<compile_context>
chip_gen: v6e
topology: v6e:2x2x1
jax: 0.10.0
libtpu: 0.0.40
codegen_flags: <defaults>
</compile_context>

<pallas_src>
import functools

import jax
import jax.numpy as jnp
import numpy as np
from jax import lax
from jax.experimental import pallas as pl
from jax.experimental.pallas import tpu as pltpu


# --------------------------------------------------------------------------- #
# helpers
# --------------------------------------------------------------------------- #
def _round_up(x, m):
    return (x + m - 1) // m * m


def _pad_to(x, axis, mult):
    rem = (-x.shape[axis]) % mult
    if rem == 0:
        return x
    pads = [(0, 0)] * x.ndim
    pads[axis] = (0, rem)
    return jnp.pad(x, pads)


# --------------------------------------------------------------------------- #
# BatchNorm2d (training-mode batch stats) -> per-channel scale / shift.
# Tiled Pallas reduction over NHW; the affine itself is folded into the first
# conv's A preparation (no normalized-activation HBM round trip).
# --------------------------------------------------------------------------- #
def _bn_stats_kernel(x_ref, w_ref, b_ref, scale_ref, shift_ref,
                     sum_ref, ssq_ref, *, count, eps):
    i = pl.program_id(0)

    @pl.when(i == 0)
    def _():
        sum_ref[...] = jnp.zeros_like(sum_ref)
        ssq_ref[...] = jnp.zeros_like(ssq_ref)

    x = x_ref[...]
    sum_ref[...] += jnp.sum(x, axis=0, keepdims=True)
    ssq_ref[...] += jnp.sum(x * x, axis=0, keepdims=True)

    @pl.when(i == pl.num_programs(0) - 1)
    def _():
        mean = sum_ref[...] / count
        var = ssq_ref[...] / count - mean * mean      # biased var (torch BN)
        inv = lax.rsqrt(var + eps)
        scale = w_ref[...] * inv
        scale_ref[...] = scale
        shift_ref[...] = b_ref[...] - mean * scale


def bn_scale_shift(x2, weight, bias, eps=1e-5):
    m, c = x2.shape
    tm = min(4096, _round_up(m, 8))                   # big tiles: ~0.35us/step
    m_pad = _round_up(m, tm)
    x_p = _pad_to(x2, 0, tm)                          # zero rows: safe (÷ true m)
    grid = (m_pad // tm,)
    scale, shift = pl.pallas_call(
        functools.partial(_bn_stats_kernel, count=float(m), eps=eps),
        out_shape=(jax.ShapeDtypeStruct((1, c), jnp.float32),
                   jax.ShapeDtypeStruct((1, c), jnp.float32)),
        grid_spec=pltpu.PrefetchScalarGridSpec(
            num_scalar_prefetch=0, grid=grid,
            in_specs=[pl.BlockSpec((tm, c), lambda i: (i, 0)),
                      pl.BlockSpec((1, c), lambda i: (0, 0)),
                      pl.BlockSpec((1, c), lambda i: (0, 0))],
            out_specs=(pl.BlockSpec((1, c), lambda i: (0, 0)),
                       pl.BlockSpec((1, c), lambda i: (0, 0))),
            scratch_shapes=[pltpu.VMEM((1, c), jnp.float32),
                            pltpu.VMEM((1, c), jnp.float32)]),
        compiler_params=pltpu.CompilerParams(
            dimension_semantics=("arbitrary",)),
        cost_estimate=pl.CostEstimate(flops=3 * m_pad * c, transcendentals=c,
                                      bytes_accessed=m_pad * c * 4 + 4 * c * 4),
    )(x_p, weight.reshape(1, c).astype(jnp.float32),
      bias.reshape(1, c).astype(jnp.float32))
    return scale, shift


# --------------------------------------------------------------------------- #
# fused 3x3 conv GEMM: dx folded into K, 3 dy taps in-kernel, f32 accumulation
# epilogues: plain act / dual (h f32 + relu(h) bf16) / fused ResBlock tail
# --------------------------------------------------------------------------- #
def _tap_acc(a_ref, w_ref, wd, th):
    """Sum of the 3 dy-tap matmuls.  a_ref: ((th+2)*wd, 3C) bf16 (halo'd tile),
    w_ref: (3, 3C, cout) bf16.  Row offsets dy*wd are multiples of 16."""
    tm = th * wd
    acc = jnp.dot(a_ref[pl.ds(0, tm), :], w_ref[0],
                  preferred_element_type=jnp.float32)
    acc = acc + jnp.dot(a_ref[pl.ds(wd, tm), :], w_ref[1],
                        preferred_element_type=jnp.float32)
    acc = acc + jnp.dot(a_ref[pl.ds(2 * wd, tm), :], w_ref[2],
                        preferred_element_type=jnp.float32)
    return acc


def _conv_act_kernel(a_ref, w_ref, b_ref, o_ref, *, wd, th, act):
    acc = _tap_acc(a_ref, w_ref, wd, th) + b_ref[...]
    if act == "relu":
        acc = jnp.maximum(acc, 0.0)
    elif act == "sigmoid":
        acc = jax.nn.sigmoid(acc)
    o_ref[...] = acc.astype(o_ref.dtype)


def _conv_dual_kernel(a_ref, w_ref, b_ref, oh_ref, or_ref, *, wd, th):
    h = _tap_acc(a_ref, w_ref, wd, th) + b_ref[...]
    oh_ref[...] = h                                    # f32 (residual path)
    or_ref[...] = jnp.maximum(h, 0.0).astype(or_ref.dtype)   # bf16 (next conv A)


def _conv_res_kernel(a_ref, w_ref, b_ref, w1_ref, b1_ref, r_ref,
                     oh_ref, or_ref, *, wd, th):
    # fused ResBlock: h_out = r + relu(conv3x3(a)+b) @ w1 + b1
    t = jnp.maximum(_tap_acc(a_ref, w_ref, wd, th) + b_ref[...], 0.0)
    h = (r_ref[...]
         + jnp.dot(t.astype(jnp.bfloat16), w1_ref[...],
                   preferred_element_type=jnp.float32)
         + b1_ref[...])
    oh_ref[...] = h
    or_ref[...] = jnp.maximum(h, 0.0).astype(or_ref.dtype)


def _prep_conv_input(x_hwc, th, wp):
    """(H, W, C) -> (n_tiles, (th+2)*wp, 3C) bf16.
    One fused XLA copy: bf16 cast + zero halo + dx channel-concat + dy halo
    tiling (overlap (th+2)/th ~ 1.0-1.25x)."""
    h, w, c = x_hwc.shape
    h_t = _round_up(h, th)
    n_t = h_t // th
    xp = jnp.pad(x_hwc.astype(jnp.bfloat16),
                 ((1, h_t - h + 1), (1, wp - w + 1), (0, 0)))   # (h_t+2, wp+2, C)
    x3 = jnp.concatenate([xp[:, 0:wp, :], xp[:, 1:wp + 1, :], xp[:, 2:wp + 2, :]],
                         axis=-1)                               # (h_t+2, wp, 3C)
    tiles = jnp.stack([x3[i * th:i * th + th + 2] for i in range(n_t)], axis=0)
    return tiles.reshape(n_t, (th + 2) * wp, 3 * c)


def conv3x3(x_hwc, w_oihw, b, *, mode="act", act="none",
            out_dtype=jnp.float32, w1=None, b1=None, residual=None,
            target_rows=2048):
    """3x3 'same' conv as one gridded Pallas GEMM.
      mode="act" : act(conv(x)+b)                           -> (H, W, cout)
      mode="dual": (conv(x)+b [f32], relu(...) [bf16])
      mode="res" : fused ResBlock h = r + relu(conv(x)+b)@w1 + b1
                   -> (h [f32], relu(h) [bf16])
    """
    hgt, wid, cin = x_hwc.shape
    cout = w_oihw.shape[0]
    wp = _round_up(wid, 16)                 # aligned row stride (bf16 tile = 16)
    th = max(1, min(hgt, target_rows // wp))
    h_t = _round_up(hgt, th)
    n_t = h_t // th
    tm = th * wp

    a = _prep_conv_input(x_hwc, th, wp)                          # bf16
    wm = jnp.stack(
        [jnp.transpose(w_oihw[:, :, dy, :], (2, 1, 0)).reshape(3 * cin, cout)
         for dy in range(3)], axis=0).astype(jnp.bfloat16)       # (3, 3C, cout)
    b2 = b.reshape(1, cout).astype(jnp.float32)

    a_spec = pl.BlockSpec((None, (th + 2) * wp, 3 * cin), lambda i: (i, 0, 0))
    w_spec = pl.BlockSpec((3, 3 * cin, cout), lambda i: (0, 0, 0))
    b_spec = pl.BlockSpec((1, cout), lambda i: (0, 0))

    cparams = pltpu.CompilerParams(dimension_semantics=("parallel",),
                                   vmem_limit_bytes=32 * 1024 * 1024)
    flops = 2 * n_t * tm * (9 * cin) * cout

    def _crop(o, c_last):
        return o.reshape(h_t, wp, c_last)[:hgt, :wid, :]

    if mode == "act":
        o_spec = pl.BlockSpec((None, tm, cout), lambda i: (i, 0, 0))
        out = pl.pallas_call(
            functools.partial(_conv_act_kernel, wd=wp, th=th, act=act),
            out_shape=jax.ShapeDtypeStruct((n_t, tm, cout), out_dtype),
            grid_spec=pltpu.PrefetchScalarGridSpec(
                num_scalar_prefetch=0, grid=(n_t,),
                in_specs=[a_spec, w_spec, b_spec], out_specs=o_spec),
            compiler_params=cparams,
            cost_estimate=pl.CostEstimate(
                flops=flops,
                transcendentals=(n_t * tm * cout if act == "sigmoid" else 0),
                bytes_accessed=a.size * 2 + wm.size * 2 + n_t * tm * cout * 4),
        )(a, wm, b2)
        return _crop(out, cout)

    if mode == "dual":
        o_spec = pl.BlockSpec((None, tm, cout), lambda i: (i, 0, 0))
        h_out, r_out = pl.pallas_call(
            functools.partial(_conv_dual_kernel, wd=wp, th=th),
            out_shape=(jax.ShapeDtypeStruct((n_t, tm, cout), jnp.float32),
                       jax.ShapeDtypeStruct((n_t, tm, cout), jnp.bfloat16)),
            grid_spec=pltpu.PrefetchScalarGridSpec(
                num_scalar_prefetch=0, grid=(n_t,),
                in_specs=[a_spec, w_spec, b_spec],
                out_specs=(o_spec, o_spec)),
            compiler_params=cparams,
            cost_estimate=pl.CostEstimate(
                flops=flops, transcendentals=0,
                bytes_accessed=a.size * 2 + wm.size * 2 + n_t * tm * cout * 6),
        )(a, wm, b2)
        return _crop(h_out, cout), _crop(r_out, cout)

    # mode == "res" : fused ResBlock tail
    cres = w1.shape[1]                                           # 128
    w1b = w1.astype(jnp.bfloat16)
    b1b = b1.reshape(1, cres).astype(jnp.float32)
    r_in = jnp.pad(residual, ((0, h_t - hgt), (0, wp - wid), (0, 0)))
    r_in = r_in.reshape(n_t, tm, cres)

    w1_spec = pl.BlockSpec(w1.shape, lambda i: (0, 0))
    b1_spec = pl.BlockSpec((1, cres), lambda i: (0, 0))
    r_spec = pl.BlockSpec((None, tm, cres), lambda i: (i, 0, 0))
    o_spec = pl.BlockSpec((None, tm, cres), lambda i: (i, 0, 0))

    h_out, r_out = pl.pallas_call(
        functools.partial(_conv_res_kernel, wd=wp, th=th),
        out_shape=(jax.ShapeDtypeStruct((n_t, tm, cres), jnp.float32),
                   jax.ShapeDtypeStruct((n_t, tm, cres), jnp.bfloat16)),
        grid_spec=pltpu.PrefetchScalarGridSpec(
            num_scalar_prefetch=0, grid=(n_t,),
            in_specs=[a_spec, w_spec, b_spec, w1_spec, b1_spec, r_spec],
            out_specs=(o_spec, o_spec)),
        compiler_params=cparams,
        cost_estimate=pl.CostEstimate(
            flops=flops + 2 * n_t * tm * cout * cres, transcendentals=0,
            bytes_accessed=(a.size * 2 + wm.size * 2 + r_in.size * 4
                            + n_t * tm * cres * 6)),
    )(a, wm, b2, w1b, b1b, r_in)
    return _crop(h_out, cres), _crop(r_out, cres)


# --------------------------------------------------------------------------- #
# ConvTranspose2d(k=4,s=2,p=1) -> equivalent 3x3 conv with 4*Cout phases
# --------------------------------------------------------------------------- #
def _convt4s2p1_as_conv3x3(w_t):
    cin, cout = w_t.shape[:2]
    w_eq = jnp.zeros((2, 2, cout, cin, 3, 3), w_t.dtype)
    for py in range(2):
        for px in range(2):
            for ty in (py, py + 1):
                for tx in (px, px + 1):
                    ky, kx = 3 + py - 2 * ty, 3 + px - 2 * tx
                    w_eq = w_eq.at[py, px, :, :, ty, tx].set(w_t[:, :, ky, kx].T)
    return w_eq.reshape(4 * cout, cin, 3, 3)


# --------------------------------------------------------------------------- #
# VQ-VAE-2 style decoder (Conv, 2x ResBlock, ReLU, ConvT, ReLU, ConvT, Sigmoid)
# --------------------------------------------------------------------------- #
def init_decoder_params(key, out_ch):
    C, NRC = 128, 32

    def conv_w(kk_, cout, cin, ksz):
        return (jax.random.normal(kk_, (cout, cin, ksz, ksz), jnp.float32)
                / jnp.sqrt(cin * ksz * ksz))

    def convt_w(kk_, cin, cout, ksz):
        return (jax.random.normal(kk_, (cin, cout, ksz, ksz), jnp.float32)
                / jnp.sqrt(cin * ksz * ksz))

    ks = jax.random.split(key, 7)
    wt1 = convt_w(ks[5], C, C // 2, 4)
    wt2 = convt_w(ks[6], C // 2, out_ch, 4)
    return {
        "w0": conv_w(ks[0], C, C, 3), "b0": jnp.zeros((C,), jnp.float32),
        "w1a": conv_w(ks[1], NRC, C, 3), "b1a": jnp.zeros((NRC,), jnp.float32),
        "w1b": conv_w(ks[2], C, NRC, 1), "b1b": jnp.zeros((C,), jnp.float32),
        "w2a": conv_w(ks[3], NRC, C, 3), "b2a": jnp.zeros((NRC,), jnp.float32),
        "w2b": conv_w(ks[4], C, NRC, 1), "b2b": jnp.zeros((C,), jnp.float32),
        # raw ConvT weights (kept for the pure-JAX reference check)
        "wt1": wt1, "bt1": jnp.zeros((C // 2,), jnp.float32),
        "wt2": wt2, "bt2": jnp.zeros((out_ch,), jnp.float32),
        # pre-converted sub-pixel equivalents (3x3 conv, 4*Cout phase channels)
        "wt1_eq": _convt4s2p1_as_conv3x3(wt1),
        "bt1_eq": jnp.tile(jnp.zeros((C // 2,), jnp.float32), 4),
        "wt2_eq": _convt4s2p1_as_conv3x3(wt2),
        "bt2_eq": jnp.tile(jnp.zeros((out_ch,), jnp.float32), 4),
    }


def decoder_forward(z_nchw, bn_w, bn_b, p):
    C, NRC = 128, 32
    n, _, h, w = z_nchw.shape
    assert n == 1
    x_hwc = jnp.transpose(z_nchw[0], (1, 2, 0))                  # (h, w, 128)

    # BatchNorm2d (batch stats) -> (1,C) scale/shift; the affine + bf16 cast
    # fuse into the first conv's A-prep copy (no extra HBM round trip).
    scale, shift = bn_scale_shift(x_hwc.reshape(h * w, C), bn_w, bn_b)
    x_bn = x_hwc * scale.reshape(1, 1, C) + shift.reshape(1, 1, C)

    # Conv2d(128,128,3,p=1): emits f32 h (residual) + bf16 relu(h) (next A).
    h0, r0 = conv3x3(x_bn, p["w0"], p["b0"], mode="dual")

    def resblock(h_prev, relu_prev, wa, ba, wb, bb):
        w1 = jnp.transpose(wb.reshape(C, NRC))                   # (32, 128)
        return conv3x3(relu_prev, wa, ba, mode="res",
                       w1=w1, b1=bb, residual=h_prev)

    h1, r1 = resblock(h0, r0, p["w1a"], p["b1a"], p["w1b"], p["b1b"])
    _, r2 = resblock(h1, r1, p["w2a"], p["b2a"], p["w2b"], p["b2b"])

    # ReLU -> ConvT(128->64,4,2,1) -> ReLU : sub-pixel 3x3 conv to 4*64 phases,
    # bf16 epilogue; the pixel shuffle fuses into the next layer's A-prep copy.
    c1 = p["wt1_eq"].shape[0] // 4
    y1 = conv3x3(r2, p["wt1_eq"], p["bt1_eq"], mode="act", act="relu",
                 out_dtype=jnp.bfloat16)                         # (h, w, 256)
    y1 = y1.reshape(h, w, 2, 2, c1).transpose(0, 2, 1, 3, 4)
    y1 = y1.reshape(2 * h, 2 * w, c1)                            # (2h, 2w, 64)

    # ConvT(64->out_ch,4,2,1) -> Sigmoid
    c2 = p["wt2_eq"].shape[0] // 4
    y2 = conv3x3(y1, p["wt2_eq"], p["bt2_eq"], mode="act", act="sigmoid",
                 out_dtype=jnp.float32)                          # (2h, 2w, 4*c2)
    y2 = y2.reshape(2 * h, 2 * w, 2, 2, c2).transpose(0, 2, 1, 3, 4)
    return y2.reshape(1, 4 * h, 4 * w, c2)


# --------------------------------------------------------------------------- #
# final compose kernel: clamp, illum**sigmoid(gamma), products  (lane-tiled)
# --------------------------------------------------------------------------- #
def _compose_kernel(reflect_ref, illum_ref, gamma_ref,
                    illum_out_ref, illum_en_ref, image_out_ref, image_en_ref):
    illum = jnp.maximum(illum_ref[...], 0.0)            # .clamp(min=0.0)
    reflect = reflect_ref[...]
    g = jax.nn.sigmoid(gamma_ref[0])
    illum_en = jnp.where(illum > 0.0,
                         jnp.exp(g * jnp.log(jnp.maximum(illum, 1e-38))),
                         0.0)
    illum_out_ref[...] = illum
    illum_en_ref[...] = illum_en
    image_out_ref[...] = reflect * illum                # (1,T) -> (C,T) broadcast
    image_en_ref[...] = reflect * illum_en


def compose(reflect_nchw, illum_nchw, gamma):
    n, c, h, w = reflect_nchw.shape
    hw = h * w
    t = 16384 if hw >= 16384 else _round_up(hw, 128)
    hw_pad = _round_up(hw, t)
    reflect2 = _pad_to(reflect_nchw.reshape(c, hw), 1, t)
    illum2 = _pad_to(illum_nchw.reshape(1, hw), 1, t)
    spec_c = pl.BlockSpec((c, t), lambda i: (0, i))
    spec_1 = pl.BlockSpec((1, t), lambda i: (0, i))
    outs = pl.pallas_call(
        _compose_kernel,
        out_shape=(jax.ShapeDtypeStruct((1, hw_pad), jnp.float32),
                   jax.ShapeDtypeStruct((1, hw_pad), jnp.float32),
                   jax.ShapeDtypeStruct((c, hw_pad), jnp.float32),
                   jax.ShapeDtypeStruct((c, hw_pad), jnp.float32)),
        grid_spec=pltpu.PrefetchScalarGridSpec(
            num_scalar_prefetch=0, grid=(hw_pad // t,),
            in_specs=[spec_c, spec_1,
                      pl.BlockSpec(memory_space=pltpu.MemorySpace.SMEM)],
            out_specs=(spec_1, spec_1, spec_c, spec_c)),
        compiler_params=pltpu.CompilerParams(dimension_semantics=("parallel",)),
        cost_estimate=pl.CostEstimate(flops=(3 * c + 4) * hw_pad,
                                      transcendentals=3 * hw_pad,
                                      bytes_accessed=(3 * c + 3) * hw_pad * 4),
    )(reflect2, illum2, gamma.reshape(1).astype(jnp.float32))
    illum_out, illum_en, image_out, image_en = outs
    return (illum_out[:, :hw].reshape(n, 1, h, w),
            illum_en[:, :hw].reshape(n, 1, h, w),
            image_out[:, :hw].reshape(n, c, h, w),
            image_en[:, :hw].reshape(n, c, h, w))


# --------------------------------------------------------------------------- #
# EngineModule forward
# --------------------------------------------------------------------------- #
@jax.jit
def engine_forward(reflect_inputs, illum_inputs, gamma,
                   bn_w, bn_b, bn_ill_w, bn_ill_b,
                   reflect_params, illum_params):
    illum_nhwc = decoder_forward(illum_inputs, bn_ill_w, bn_ill_b, illum_params)
    reflect_nhwc = decoder_forward(reflect_inputs, bn_w, bn_b, reflect_params)
    reflect_out = jnp.transpose(reflect_nhwc, (0, 3, 1, 2))      # (1,3,H,W)
    illum_raw = jnp.transpose(illum_nhwc, (0, 3, 1, 2))          # (1,1,H,W)
    illum_out, illum_en, image_out, image_en = compose(reflect_out, illum_raw,
                                                       gamma)
    return illum_out, illum_en, reflect_out, image_out, image_en, gamma


class EngineModulePallas:
    def __init__(self, image, key):
        # image: (3, H, W), H/W multiples of 4 (stand-in for prepare_image output)
        _, h, w = image.shape
        mean, std = jnp.mean(image), jnp.std(image)
        ks = jax.random.split(key, 5)
        self.reflect_net_inputs = (jax.random.normal(
            ks[0], (1, 128, h // 4, w // 4), jnp.float32) * std + mean)
        self.illum_net_inputs = (jax.random.normal(
            ks[1], (1, 128, h // 4, w // 4), jnp.float32) * std + mean)
        self.gamma = jax.random.normal(ks[2], (1,), jnp.float32)
        # BatchNorm2d(128) default affine init (weight=1, bias=0)
        self.bn_w = jnp.ones((128,), jnp.float32)
        self.bn_b = jnp.zeros((128,), jnp.float32)
        self.bn_ill_w = jnp.ones((128,), jnp.float32)
        self.bn_ill_b = jnp.zeros((128,), jnp.float32)
        self.reflect_params = init_decoder_params(ks[3], out_ch=3)
        self.illum_params = init_decoder_params(ks[4], out_ch=1)

    def forward(self):
        return engine_forward(self.reflect_net_inputs, self.illum_net_inputs,
                              self.gamma, self.bn_w, self.bn_b,
                              self.bn_ill_w, self.bn_ill_b,
                              self.reflect_params, self.illum_params)


# --------------------------------------------------------------------------- #
# pure-JAX f32 reference (numeric sanity check of the Pallas path)
# --------------------------------------------------------------------------- #
def _ref_conv(x, w, b, pad):
    y = lax.conv_general_dilated(x, w, (1, 1), ((pad, pad), (pad, pad)),
                                 dimension_numbers=("NCHW", "OIHW", "NCHW"))
    return y + b.reshape(1, -1, 1, 1)


def _ref_convt(x, w_t, b):       # ConvTranspose2d(k=4, s=2, p=1)
    w_conv = jnp.flip(w_t, (2, 3)).transpose(1, 0, 2, 3)
    y = lax.conv_general_dilated(x, w_conv, (1, 1), ((2, 2), (2, 2)),
                                 lhs_dilation=(2, 2),
                                 dimension_numbers=("NCHW", "OIHW", "NCHW"))
    return y + b.reshape(1, -1, 1, 1)


def _ref_decoder(z, bn_w, bn_b, p):
    mean = jnp.mean(z, axis=(0, 2, 3), keepdims=True)
    var = jnp.mean((z - mean) ** 2, axis=(0, 2, 3), keepdims=True)
    x = ((z - mean) * lax.rsqrt(var + 1e-5) * bn_w.reshape(1, -1, 1, 1)
         + bn_b.reshape(1, -1, 1, 1))
    h = _ref_conv(x, p["w0"], p["b0"], 1)
    for i in (1, 2):
        t = jax.nn.relu(_ref_conv(jax.nn.relu(h), p[f"w{i}a"], p[f"b{i}a"], 1))
        h = h + _ref_conv(t, p[f"w{i}b"], p[f"b{i}b"], 0)
    h = jax.nn.relu(_ref_convt(jax.nn.relu(h), p["wt1"], p["bt1"]))
    return jax.nn.sigmoid(_ref_convt(h, p["wt2"], p["bt2"]))


def _ref_forward(mod):
    illum = jnp.maximum(_ref_decoder(mod.illum_net_inputs, mod.bn_ill_w,
                                     mod.bn_ill_b, mod.illum_params), 0.0)
    reflect = _ref_decoder(mod.reflect_net_inputs, mod.bn_w, mod.bn_b,
                           mod.reflect_params)
    g = jax.nn.sigmoid(mod.gamma)
    illum_en = illum ** g
    return illum, illum_en, reflect, reflect * illum, reflect * illum_en


if __name__ == "__main__":
    key = jax.random.PRNGKey(0)
    k_img, k_mod = jax.random.split(key)
    image = jax.random.uniform(k_img, (3, 16, 16), jnp.float32)  # small synthetic
    mod = EngineModulePallas(image, k_mod)
    outs = mod.forward()
    for o in outs:
        jax.block_until_ready(o)

    # shape sanity (matches the torch module at this image size)
    assert outs[0].shape == (1, 1, 16, 16)   # illum_out
    assert outs[1].shape == (1, 1, 16, 16)   # illum_en
    assert outs[2].shape == (1, 3, 16, 16)   # reflect_out
    assert outs[3].shape == (1, 3, 16, 16)   # image_out
    assert outs[4].shape == (1, 3, 16, 16)   # image_en
    assert outs[5].shape == (1,)             # gamma

    # numeric sanity vs a pure-JAX f32 reference (bf16 MXU path => loose tol)
    ref = _ref_forward(mod)
    for got, want in zip(outs[:5], ref):
        np.testing.assert_allclose(np.asarray(got), np.asarray(want),
                                   rtol=0.1, atol=0.1)
    print("KERNEL_OK")
</pallas_src>

<mosaic_0001>
module attributes {stable_mosaic.version = 11 : i64} {
  func.func @_bn_stats_kernel(%arg0: i32, %arg1: memref<16x128xf32, #tpu.memory_space<vmem>>, %arg2: memref<1x128xf32, #tpu.memory_space<vmem>>, %arg3: memref<1x128xf32, #tpu.memory_space<vmem>>, %arg4: memref<1x128xf32, #tpu.memory_space<vmem>>, %arg5: memref<1x128xf32, #tpu.memory_space<vmem>>, %arg6: memref<1x128xf32, #tpu.memory_space<vmem>>, %arg7: memref<1x128xf32, #tpu.memory_space<vmem>>) attributes {dimension_semantics = [#tpu.dimension_semantics<arbitrary>], iteration_bounds = array<i64: 1>, scalar_prefetch = 0 : i64, scratch_operands = 2 : i64, tpu.core_type = #tpu.core_type<tc>, window_params = [{transform_indices = @transform_0, window_bounds = array<i64: 16, 128>}, {pipeline_mode = #tpu.pipeline_mode<synchronous>, transform_indices = @transform_1, window_bounds = array<i64: 1, 128>}, {pipeline_mode = #tpu.pipeline_mode<synchronous>, transform_indices = @transform_2, window_bounds = array<i64: 1, 128>}, {pipeline_mode = #tpu.pipeline_mode<synchronous>, transform_indices = @transform_3, window_bounds = array<i64: 1, 128>}, {pipeline_mode = #tpu.pipeline_mode<synchronous>, transform_indices = @transform_4, window_bounds = array<i64: 1, 128>}]} {
    %c0_i32 = arith.constant 0 : i32
    %0 = arith.cmpi eq, %arg0, %c0_i32 : i32
    %1 = arith.extui %0 : i1 to i32
    %c0_i32_0 = arith.constant 0 : i32
    %2 = arith.cmpi ne, %1, %c0_i32_0 : i32
    scf.if %2 {
      %cst_13 = arith.constant 0.000000e+00 : f32
      %18 = vector.broadcast %cst_13 : f32 to vector<1x128xf32>
      %c0_14 = arith.constant 0 : index
      %c0_15 = arith.constant 0 : index
      %19 = vector.load %arg6[%c0_14, %c0_15] : memref<1x128xf32, #tpu.memory_space<vmem>>, vector<1x128xf32>
      tpu.vector_store %arg6[%c0_14, %c0_15], %18 {strides = array<i32>} : memref<1x128xf32, #tpu.memory_space<vmem>>, vector<1x128xf32>,
      %cst_16 = arith.constant 0.000000e+00 : f32
      %20 = vector.broadcast %cst_16 : f32 to vector<1x128xf32>
      %c0_17 = arith.constant 0 : index
      %c0_18 = arith.constant 0 : index
      %21 = vector.load %arg7[%c0_17, %c0_18] : memref<1x128xf32, #tpu.memory_space<vmem>>, vector<1x128xf32>
      tpu.vector_store %arg7[%c0_17, %c0_18], %20 {strides = array<i32>} : memref<1x128xf32, #tpu.memory_space<vmem>>, vector<1x128xf32>,
    } else {
    }
    %c0 = arith.constant 0 : index
    %c0_1 = arith.constant 0 : index
    %3 = vector.load %arg1[%c0, %c0_1] : memref<16x128xf32, #tpu.memory_space<vmem>>, vector<16x128xf32>
    %c0_2 = arith.constant 0 : index
    %c0_3 = arith.constant 0 : index
    %4 = vector.load %arg6[%c0_2, %c0_3] : memref<1x128xf32, #tpu.memory_space<vmem>>, vector<1x128xf32>
    %cst = arith.constant dense<0.000000e+00> : vector<128xf32>
    %5 = vector.multi_reduction <add>, %3, %cst [0] : vector<16x128xf32> to vector<128xf32>
    %6 = vector.shape_cast %5 : vector<128xf32> to vector<1x128xf32>
    %7 = arith.addf %4, %6 : vector<1x128xf32>
    %c0_4 = arith.constant 0 : index
    %c0_5 = arith.constant 0 : index
    %8 = vector.load %arg6[%c0_4, %c0_5] : memref<1x128xf32, #tpu.memory_space<vmem>>, vector<1x128xf32>
    tpu.vector_store %arg6[%c0_4, %c0_5], %7 {strides = array<i32>} : memref<1x128xf32, #tpu.memory_space<vmem>>, vector<1x128xf32>,
    %c0_6 = arith.constant 0 : index
    %c0_7 = arith.constant 0 : index
    %9 = vector.load %arg7[%c0_6, %c0_7] : memref<1x128xf32, #tpu.memory_space<vmem>>, vector<1x128xf32>
    %10 = arith.mulf %3, %3 : vector<16x128xf32>
    %cst_8 = arith.constant dense<0.000000e+00> : vector<128xf32>
    %11 = vector.multi_reduction <add>, %10, %cst_8 [0] : vector<16x128xf32> to vector<128xf32>
    %12 = vector.shape_cast %11 : vector<128xf32> to vector<1x128xf32>
    %13 = arith.addf %9, %12 : vector<1x128xf32>
    %c0_9 = arith.constant 0 : index
    %c0_10 = arith.constant 0 : index
    %14 = vector.load %arg7[%c0_9, %c0_10] : memref<1x128xf32, #tpu.memory_space<vmem>>, vector<1x128xf32>
    tpu.vector_store %arg7[%c0_9, %c0_10], %13 {strides = array<i32>} : memref<1x128xf32, #tpu.memory_space<vmem>>, vector<1x128xf32>,
    %c0_i32_11 = arith.constant 0 : i32
    %15 = arith.cmpi eq, %arg0, %c0_i32_11 : i32
    %16 = arith.extui %15 : i1 to i32
    %c0_i32_12 = arith.constant 0 : i32
    %17 = arith.cmpi ne, %16, %c0_i32_12 : i32
    scf.if %17 {
      %c0_13 = arith.constant 0 : index
      %c0_14 = arith.constant 0 : index
      %18 = vector.load %arg6[%c0_13, %c0_14] : memref<1x128xf32, #tpu.memory_space<vmem>>, vector<1x128xf32>
      %cst_15 = arith.constant 1.600000e+01 : f32
      %19 = vector.broadcast %cst_15 : f32 to vector<1x128xf32>
      %20 = arith.divf %18, %19 : vector<1x128xf32>
      %c0_16 = arith.constant 0 : index
      %c0_17 = arith.constant 0 : index
      %21 = vector.load %arg7[%c0_16, %c0_17] : memref<1x128xf32, #tpu.memory_space<vmem>>, vector<1x128xf32>
      %cst_18 = arith.constant 1.600000e+01 : f32
      %22 = vector.broadcast %cst_18 : f32 to vector<1x128xf32>
      %23 = arith.divf %21, %22 : vector<1x128xf32>
      %24 = arith.mulf %20, %20 : vector<1x128xf32>
      %25 = arith.subf %23, %24 : vector<1x128xf32>
      %cst_19 = arith.constant 9.99999974E-6 : f32
      %26 = vector.broadcast %cst_19 : f32 to vector<1x128xf32>
      %27 = arith.addf %25, %26 : vector<1x128xf32>
      %28 = math.rsqrt %27 : vector<1x128xf32>
      %c0_20 = arith.constant 0 : index
      %c0_21 = arith.constant 0 : index
      %29 = vector.load %arg2[%c0_20, %c0_21] : memref<1x128xf32, #tpu.memory_space<vmem>>, vector<1x128xf32>
      %30 = arith.mulf %29, %28 : vector<1x128xf32>
      %c0_22 = arith.constant 0 : index
      %c0_23 = arith.constant 0 : index
      %31 = vector.load %arg4[%c0_22, %c0_23] : memref<1x128xf32, #tpu.memory_space<vmem>>, vector<1x128xf32>
      tpu.vector_store %arg4[%c0_22, %c0_23], %30 {strides = array<i32>} : memref<1x128xf32, #tpu.memory_space<vmem>>, vector<1x128xf32>,
      %c0_24 = arith.constant 0 : index
      %c0_25 = arith.constant 0 : index
      %32 = vector.load %arg3[%c0_24, %c0_25] : memref<1x128xf32, #tpu.memory_space<vmem>>, vector<1x128xf32>
      %33 = arith.mulf %20, %30 : vector<1x128xf32>
      %34 = arith.subf %32, %33 : vector<1x128xf32>
      %c0_26 = arith.constant 0 : index
      %c0_27 = arith.constant 0 : index
      %35 = vector.load %arg5[%c0_26, %c0_27] : memref<1x128xf32, #tpu.memory_space<vmem>>, vector<1x128xf32>
      tpu.vector_store %arg5[%c0_26, %c0_27], %34 {strides = array<i32>} : memref<1x128xf32, #tpu.memory_space<vmem>>, vector<1x128xf32>,
    } else {
    }
    return
  }
  func.func @transform_0(%arg0: i32) -> (i32, i32) {
    %c0_i32 = arith.constant 0 : i32
    %c0_i32_0 = arith.constant 0 : i32
    return %arg0, %c0_i32 : i32, i32
  }
  func.func @transform_1(%arg0: i32) -> (i32, i32) {
    %c0_i32 = arith.constant 0 : i32
    %c0_i32_0 = arith.constant 0 : i32
    %c0_i32_1 = arith.constant 0 : i32
    return %c0_i32, %c0_i32_0 : i32, i32
  }
  func.func @transform_2(%arg0: i32) -> (i32, i32) {
    %c0_i32 = arith.constant 0 : i32
    %c0_i32_0 = arith.constant 0 : i32
    %c0_i32_1 = arith.constant 0 : i32
    return %c0_i32, %c0_i32_0 : i32, i32
  }
  func.func @transform_3(%arg0: i32) -> (i32, i32) {
    %c0_i32 = arith.constant 0 : i32
    %c0_i32_0 = arith.constant 0 : i32
    %c0_i32_1 = arith.constant 0 : i32
    return %c0_i32, %c0_i32_0 : i32, i32
  }
  func.func @transform_4(%arg0: i32) -> (i32, i32) {
    %c0_i32 = arith.constant 0 : i32
    %c0_i32_0 = arith.constant 0 : i32
    %c0_i32_1 = arith.constant 0 : i32
    return %c0_i32, %c0_i32_0 : i32, i32
  }
}

module attributes {stable_mosaic.version = 11 : i64} {
  func.func @_bn_stats_kernel(%arg0: i32, %arg1: memref<16x128xf32, #tpu.memory_space<vmem>>, %arg2: memref<1x128xf32, #tpu.memory_space<vmem>>, %arg3: memref<1x128xf32, #tpu.memory_space<vmem>>, %arg4: memref<1x128xf32, #tpu.memory_space<vmem>>, %arg5: memref<1x128xf32, #tpu.memory_space<vmem>>, %arg6: memref<1x128xf32, #tpu.memory_space<vmem>>, %arg7: memref<1x128xf32, #tpu.memory_space<vmem>>) attributes {dimension_semantics = [#tpu.dimension_semantics<arbitrary>], iteration_bounds = array<i64: 1>, scalar_prefetch = 0 : i64, scratch_operands = 2 : i64, tpu.core_type = #tpu.core_type<tc>, window_params = [{transform_indices = @transform_0, window_bounds = array<i64: 16, 128>}, {pipeline_mode = #tpu.pipeline_mode<synchronous>, transform_indices = @transform_1, window_bounds = array<i64: 1, 128>}, {pipeline_mode = #tpu.pipeline_mode<synchronous>, transform_indices = @transform_2, window_bounds = array<i64: 1, 128>}, {pipeline_mode = #tpu.pipeline_mode<synchronous>, transform_indices = @transform_3, window_bounds = array<i64: 1, 128>}, {pipeline_mode = #tpu.pipeline_mode<synchronous>, transform_indices = @transform_4, window_bounds = array<i64: 1, 128>}]} {
    %c0_i32 = arith.constant 0 : i32
    %0 = arith.cmpi eq, %arg0, %c0_i32 : i32
    %1 = arith.extui %0 : i1 to i32
    %c0_i32_0 = arith.constant 0 : i32
    %2 = arith.cmpi ne, %1, %c0_i32_0 : i32
    scf.if %2 {
      %cst_13 = arith.constant 0.000000e+00 : f32
      %18 = vector.broadcast %cst_13 : f32 to vector<1x128xf32>
      %c0_14 = arith.constant 0 : index
      %c0_15 = arith.constant 0 : index
      %19 = vector.load %arg6[%c0_14, %c0_15] : memref<1x128xf32, #tpu.memory_space<vmem>>, vector<1x128xf32>
      tpu.vector_store %arg6[%c0_14, %c0_15], %18 {strides = array<i32>} : memref<1x128xf32, #tpu.memory_space<vmem>>, vector<1x128xf32>,
      %cst_16 = arith.constant 0.000000e+00 : f32
      %20 = vector.broadcast %cst_16 : f32 to vector<1x128xf32>
      %c0_17 = arith.constant 0 : index
      %c0_18 = arith.constant 0 : index
      %21 = vector.load %arg7[%c0_17, %c0_18] : memref<1x128xf32, #tpu.memory_space<vmem>>, vector<1x128xf32>
      tpu.vector_store %arg7[%c0_17, %c0_18], %20 {strides = array<i32>} : memref<1x128xf32, #tpu.memory_space<vmem>>, vector<1x128xf32>,
    } else {
    }
    %c0 = arith.constant 0 : index
    %c0_1 = arith.constant 0 : index
    %3 = vector.load %arg1[%c0, %c0_1] : memref<16x128xf32, #tpu.memory_space<vmem>>, vector<16x128xf32>
    %c0_2 = arith.constant 0 : index
    %c0_3 = arith.constant 0 : index
    %4 = vector.load %arg6[%c0_2, %c0_3] : memref<1x128xf32, #tpu.memory_space<vmem>>, vector<1x128xf32>
    %cst = arith.constant dense<0.000000e+00> : vector<128xf32>
    %5 = vector.multi_reduction <add>, %3, %cst [0] : vector<16x128xf32> to vector<128xf32>
    %6 = vector.shape_cast %5 : vector<128xf32> to vector<1x128xf32>
    %7 = arith.addf %4, %6 : vector<1x128xf32>
    %c0_4 = arith.constant 0 : index
    %c0_5 = arith.constant 0 : index
    %8 = vector.load %arg6[%c0_4, %c0_5] : memref<1x128xf32, #tpu.memory_space<vmem>>, vector<1x128xf32>
    tpu.vector_store %arg6[%c0_4, %c0_5], %7 {strides = array<i32>} : memref<1x128xf32, #tpu.memory_space<vmem>>, vector<1x128xf32>,
    %c0_6 = arith.constant 0 : index
    %c0_7 = arith.constant 0 : index
    %9 = vector.load %arg7[%c0_6, %c0_7] : memref<1x128xf32, #tpu.memory_space<vmem>>, vector<1x128xf32>
    %10 = arith.mulf %3, %3 : vector<16x128xf32>
    %cst_8 = arith.constant dense<0.000000e+00> : vector<128xf32>
    %11 = vector.multi_reduction <add>, %10, %cst_8 [0] : vector<16x128xf32> to vector<128xf32>
    %12 = vector.shape_cast %11 : vector<128xf32> to vector<1x128xf32>
    %13 = arith.addf %9, %12 : vector<1x128xf32>
    %c0_9 = arith.constant 0 : index
    %c0_10 = arith.constant 0 : index
    %14 = vector.load %arg7[%c0_9, %c0_10] : memref<1x128xf32, #tpu.memory_space<vmem>>, vector<1x128xf32>
    tpu.vector_store %arg7[%c0_9, %c0_10], %13 {strides = array<i32>} : memref<1x128xf32, #tpu.memory_space<vmem>>, vector<1x128xf32>,
    %c0_i32_11 = arith.constant 0 : i32
    %15 = arith.cmpi eq, %arg0, %c0_i32_11 : i32
    %16 = arith.extui %15 : i1 to i32
    %c0_i32_12 = arith.constant 0 : i32
    %17 = arith.cmpi ne, %16, %c0_i32_12 : i32
    scf.if %17 {
      %c0_13 = arith.constant 0 : index
      %c0_14 = arith.constant 0 : index
      %18 = vector.load %arg6[%c0_13, %c0_14] : memref<1x128xf32, #tpu.memory_space<vmem>>, vector<1x128xf32>
      %cst_15 = arith.constant 1.600000e+01 : f32
      %19 = vector.broadcast %cst_15 : f32 to vector<1x128xf32>
      %20 = arith.divf %18, %19 : vector<1x128xf32>
      %c0_16 = arith.constant 0 : index
      %c0_17 = arith.constant 0 : index
      %21 = vector.load %arg7[%c0_16, %c0_17] : memref<1x128xf32, #tpu.memory_space<vmem>>, vector<1x128xf32>
      %cst_18 = arith.constant 1.600000e+01 : f32
      %22 = vector.broadcast %cst_18 : f32 to vector<1x128xf32>
      %23 = arith.divf %21, %22 : vector<1x128xf32>
      %24 = arith.mulf %20, %20 : vector<1x128xf32>
      %25 = arith.subf %23, %24 : vector<1x128xf32>
      %cst_19 = arith.constant 9.99999974E-6 : f32
      %26 = vector.broadcast %cst_19 : f32 to vector<1x128xf32>
      %27 = arith.addf %25, %26 : vector<1x128xf32>
      %28 = math.rsqrt %27 : vector<1x128xf32>
      %c0_20 = arith.constant 0 : index
      %c0_21 = arith.constant 0 : index
      %29 = vector.load %arg2[%c0_20, %c0_21] : memref<1x128xf32, #tpu.memory_space<vmem>>, vector<1x128xf32>
      %30 = arith.mulf %29, %28 : vector<1x128xf32>
      %c0_22 = arith.constant 0 : index
      %c0_23 = arith.constant 0 : index
      %31 = vector.load %arg4[%c0_22, %c0_23] : memref<1x128xf32, #tpu.memory_space<vmem>>, vector<1x128xf32>
      tpu.vector_store %arg4[%c0_22, %c0_23], %30 {strides = array<i32>} : memref<1x128xf32, #tpu.memory_space<vmem>>, vector<1x128xf32>,
      %c0_24 = arith.constant 0 : index
      %c0_25 = arith.constant 0 : index
      %32 = vector.load %arg3[%c0_24, %c0_25] : memref<1x128xf32, #tpu.memory_space<vmem>>, vector<1x128xf32>
      %33 = arith.mulf %20, %30 : vector<1x128xf32>
      %34 = arith.subf %32, %33 : vector<1x128xf32>
      %c0_26 = arith.constant 0 : index
      %c0_27 = arith.constant 0 : index
      %35 = vector.load %arg5[%c0_26, %c0_27] : memref<1x128xf32, #tpu.memory_space<vmem>>, vector<1x128xf32>
      tpu.vector_store %arg5[%c0_26, %c0_27], %34 {strides = array<i32>} : memref<1x128xf32, #tpu.memory_space<vmem>>, vector<1x128xf32>,
    } else {
    }
    return
  }
  func.func @transform_0(%arg0: i32) -> (i32, i32) {
    %c0_i32 = arith.constant 0 : i32
    %c0_i32_0 = arith.constant 0 : i32
    return %arg0, %c0_i32 : i32, i32
  }
  func.func @transform_1(%arg0: i32) -> (i32, i32) {
    %c0_i32 = arith.constant 0 : i32
    %c0_i32_0 = arith.constant 0 : i32
    %c0_i32_1 = arith.constant 0 : i32
    return %c0_i32, %c0_i32_0 : i32, i32
  }
  func.func @transform_2(%arg0: i32) -> (i32, i32) {
    %c0_i32 = arith.constant 0 : i32
    %c0_i32_0 = arith.constant 0 : i32
    %c0_i32_1 = arith.constant 0 : i32
    return %c0_i32, %c0_i32_0 : i32, i32
  }
  func.func @transform_3(%arg0: i32) -> (i32, i32) {
    %c0_i32 = arith.constant 0 : i32
    %c0_i32_0 = arith.constant 0 : i32
    %c0_i32_1 = arith.constant 0 : i32
    return %c0_i32, %c0_i32_0 : i32, i32
  }
  func.func @transform_4(%arg0: i32) -> (i32, i32) {
    %c0_i32 = arith.constant 0 : i32
    %c0_i32_0 = arith.constant 0 : i32
    %c0_i32_1 = arith.constant 0 : i32
    return %c0_i32, %c0_i32_0 : i32, i32
  }
}

module attributes {stable_mosaic.version = 11 : i64} {
  func.func @_conv_dual_kernel(%arg0: i32, %arg1: memref<1x96x384xbf16, #tpu.memory_space<vmem>>, %arg2: memref<3x384x128xbf16, #tpu.memory_space<vmem>>, %arg3: memref<1x128xf32, #tpu.memory_space<vmem>>, %arg4: memref<1x64x128xf32, #tpu.memory_space<vmem>>, %arg5: memref<1x64x128xbf16, #tpu.memory_space<vmem>>) attributes {dimension_semantics = [#tpu.dimension_semantics<parallel>], iteration_bounds = array<i64: 1>, scalar_prefetch = 0 : i64, scratch_operands = 0 : i64, tpu.core_type = #tpu.core_type<tc>, window_params = [{transform_indices = @transform_0, window_bounds = array<i64: 1, 96, 384>}, {pipeline_mode = #tpu.pipeline_mode<synchronous>, transform_indices = @transform_1, window_bounds = array<i64: 3, 384, 128>}, {pipeline_mode = #tpu.pipeline_mode<synchronous>, transform_indices = @transform_2, window_bounds = array<i64: 1, 128>}, {transform_indices = @transform_3, window_bounds = array<i64: 1, 64, 128>}, {transform_indices = @transform_4, window_bounds = array<i64: 1, 64, 128>}]} {
    %c0 = arith.constant 0 : index
    %c0_0 = arith.constant 0 : index
    %c0_1 = arith.constant 0 : index
    %0 = vector.load %arg1[%c0, %c0_0, %c0_1] : memref<1x96x384xbf16, #tpu.memory_space<vmem>>, vector<1x64x384xbf16>
    %1 = vector.shape_cast %0 : vector<1x64x384xbf16> to vector<64x384xbf16>
    %c0_2 = arith.constant 0 : index
    %c0_3 = arith.constant 0 : index
    %c0_4 = arith.constant 0 : index
    %2 = vector.load %arg2[%c0_2, %c0_3, %c0_4] : memref<3x384x128xbf16, #tpu.memory_space<vmem>>, vector<1x384x128xbf16>
    %3 = vector.shape_cast %2 : vector<1x384x128xbf16> to vector<384x128xbf16>
    %cst = arith.constant dense<0.000000e+00> : vector<64x128xf32>
    %4 = tpu.matmul %1, %3, %cst {dimension_numbers = #tpu.dot_dimension_numbers<[1], [0], [0], [1], [0, 0, 1, 1], [], []>} : vector<64x384xbf16>, vector<384x128xbf16>, vector<64x128xf32> -> vector<64x128xf32>
    %c0_5 = arith.constant 0 : index
    %c16 = arith.constant 16 : index
    %c0_6 = arith.constant 0 : index
    %5 = vector.load %arg1[%c0_5, %c16, %c0_6] : memref<1x96x384xbf16, #tpu.memory_space<vmem>>, vector<1x64x384xbf16>
    %6 = vector.shape_cast %5 : vector<1x64x384xbf16> to vector<64x384xbf16>
    %c1 = arith.constant 1 : index
    %c0_7 = arith.constant 0 : index
    %c0_8 = arith.constant 0 : index
    %7 = vector.load %arg2[%c1, %c0_7, %c0_8] : memref<3x384x128xbf16, #tpu.memory_space<vmem>>, vector<1x384x128xbf16>
    %8 = vector.shape_cast %7 : vector<1x384x128xbf16> to vector<384x128xbf16>
    %cst_9 = arith.constant dense<0.000000e+00> : vector<64x128xf32>
    %9 = tpu.matmul %6, %8, %cst_9 {dimension_numbers = #tpu.dot_dimension_numbers<[1], [0], [0], [1], [0, 0, 1, 1], [], []>} : vector<64x384xbf16>, vector<384x128xbf16>, vector<64x128xf32> -> vector<64x128xf32>
    %10 = arith.addf %4, %9 : vector<64x128xf32>
    %c0_10 = arith.constant 0 : index
    %c32 = arith.constant 32 : index
    %c0_11 = arith.constant 0 : index
    %11 = vector.load %arg1[%c0_10, %c32, %c0_11] : memref<1x96x384xbf16, #tpu.memory_space<vmem>>, vector<1x64x384xbf16>
    %12 = vector.shape_cast %11 : vector<1x64x384xbf16> to vector<64x384xbf16>
    %c2 = arith.constant 2 : index
    %c0_12 = arith.constant 0 : index
    %c0_13 = arith.constant 0 : index
    %13 = vector.load %arg2[%c2, %c0_12, %c0_13] : memref<3x384x128xbf16, #tpu.memory_space<vmem>>, vector<1x384x128xbf16>
    %14 = vector.shape_cast %13 : vector<1x384x128xbf16> to vector<384x128xbf16>
    %cst_14 = arith.constant dense<0.000000e+00> : vector<64x128xf32>
    %15 = tpu.matmul %12, %14, %cst_14 {dimension_numbers = #tpu.dot_dimension_numbers<[1], [0], [0], [1], [0, 0, 1, 1], [], []>} : vector<64x384xbf16>, vector<384x128xbf16>, vector<64x128xf32> -> vector<64x128xf32>
    %16 = arith.addf %10, %15 : vector<64x128xf32>
    %c0_15 = arith.constant 0 : index
    %c0_16 = arith.constant 0 : index
    %17 = vector.load %arg3[%c0_15, %c0_16] : memref<1x128xf32, #tpu.memory_space<vmem>>, vector<1x128xf32>
    %18 = vector.broadcast %17 : vector<1x128xf32> to vector<64x128xf32>
    %19 = arith.addf %16, %18 : vector<64x128xf32>
    %c0_17 = arith.constant 0 : index
    %c0_18 = arith.constant 0 : index
    %c0_19 = arith.constant 0 : index
    %20 = vector.load %arg4[%c0_17, %c0_18, %c0_19] : memref<1x64x128xf32, #tpu.memory_space<vmem>>, vector<1x64x128xf32>
    %21 = vector.shape_cast %20 : vector<1x64x128xf32> to vector<64x128xf32>
    %22 = vector.shape_cast %19 : vector<64x128xf32> to vector<1x64x128xf32>
    tpu.vector_store %arg4[%c0_17, %c0_18, %c0_19], %22 {strides = array<i32>} : memref<1x64x128xf32, #tpu.memory_space<vmem>>, vector<1x64x128xf32>,
    %cst_20 = arith.constant 0.000000e+00 : f32
    %23 = vector.broadcast %cst_20 : f32 to vector<64x128xf32>
    %24 = arith.maximumf %19, %23 : vector<64x128xf32>
    %25 = arith.truncf %24 : vector<64x128xf32> to vector<64x128xbf16>
    %c0_21 = arith.constant 0 : index
    %c0_22 = arith.constant 0 : index
    %c0_23 = arith.constant 0 : index
    %26 = vector.load %arg5[%c0_21, %c0_22, %c0_23] : memref<1x64x128xbf16, #tpu.memory_space<vmem>>, vector<1x64x128xbf16>
    %27 = vector.shape_cast %26 : vector<1x64x128xbf16> to vector<64x128xbf16>
    %28 = vector.shape_cast %25 : vector<64x128xbf16> to vector<1x64x128xbf16>
    tpu.vector_store %arg5[%c0_21, %c0_22, %c0_23], %28 {strides = array<i32>} : memref<1x64x128xbf16, #tpu.memory_space<vmem>>, vector<1x64x128xbf16>,
    return
  }
  func.func @transform_0(%arg0: i32) -> (i32, i32, i32) {
    %c0_i32 = arith.constant 0 : i32
    %c0_i32_0 = arith.constant 0 : i32
    %c0_i32_1 = arith.constant 0 : i32
    return %arg0, %c0_i32, %c0_i32_0 : i32, i32, i32
  }
  func.func @transform_1(%arg0: i32) -> (i32, i32, i32) {
    %c0_i32 = arith.constant 0 : i32
    %c0_i32_0 = arith.constant 0 : i32
    %c0_i32_1 = arith.constant 0 : i32
    %c0_i32_2 = arith.constant 0 : i32
    return %c0_i32, %c0_i32_0, %c0_i32_1 : i32, i32, i32
  }
  func.func @transform_2(%arg0: i32) -> (i32, i32) {
    %c0_i32 = arith.constant 0 : i32
    %c0_i32_0 = arith.constant 0 : i32
    %c0_i32_1 = arith.constant 0 : i32
    return %c0_i32, %c0_i32_0 : i32, i32
  }
  func.func @transform_3(%arg0: i32) -> (i32, i32, i32) {
    %c0_i32 = arith.constant 0 : i32
    %c0_i32_0 = arith.constant 0 : i32
    %c0_i32_1 = arith.constant 0 : i32
    return %arg0, %c0_i32, %c0_i32_0 : i32, i32, i32
  }
  func.func @transform_4(%arg0: i32) -> (i32, i32, i32) {
    %c0_i32 = arith.constant 0 : i32
    %c0_i32_0 = arith.constant 0 : i32
    %c0_i32_1 = arith.constant 0 : i32
    return %arg0, %c0_i32, %c0_i32_0 : i32, i32, i32
  }
}

module attributes {stable_mosaic.version = 11 : i64} {
  func.func @_conv_res_kernel(%arg0: i32, %arg1: memref<1x96x384xbf16, #tpu.memory_space<vmem>>, %arg2: memref<3x384x32xbf16, #tpu.memory_space<vmem>>, %arg3: memref<1x32xf32, #tpu.memory_space<vmem>>, %arg4: memref<32x128xbf16, #tpu.memory_space<vmem>>, %arg5: memref<1x128xf32, #tpu.memory_space<vmem>>, %arg6: memref<1x64x128xf32, #tpu.memory_space<vmem>>, %arg7: memref<1x64x128xf32, #tpu.memory_space<vmem>>, %arg8: memref<1x64x128xbf16, #tpu.memory_space<vmem>>) attributes {dimension_semantics = [#tpu.dimension_semantics<parallel>], iteration_bounds = array<i64: 1>, scalar_prefetch = 0 : i64, scratch_operands = 0 : i64, tpu.core_type = #tpu.core_type<tc>, window_params = [{transform_indices = @transform_0, window_bounds = array<i64: 1, 96, 384>}, {pipeline_mode = #tpu.pipeline_mode<synchronous>, transform_indices = @transform_1, window_bounds = array<i64: 3, 384, 32>}, {pipeline_mode = #tpu.pipeline_mode<synchronous>, transform_indices = @transform_2, window_bounds = array<i64: 1, 32>}, {pipeline_mode = #tpu.pipeline_mode<synchronous>, transform_indices = @transform_3, window_bounds = array<i64: 32, 128>}, {pipeline_mode = #tpu.pipeline_mode<synchronous>, transform_indices = @transform_4, window_bounds = array<i64: 1, 128>}, {transform_indices = @transform_5, window_bounds = array<i64: 1, 64, 128>}, {transform_indices = @transform_6, window_bounds = array<i64: 1, 64, 128>}, {transform_indices = @transform_7, window_bounds = array<i64: 1, 64, 128>}]} {
    %c0 = arith.constant 0 : index
    %c0_0 = arith.constant 0 : index
    %c0_1 = arith.constant 0 : index
    %0 = vector.load %arg1[%c0, %c0_0, %c0_1] : memref<1x96x384xbf16, #tpu.memory_space<vmem>>, vector<1x64x384xbf16>
    %1 = vector.shape_cast %0 : vector<1x64x384xbf16> to vector<64x384xbf16>
    %c0_2 = arith.constant 0 : index
    %c0_3 = arith.constant 0 : index
    %c0_4 = arith.constant 0 : index
    %2 = vector.load %arg2[%c0_2, %c0_3, %c0_4] : memref<3x384x32xbf16, #tpu.memory_space<vmem>>, vector<1x384x32xbf16>
    %3 = vector.shape_cast %2 : vector<1x384x32xbf16> to vector<384x32xbf16>
    %cst = arith.constant dense<0.000000e+00> : vector<64x32xf32>
    %4 = tpu.matmul %1, %3, %cst {dimension_numbers = #tpu.dot_dimension_numbers<[1], [0], [0], [1], [0, 0, 1, 1], [], []>} : vector<64x384xbf16>, vector<384x32xbf16>, vector<64x32xf32> -> vector<64x32xf32>
    %c0_5 = arith.constant 0 : index
    %c16 = arith.constant 16 : index
    %c0_6 = arith.constant 0 : index
    %5 = vector.load %arg1[%c0_5, %c16, %c0_6] : memref<1x96x384xbf16, #tpu.memory_space<vmem>>, vector<1x64x384xbf16>
    %6 = vector.shape_cast %5 : vector<1x64x384xbf16> to vector<64x384xbf16>
    %c1 = arith.constant 1 : index
    %c0_7 = arith.constant 0 : index
    %c0_8 = arith.constant 0 : index
    %7 = vector.load %arg2[%c1, %c0_7, %c0_8] : memref<3x384x32xbf16, #tpu.memory_space<vmem>>, vector<1x384x32xbf16>
    %8 = vector.shape_cast %7 : vector<1x384x32xbf16> to vector<384x32xbf16>
    %cst_9 = arith.constant dense<0.000000e+00> : vector<64x32xf32>
    %9 = tpu.matmul %6, %8, %cst_9 {dimension_numbers = #tpu.dot_dimension_numbers<[1], [0], [0], [1], [0, 0, 1, 1], [], []>} : vector<64x384xbf16>, vector<384x32xbf16>, vector<64x32xf32> -> vector<64x32xf32>
    %10 = arith.addf %4, %9 : vector<64x32xf32>
    %c0_10 = arith.constant 0 : index
    %c32 = arith.constant 32 : index
    %c0_11 = arith.constant 0 : index
    %11 = vector.load %arg1[%c0_10, %c32, %c0_11] : memref<1x96x384xbf16, #tpu.memory_space<vmem>>, vector<1x64x384xbf16>
    %12 = vector.shape_cast %11 : vector<1x64x384xbf16> to vector<64x384xbf16>
    %c2 = arith.constant 2 : index
    %c0_12 = arith.constant 0 : index
    %c0_13 = arith.constant 0 : index
    %13 = vector.load %arg2[%c2, %c0_12, %c0_13] : memref<3x384x32xbf16, #tpu.memory_space<vmem>>, vector<1x384x32xbf16>
    %14 = vector.shape_cast %13 : vector<1x384x32xbf16> to vector<384x32xbf16>
    %cst_14 = arith.constant dense<0.000000e+00> : vector<64x32xf32>
    %15 = tpu.matmul %12, %14, %cst_14 {dimension_numbers = #tpu.dot_dimension_numbers<[1], [0], [0], [1], [0, 0, 1, 1], [], []>} : vector<64x384xbf16>, vector<384x32xbf16>, vector<64x32xf32> -> vector<64x32xf32>
    %16 = arith.addf %10, %15 : vector<64x32xf32>
    %c0_15 = arith.constant 0 : index
    %c0_16 = arith.constant 0 : index
    %17 = vector.load %arg3[%c0_15, %c0_16] : memref<1x32xf32, #tpu.memory_space<vmem>>, vector<1x32xf32>
    %18 = vector.broadcast %17 : vector<1x32xf32> to vector<64x32xf32>
    %19 = arith.addf %16, %18 : vector<64x32xf32>
    %cst_17 = arith.constant 0.000000e+00 : f32
    %20 = vector.broadcast %cst_17 : f32 to vector<64x32xf32>
    %21 = arith.maximumf %19, %20 : vector<64x32xf32>
    %c0_18 = arith.constant 0 : index
    %c0_19 = arith.constant 0 : index
    %c0_20 = arith.constant 0 : index
    %22 = vector.load %arg6[%c0_18, %c0_19, %c0_20] : memref<1x64x128xf32, #tpu.memory_space<vmem>>, vector<1x64x128xf32>
    %23 = vector.shape_cast %22 : vector<1x64x128xf32> to vector<64x128xf32>
    %24 = arith.truncf %21 : vector<64x32xf32> to vector<64x32xbf16>
    %c0_21 = arith.constant 0 : index
    %c0_22 = arith.constant 0 : index
    %25 = vector.load %arg4[%c0_21, %c0_22] : memref<32x128xbf16, #tpu.memory_space<vmem>>, vector<32x128xbf16>
    %cst_23 = arith.constant dense<0.000000e+00> : vector<64x128xf32>
    %26 = tpu.matmul %24, %25, %cst_23 {dimension_numbers = #tpu.dot_dimension_numbers<[1], [0], [0], [1], [0, 0, 1, 1], [], []>} : vector<64x32xbf16>, vector<32x128xbf16>, vector<64x128xf32> -> vector<64x128xf32>
    %27 = arith.addf %23, %26 : vector<64x128xf32>
    %c0_24 = arith.constant 0 : index
    %c0_25 = arith.constant 0 : index
    %28 = vector.load %arg5[%c0_24, %c0_25] : memref<1x128xf32, #tpu.memory_space<vmem>>, vector<1x128xf32>
    %29 = vector.broadcast %28 : vector<1x128xf32> to vector<64x128xf32>
    %30 = arith.addf %27, %29 : vector<64x128xf32>
    %c0_26 = arith.constant 0 : index
    %c0_27 = arith.constant 0 : index
    %c0_28 = arith.constant 0 : index
    %31 = vector.load %arg7[%c0_26, %c0_27, %c0_28] : memref<1x64x128xf32, #tpu.memory_space<vmem>>, vector<1x64x128xf32>
    %32 = vector.shape_cast %31 : vector<1x64x128xf32> to vector<64x128xf32>
    %33 = vector.shape_cast %30 : vector<64x128xf32> to vector<1x64x128xf32>
    tpu.vector_store %arg7[%c0_26, %c0_27, %c0_28], %33 {strides = array<i32>} : memref<1x64x128xf32, #tpu.memory_space<vmem>>, vector<1x64x128xf32>,
    %cst_29 = arith.constant 0.000000e+00 : f32
    %34 = vector.broadcast %cst_29 : f32 to vector<64x128xf32>
    %35 = arith.maximumf %30, %34 : vector<64x128xf32>
    %36 = arith.truncf %35 : vector<64x128xf32> to vector<64x128xbf16>
    %c0_30 = arith.constant 0 : index
    %c0_31 = arith.constant 0 : index
    %c0_32 = arith.constant 0 : index
    %37 = vector.load %arg8[%c0_30, %c0_31, %c0_32] : memref<1x64x128xbf16, #tpu.memory_space<vmem>>, vector<1x64x128xbf16>
    %38 = vector.shape_cast %37 : vector<1x64x128xbf16> to vector<64x128xbf16>
    %39 = vector.shape_cast %36 : vector<64x128xbf16> to vector<1x64x128xbf16>
    tpu.vector_store %arg8[%c0_30, %c0_31, %c0_32], %39 {strides = array<i32>} : memref<1x64x128xbf16, #tpu.memory_space<vmem>>, vector<1x64x128xbf16>,
    return
  }
  func.func @transform_0(%arg0: i32) -> (i32, i32, i32) {
    %c0_i32 = arith.constant 0 : i32
    %c0_i32_0 = arith.constant 0 : i32
    %c0_i32_1 = arith.constant 0 : i32
    return %arg0, %c0_i32, %c0_i32_0 : i32, i32, i32
  }
  func.func @transform_1(%arg0: i32) -> (i32, i32, i32) {
    %c0_i32 = arith.constant 0 : i32
    %c0_i32_0 = arith.constant 0 : i32
    %c0_i32_1 = arith.constant 0 : i32
    %c0_i32_2 = arith.constant 0 : i32
    return %c0_i32, %c0_i32_0, %c0_i32_1 : i32, i32, i32
  }
  func.func @transform_2(%arg0: i32) -> (i32, i32) {
    %c0_i32 = arith.constant 0 : i32
    %c0_i32_0 = arith.constant 0 : i32
    %c0_i32_1 = arith.constant 0 : i32
    return %c0_i32, %c0_i32_0 : i32, i32
  }
  func.func @transform_3(%arg0: i32) -> (i32, i32) {
    %c0_i32 = arith.constant 0 : i32
    %c0_i32_0 = arith.constant 0 : i32
    %c0_i32_1 = arith.constant 0 : i32
    return %c0_i32, %c0_i32_0 : i32, i32
  }
  func.func @transform_4(%arg0: i32) -> (i32, i32) {
    %c0_i32 = arith.constant 0 : i32
    %c0_i32_0 = arith.constant 0 : i32
    %c0_i32_1 = arith.constant 0 : i32
    return %c0_i32, %c0_i32_0 : i32, i32
  }
  func.func @transform_5(%arg0: i32) -> (i32, i32, i32) {
    %c0_i32 = arith.constant 0 : i32
    %c0_i32_0 = arith.constant 0 : i32
    %c0_i32_1 = arith.constant 0 : i32
    return %arg0, %c0_i32, %c0_i32_0 : i32, i32, i32
  }
  func.func @transform_6(%arg0: i32) -> (i32, i32, i32) {
    %c0_i32 = arith.constant 0 : i32
    %c0_i32_0 = arith.constant 0 : i32
    %c0_i32_1 = arith.constant 0 : i32
    return %arg0, %c0_i32, %c0_i32_0 : i32, i32, i32
  }
  func.func @transform_7(%arg0: i32) -> (i32, i32, i32) {
    %c0_i32 = arith.constant 0 : i32
    %c0_i32_0 = arith.constant 0 : i32
    %c0_i32_1 = arith.constant 0 : i32
    return %arg0, %c0_i32, %c0_i32_0 : i32, i32, i32
  }
}

module attributes {stable_mosaic.version = 11 : i64} {
  func.func @_conv_res_kernel(%arg0: i32, %arg1: memref<1x96x384xbf16, #tpu.memory_space<vmem>>, %arg2: memref<3x384x32xbf16, #tpu.memory_space<vmem>>, %arg3: memref<1x32xf32, #tpu.memory_space<vmem>>, %arg4: memref<32x128xbf16, #tpu.memory_space<vmem>>, %arg5: memref<1x128xf32, #tpu.memory_space<vmem>>, %arg6: memref<1x64x128xf32, #tpu.memory_space<vmem>>, %arg7: memref<1x64x128xf32, #tpu.memory_space<vmem>>, %arg8: memref<1x64x128xbf16, #tpu.memory_space<vmem>>) attributes {dimension_semantics = [#tpu.dimension_semantics<parallel>], iteration_bounds = array<i64: 1>, scalar_prefetch = 0 : i64, scratch_operands = 0 : i64, tpu.core_type = #tpu.core_type<tc>, window_params = [{transform_indices = @transform_0, window_bounds = array<i64: 1, 96, 384>}, {pipeline_mode = #tpu.pipeline_mode<synchronous>, transform_indices = @transform_1, window_bounds = array<i64: 3, 384, 32>}, {pipeline_mode = #tpu.pipeline_mode<synchronous>, transform_indices = @transform_2, window_bounds = array<i64: 1, 32>}, {pipeline_mode = #tpu.pipeline_mode<synchronous>, transform_indices = @transform_3, window_bounds = array<i64: 32, 128>}, {pipeline_mode = #tpu.pipeline_mode<synchronous>, transform_indices = @transform_4, window_bounds = array<i64: 1, 128>}, {transform_indices = @transform_5, window_bounds = array<i64: 1, 64, 128>}, {transform_indices = @transform_6, window_bounds = array<i64: 1, 64, 128>}, {transform_indices = @transform_7, window_bounds = array<i64: 1, 64, 128>}]} {
    %c0 = arith.constant 0 : index
    %c0_0 = arith.constant 0 : index
    %c0_1 = arith.constant 0 : index
    %0 = vector.load %arg1[%c0, %c0_0, %c0_1] : memref<1x96x384xbf16, #tpu.memory_space<vmem>>, vector<1x64x384xbf16>
    %1 = vector.shape_cast %0 : vector<1x64x384xbf16> to vector<64x384xbf16>
    %c0_2 = arith.constant 0 : index
    %c0_3 = arith.constant 0 : index
    %c0_4 = arith.constant 0 : index
    %2 = vector.load %arg2[%c0_2, %c0_3, %c0_4] : memref<3x384x32xbf16, #tpu.memory_space<vmem>>, vector<1x384x32xbf16>
    %3 = vector.shape_cast %2 : vector<1x384x32xbf16> to vector<384x32xbf16>
    %cst = arith.constant dense<0.000000e+00> : vector<64x32xf32>
    %4 = tpu.matmul %1, %3, %cst {dimension_numbers = #tpu.dot_dimension_numbers<[1], [0], [0], [1], [0, 0, 1, 1], [], []>} : vector<64x384xbf16>, vector<384x32xbf16>, vector<64x32xf32> -> vector<64x32xf32>
    %c0_5 = arith.constant 0 : index
    %c16 = arith.constant 16 : index
    %c0_6 = arith.constant 0 : index
    %5 = vector.load %arg1[%c0_5, %c16, %c0_6] : memref<1x96x384xbf16, #tpu.memory_space<vmem>>, vector<1x64x384xbf16>
    %6 = vector.shape_cast %5 : vector<1x64x384xbf16> to vector<64x384xbf16>
    %c1 = arith.constant 1 : index
    %c0_7 = arith.constant 0 : index
    %c0_8 = arith.constant 0 : index
    %7 = vector.load %arg2[%c1, %c0_7, %c0_8] : memref<3x384x32xbf16, #tpu.memory_space<vmem>>, vector<1x384x32xbf16>
    %8 = vector.shape_cast %7 : vector<1x384x32xbf16> to vector<384x32xbf16>
    %cst_9 = arith.constant dense<0.000000e+00> : vector<64x32xf32>
    %9 = tpu.matmul %6, %8, %cst_9 {dimension_numbers = #tpu.dot_dimension_numbers<[1], [0], [0], [1], [0, 0, 1, 1], [], []>} : vector<64x384xbf16>, vector<384x32xbf16>, vector<64x32xf32> -> vector<64x32xf32>
    %10 = arith.addf %4, %9 : vector<64x32xf32>
    %c0_10 = arith.constant 0 : index
    %c32 = arith.constant 32 : index
    %c0_11 = arith.constant 0 : index
    %11 = vector.load %arg1[%c0_10, %c32, %c0_11] : memref<1x96x384xbf16, #tpu.memory_space<vmem>>, vector<1x64x384xbf16>
    %12 = vector.shape_cast %11 : vector<1x64x384xbf16> to vector<64x384xbf16>
    %c2 = arith.constant 2 : index
    %c0_12 = arith.constant 0 : index
    %c0_13 = arith.constant 0 : index
    %13 = vector.load %arg2[%c2, %c0_12, %c0_13] : memref<3x384x32xbf16, #tpu.memory_space<vmem>>, vector<1x384x32xbf16>
    %14 = vector.shape_cast %13 : vector<1x384x32xbf16> to vector<384x32xbf16>
    %cst_14 = arith.constant dense<0.000000e+00> : vector<64x32xf32>
    %15 = tpu.matmul %12, %14, %cst_14 {dimension_numbers = #tpu.dot_dimension_numbers<[1], [0], [0], [1], [0, 0, 1, 1], [], []>} : vector<64x384xbf16>, vector<384x32xbf16>, vector<64x32xf32> -> vector<64x32xf32>
    %16 = arith.addf %10, %15 : vector<64x32xf32>
    %c0_15 = arith.constant 0 : index
    %c0_16 = arith.constant 0 : index
    %17 = vector.load %arg3[%c0_15, %c0_16] : memref<1x32xf32, #tpu.memory_space<vmem>>, vector<1x32xf32>
    %18 = vector.broadcast %17 : vector<1x32xf32> to vector<64x32xf32>
    %19 = arith.addf %16, %18 : vector<64x32xf32>
    %cst_17 = arith.constant 0.000000e+00 : f32
    %20 = vector.broadcast %cst_17 : f32 to vector<64x32xf32>
    %21 = arith.maximumf %19, %20 : vector<64x32xf32>
    %c0_18 = arith.constant 0 : index
    %c0_19 = arith.constant 0 : index
    %c0_20 = arith.constant 0 : index
    %22 = vector.load %arg6[%c0_18, %c0_19, %c0_20] : memref<1x64x128xf32, #tpu.memory_space<vmem>>, vector<1x64x128xf32>
    %23 = vector.shape_cast %22 : vector<1x64x128xf32> to vector<64x128xf32>
    %24 = arith.truncf %21 : vector<64x32xf32> to vector<64x32xbf16>
    %c0_21 = arith.constant 0 : index
    %c0_22 = arith.constant 0 : index
    %25 = vector.load %arg4[%c0_21, %c0_22] : memref<32x128xbf16, #tpu.memory_space<vmem>>, vector<32x128xbf16>
    %cst_23 = arith.constant dense<0.000000e+00> : vector<64x128xf32>
    %26 = tpu.matmul %24, %25, %cst_23 {dimension_numbers = #tpu.dot_dimension_numbers<[1], [0], [0], [1], [0, 0, 1, 1], [], []>} : vector<64x32xbf16>, vector<32x128xbf16>, vector<64x128xf32> -> vector<64x128xf32>
    %27 = arith.addf %23, %26 : vector<64x128xf32>
    %c0_24 = arith.constant 0 : index
    %c0_25 = arith.constant 0 : index
    %28 = vector.load %arg5[%c0_24, %c0_25] : memref<1x128xf32, #tpu.memory_space<vmem>>, vector<1x128xf32>
    %29 = vector.broadcast %28 : vector<1x128xf32> to vector<64x128xf32>
    %30 = arith.addf %27, %29 : vector<64x128xf32>
    %c0_26 = arith.constant 0 : index
    %c0_27 = arith.constant 0 : index
    %c0_28 = arith.constant 0 : index
    %31 = vector.load %arg7[%c0_26, %c0_27, %c0_28] : memref<1x64x128xf32, #tpu.memory_space<vmem>>, vector<1x64x128xf32>
    %32 = vector.shape_cast %31 : vector<1x64x128xf32> to vector<64x128xf32>
    %33 = vector.shape_cast %30 : vector<64x128xf32> to vector<1x64x128xf32>
    tpu.vector_store %arg7[%c0_26, %c0_27, %c0_28], %33 {strides = array<i32>} : memref<1x64x128xf32, #tpu.memory_space<vmem>>, vector<1x64x128xf32>,
    %cst_29 = arith.constant 0.000000e+00 : f32
    %34 = vector.broadcast %cst_29 : f32 to vector<64x128xf32>
    %35 = arith.maximumf %30, %34 : vector<64x128xf32>
    %36 = arith.truncf %35 : vector<64x128xf32> to vector<64x128xbf16>
    %c0_30 = arith.constant 0 : index
    %c0_31 = arith.constant 0 : index
    %c0_32 = arith.constant 0 : index
    %37 = vector.load %arg8[%c0_30, %c0_31, %c0_32] : memref<1x64x128xbf16, #tpu.memory_space<vmem>>, vector<1x64x128xbf16>
    %38 = vector.shape_cast %37 : vector<1x64x128xbf16> to vector<64x128xbf16>
    %39 = vector.shape_cast %36 : vector<64x128xbf16> to vector<1x64x128xbf16>
    tpu.vector_store %arg8[%c0_30, %c0_31, %c0_32], %39 {strides = array<i32>} : memref<1x64x128xbf16, #tpu.memory_space<vmem>>, vector<1x64x128xbf16>,
    return
  }
  func.func @transform_0(%arg0: i32) -> (i32, i32, i32) {
    %c0_i32 = arith.constant 0 : i32
    %c0_i32_0 = arith.constant 0 : i32
    %c0_i32_1 = arith.constant 0 : i32
    return %arg0, %c0_i32, %c0_i32_0 : i32, i32, i32
  }
  func.func @transform_1(%arg0: i32) -> (i32, i32, i32) {
    %c0_i32 = arith.constant 0 : i32
    %c0_i32_0 = arith.constant 0 : i32
    %c0_i32_1 = arith.constant 0 : i32
    %c0_i32_2 = arith.constant 0 : i32
    return %c0_i32, %c0_i32_0, %c0_i32_1 : i32, i32, i32
  }
  func.func @transform_2(%arg0: i32) -> (i32, i32) {
    %c0_i32 = arith.constant 0 : i32
    %c0_i32_0 = arith.constant 0 : i32
    %c0_i32_1 = arith.constant 0 : i32
    return %c0_i32, %c0_i32_0 : i32, i32
  }
  func.func @transform_3(%arg0: i32) -> (i32, i32) {
    %c0_i32 = arith.constant 0 : i32
    %c0_i32_0 = arith.constant 0 : i32
    %c0_i32_1 = arith.constant 0 : i32
    return %c0_i32, %c0_i32_0 : i32, i32
  }
  func.func @transform_4(%arg0: i32) -> (i32, i32) {
    %c0_i32 = arith.constant 0 : i32
    %c0_i32_0 = arith.constant 0 : i32
    %c0_i32_1 = arith.constant 0 : i32
    return %c0_i32, %c0_i32_0 : i32, i32
  }
  func.func @transform_5(%arg0: i32) -> (i32, i32, i32) {
    %c0_i32 = arith.constant 0 : i32
    %c0_i32_0 = arith.constant 0 : i32
    %c0_i32_1 = arith.constant 0 : i32
    return %arg0, %c0_i32, %c0_i32_0 : i32, i32, i32
  }
  func.func @transform_6(%arg0: i32) -> (i32, i32, i32) {
    %c0_i32 = arith.constant 0 : i32
    %c0_i32_0 = arith.constant 0 : i32
    %c0_i32_1 = arith.constant 0 : i32
    return %arg0, %c0_i32, %c0_i32_0 : i32, i32, i32
  }
  func.func @transform_7(%arg0: i32) -> (i32, i32, i32) {
    %c0_i32 = arith.constant 0 : i32
    %c0_i32_0 = arith.constant 0 : i32
    %c0_i32_1 = arith.constant 0 : i32
    return %arg0, %c0_i32, %c0_i32_0 : i32, i32, i32
  }
}

module attributes {stable_mosaic.version = 11 : i64} {
  func.func @_conv_act_kernel(%arg0: i32, %arg1: memref<1x96x384xbf16, #tpu.memory_space<vmem>>, %arg2: memref<3x384x256xbf16, #tpu.memory_space<vmem>>, %arg3: memref<1x256xf32, #tpu.memory_space<vmem>>, %arg4: memref<1x64x256xbf16, #tpu.memory_space<vmem>>) attributes {dimension_semantics = [#tpu.dimension_semantics<parallel>], iteration_bounds = array<i64: 1>, scalar_prefetch = 0 : i64, scratch_operands = 0 : i64, tpu.core_type = #tpu.core_type<tc>, window_params = [{transform_indices = @transform_0, window_bounds = array<i64: 1, 96, 384>}, {pipeline_mode = #tpu.pipeline_mode<synchronous>, transform_indices = @transform_1, window_bounds = array<i64: 3, 384, 256>}, {pipeline_mode = #tpu.pipeline_mode<synchronous>, transform_indices = @transform_2, window_bounds = array<i64: 1, 256>}, {transform_indices = @transform_3, window_bounds = array<i64: 1, 64, 256>}]} {
    %c0 = arith.constant 0 : index
    %c0_0 = arith.constant 0 : index
    %c0_1 = arith.constant 0 : index
    %0 = vector.load %arg1[%c0, %c0_0, %c0_1] : memref<1x96x384xbf16, #tpu.memory_space<vmem>>, vector<1x64x384xbf16>
    %1 = vector.shape_cast %0 : vector<1x64x384xbf16> to vector<64x384xbf16>
    %c0_2 = arith.constant 0 : index
    %c0_3 = arith.constant 0 : index
    %c0_4 = arith.constant 0 : index
    %2 = vector.load %arg2[%c0_2, %c0_3, %c0_4] : memref<3x384x256xbf16, #tpu.memory_space<vmem>>, vector<1x384x256xbf16>
    %3 = vector.shape_cast %2 : vector<1x384x256xbf16> to vector<384x256xbf16>
    %cst = arith.constant dense<0.000000e+00> : vector<64x256xf32>
    %4 = tpu.matmul %1, %3, %cst {dimension_numbers = #tpu.dot_dimension_numbers<[1], [0], [0], [1], [0, 0, 1, 1], [], []>} : vector<64x384xbf16>, vector<384x256xbf16>, vector<64x256xf32> -> vector<64x256xf32>
    %c0_5 = arith.constant 0 : index
    %c16 = arith.constant 16 : index
    %c0_6 = arith.constant 0 : index
    %5 = vector.load %arg1[%c0_5, %c16, %c0_6] : memref<1x96x384xbf16, #tpu.memory_space<vmem>>, vector<1x64x384xbf16>
    %6 = vector.shape_cast %5 : vector<1x64x384xbf16> to vector<64x384xbf16>
    %c1 = arith.constant 1 : index
    %c0_7 = arith.constant 0 : index
    %c0_8 = arith.constant 0 : index
    %7 = vector.load %arg2[%c1, %c0_7, %c0_8] : memref<3x384x256xbf16, #tpu.memory_space<vmem>>, vector<1x384x256xbf16>
    %8 = vector.shape_cast %7 : vector<1x384x256xbf16> to vector<384x256xbf16>
    %cst_9 = arith.constant dense<0.000000e+00> : vector<64x256xf32>
    %9 = tpu.matmul %6, %8, %cst_9 {dimension_numbers = #tpu.dot_dimension_numbers<[1], [0], [0], [1], [0, 0, 1, 1], [], []>} : vector<64x384xbf16>, vector<384x256xbf16>, vector<64x256xf32> -> vector<64x256xf32>
    %10 = arith.addf %4, %9 : vector<64x256xf32>
    %c0_10 = arith.constant 0 : index
    %c32 = arith.constant 32 : index
    %c0_11 = arith.constant 0 : index
    %11 = vector.load %arg1[%c0_10, %c32, %c0_11] : memref<1x96x384xbf16, #tpu.memory_space<vmem>>, vector<1x64x384xbf16>
    %12 = vector.shape_cast %11 : vector<1x64x384xbf16> to vector<64x384xbf16>
    %c2 = arith.constant 2 : index
    %c0_12 = arith.constant 0 : index
    %c0_13 = arith.constant 0 : index
    %13 = vector.load %arg2[%c2, %c0_12, %c0_13] : memref<3x384x256xbf16, #tpu.memory_space<vmem>>, vector<1x384x256xbf16>
    %14 = vector.shape_cast %13 : vector<1x384x256xbf16> to vector<384x256xbf16>
    %cst_14 = arith.constant dense<0.000000e+00> : vector<64x256xf32>
    %15 = tpu.matmul %12, %14, %cst_14 {dimension_numbers = #tpu.dot_dimension_numbers<[1], [0], [0], [1], [0, 0, 1, 1], [], []>} : vector<64x384xbf16>, vector<384x256xbf16>, vector<64x256xf32> -> vector<64x256xf32>
    %16 = arith.addf %10, %15 : vector<64x256xf32>
    %c0_15 = arith.constant 0 : index
    %c0_16 = arith.constant 0 : index
    %17 = vector.load %arg3[%c0_15, %c0_16] : memref<1x256xf32, #tpu.memory_space<vmem>>, vector<1x256xf32>
    %18 = vector.broadcast %17 : vector<1x256xf32> to vector<64x256xf32>
    %19 = arith.addf %16, %18 : vector<64x256xf32>
    %cst_17 = arith.constant 0.000000e+00 : f32
    %20 = vector.broadcast %cst_17 : f32 to vector<64x256xf32>
    %21 = arith.maximumf %19, %20 : vector<64x256xf32>
    %22 = arith.truncf %21 : vector<64x256xf32> to vector<64x256xbf16>
    %c0_18 = arith.constant 0 : index
    %c0_19 = arith.constant 0 : index
    %c0_20 = arith.constant 0 : index
    %23 = vector.load %arg4[%c0_18, %c0_19, %c0_20] : memref<1x64x256xbf16, #tpu.memory_space<vmem>>, vector<1x64x256xbf16>
    %24 = vector.shape_cast %23 : vector<1x64x256xbf16> to vector<64x256xbf16>
    %25 = vector.shape_cast %22 : vector<64x256xbf16> to vector<1x64x256xbf16>
    tpu.vector_store %arg4[%c0_18, %c0_19, %c0_20], %25 {strides = array<i32>} : memref<1x64x256xbf16, #tpu.memory_space<vmem>>, vector<1x64x256xbf16>,
    return
  }
  func.func @transform_0(%arg0: i32) -> (i32, i32, i32) {
    %c0_i32 = arith.constant 0 : i32
    %c0_i32_0 = arith.constant 0 : i32
    %c0_i32_1 = arith.constant 0 : i32
    return %arg0, %c0_i32, %c0_i32_0 : i32, i32, i32
  }
  func.func @transform_1(%arg0: i32) -> (i32, i32, i32) {
    %c0_i32 = arith.constant 0 : i32
    %c0_i32_0 = arith.constant 0 : i32
    %c0_i32_1 = arith.constant 0 : i32
    %c0_i32_2 = arith.constant 0 : i32
    return %c0_i32, %c0_i32_0, %c0_i32_1 : i32, i32, i32
  }
  func.func @transform_2(%arg0: i32) -> (i32, i32) {
    %c0_i32 = arith.constant 0 : i32
    %c0_i32_0 = arith.constant 0 : i32
    %c0_i32_1 = arith.constant 0 : i32
    return %c0_i32, %c0_i32_0 : i32, i32
  }
  func.func @transform_3(%arg0: i32) -> (i32, i32, i32) {
    %c0_i32 = arith.constant 0 : i32
    %c0_i32_0 = arith.constant 0 : i32
    %c0_i32_1 = arith.constant 0 : i32
    return %arg0, %c0_i32, %c0_i32_0 : i32, i32, i32
  }
}

module attributes {stable_mosaic.version = 11 : i64} {
  func.func @_conv_act_kernel(%arg0: i32, %arg1: memref<1x160x192xbf16, #tpu.memory_space<vmem>>, %arg2: memref<3x192x4xbf16, #tpu.memory_space<vmem>>, %arg3: memref<1x4xf32, #tpu.memory_space<vmem>>, %arg4: memref<1x128x4xf32, #tpu.memory_space<vmem>>) attributes {dimension_semantics = [#tpu.dimension_semantics<parallel>], iteration_bounds = array<i64: 1>, scalar_prefetch = 0 : i64, scratch_operands = 0 : i64, tpu.core_type = #tpu.core_type<tc>, window_params = [{transform_indices = @transform_0, window_bounds = array<i64: 1, 160, 192>}, {pipeline_mode = #tpu.pipeline_mode<synchronous>, transform_indices = @transform_1, window_bounds = array<i64: 3, 192, 4>}, {pipeline_mode = #tpu.pipeline_mode<synchronous>, transform_indices = @transform_2, window_bounds = array<i64: 1, 4>}, {transform_indices = @transform_3, window_bounds = array<i64: 1, 128, 4>}]} {
    %c0 = arith.constant 0 : index
    %c0_0 = arith.constant 0 : index
    %c0_1 = arith.constant 0 : index
    %0 = vector.load %arg1[%c0, %c0_0, %c0_1] : memref<1x160x192xbf16, #tpu.memory_space<vmem>>, vector<1x128x192xbf16>
    %1 = vector.shape_cast %0 : vector<1x128x192xbf16> to vector<128x192xbf16>
    %c0_2 = arith.constant 0 : index
    %c0_3 = arith.constant 0 : index
    %c0_4 = arith.constant 0 : index
    %2 = vector.load %arg2[%c0_2, %c0_3, %c0_4] : memref<3x192x4xbf16, #tpu.memory_space<vmem>>, vector<1x192x4xbf16>
    %3 = vector.shape_cast %2 : vector<1x192x4xbf16> to vector<192x4xbf16>
    %cst = arith.constant dense<0.000000e+00> : vector<128x4xf32>
    %4 = tpu.matmul %1, %3, %cst {dimension_numbers = #tpu.dot_dimension_numbers<[1], [0], [0], [1], [0, 0, 1, 1], [], []>} : vector<128x192xbf16>, vector<192x4xbf16>, vector<128x4xf32> -> vector<128x4xf32>
    %c0_5 = arith.constant 0 : index
    %c16 = arith.constant 16 : index
    %c0_6 = arith.constant 0 : index
    %5 = vector.load %arg1[%c0_5, %c16, %c0_6] : memref<1x160x192xbf16, #tpu.memory_space<vmem>>, vector<1x128x192xbf16>
    %6 = vector.shape_cast %5 : vector<1x128x192xbf16> to vector<128x192xbf16>
    %c1 = arith.constant 1 : index
    %c0_7 = arith.constant 0 : index
    %c0_8 = arith.constant 0 : index
    %7 = vector.load %arg2[%c1, %c0_7, %c0_8] : memref<3x192x4xbf16, #tpu.memory_space<vmem>>, vector<1x192x4xbf16>
    %8 = vector.shape_cast %7 : vector<1x192x4xbf16> to vector<192x4xbf16>
    %cst_9 = arith.constant dense<0.000000e+00> : vector<128x4xf32>
    %9 = tpu.matmul %6, %8, %cst_9 {dimension_numbers = #tpu.dot_dimension_numbers<[1], [0], [0], [1], [0, 0, 1, 1], [], []>} : vector<128x192xbf16>, vector<192x4xbf16>, vector<128x4xf32> -> vector<128x4xf32>
    %10 = arith.addf %4, %9 : vector<128x4xf32>
    %c0_10 = arith.constant 0 : index
    %c32 = arith.constant 32 : index
    %c0_11 = arith.constant 0 : index
    %11 = vector.load %arg1[%c0_10, %c32, %c0_11] : memref<1x160x192xbf16, #tpu.memory_space<vmem>>, vector<1x128x192xbf16>
    %12 = vector.shape_cast %11 : vector<1x128x192xbf16> to vector<128x192xbf16>
    %c2 = arith.constant 2 : index
    %c0_12 = arith.constant 0 : index
    %c0_13 = arith.constant 0 : index
    %13 = vector.load %arg2[%c2, %c0_12, %c0_13] : memref<3x192x4xbf16, #tpu.memory_space<vmem>>, vector<1x192x4xbf16>
    %14 = vector.shape_cast %13 : vector<1x192x4xbf16> to vector<192x4xbf16>
    %cst_14 = arith.constant dense<0.000000e+00> : vector<128x4xf32>
    %15 = tpu.matmul %12, %14, %cst_14 {dimension_numbers = #tpu.dot_dimension_numbers<[1], [0], [0], [1], [0, 0, 1, 1], [], []>} : vector<128x192xbf16>, vector<192x4xbf16>, vector<128x4xf32> -> vector<128x4xf32>
    %16 = arith.addf %10, %15 : vector<128x4xf32>
    %c0_15 = arith.constant 0 : index
    %c0_16 = arith.constant 0 : index
    %17 = vector.load %arg3[%c0_15, %c0_16] : memref<1x4xf32, #tpu.memory_space<vmem>>, vector<1x4xf32>
    %18 = vector.broadcast %17 : vector<1x4xf32> to vector<128x4xf32>
    %19 = arith.addf %16, %18 : vector<128x4xf32>
    %20 = arith.negf %19 : vector<128x4xf32>
    %21 = math.exp %20 : vector<128x4xf32>
    %cst_17 = arith.constant 1.000000e+00 : f32
    %22 = vector.broadcast %cst_17 : f32 to vector<128x4xf32>
    %23 = arith.addf %22, %21 : vector<128x4xf32>
    %24 = arith.divf %22, %23 : vector<128x4xf32>
    %c0_18 = arith.constant 0 : index
    %c0_19 = arith.constant 0 : index
    %c0_20 = arith.constant 0 : index
    %25 = vector.load %arg4[%c0_18, %c0_19, %c0_20] : memref<1x128x4xf32, #tpu.memory_space<vmem>>, vector<1x128x4xf32>
    %26 = vector.shape_cast %25 : vector<1x128x4xf32> to vector<128x4xf32>
    %27 = vector.shape_cast %24 : vector<128x4xf32> to vector<1x128x4xf32>
    tpu.vector_store %arg4[%c0_18, %c0_19, %c0_20], %27 {strides = array<i32>} : memref<1x128x4xf32, #tpu.memory_space<vmem>>, vector<1x128x4xf32>,
    return
  }
  func.func @transform_0(%arg0: i32) -> (i32, i32, i32) {
    %c0_i32 = arith.constant 0 : i32
    %c0_i32_0 = arith.constant 0 : i32
    %c0_i32_1 = arith.constant 0 : i32
    return %arg0, %c0_i32, %c0_i32_0 : i32, i32, i32
  }
  func.func @transform_1(%arg0: i32) -> (i32, i32, i32) {
    %c0_i32 = arith.constant 0 : i32
    %c0_i32_0 = arith.constant 0 : i32
    %c0_i32_1 = arith.constant 0 : i32
    %c0_i32_2 = arith.constant 0 : i32
    return %c0_i32, %c0_i32_0, %c0_i32_1 : i32, i32, i32
  }
  func.func @transform_2(%arg0: i32) -> (i32, i32) {
    %c0_i32 = arith.constant 0 : i32
    %c0_i32_0 = arith.constant 0 : i32
    %c0_i32_1 = arith.constant 0 : i32
    return %c0_i32, %c0_i32_0 : i32, i32
  }
  func.func @transform_3(%arg0: i32) -> (i32, i32, i32) {
    %c0_i32 = arith.constant 0 : i32
    %c0_i32_0 = arith.constant 0 : i32
    %c0_i32_1 = arith.constant 0 : i32
    return %arg0, %c0_i32, %c0_i32_0 : i32, i32, i32
  }
}

module attributes {stable_mosaic.version = 11 : i64} {
  func.func @_compose_kernel(%arg0: i32, %arg1: memref<3x256xf32, #tpu.memory_space<vmem>>, %arg2: memref<1x256xf32, #tpu.memory_space<vmem>>, %arg3: memref<1xf32, #tpu.memory_space<smem>>, %arg4: memref<1x256xf32, #tpu.memory_space<vmem>>, %arg5: memref<1x256xf32, #tpu.memory_space<vmem>>, %arg6: memref<3x256xf32, #tpu.memory_space<vmem>>, %arg7: memref<3x256xf32, #tpu.memory_space<vmem>>) attributes {dimension_semantics = [#tpu.dimension_semantics<parallel>], iteration_bounds = array<i64: 1>, scalar_prefetch = 0 : i64, scratch_operands = 0 : i64, tpu.core_type = #tpu.core_type<tc>, window_params = [{transform_indices = @transform_0, window_bounds = array<i64: 3, 256>}, {transform_indices = @transform_1, window_bounds = array<i64: 1, 256>}, {transform_indices = @transform_2, window_bounds = array<i64: 1>}, {transform_indices = @transform_3, window_bounds = array<i64: 1, 256>}, {transform_indices = @transform_4, window_bounds = array<i64: 1, 256>}, {transform_indices = @transform_5, window_bounds = array<i64: 3, 256>}, {transform_indices = @transform_6, window_bounds = array<i64: 3, 256>}]} {
    %c0 = arith.constant 0 : index
    %c0_0 = arith.constant 0 : index
    %0 = vector.load %arg2[%c0, %c0_0] : memref<1x256xf32, #tpu.memory_space<vmem>>, vector<1x256xf32>
    %cst = arith.constant 0.000000e+00 : f32
    %1 = vector.broadcast %cst : f32 to vector<1x256xf32>
    %2 = arith.maximumf %0, %1 : vector<1x256xf32>
    %c0_1 = arith.constant 0 : index
    %c0_2 = arith.constant 0 : index
    %3 = vector.load %arg1[%c0_1, %c0_2] : memref<3x256xf32, #tpu.memory_space<vmem>>, vector<3x256xf32>
    %c0_3 = arith.constant 0 : index
    %4 = memref.load %arg3[%c0_3] : memref<1xf32, #tpu.memory_space<smem>>
    %5 = arith.negf %4 : f32
    %6 = math.exp %5 : f32
    %cst_4 = arith.constant 1.000000e+00 : f32
    %7 = arith.addf %cst_4, %6 : f32
    %8 = arith.divf %cst_4, %7 : f32
    %cst_5 = arith.constant 0.000000e+00 : f32
    %9 = vector.broadcast %cst_5 : f32 to vector<1x256xf32>
    %10 = arith.cmpf ogt, %2, %9 : vector<1x256xf32>
    %cst_6 = arith.constant 9.99999935E-39 : f32
    %11 = vector.broadcast %cst_6 : f32 to vector<1x256xf32>
    %12 = arith.maximumf %2, %11 : vector<1x256xf32>
    %13 = math.log %12 : vector<1x256xf32>
    %14 = vector.broadcast %8 : f32 to vector<1x256xf32>
    %15 = arith.mulf %14, %13 : vector<1x256xf32>
    %16 = math.exp %15 : vector<1x256xf32>
    %cst_7 = arith.constant 0.000000e+00 : f32
    %17 = vector.broadcast %cst_7 : f32 to vector<1x256xf32>
    %18 = arith.select %10, %16, %17 : vector<1x256xi1>, vector<1x256xf32>
    %c0_8 = arith.constant 0 : index
    %c0_9 = arith.constant 0 : index
    %19 = vector.load %arg4[%c0_8, %c0_9] : memref<1x256xf32, #tpu.memory_space<vmem>>, vector<1x256xf32>
    tpu.vector_store %arg4[%c0_8, %c0_9], %2 {strides = array<i32>} : memref<1x256xf32, #tpu.memory_space<vmem>>, vector<1x256xf32>,
    %c0_10 = arith.constant 0 : index
    %c0_11 = arith.constant 0 : index
    %20 = vector.load %arg5[%c0_10, %c0_11] : memref<1x256xf32, #tpu.memory_space<vmem>>, vector<1x256xf32>
    tpu.vector_store %arg5[%c0_10, %c0_11], %18 {strides = array<i32>} : memref<1x256xf32, #tpu.memory_space<vmem>>, vector<1x256xf32>,
    %21 = vector.broadcast %2 : vector<1x256xf32> to vector<3x256xf32>
    %22 = arith.mulf %3, %21 : vector<3x256xf32>
    %c0_12 = arith.constant 0 : index
    %c0_13 = arith.constant 0 : index
    %23 = vector.load %arg6[%c0_12, %c0_13] : memref<3x256xf32, #tpu.memory_space<vmem>>, vector<3x256xf32>
    tpu.vector_store %arg6[%c0_12, %c0_13], %22 {strides = array<i32>} : memref<3x256xf32, #tpu.memory_space<vmem>>, vector<3x256xf32>,
    %24 = vector.broadcast %18 : vector<1x256xf32> to vector<3x256xf32>
    %25 = arith.mulf %3, %24 : vector<3x256xf32>
    %c0_14 = arith.constant 0 : index
    %c0_15 = arith.constant 0 : index
    %26 = vector.load %arg7[%c0_14, %c0_15] : memref<3x256xf32, #tpu.memory_space<vmem>>, vector<3x256xf32>
    tpu.vector_store %arg7[%c0_14, %c0_15], %25 {strides = array<i32>} : memref<3x256xf32, #tpu.memory_space<vmem>>, vector<3x256xf32>,
    return
  }
  func.func @transform_0(%arg0: i32) -> (i32, i32) {
    %c0_i32 = arith.constant 0 : i32
    %c0_i32_0 = arith.constant 0 : i32
    return %c0_i32, %arg0 : i32, i32
  }
  func.func @transform_1(%arg0: i32) -> (i32, i32) {
    %c0_i32 = arith.constant 0 : i32
    %c0_i32_0 = arith.constant 0 : i32
    return %c0_i32, %arg0 : i32, i32
  }
  func.func @transform_2(%arg0: i32) -> i32 {
    %c0_i32 = arith.constant 0 : i32
    %c0_i32_0 = arith.constant 0 : i32
    return %c0_i32 : i32
  }
  func.func @transform_3(%arg0: i32) -> (i32, i32) {
    %c0_i32 = arith.constant 0 : i32
    %c0_i32_0 = arith.constant 0 : i32
    return %c0_i32, %arg0 : i32, i32
  }
  func.func @transform_4(%arg0: i32) -> (i32, i32) {
    %c0_i32 = arith.constant 0 : i32
    %c0_i32_0 = arith.constant 0 : i32
    return %c0_i32, %arg0 : i32, i32
  }
  func.func @transform_5(%arg0: i32) -> (i32, i32) {
    %c0_i32 = arith.constant 0 : i32
    %c0_i32_0 = arith.constant 0 : i32
    return %c0_i32, %arg0 : i32, i32
  }
  func.func @transform_6(%arg0: i32) -> (i32, i32) {
    %c0_i32 = arith.constant 0 : i32
    %c0_i32_0 = arith.constant 0 : i32
    return %c0_i32, %arg0 : i32, i32
  }
}

module attributes {stable_mosaic.version = 11 : i64} {
  func.func @_conv_act_kernel(%arg0: i32, %arg1: memref<1x160x192xbf16, #tpu.memory_space<vmem>>, %arg2: memref<3x192x12xbf16, #tpu.memory_space<vmem>>, %arg3: memref<1x12xf32, #tpu.memory_space<vmem>>, %arg4: memref<1x128x12xf32, #tpu.memory_space<vmem>>) attributes {dimension_semantics = [#tpu.dimension_semantics<parallel>], iteration_bounds = array<i64: 1>, scalar_prefetch = 0 : i64, scratch_operands = 0 : i64, tpu.core_type = #tpu.core_type<tc>, window_params = [{transform_indices = @transform_0, window_bounds = array<i64: 1, 160, 192>}, {pipeline_mode = #tpu.pipeline_mode<synchronous>, transform_indices = @transform_1, window_bounds = array<i64: 3, 192, 12>}, {pipeline_mode = #tpu.pipeline_mode<synchronous>, transform_indices = @transform_2, window_bounds = array<i64: 1, 12>}, {transform_indices = @transform_3, window_bounds = array<i64: 1, 128, 12>}]} {
    %c0 = arith.constant 0 : index
    %c0_0 = arith.constant 0 : index
    %c0_1 = arith.constant 0 : index
    %0 = vector.load %arg1[%c0, %c0_0, %c0_1] : memref<1x160x192xbf16, #tpu.memory_space<vmem>>, vector<1x128x192xbf16>
    %1 = vector.shape_cast %0 : vector<1x128x192xbf16> to vector<128x192xbf16>
    %c0_2 = arith.constant 0 : index
    %c0_3 = arith.constant 0 : index
    %c0_4 = arith.constant 0 : index
    %2 = vector.load %arg2[%c0_2, %c0_3, %c0_4] : memref<3x192x12xbf16, #tpu.memory_space<vmem>>, vector<1x192x12xbf16>
    %3 = vector.shape_cast %2 : vector<1x192x12xbf16> to vector<192x12xbf16>
    %cst = arith.constant dense<0.000000e+00> : vector<128x12xf32>
    %4 = tpu.matmul %1, %3, %cst {dimension_numbers = #tpu.dot_dimension_numbers<[1], [0], [0], [1], [0, 0, 1, 1], [], []>} : vector<128x192xbf16>, vector<192x12xbf16>, vector<128x12xf32> -> vector<128x12xf32>
    %c0_5 = arith.constant 0 : index
    %c16 = arith.constant 16 : index
    %c0_6 = arith.constant 0 : index
    %5 = vector.load %arg1[%c0_5, %c16, %c0_6] : memref<1x160x192xbf16, #tpu.memory_space<vmem>>, vector<1x128x192xbf16>
    %6 = vector.shape_cast %5 : vector<1x128x192xbf16> to vector<128x192xbf16>
    %c1 = arith.constant 1 : index
    %c0_7 = arith.constant 0 : index
    %c0_8 = arith.constant 0 : index
    %7 = vector.load %arg2[%c1, %c0_7, %c0_8] : memref<3x192x12xbf16, #tpu.memory_space<vmem>>, vector<1x192x12xbf16>
    %8 = vector.shape_cast %7 : vector<1x192x12xbf16> to vector<192x12xbf16>
    %cst_9 = arith.constant dense<0.000000e+00> : vector<128x12xf32>
    %9 = tpu.matmul %6, %8, %cst_9 {dimension_numbers = #tpu.dot_dimension_numbers<[1], [0], [0], [1], [0, 0, 1, 1], [], []>} : vector<128x192xbf16>, vector<192x12xbf16>, vector<128x12xf32> -> vector<128x12xf32>
    %10 = arith.addf %4, %9 : vector<128x12xf32>
    %c0_10 = arith.constant 0 : index
    %c32 = arith.constant 32 : index
    %c0_11 = arith.constant 0 : index
    %11 = vector.load %arg1[%c0_10, %c32, %c0_11] : memref<1x160x192xbf16, #tpu.memory_space<vmem>>, vector<1x128x192xbf16>
    %12 = vector.shape_cast %11 : vector<1x128x192xbf16> to vector<128x192xbf16>
    %c2 = arith.constant 2 : index
    %c0_12 = arith.constant 0 : index
    %c0_13 = arith.constant 0 : index
    %13 = vector.load %arg2[%c2, %c0_12, %c0_13] : memref<3x192x12xbf16, #tpu.memory_space<vmem>>, vector<1x192x12xbf16>
    %14 = vector.shape_cast %13 : vector<1x192x12xbf16> to vector<192x12xbf16>
    %cst_14 = arith.constant dense<0.000000e+00> : vector<128x12xf32>
    %15 = tpu.matmul %12, %14, %cst_14 {dimension_numbers = #tpu.dot_dimension_numbers<[1], [0], [0], [1], [0, 0, 1, 1], [], []>} : vector<128x192xbf16>, vector<192x12xbf16>, vector<128x12xf32> -> vector<128x12xf32>
    %16 = arith.addf %10, %15 : vector<128x12xf32>
    %c0_15 = arith.constant 0 : index
    %c0_16 = arith.constant 0 : index
    %17 = vector.load %arg3[%c0_15, %c0_16] : memref<1x12xf32, #tpu.memory_space<vmem>>, vector<1x12xf32>
    %18 = vector.broadcast %17 : vector<1x12xf32> to vector<128x12xf32>
    %19 = arith.addf %16, %18 : vector<128x12xf32>
    %20 = arith.negf %19 : vector<128x12xf32>
    %21 = math.exp %20 : vector<128x12xf32>
    %cst_17 = arith.constant 1.000000e+00 : f32
    %22 = vector.broadcast %cst_17 : f32 to vector<128x12xf32>
    %23 = arith.addf %22, %21 : vector<128x12xf32>
    %24 = arith.divf %22, %23 : vector<128x12xf32>
    %c0_18 = arith.constant 0 : index
    %c0_19 = arith.constant 0 : index
    %c0_20 = arith.constant 0 : index
    %25 = vector.load %arg4[%c0_18, %c0_19, %c0_20] : memref<1x128x12xf32, #tpu.memory_space<vmem>>, vector<1x128x12xf32>
    %26 = vector.shape_cast %25 : vector<1x128x12xf32> to vector<128x12xf32>
    %27 = vector.shape_cast %24 : vector<128x12xf32> to vector<1x128x12xf32>
    tpu.vector_store %arg4[%c0_18, %c0_19, %c0_20], %27 {strides = array<i32>} : memref<1x128x12xf32, #tpu.memory_space<vmem>>, vector<1x128x12xf32>,
    return
  }
  func.func @transform_0(%arg0: i32) -> (i32, i32, i32) {
    %c0_i32 = arith.constant 0 : i32
    %c0_i32_0 = arith.constant 0 : i32
    %c0_i32_1 = arith.constant 0 : i32
    return %arg0, %c0_i32, %c0_i32_0 : i32, i32, i32
  }
  func.func @transform_1(%arg0: i32) -> (i32, i32, i32) {
    %c0_i32 = arith.constant 0 : i32
    %c0_i32_0 = arith.constant 0 : i32
    %c0_i32_1 = arith.constant 0 : i32
    %c0_i32_2 = arith.constant 0 : i32
    return %c0_i32, %c0_i32_0, %c0_i32_1 : i32, i32, i32
  }
  func.func @transform_2(%arg0: i32) -> (i32, i32) {
    %c0_i32 = arith.constant 0 : i32
    %c0_i32_0 = arith.constant 0 : i32
    %c0_i32_1 = arith.constant 0 : i32
    return %c0_i32, %c0_i32_0 : i32, i32
  }
  func.func @transform_3(%arg0: i32) -> (i32, i32, i32) {
    %c0_i32 = arith.constant 0 : i32
    %c0_i32_0 = arith.constant 0 : i32
    %c0_i32_1 = arith.constant 0 : i32
    return %arg0, %c0_i32, %c0_i32_0 : i32, i32, i32
  }
}

</mosaic_0001>

<llo_original>
// kernel: engine_forward.13
$region0: #{engine_forward.13}
  #allocation0 [shape = 'u32[]', space=smem, size = 0x4, offset = 0x4, fixed_abs, tag = 'smem constant byte address 0x4 - core index']
  #allocation1 [shape = 'u32[144,128]{1,0:T(1,128)}', space=vmem, size = 0x12000, scoped, tag = 'internal scratch']
  #allocation2 [shape = 'f32[1,128]{1,0:T(1,128)}', space=vmem, size = 0x200, scoped, tag = 'scratch operand']
  #allocation3 [shape = 'f32[1,128]{1,0:T(1,128)}', space=vmem, size = 0x200, scoped, tag = 'scratch operand']
  %s0 = inlined_call_operand.hbm [shape: f32[16,128], index: 0, kind: input, shape index: {}]
  %s1 = inlined_call_operand.hbm [shape: f32[1,128], index: 1, kind: input, shape index: {}]
  %s2 = inlined_call_operand.hbm [shape: f32[1,128], index: 2, kind: input, shape index: {}]
  %s3 = inlined_call_operand.vmem [shape: f32[1,128], index: 3, kind: output, shape index: {0}]
  %s4 = inlined_call_operand.vmem [shape: f32[1,128], index: 4, kind: output, shape index: {1}]
  %5 = xla_tuple %s3, %s4
  %s6 = sld [smem:[#allocation0]]
  $region50: #{engine_forward.13} parent=0
    _
  %s8 = ssub.s32 1, %s6
  %s9 = scalar_select 0, %s8, %s6
  $region1: #{engine_forward.13} parent=0
    #allocation4 [shape = 'u8[8192]{0}', space=vmem, size = 0x2000, scoped, tag = 'input window, operand 0, single buffered']
    #allocation5 [shape = 's32[1]{0}', space=sflag, size = 0x4, scoped, tag = 'scoped memory for engine_forward.13']
    #allocation6 [shape = 'u8[512]{0}', space=vmem, size = 0x400, scoped, tag = 'input window, operand 1, single buffered']
    #allocation7 [shape = 's32[1]{0}', space=sflag, size = 0x4, scoped, tag = 'scoped memory for engine_forward.13']
    #allocation8 [shape = 'u8[512]{0}', space=vmem, size = 0x400, scoped, tag = 'input window, operand 2, single buffered']
    %10 = vsyncpa [#allocation5], 0
    %11 = vsyncpa [#allocation7], 0
    // Predicated region
    $region2: #{engine_forward.13} parent=1 // pred_check
      _
    $region3: #{engine_forward.13} parent=1 // pred_check_branch
      %13 = sbr.rel (0) target = $region5
    $region4: #{engine_forward.13} parent=1 // pred_region
      %s15 = ssub.s32 256, 256
      %16 = vsyncadd [#allocation5], %s15
      %s17 = sshll.u32 [#allocation4], 4
      %s18 = int_to_ptr.vmem [resolvable:$true] %s17
      %23 = dma.hbm_to_vmem [thread:$0]  %s0, 256, %s18, [#allocation5], 128, 128, 8
    $region5: #{engine_forward.13} parent=1 // pred_fallthru
      _
    // Predicated region
    $region6: #{engine_forward.13} parent=1 // pred_check
      _
    $region7: #{engine_forward.13} parent=1 // pred_check_branch
      %25 = sbr.rel (0) target = $region9
    $region8: #{engine_forward.13} parent=1 // pred_region
      %s27 = ssub.s32 16, 16
      %28 = vsyncadd [#allocation7], %s27
      %s30 = sshll.u32 [#allocation6], 4
      %s31 = int_to_ptr.vmem [resolvable:$true] %s30
      %33 = dma.hbm_to_vmem [thread:$0]  %s1, 16, %s31, [#allocation7]
    $region9: #{engine_forward.13} parent=1 // pred_fallthru
      _
    // Predicated region
    $region10: #{engine_forward.13} parent=1 // pred_check
      _
    $region11: #{engine_forward.13} parent=1 // pred_check_branch
      %35 = sbr.rel (0) target = $region13
    $region12: #{engine_forward.13} parent=1 // pred_region
      %s37 = ssub.s32 16, 16
      %38 = vsyncadd [#allocation7], %s37
      %s40 = sshll.u32 [#allocation8], 4
      %s41 = int_to_ptr.vmem [resolvable:$true] %s40
      %43 = dma.hbm_to_vmem [thread:$0]  %s2, 16, %s41, [#allocation7]
    $region13: #{engine_forward.13} parent=1 // pred_fallthru
      _
    // Predicated region
    $region14: #{engine_forward.13} parent=1 // pred_check
      _
    $region15: #{engine_forward.13} parent=1 // pred_check_branch
      %45 = sbr.rel (0) target = $region17
    $region16: #{engine_forward.13} parent=1 // pred_region
      %46 = dma.done [#allocation5], 256
    $region17: #{engine_forward.13} parent=1 // pred_fallthru
      _
    // Predicated region
    $region18: #{engine_forward.13} parent=1 // pred_check
      _
    $region19: #{engine_forward.13} parent=1 // pred_check_branch
      %48 = sbr.rel (0) target = $region21
    $region20: #{engine_forward.13} parent=1 // pred_region
      %49 = dma.done [#allocation7], 16
    $region21: #{engine_forward.13} parent=1 // pred_fallthru
      _
    // Predicated region
    $region22: #{engine_forward.13} parent=1 // pred_check
      _
    $region23: #{engine_forward.13} parent=1 // pred_check_branch
      %51 = sbr.rel (0) target = $region25
    $region24: #{engine_forward.13} parent=1 // pred_region
      %52 = dma.done [#allocation7], 16
    $region25: #{engine_forward.13} parent=1 // pred_fallthru
      _
    %p53 = scmp.eq.s32.totalorder 0, 0
    // Predicated region
    $region26: #{engine_forward.13} parent=1 // pred_check
      %p54 = pneg %p53
    $region27: #{engine_forward.13} parent=1 // pred_check_branch
      %56 = sbr.rel (%p54) target = $region29
    $region28: #{engine_forward.13} parent=1 // pred_region
      %57 = vst [vmem:[#allocation2] sm:$0x1] 0.0
      %58 = vst [vmem:[#allocation3] sm:$0x1] 0.0
    $region29: #{engine_forward.13} parent=1 // pred_fallthru
      _
    %v59 = vld [vmem:[#allocation4] sm:$0xff]
    %v60 = vld [vmem:[#allocation4 + $0x8] sm:$0xff]
    %v61 = vld [vmem:[#allocation2] sm:$0x1]
    %v62 = vadd.f32 %v59, %v60
    %v63 = vrot.slane %v62, 4
    %v64 = vadd.f32 %v62, %v63
    %v65 = vrot.slane %v64, 2
    %v66 = vadd.f32 %v64, %v65
    %v67 = vrot.slane %v66, 1
    %v68 = vadd.f32 %v66, %v67
    %v69 = vadd.f32 %v61, %v68
    %70 = vst [vmem:[#allocation2] sm:$0x1] %v69
    %v71 = vld [vmem:[#allocation3] sm:$0x1]
    %v72 = vmul.f32 %v59, %v59
    %v73 = vmul.f32 %v60, %v60
    %v74 = vadd.f32 %v72, %v73
    %v75 = vrot.slane %v74, 4
    %v76 = vadd.f32 %v74, %v75
    %v77 = vrot.slane %v76, 2
    %v78 = vadd.f32 %v76, %v77
    %v79 = vrot.slane %v78, 1
    %v80 = vadd.f32 %v78, %v79
    %v81 = vadd.f32 %v71, %v80
    %82 = vst [vmem:[#allocation3] sm:$0x1] %v81
    // Predicated region
    $region30: #{engine_forward.13} parent=1 // pred_check
      %p83 = pneg %p53
    $region31: #{engine_forward.13} parent=1 // pred_check_branch
      %85 = sbr.rel (%p83) target = $region33
    $region32: #{engine_forward.13} parent=1 // pred_region
      %v86 = vld [vmem:[#allocation2] sm:$0x1]
      %v87 = vrcp.pop 16.0
      %v88 = vmul.f32 %v86, %v87
      %v89 = vld [vmem:[#allocation3] sm:$0x1]
      %v90 = vmul.f32 %v89, %v87
      %v91 = vmul.f32 %v88, %v88
      %v92 = vsub.f32 %v90, %v91
      %v93 = vadd.f32 %v92, 1e-05
      %v94 = vrsqrt.pop %v93
      %v95 = vld [vmem:[#allocation6] sm:$0x1]
      %v96 = vmul.f32 %v95, %v94
      %97 = vst [vmem:[%s3] sm:$0x1] %v96
      %v98 = vld [vmem:[#allocation8] sm:$0x1]
      %v99 = vmul.f32 %v88, %v96
      %v100 = vsub.f32 %v98, %v99
      %101 = vst [vmem:[%s4] sm:$0x1] %v100
    $region33: #{engine_forward.13} parent=1 // pred_fallthru
      _
    // Predicated region
    $region34: #{engine_forward.13} parent=1 // pred_check
      _
    $region35: #{engine_forward.13} parent=1 // pred_check_branch
      %103 = sbr.rel (0) target = $region37
    $region36: #{engine_forward.13} parent=1 // pred_region
      _
    $region37: #{engine_forward.13} parent=1 // pred_fallthru
      _
    // Predicated region
    $region38: #{engine_forward.13} parent=1 // pred_check
      _
    $region39: #{engine_forward.13} parent=1 // pred_check_branch
      %105 = sbr.rel (0) target = $region41
    $region40: #{engine_forward.13} parent=1 // pred_region
      _
    $region41: #{engine_forward.13} parent=1 // pred_fallthru
      _
    // Predicated region
    $region42: #{engine_forward.13} parent=1 // pred_check
      _
    $region43: #{engine_forward.13} parent=1 // pred_check_branch
      %107 = sbr.rel (0) target = $region45
    $region44: #{engine_forward.13} parent=1 // pred_region
      _
    $region45: #{engine_forward.13} parent=1 // pred_fallthru
      _
    // Predicated region
    $region46: #{engine_forward.13} parent=1 // pred_check
      _
    $region47: #{engine_forward.13} parent=1 // pred_check_branch
      %109 = sbr.rel (0) target = $region49
    $region48: #{engine_forward.13} parent=1 // pred_region
      _
    $region49: #{engine_forward.13} parent=1 // pred_fallthru
      _
    %110 = vsyncpa [#allocation5], 1
    %111 = vsyncpa [#allocation7], 1

// kernel: engine_forward.19
$region0: #{engine_forward.19}
  #allocation0 [shape = 'u32[]', space=smem, size = 0x4, offset = 0x4, fixed_abs, tag = 'smem constant byte address 0x4 - core index']
  #allocation1 [shape = 'u32[144,128]{1,0:T(1,128)}', space=vmem, size = 0x12000, scoped, tag = 'internal scratch']
  #allocation2 [shape = 'f32[1,128]{1,0:T(1,128)}', space=vmem, size = 0x200, scoped, tag = 'scratch operand']
  #allocation3 [shape = 'f32[1,128]{1,0:T(1,128)}', space=vmem, size = 0x200, scoped, tag = 'scratch operand']
  %s0 = inlined_call_operand.vmem [shape: f32[16,128], index: 0, kind: input, shape index: {}]
  %s1 = inlined_call_operand.vmem [shape: f32[1,128], index: 1, kind: input, shape index: {}]
  %s2 = inlined_call_operand.vmem [shape: f32[1,128], index: 2, kind: input, shape index: {}]
  %s3 = inlined_call_operand.vmem [shape: f32[1,128], index: 3, kind: output, shape index: {0}]
  %s4 = inlined_call_operand.vmem [shape: f32[1,128], index: 4, kind: output, shape index: {1}]
  %5 = xla_tuple %s3, %s4
  %s6 = sld [smem:[#allocation0]]
  $region38: #{engine_forward.19} parent=0
    _
  %s8 = ssub.s32 1, %s6
  %s9 = scalar_select 0, %s8, %s6
  // Predicated region
  $region2: #{engine_forward.19} parent=0 // pred_check
    _
  $region3: #{engine_forward.19} parent=0 // pred_check_branch
    %11 = sbr.rel (0) target = $region5
  $region4: #{engine_forward.19} parent=0 // pred_region
    _
  $region5: #{engine_forward.19} parent=0 // pred_fallthru
    _
  // Predicated region
  $region6: #{engine_forward.19} parent=0 // pred_check
    _
  $region7: #{engine_forward.19} parent=0 // pred_check_branch
    %13 = sbr.rel (0) target = $region9
  $region8: #{engine_forward.19} parent=0 // pred_region
    _
  $region9: #{engine_forward.19} parent=0 // pred_fallthru
    _
  // Predicated region
  $region10: #{engine_forward.19} parent=0 // pred_check
    _
  $region11: #{engine_forward.19} parent=0 // pred_check_branch
    %15 = sbr.rel (0) target = $region13
  $region12: #{engine_forward.19} parent=0 // pred_region
    _
  $region13: #{engine_forward.19} parent=0 // pred_fallthru
    _
  %p16 = scmp.eq.s32.totalorder 0, 0
  // Predicated region
  $region14: #{engine_forward.19} parent=0 // pred_check
    %p17 = pneg %p16
  $region15: #{engine_forward.19} parent=0 // pred_check_branch
    %19 = sbr.rel (%p17) target = $region17
  $region16: #{engine_forward.19} parent=0 // pred_region
    %20 = vst [vmem:[#allocation2] sm:$0x1] 0.0
    %21 = vst [vmem:[#allocation3] sm:$0x1] 0.0
  $region17: #{engine_forward.19} parent=0 // pred_fallthru
    _
  %v22 = vld [vmem:[%s0] sm:$0xff]
  %v23 = vld [vmem:[%s0 + $0x8] sm:$0xff]
  %v24 = vld [vmem:[#allocation2] sm:$0x1]
  %v25 = vadd.f32 %v22, %v23
  %v26 = vrot.slane %v25, 4
  %v27 = vadd.f32 %v25, %v26
  %v28 = vrot.slane %v27, 2
  %v29 = vadd.f32 %v27, %v28
  %v30 = vrot.slane %v29, 1
  %v31 = vadd.f32 %v29, %v30
  %v32 = vadd.f32 %v24, %v31
  %33 = vst [vmem:[#allocation2] sm:$0x1] %v32
  %v34 = vld [vmem:[#allocation3] sm:$0x1]
  %v35 = vmul.f32 %v22, %v22
  %v36 = vmul.f32 %v23, %v23
  %v37 = vadd.f32 %v35, %v36
  %v38 = vrot.slane %v37, 4
  %v39 = vadd.f32 %v37, %v38
  %v40 = vrot.slane %v39, 2
  %v41 = vadd.f32 %v39, %v40
  %v42 = vrot.slane %v41, 1
  %v43 = vadd.f32 %v41, %v42
  %v44 = vadd.f32 %v34, %v43
  %45 = vst [vmem:[#allocation3] sm:$0x1] %v44
  // Predicated region
  $region18: #{engine_forward.19} parent=0 // pred_check
    %p46 = pneg %p16
  $region19: #{engine_forward.19} parent=0 // pred_check_branch
    %48 = sbr.rel (%p46) target = $region21
  $region20: #{engine_forward.19} parent=0 // pred_region
    %v49 = vld [vmem:[#allocation2] sm:$0x1]
    %v50 = vrcp.pop 16.0
    %v51 = vmul.f32 %v49, %v50
    %v52 = vld [vmem:[#allocation3] sm:$0x1]
    %v53 = vmul.f32 %v52, %v50
    %v54 = vmul.f32 %v51, %v51
    %v55 = vsub.f32 %v53, %v54
    %v56 = vadd.f32 %v55, 1e-05
    %v57 = vrsqrt.pop %v56
    %v58 = vld [vmem:[%s1] sm:$0x1]
    %v59 = vmul.f32 %v58, %v57
    %60 = vst [vmem:[%s3] sm:$0x1] %v59
    %v61 = vld [vmem:[%s2] sm:$0x1]
    %v62 = vmul.f32 %v51, %v59
    %v63 = vsub.f32 %v61, %v62
    %64 = vst [vmem:[%s4] sm:$0x1] %v63
  $region21: #{engine_forward.19} parent=0 // pred_fallthru
    _
  // Predicated region
  $region22: #{engine_forward.19} parent=0 // pred_check
    _
  $region23: #{engine_forward.19} parent=0 // pred_check_branch
    %66 = sbr.rel (0) target = $region25
  $region24: #{engine_forward.19} parent=0 // pred_region
    _
  $region25: #{engine_forward.19} parent=0 // pred_fallthru
    _
  // Predicated region
  $region26: #{engine_forward.19} parent=0 // pred_check
    _
  $region27: #{engine_forward.19} parent=0 // pred_check_branch
    %68 = sbr.rel (0) target = $region29
  $region28: #{engine_forward.19} parent=0 // pred_region
    _
  $region29: #{engine_forward.19} parent=0 // pred_fallthru
    _
  // Predicated region
  $region30: #{engine_forward.19} parent=0 // pred_check
    _
  $region31: #{engine_forward.19} parent=0 // pred_check_branch
    %70 = sbr.rel (0) target = $region33
  $region32: #{engine_forward.19} parent=0 // pred_region
    _
  $region33: #{engine_forward.19} parent=0 // pred_fallthru
    _
  // Predicated region
  $region34: #{engine_forward.19} parent=0 // pred_check
    _
  $region35: #{engine_forward.19} parent=0 // pred_check_branch
    %72 = sbr.rel (0) target = $region37
  $region36: #{engine_forward.19} parent=0 // pred_region
    _
  $region37: #{engine_forward.19} parent=0 // pred_fallthru
    _

// kernel: engine_forward.14
$region0: #{engine_forward.14}
  #allocation0 [shape = 'u32[]', space=smem, size = 0x4, offset = 0x4, fixed_abs, tag = 'smem constant byte address 0x4 - core index']
  #allocation1 [shape = 'u32[144,128]{1,0:T(1,128)}', space=vmem, size = 0x12000, scoped, tag = 'internal scratch']
  %s0 = inlined_call_operand.vmem [shape: bf16[1,96,384], index: 0, kind: input, shape index: {}]
  %s1 = inlined_call_operand.vmem [shape: bf16[3,384,128], index: 1, kind: input, shape index: {}]
  %s2 = inlined_call_operand.vmem [shape: f32[1,128], index: 2, kind: input, shape index: {}]
  %s3 = inlined_call_operand.vmem [shape: f32[1,64,128], index: 3, kind: output, shape index: {0}]
  %s4 = inlined_call_operand.vmem [shape: bf16[1,64,128], index: 4, kind: output, shape index: {1}]
  %5 = xla_tuple %s3, %s4
  %s6 = sld [smem:[#allocation0]]
  $region30: #{engine_forward.14} parent=0
    _
  %s8 = ssub.s32 1, %s6
  %s9 = scalar_select 0, %s8, %s6
  // Predicated region
  $region2: #{engine_forward.14} parent=0 // pred_check
    _
  $region3: #{engine_forward.14} parent=0 // pred_check_branch
    %11 = sbr.rel (0) target = $region5
  $region4: #{engine_forward.14} parent=0 // pred_region
    _
  $region5: #{engine_forward.14} parent=0 // pred_fallthru
    _
  // Predicated region
  $region6: #{engine_forward.14} parent=0 // pred_check
    _
  $region7: #{engine_forward.14} parent=0 // pred_check_branch
    %13 = sbr.rel (0) target = $region9
  $region8: #{engine_forward.14} parent=0 // pred_region
    _
  $region9: #{engine_forward.14} parent=0 // pred_fallthru
    _
  // Predicated region
  $region10: #{engine_forward.14} parent=0 // pred_check
    _
  $region11: #{engine_forward.14} parent=0 // pred_check_branch
    %15 = sbr.rel (0) target = $region13
  $region12: #{engine_forward.14} parent=0 // pred_region
    _
  $region13: #{engine_forward.14} parent=0 // pred_fallthru
    _
  %v17 = vld [vmem:[%s0] sm:$0xff]
  %v18 = vld [vmem:[%s0 + $0x8] sm:$0xf]
  %v19 = vld [vmem:[%s0 + $0xc] sm:$0xff]
  %v20 = vld [vmem:[%s0 + $0x14] sm:$0xf]
  %v21 = vld [vmem:[%s0 + $0x18] sm:$0xff]
  %v22 = vld [vmem:[%s0 + $0x20] sm:$0xf]
  %v23 = vld [vmem:[%s0 + $0x24] sm:$0xff]
  %v24 = vld [vmem:[%s0 + $0x2c] sm:$0xf]
  %v25 = vld [vmem:[%s0 + $0x30] sm:$0xff]
  %v26 = vld [vmem:[%s0 + $0x38] sm:$0xf]
  %v27 = vld [vmem:[%s0 + $0x3c] sm:$0xff]
  %v28 = vld [vmem:[%s0 + $0x44] sm:$0xf]
  %v29 = vld [vmem:[%s0 + $0x48] sm:$0xff]
  %v30 = vld [vmem:[%s0 + $0x50] sm:$0xf]
  %v31 = vld [vmem:[%s0 + $0x54] sm:$0xff]
  %v32 = vld [vmem:[%s0 + $0x5c] sm:$0xf]
  %v33 = vld [vmem:[%s1] sm:$0xf]
  %v34 = vld [vmem:[%s1 + $0x4] sm:$0xf]
  %v35 = vld [vmem:[%s1 + $0x8] sm:$0xf]
  %v36 = vld [vmem:[%s1 + $0xc] sm:$0xf]
  %v37 = vld [vmem:[%s1 + $0x10] sm:$0xf]
  %v38 = vld [vmem:[%s1 + $0x14] sm:$0xf]
  %v39 = vld [vmem:[%s1 + $0x18] sm:$0xf]
  %v40 = vld [vmem:[%s1 + $0x1c] sm:$0xf]
  %v41 = vld [vmem:[%s1 + $0x20] sm:$0xf]
  %v42 = vld [vmem:[%s1 + $0x24] sm:$0xf]
  %v43 = vld [vmem:[%s1 + $0x28] sm:$0xf]
  %v44 = vld [vmem:[%s1 + $0x2c] sm:$0xf]
  %v45 = vld [vmem:[%s1 + $0x30] sm:$0xf]
  %v46 = vld [vmem:[%s1 + $0x34] sm:$0xf]
  %v47 = vld [vmem:[%s1 + $0x38] sm:$0xf]
  %v48 = vld [vmem:[%s1 + $0x3c] sm:$0xf]
  %v49 = vld [vmem:[%s1 + $0x40] sm:$0xf]
  %v50 = vld [vmem:[%s1 + $0x44] sm:$0xf]
  %v51 = vld [vmem:[%s1 + $0x48] sm:$0xf]
  %v52 = vld [vmem:[%s1 + $0x4c] sm:$0xf]
  %v53 = vld [vmem:[%s1 + $0x50] sm:$0xf]
  %v54 = vld [vmem:[%s1 + $0x54] sm:$0xf]
  %v55 = vld [vmem:[%s1 + $0x58] sm:$0xf]
  %v56 = vld [vmem:[%s1 + $0x5c] sm:$0xf]
  %v57 = vld [vmem:[%s1 + $0x60] sm:$0xf]
  %v58 = vld [vmem:[%s1 + $0x64] sm:$0xf]
  %v59 = vld [vmem:[%s1 + $0x68] sm:$0xf]
  %v60 = vld [vmem:[%s1 + $0x6c] sm:$0xf]
  %v61 = vld [vmem:[%s1 + $0x70] sm:$0xf]
  %v62 = vld [vmem:[%s1 + $0x74] sm:$0xf]
  %v63 = vld [vmem:[%s1 + $0x78] sm:$0xf]
  %v64 = vld [vmem:[%s1 + $0x7c] sm:$0xf]
  %v65 = vld [vmem:[%s1 + $0x80] sm:$0xf]
  %v66 = vld [vmem:[%s1 + $0x84] sm:$0xf]
  %v67 = vld [vmem:[%s1 + $0x88] sm:$0xf]
  %v68 = vld [vmem:[%s1 + $0x8c] sm:$0xf]
  %v69 = vld [vmem:[%s1 + $0x90] sm:$0xf]
  %v70 = vld [vmem:[%s1 + $0x94] sm:$0xf]
  %v71 = vld [vmem:[%s1 + $0x98] sm:$0xf]
  %v72 = vld [vmem:[%s1 + $0x9c] sm:$0xf]
  %v73 = vld [vmem:[%s1 + $0xa0] sm:$0xf]
  %v74 = vld [vmem:[%s1 + $0xa4] sm:$0xf]
  %v75 = vld [vmem:[%s1 + $0xa8] sm:$0xf]
  %v76 = vld [vmem:[%s1 + $0xac] sm:$0xf]
  %v77 = vld [vmem:[%s1 + $0xb0] sm:$0xf]
  %v78 = vld [vmem:[%s1 + $0xb4] sm:$0xf]
  %v79 = vld [vmem:[%s1 + $0xb8] sm:$0xf]
  %v80 = vld [vmem:[%s1 + $0xbc] sm:$0xf]
  %v81 = vld [vmem:[%s0 + $0x60] sm:$0xff]
  %v82 = vld [vmem:[%s0 + $0x68] sm:$0xf]
  %v83 = vld [vmem:[%s0 + $0x6c] sm:$0xff]
  %v84 = vld [vmem:[%s0 + $0x74] sm:$0xf]
  %s85 = scalar_lea.vmem %s1, 192
  %v86 = vld [vmem:[%s85] sm:$0xf]
  %v87 = vld [vmem:[%s85 + $0x4] sm:$0xf]
  %v88 = vld [vmem:[%s85 + $0x8] sm:$0xf]
  %v89 = vld [vmem:[%s85 + $0xc] sm:$0xf]
  %v90 = vld [vmem:[%s85 + $0x10] sm:$0xf]
  %v91 = vld [vmem:[%s85 + $0x14] sm:$0xf]
  %v92 = vld [vmem:[%s85 + $0x18] sm:$0xf]
  %v93 = vld [vmem:[%s85 + $0x1c] sm:$0xf]
  %v94 = vld [vmem:[%s85 + $0x20] sm:$0xf]
  %v95 = vld [vmem:[%s85 + $0x24] sm:$0xf]
  %v96 = vld [vmem:[%s85 + $0x28] sm:$0xf]
  %v97 = vld [vmem:[%s85 + $0x2c] sm:$0xf]
  %v98 = vld [vmem:[%s85 + $0x30] sm:$0xf]
  %v99 = vld [vmem:[%s85 + $0x34] sm:$0xf]
  %v100 = vld [vmem:[%s85 + $0x38] sm:$0xf]
  %v101 = vld [vmem:[%s85 + $0x3c] sm:$0xf]
  %v102 = vld [vmem:[%s85 + $0x40] sm:$0xf]
  %v103 = vld [vmem:[%s85 + $0x44] sm:$0xf]
  %v104 = vld [vmem:[%s85 + $0x48] sm:$0xf]
  %v105 = vld [vmem:[%s85 + $0x4c] sm:$0xf]
  %v106 = vld [vmem:[%s85 + $0x50] sm:$0xf]
  %v107 = vld [vmem:[%s85 + $0x54] sm:$0xf]
  %v108 = vld [vmem:[%s85 + $0x58] sm:$0xf]
  %v109 = vld [vmem:[%s85 + $0x5c] sm:$0xf]
  %v110 = vld [vmem:[%s85 + $0x60] sm:$0xf]
  %v111 = vld [vmem:[%s85 + $0x64] sm:$0xf]
  %v112 = vld [vmem:[%s85 + $0x68] sm:$0xf]
  %v113 = vld [vmem:[%s85 + $0x6c] sm:$0xf]
  %v114 = vld [vmem:[%s85 + $0x70] sm:$0xf]
  %v115 = vld [vmem:[%s85 + $0x74] sm:$0xf]
  %v116 = vld [vmem:[%s85 + $0x78] sm:$0xf]
  %v117 = vld [vmem:[%s85 + $0x7c] sm:$0xf]
  %v118 = vld [vmem:[%s85 + $0x80] sm:$0xf]
  %v119 = vld [vmem:[%s85 + $0x84] sm:$0xf]
  %v120 = vld [vmem:[%s85 + $0x88] sm:$0xf]
  %v121 = vld [vmem:[%s85 + $0x8c] sm:$0xf]
  %v122 = vld [vmem:[%s85 + $0x90] sm:$0xf]
  %v123 = vld [vmem:[%s85 + $0x94] sm:$0xf]
  %v124 = vld [vmem:[%s85 + $0x98] sm:$0xf]
  %v125 = vld [vmem:[%s85 + $0x9c] sm:$0xf]
  %v126 = vld [vmem:[%s85 + $0xa0] sm:$0xf]
  %v127 = vld [vmem:[%s85 + $0xa4] sm:$0xf]
  %v128 = vld [vmem:[%s85 + $0xa8] sm:$0xf]
  %v129 = vld [vmem:[%s85 + $0xac] sm:$0xf]
  %v130 = vld [vmem:[%s85 + $0xb0] sm:$0xf]
  %v131 = vld [vmem:[%s85 + $0xb4] sm:$0xf]
  %v132 = vld [vmem:[%s85 + $0xb8] sm:$0xf]
  %v133 = vld [vmem:[%s85 + $0xbc] sm:$0xf]
  %v150 = vunpack.c.l.b16 %v21
  %v151 = vunpack.c.h.b16 %v21
  %v152 = vunpack.c.l.b16 %v22
  %v153 = vunpack.c.l.b16 %v23
  %v154 = vunpack.c.h.b16 %v23
  %v155 = vunpack.c.l.b16 %v24
  %v156 = vunpack.c.l.b16 %v25
  %v157 = vunpack.c.h.b16 %v25
  %v158 = vunpack.c.l.b16 %v26
  %v159 = vunpack.c.l.b16 %v27
  %v160 = vunpack.c.h.b16 %v27
  %v161 = vunpack.c.l.b16 %v28
  %v162 = vunpack.c.l.b16 %v29
  %v163 = vunpack.c.h.b16 %v29
  %v164 = vunpack.c.l.b16 %v30
  %v165 = vunpack.c.l.b16 %v31
  %v166 = vunpack.c.h.b16 %v31
  %v167 = vunpack.c.l.b16 %v32
  %v168 = vunpack.c.l.b16 %v81
  %v169 = vunpack.c.h.b16 %v81
  %v170 = vunpack.c.l.b16 %v82
  %v171 = vunpack.c.l.b16 %v83
  %v172 = vunpack.c.h.b16 %v83
  %v173 = vunpack.c.l.b16 %v84
  %v174 = vpack.c.b16 %v153, %v150
  %v175 = vpack.c.b16 %v154, %v151
  %v176 = vpack.c.b16 %v155, %v152
  %v177 = vpack.c.b16 %v159, %v156
  %v178 = vpack.c.b16 %v160, %v157
  %v179 = vpack.c.b16 %v161, %v158
  %v180 = vpack.c.b16 %v165, %v162
  %v181 = vpack.c.b16 %v166, %v163
  %v182 = vpack.c.b16 %v167, %v164
  %v183 = vpack.c.b16 %v171, %v168
  %v184 = vpack.c.b16 %v172, %v169
  %v185 = vpack.c.b16 %v173, %v170
  %v246 = vunpack.c.l.b16 %v86
  %v247 = vunpack.c.l.b16 %v87
  %v248 = vunpack.c.l.b16 %v88
  %v249 = vunpack.c.l.b16 %v89
  %v250 = vunpack.c.l.b16 %v90
  %v251 = vunpack.c.l.b16 %v91
  %v252 = vunpack.c.l.b16 %v92
  %v253 = vunpack.c.l.b16 %v93
  %v254 = vunpack.c.l.b16 %v94
  %v255 = vunpack.c.l.b16 %v95
  %v256 = vunpack.c.l.b16 %v96
  %v257 = vunpack.c.l.b16 %v97
  %v258 = vunpack.c.l.b16 %v98
  %v259 = vunpack.c.l.b16 %v99
  %v260 = vunpack.c.l.b16 %v100
  %v261 = vunpack.c.l.b16 %v101
  %v262 = vunpack.c.l.b16 %v102
  %v263 = vunpack.c.l.b16 %v103
  %v264 = vunpack.c.l.b16 %v104
  %v265 = vunpack.c.l.b16 %v105
  %v266 = vunpack.c.l.b16 %v106
  %v267 = vunpack.c.l.b16 %v107
  %v268 = vunpack.c.l.b16 %v108
  %v269 = vunpack.c.l.b16 %v109
  %v270 = vunpack.c.l.b16 %v110
  %v271 = vunpack.c.l.b16 %v111
  %v272 = vunpack.c.l.b16 %v112
  %v273 = vunpack.c.l.b16 %v113
  %v274 = vunpack.c.l.b16 %v114
  %v275 = vunpack.c.l.b16 %v115
  %v276 = vunpack.c.l.b16 %v116
  %v277 = vunpack.c.l.b16 %v117
  %v278 = vunpack.c.l.b16 %v118
  %v279 = vunpack.c.l.b16 %v119
  %v280 = vunpack.c.l.b16 %v120
  %v281 = vunpack.c.l.b16 %v121
  %v282 = vunpack.c.l.b16 %v122
  %v283 = vunpack.c.l.b16 %v123
  %v284 = vunpack.c.l.b16 %v124
  %v285 = vunpack.c.l.b16 %v125
  %v286 = vunpack.c.l.b16 %v126
  %v287 = vunpack.c.l.b16 %v127
  %v288 = vunpack.c.l.b16 %v128
  %v289 = vunpack.c.l.b16 %v129
  %v290 = vunpack.c.l.b16 %v130
  %v291 = vunpack.c.l.b16 %v131
  %v292 = vunpack.c.l.b16 %v132
  %v293 = vunpack.c.l.b16 %v133
  %v294 = vpack.c.b16 %v247, %v246
  %v295 = vpack.c.b16 %v249, %v248
  %v296 = vpack.c.b16 %v251, %v250
  %v297 = vpack.c.b16 %v253, %v252
  %v298 = vpack.c.b16 %v255, %v254
  %v299 = vpack.c.b16 %v257, %v256
  %v300 = vpack.c.b16 %v259, %v258
  %v301 = vpack.c.b16 %v261, %v260
  %v302 = vpack.c.b16 %v263, %v262
  %v303 = vpack.c.b16 %v265, %v264
  %v304 = vpack.c.b16 %v267, %v266
  %v305 = vpack.c.b16 %v269, %v268
  %v306 = vpack.c.b16 %v271, %v270
  %v307 = vpack.c.b16 %v273, %v272
  %v308 = vpack.c.b16 %v275, %v274
  %v309 = vpack.c.b16 %v277, %v276
  %v310 = vpack.c.b16 %v279, %v278
  %v311 = vpack.c.b16 %v281, %v280
  %v312 = vpack.c.b16 %v283, %v282
  %v313 = vpack.c.b16 %v285, %v284
  %v314 = vpack.c.b16 %v287, %v286
  %v315 = vpack.c.b16 %v289, %v288
  %v316 = vpack.c.b16 %v291, %v290
  %v317 = vpack.c.b16 %v293, %v292
  %342 = vmatprep.subr.bf16.mxu0 0
  %343 = vmatpush1.bf16.msra.mxu0 %v301
  %344 = vmatprep.subr.bf16.mxu0 0
  %345 = vmatpush1.bf16.msra.mxu0 %v300
  %346 = vmatprep.subr.bf16.mxu0 0
  %347 = vmatpush1.bf16.msra.mxu0 %v299
  %348 = vmatprep.subr.bf16.mxu0 0
  %349 = vmatpush1.bf16.msra.mxu0 %v298
  %350 = vmatprep.subr.bf16.mxu0 0
  %351 = vmatpush1.bf16.msra.mxu0 %v297
  %352 = vmatprep.subr.bf16.mxu0 0
  %353 = vmatpush1.bf16.msra.mxu0 %v296
  %354 = vmatprep.subr.bf16.mxu0 0
  %355 = vmatpush1.bf16.msra.mxu0 %v295
  %356 = vmatprep.subr.bf16.mxu0 0
  %357 = vmatpush1.bf16.msra.mxu0 %v294
  %358 = vmatprep.subr.bf16.mxu0 0
  %359 = vmatpush2.bf16.msra.mxu0 %v309
  %360 = vmatprep.subr.bf16.mxu0 0
  %361 = vmatpush2.bf16.msra.mxu0 %v308
  %362 = vmatprep.subr.bf16.mxu0 0
  %363 = vmatpush2.bf16.msra.mxu0 %v307
  %364 = vmatprep.subr.bf16.mxu0 0
  %365 = vmatpush2.bf16.msra.mxu0 %v306
  %366 = vmatprep.subr.bf16.mxu0 0
  %367 = vmatpush2.bf16.msra.mxu0 %v305
  %368 = vmatprep.subr.bf16.mxu0 0
  %369 = vmatpush2.bf16.msra.mxu0 %v304
  %370 = vmatprep.subr.bf16.mxu0 0
  %371 = vmatpush2.bf16.msra.mxu0 %v303
  %372 = vmatprep.subr.bf16.mxu0 0
  %373 = vmatpush2.bf16.msra.mxu0 %v302
  %374 = vmatprep.mubr.bf16.mxu0 %v175
  %375 = vmatmul.mubr.bf16.gmra.mxu0 %v174
  %v376 = vpop.f32.mrf.mxu0
  %v377 = vadd.f32 0.0, %v376
  %v378 = vpop.f32.mrf.mxu0
  %v379 = vpop.f32.mrf.mxu0
  %v380 = vadd.f32 0.0, %v379
  %v381 = vpop.f32.mrf.mxu0
  %382 = vmatprep.mubr.bf16.mxu0 %v178
  %383 = vmatmul.mubr.bf16.gmra.mxu0 %v177
  %v384 = vpop.f32.mrf.mxu0
  %v385 = vadd.f32 0.0, %v384
  %v386 = vpop.f32.mrf.mxu0
  %v387 = vpop.f32.mrf.mxu0
  %v388 = vadd.f32 0.0, %v387
  %v389 = vpop.f32.mrf.mxu0
  %390 = vmatprep.mubr.bf16.mxu0 %v181
  %391 = vmatmul.mubr.bf16.gmra.mxu0 %v180
  %v392 = vpop.f32.mrf.mxu0
  %v393 = vadd.f32 0.0, %v392
  %v394 = vpop.f32.mrf.mxu0
  %v395 = vpop.f32.mrf.mxu0
  %v396 = vadd.f32 0.0, %v395
  %v397 = vpop.f32.mrf.mxu0
  %398 = vmatprep.mubr.bf16.mxu0 %v184
  %399 = vmatmul.mubr.bf16.gmra.mxu0 %v183
  %v400 = vpop.f32.mrf.mxu0
  %v401 = vadd.f32 0.0, %v400
  %v402 = vpop.f32.mrf.mxu0
  %v403 = vpop.f32.mrf.mxu0
  %v404 = vadd.f32 0.0, %v403
  %v405 = vpop.f32.mrf.mxu0
  %406 = vdwg.mxu0
  %407 = vmatprep.subr.bf16.mxu0 0
  %408 = vmatpush1.bf16.msra.mxu0 %v317
  %409 = vmatprep.subr.bf16.mxu0 0
  %410 = vmatpush1.bf16.msra.mxu0 %v316
  %411 = vmatprep.subr.bf16.mxu0 0
  %412 = vmatpush1.bf16.msra.mxu0 %v315
  %413 = vmatprep.subr.bf16.mxu0 0
  %414 = vmatpush1.bf16.msra.mxu0 %v314
  %415 = vmatprep.subr.bf16.mxu0 0
  %416 = vmatpush1.bf16.msra.mxu0 %v313
  %417 = vmatprep.subr.bf16.mxu0 0
  %418 = vmatpush1.bf16.msra.mxu0 %v312
  %419 = vmatprep.subr.bf16.mxu0 0
  %420 = vmatpush1.bf16.msra.mxu0 %v311
  %421 = vmatprep.subr.bf16.mxu0 0
  %422 = vmatpush1.bf16.msra.mxu0 %v310
  %423 = vmatprep.subr.bf16.mxu0 0
  %424 = vmatpush2.bf16.msra.mxu0 0
  %425 = vmatprep.subr.bf16.mxu0 0
  %426 = vmatpush2.bf16.msra.mxu0 0
  %427 = vmatprep.subr.bf16.mxu0 0
  %428 = vmatpush2.bf16.msra.mxu0 0
  %429 = vmatprep.subr.bf16.mxu0 0
  %430 = vmatpush2.bf16.msra.mxu0 0
  %431 = vmatprep.subr.bf16.mxu0 0
  %432 = vmatpush2.bf16.msra.mxu0 0
  %433 = vmatprep.subr.bf16.mxu0 0
  %434 = vmatpush2.bf16.msra.mxu0 0
  %435 = vmatprep.subr.bf16.mxu0 0
  %436 = vmatpush2.bf16.msra.mxu0 0
  %437 = vmatprep.subr.bf16.mxu0 0
  %438 = vmatpush2.bf16.msra.mxu0 0
  %439 = vmatprep.mubr.bf16.mxu0 0
  %440 = vmatmul.mubr.bf16.gmra.mxu0 %v176
  %v441 = vpop.f32.mrf.mxu0
  %v442 = vadd.f32 %v377, %v441
  %v443 = vpop.f32.mrf.mxu0
  %v444 = vpop.f32.mrf.mxu0
  %v445 = vadd.f32 %v380, %v444
  %v446 = vpop.f32.mrf.mxu0
  %447 = vmatprep.mubr.bf16.mxu0 0
  %448 = vmatmul.mubr.bf16.gmra.mxu0 %v179
  %v449 = vpop.f32.mrf.mxu0
  %v450 = vadd.f32 %v385, %v449
  %v451 = vpop.f32.mrf.mxu0
  %v452 = vpop.f32.mrf.mxu0
  %v453 = vadd.f32 %v388, %v452
  %v454 = vpop.f32.mrf.mxu0
  %455 = vmatprep.mubr.bf16.mxu0 0
  %456 = vmatmul.mubr.bf16.gmra.mxu0 %v182
  %v457 = vpop.f32.mrf.mxu0
  %v458 = vadd.f32 %v393, %v457
  %v459 = vpop.f32.mrf.mxu0
  %v460 = vpop.f32.mrf.mxu0
  %v461 = vadd.f32 %v396, %v460
  %v462 = vpop.f32.mrf.mxu0
  %463 = vmatprep.mubr.bf16.mxu0 0
  %464 = vmatmul.mubr.bf16.gmra.mxu0 %v185
  %v465 = vpop.f32.mrf.mxu0
  %v466 = vadd.f32 %v401, %v465
  %v467 = vpop.f32.mrf.mxu0
  %v468 = vpop.f32.mrf.mxu0
  %v469 = vadd.f32 %v404, %v468
  %v470 = vpop.f32.mrf.mxu0
  %471 = vdwg.mxu0
  %v476 = vunpack.c.l.b16 %v17
  %v477 = vunpack.c.h.b16 %v17
  %v478 = vunpack.c.l.b16 %v18
  %v479 = vunpack.c.l.b16 %v19
  %v480 = vunpack.c.h.b16 %v19
  %v481 = vunpack.c.l.b16 %v20
  %v482 = vpack.c.b16 %v479, %v476
  %v483 = vpack.c.b16 %v480, %v477
  %v484 = vpack.c.b16 %v481, %v478
  %v536 = vunpack.c.l.b16 %v33
  %v537 = vunpack.c.l.b16 %v34
  %v538 = vunpack.c.l.b16 %v35
  %v539 = vunpack.c.l.b16 %v36
  %v540 = vunpack.c.l.b16 %v37
  %v541 = vunpack.c.l.b16 %v38
  %v542 = vunpack.c.l.b16 %v39
  %v543 = vunpack.c.l.b16 %v40
  %v544 = vunpack.c.l.b16 %v41
  %v545 = vunpack.c.l.b16 %v42
  %v546 = vunpack.c.l.b16 %v43
  %v547 = vunpack.c.l.b16 %v44
  %v548 = vunpack.c.l.b16 %v45
  %v549 = vunpack.c.l.b16 %v46
  %v550 = vunpack.c.l.b16 %v47
  %v551 = vunpack.c.l.b16 %v48
  %v552 = vunpack.c.l.b16 %v49
  %v553 = vunpack.c.l.b16 %v50
  %v554 = vunpack.c.l.b16 %v51
  %v555 = vunpack.c.l.b16 %v52
  %v556 = vunpack.c.l.b16 %v53
  %v557 = vunpack.c.l.b16 %v54
  %v558 = vunpack.c.l.b16 %v55
  %v559 = vunpack.c.l.b16 %v56
  %v560 = vunpack.c.l.b16 %v57
  %v561 = vunpack.c.l.b16 %v58
  %v562 = vunpack.c.l.b16 %v59
  %v563 = vunpack.c.l.b16 %v60
  %v564 = vunpack.c.l.b16 %v61
  %v565 = vunpack.c.l.b16 %v62
  %v566 = vunpack.c.l.b16 %v63
  %v567 = vunpack.c.l.b16 %v64
  %v568 = vunpack.c.l.b16 %v65
  %v569 = vunpack.c.l.b16 %v66
  %v570 = vunpack.c.l.b16 %v67
  %v571 = vunpack.c.l.b16 %v68
  %v572 = vunpack.c.l.b16 %v69
  %v573 = vunpack.c.l.b16 %v70
  %v574 = vunpack.c.l.b16 %v71
  %v575 = vunpack.c.l.b16 %v72
  %v576 = vunpack.c.l.b16 %v73
  %v577 = vunpack.c.l.b16 %v74
  %v578 = vunpack.c.l.b16 %v75
  %v579 = vunpack.c.l.b16 %v76
  %v580 = vunpack.c.l.b16 %v77
  %v581 = vunpack.c.l.b16 %v78
  %v582 = vunpack.c.l.b16 %v79
  %v583 = vunpack.c.l.b16 %v80
  %v584 = vpack.c.b16 %v537, %v536
  %v585 = vpack.c.b16 %v539, %v538
  %v586 = vpack.c.b16 %v541, %v540
  %v587 = vpack.c.b16 %v543, %v542
  %v588 = vpack.c.b16 %v545, %v544
  %v589 = vpack.c.b16 %v547, %v546
  %v590 = vpack.c.b16 %v549, %v548
  %v591 = vpack.c.b16 %v551, %v550
  %v592 = vpack.c.b16 %v553, %v552
  %v593 = vpack.c.b16 %v555, %v554
  %v594 = vpack.c.b16 %v557, %v556
  %v595 = vpack.c.b16 %v559, %v558
  %v596 = vpack.c.b16 %v561, %v560
  %v597 = vpack.c.b16 %v563, %v562
  %v598 = vpack.c.b16 %v565, %v564
  %v599 = vpack.c.b16 %v567, %v566
  %v600 = vpack.c.b16 %v569, %v568
  %v601 = vpack.c.b16 %v571, %v570
  %v602 = vpack.c.b16 %v573, %v572
  %v603 = vpack.c.b16 %v575, %v574
  %v604 = vpack.c.b16 %v577, %v576
  %v605 = vpack.c.b16 %v579, %v578
  %v606 = vpack.c.b16 %v581, %v580
  %v607 = vpack.c.b16 %v583, %v582
  %632 = vmatprep.subr.bf16.mxu0 0
  %633 = vmatpush1.bf16.msra.mxu0 %v591
  %634 = vmatprep.subr.bf16.mxu0 0
  %635 = vmatpush1.bf16.msra.mxu0 %v590
  %636 = vmatprep.subr.bf16.mxu0 0
  %637 = vmatpush1.bf16.msra.mxu0 %v589
  %638 = vmatprep.subr.bf16.mxu0 0
  %639 = vmatpush1.bf16.msra.mxu0 %v588
  %640 = vmatprep.subr.bf16.mxu0 0
  %641 = vmatpush1.bf16.msra.mxu0 %v587
  %642 = vmatprep.subr.bf16.mxu0 0
  %643 = vmatpush1.bf16.msra.mxu0 %v586
  %644 = vmatprep.subr.bf16.mxu0 0
  %645 = vmatpush1.bf16.msra.mxu0 %v585
  %646 = vmatprep.subr.bf16.mxu0 0
  %647 = vmatpush1.bf16.msra.mxu0 %v584
  %648 = vmatprep.subr.bf16.mxu0 0
  %649 = vmatpush2.bf16.msra.mxu0 %v599
  %650 = vmatprep.subr.bf16.mxu0 0
  %651 = vmatpush2.bf16.msra.mxu0 %v598
  %652 = vmatprep.subr.bf16.mxu0 0
  %653 = vmatpush2.bf16.msra.mxu0 %v597
  %654 = vmatprep.subr.bf16.mxu0 0
  %655 = vmatpush2.bf16.msra.mxu0 %v596
  %656 = vmatprep.subr.bf16.mxu0 0
  %657 = vmatpush2.bf16.msra.mxu0 %v595
  %658 = vmatprep.subr.bf16.mxu0 0
  %659 = vmatpush2.bf16.msra.mxu0 %v594
  %660 = vmatprep.subr.bf16.mxu0 0
  %661 = vmatpush2.bf16.msra.mxu0 %v593
  %662 = vmatprep.subr.bf16.mxu0 0
  %663 = vmatpush2.bf16.msra.mxu0 %v592
  %664 = vmatprep.mubr.bf16.mxu0 %v483
  %665 = vmatmul.mubr.bf16.gmra.mxu0 %v482
  %v666 = vpop.f32.mrf.mxu0
  %v667 = vadd.f32 %v442, %v666
  %v668 = vpop.f32.mrf.mxu0
  %v669 = vpop.f32.mrf.mxu0
  %v670 = vadd.f32 %v445, %v669
  %v671 = vpop.f32.mrf.mxu0
  %672 = vmatprep.mubr.bf16.mxu0 %v175
  %673 = vmatmul.mubr.bf16.gmra.mxu0 %v174
  %v674 = vpop.f32.mrf.mxu0
  %v675 = vadd.f32 %v450, %v674
  %v676 = vpop.f32.mrf.mxu0
  %v677 = vpop.f32.mrf.mxu0
  %v678 = vadd.f32 %v453, %v677
  %v679 = vpop.f32.mrf.mxu0
  %680 = vmatprep.mubr.bf16.mxu0 %v178
  %681 = vmatmul.mubr.bf16.gmra.mxu0 %v177
  %v682 = vpop.f32.mrf.mxu0
  %v683 = vadd.f32 %v458, %v682
  %v684 = vpop.f32.mrf.mxu0
  %v685 = vpop.f32.mrf.mxu0
  %v686 = vadd.f32 %v461, %v685
  %v687 = vpop.f32.mrf.mxu0
  %688 = vmatprep.mubr.bf16.mxu0 %v181
  %689 = vmatmul.mubr.bf16.gmra.mxu0 %v180
  %v690 = vpop.f32.mrf.mxu0
  %v691 = vadd.f32 %v466, %v690
  %v692 = vpop.f32.mrf.mxu0
  %v693 = vpop.f32.mrf.mxu0
  %v694 = vadd.f32 %v469, %v693
  %v695 = vpop.f32.mrf.mxu0
  %696 = vdwg.mxu0
  %697 = vmatprep.subr.bf16.mxu0 0
  %698 = vmatpush1.bf16.msra.mxu0 %v607
  %699 = vmatprep.subr.bf16.mxu0 0
  %700 = vmatpush1.bf16.msra.mxu0 %v606
  %701 = vmatprep.subr.bf16.mxu0 0
  %702 = vmatpush1.bf16.msra.mxu0 %v605
  %703 = vmatprep.subr.bf16.mxu0 0
  %704 = vmatpush1.bf16.msra.mxu0 %v604
  %705 = vmatprep.subr.bf16.mxu0 0
  %706 = vmatpush1.bf16.msra.mxu0 %v603
  %707 = vmatprep.subr.bf16.mxu0 0
  %708 = vmatpush1.bf16.msra.mxu0 %v602
  %709 = vmatprep.subr.bf16.mxu0 0
  %710 = vmatpush1.bf16.msra.mxu0 %v601
  %711 = vmatprep.subr.bf16.mxu0 0
  %712 = vmatpush1.bf16.msra.mxu0 %v600
  %713 = vmatprep.subr.bf16.mxu0 0
  %714 = vmatpush2.bf16.msra.mxu0 0
  %715 = vmatprep.subr.bf16.mxu0 0
  %716 = vmatpush2.bf16.msra.mxu0 0
  %717 = vmatprep.subr.bf16.mxu0 0
  %718 = vmatpush2.bf16.msra.mxu0 0
  %719 = vmatprep.subr.bf16.mxu0 0
  %720 = vmatpush2.bf16.msra.mxu0 0
  %721 = vmatprep.subr.bf16.mxu0 0
  %722 = vmatpush2.bf16.msra.mxu0 0
  %723 = vmatprep.subr.bf16.mxu0 0
  %724 = vmatpush2.bf16.msra.mxu0 0
  %725 = vmatprep.subr.bf16.mxu0 0
  %726 = vmatpush2.bf16.msra.mxu0 0
  %727 = vmatprep.subr.bf16.mxu0 0
  %728 = vmatpush2.bf16.msra.mxu0 0
  %729 = vmatprep.mubr.bf16.mxu0 0
  %730 = vmatmul.mubr.bf16.gmra.mxu0 %v484
  %v731 = vpop.f32.mrf.mxu0
  %v732 = vadd.f32 %v667, %v731
  %v733 = vpop.f32.mrf.mxu0
  %v734 = vpop.f32.mrf.mxu0
  %v735 = vadd.f32 %v670, %v734
  %v736 = vpop.f32.mrf.mxu0
  %737 = vmatprep.mubr.bf16.mxu0 0
  %738 = vmatmul.mubr.bf16.gmra.mxu0 %v176
  %v739 = vpop.f32.mrf.mxu0
  %v740 = vadd.f32 %v675, %v739
  %v741 = vpop.f32.mrf.mxu0
  %v742 = vpop.f32.mrf.mxu0
  %v743 = vadd.f32 %v678, %v742
  %v744 = vpop.f32.mrf.mxu0
  %745 = vmatprep.mubr.bf16.mxu0 0
  %746 = vmatmul.mubr.bf16.gmra.mxu0 %v179
  %v747 = vpop.f32.mrf.mxu0
  %v748 = vadd.f32 %v683, %v747
  %v749 = vpop.f32.mrf.mxu0
  %v750 = vpop.f32.mrf.mxu0
  %v751 = vadd.f32 %v686, %v750
  %v752 = vpop.f32.mrf.mxu0
  %753 = vmatprep.mubr.bf16.mxu0 0
  %754 = vmatmul.mubr.bf16.gmra.mxu0 %v182
  %v755 = vpop.f32.mrf.mxu0
  %v756 = vadd.f32 %v691, %v755
  %v757 = vpop.f32.mrf.mxu0
  %v758 = vpop.f32.mrf.mxu0
  %v759 = vadd.f32 %v694, %v758
  %v760 = vpop.f32.mrf.mxu0
  %761 = vdwg.mxu0
  %v762 = vld [vmem:[%s0 + $0x30] sm:$0xff]
  %v763 = vld [vmem:[%s0 + $0x38] sm:$0xf]
  %v764 = vld [vmem:[%s0 + $0x3c] sm:$0xff]
  %v765 = vld [vmem:[%s0 + $0x44] sm:$0xf]
  %v766 = vld [vmem:[%s0 + $0x48] sm:$0xff]
  %v767 = vld [vmem:[%s0 + $0x50] sm:$0xf]
  %v768 = vld [vmem:[%s0 + $0x54] sm:$0xff]
  %v769 = vld [vmem:[%s0 + $0x5c] sm:$0xf]
  %v770 = vld [vmem:[%s0 + $0x60] sm:$0xff]
  %v771 = vld [vmem:[%s0 + $0x68] sm:$0xf]
  %v772 = vld [vmem:[%s0 + $0x6c] sm:$0xff]
  %v773 = vld [vmem:[%s0 + $0x74] sm:$0xf]
  %v774 = vld [vmem:[%s0 + $0x78] sm:$0xff]
  %v775 = vld [vmem:[%s0 + $0x80] sm:$0xf]
  %v776 = vld [vmem:[%s0 + $0x84] sm:$0xff]
  %v777 = vld [vmem:[%s0 + $0x8c] sm:$0xf]
  %s778 = scalar_lea.vmem %s1, 384
  %v779 = vld [vmem:[%s778] sm:$0xf]
  %v780 = vld [vmem:[%s778 + $0x4] sm:$0xf]
  %v781 = vld [vmem:[%s778 + $0x8] sm:$0xf]
  %v782 = vld [vmem:[%s778 + $0xc] sm:$0xf]
  %v783 = vld [vmem:[%s778 + $0x10] sm:$0xf]
  %v784 = vld [vmem:[%s778 + $0x14] sm:$0xf]
  %v785 = vld [vmem:[%s778 + $0x18] sm:$0xf]
  %v786 = vld [vmem:[%s778 + $0x1c] sm:$0xf]
  %v787 = vld [vmem:[%s778 + $0x20] sm:$0xf]
  %v788 = vld [vmem:[%s778 + $0x24] sm:$0xf]
  %v789 = vld [vmem:[%s778 + $0x28] sm:$0xf]
  %v790 = vld [vmem:[%s778 + $0x2c] sm:$0xf]
  %v791 = vld [vmem:[%s778 + $0x30] sm:$0xf]
  %v792 = vld [vmem:[%s778 + $0x34] sm:$0xf]
  %v793 = vld [vmem:[%s778 + $0x38] sm:$0xf]
  %v794 = vld [vmem:[%s778 + $0x3c] sm:$0xf]
  %v795 = vld [vmem:[%s778 + $0x40] sm:$0xf]
  %v796 = vld [vmem:[%s778 + $0x44] sm:$0xf]
  %v797 = vld [vmem:[%s778 + $0x48] sm:$0xf]
  %v798 = vld [vmem:[%s778 + $0x4c] sm:$0xf]
  %v799 = vld [vmem:[%s778 + $0x50] sm:$0xf]
  %v800 = vld [vmem:[%s778 + $0x54] sm:$0xf]
  %v801 = vld [vmem:[%s778 + $0x58] sm:$0xf]
  %v802 = vld [vmem:[%s778 + $0x5c] sm:$0xf]
  %v803 = vld [vmem:[%s778 + $0x60] sm:$0xf]
  %v804 = vld [vmem:[%s778 + $0x64] sm:$0xf]
  %v805 = vld [vmem:[%s778 + $0x68] sm:$0xf]
  %v806 = vld [vmem:[%s778 + $0x6c] sm:$0xf]
  %v807 = vld [vmem:[%s778 + $0x70] sm:$0xf]
  %v808 = vld [vmem:[%s778 + $0x74] sm:$0xf]
  %v809 = vld [vmem:[%s778 + $0x78] sm:$0xf]
  %v810 = vld [vmem:[%s778 + $0x7c] sm:$0xf]
  %v811 = vld [vmem:[%s778 + $0x80] sm:$0xf]
  %v812 = vld [vmem:[%s778 + $0x84] sm:$0xf]
  %v813 = vld [vmem:[%s778 + $0x88] sm:$0xf]
  %v814 = vld [vmem:[%s778 + $0x8c] sm:$0xf]
  %v815 = vld [vmem:[%s778 + $0x90] sm:$0xf]
  %v816 = vld [vmem:[%s778 + $0x94] sm:$0xf]
  %v817 = vld [vmem:[%s778 + $0x98] sm:$0xf]
  %v818 = vld [vmem:[%s778 + $0x9c] sm:$0xf]
  %v819 = vld [vmem:[%s778 + $0xa0] sm:$0xf]
  %v820 = vld [vmem:[%s778 + $0xa4] sm:$0xf]
  %v821 = vld [vmem:[%s778 + $0xa8] sm:$0xf]
  %v822 = vld [vmem:[%s778 + $0xac] sm:$0xf]
  %v823 = vld [vmem:[%s778 + $0xb0] sm:$0xf]
  %v824 = vld [vmem:[%s778 + $0xb4] sm:$0xf]
  %v825 = vld [vmem:[%s778 + $0xb8] sm:$0xf]
  %v826 = vld [vmem:[%s778 + $0xbc] sm:$0xf]
  %v843 = vunpack.c.l.b16 %v762
  %v844 = vunpack.c.h.b16 %v762
  %v845 = vunpack.c.l.b16 %v763
  %v846 = vunpack.c.l.b16 %v764
  %v847 = vunpack.c.h.b16 %v764
  %v848 = vunpack.c.l.b16 %v765
  %v849 = vunpack.c.l.b16 %v766
  %v850 = vunpack.c.h.b16 %v766
  %v851 = vunpack.c.l.b16 %v767
  %v852 = vunpack.c.l.b16 %v768
  %v853 = vunpack.c.h.b16 %v768
  %v854 = vunpack.c.l.b16 %v769
  %v855 = vunpack.c.l.b16 %v770
  %v856 = vunpack.c.h.b16 %v770
  %v857 = vunpack.c.l.b16 %v771
  %v858 = vunpack.c.l.b16 %v772
  %v859 = vunpack.c.h.b16 %v772
  %v860 = vunpack.c.l.b16 %v773
  %v861 = vunpack.c.l.b16 %v774
  %v862 = vunpack.c.h.b16 %v774
  %v863 = vunpack.c.l.b16 %v775
  %v864 = vunpack.c.l.b16 %v776
  %v865 = vunpack.c.h.b16 %v776
  %v866 = vunpack.c.l.b16 %v777
  %v867 = vpack.c.b16 %v846, %v843
  %v868 = vpack.c.b16 %v847, %v844
  %v869 = vpack.c.b16 %v848, %v845
  %v870 = vpack.c.b16 %v852, %v849
  %v871 = vpack.c.b16 %v853, %v850
  %v872 = vpack.c.b16 %v854, %v851
  %v873 = vpack.c.b16 %v858, %v855
  %v874 = vpack.c.b16 %v859, %v856
  %v875 = vpack.c.b16 %v860, %v857
  %v876 = vpack.c.b16 %v864, %v861
  %v877 = vpack.c.b16 %v865, %v862
  %v878 = vpack.c.b16 %v866, %v863
  %v939 = vunpack.c.l.b16 %v779
  %v940 = vunpack.c.l.b16 %v780
  %v941 = vunpack.c.l.b16 %v781
  %v942 = vunpack.c.l.b16 %v782
  %v943 = vunpack.c.l.b16 %v783
  %v944 = vunpack.c.l.b16 %v784
  %v945 = vunpack.c.l.b16 %v785
  %v946 = vunpack.c.l.b16 %v786
  %v947 = vunpack.c.l.b16 %v787
  %v948 = vunpack.c.l.b16 %v788
  %v949 = vunpack.c.l.b16 %v789
  %v950 = vunpack.c.l.b16 %v790
  %v951 = vunpack.c.l.b16 %v791
  %v952 = vunpack.c.l.b16 %v792
  %v953 = vunpack.c.l.b16 %v793
  %v954 = vunpack.c.l.b16 %v794
  %v955 = vunpack.c.l.b16 %v795
  %v956 = vunpack.c.l.b16 %v796
  %v957 = vunpack.c.l.b16 %v797
  %v958 = vunpack.c.l.b16 %v798
  %v959 = vunpack.c.l.b16 %v799
  %v960 = vunpack.c.l.b16 %v800
  %v961 = vunpack.c.l.b16 %v801
  %v962 = vunpack.c.l.b16 %v802
  %v963 = vunpack.c.l.b16 %v803
  %v964 = vunpack.c.l.b16 %v804
  %v965 = vunpack.c.l.b16 %v805
  %v966 = vunpack.c.l.b16 %v806
  %v967 = vunpack.c.l.b16 %v807
  %v968 = vunpack.c.l.b16 %v808
  %v969 = vunpack.c.l.b16 %v809
  %v970 = vunpack.c.l.b16 %v810
  %v971 = vunpack.c.l.b16 %v811
  %v972 = vunpack.c.l.b16 %v812
  %v973 = vunpack.c.l.b16 %v813
  %v974 = vunpack.c.l.b16 %v814
  %v975 = vunpack.c.l.b16 %v815
  %v976 = vunpack.c.l.b16 %v816
  %v977 = vunpack.c.l.b16 %v817
  %v978 = vunpack.c.l.b16 %v818
  %v979 = vunpack.c.l.b16 %v819
  %v980 = vunpack.c.l.b16 %v820
  %v981 = vunpack.c.l.b16 %v821
  %v982 = vunpack.c.l.b16 %v822
  %v983 = vunpack.c.l.b16 %v823
  %v984 = vunpack.c.l.b16 %v824
  %v985 = vunpack.c.l.b16 %v825
  %v986 = vunpack.c.l.b16 %v826
  %v987 = vpack.c.b16 %v940, %v939
  %v988 = vpack.c.b16 %v942, %v941
  %v989 = vpack.c.b16 %v944, %v943
  %v990 = vpack.c.b16 %v946, %v945
  %v991 = vpack.c.b16 %v948, %v947
  %v992 = vpack.c.b16 %v950, %v949
  %v993 = vpack.c.b16 %v952, %v951
  %v994 = vpack.c.b16 %v954, %v953
  %v995 = vpack.c.b16 %v956, %v955
  %v996 = vpack.c.b16 %v958, %v957
  %v997 = vpack.c.b16 %v960, %v959
  %v998 = vpack.c.b16 %v962, %v961
  %v999 = vpack.c.b16 %v964, %v963
  %v1000 = vpack.c.b16 %v966, %v965
  %v1001 = vpack.c.b16 %v968, %v967
  %v1002 = vpack.c.b16 %v970, %v969
  %v1003 = vpack.c.b16 %v972, %v971
  %v1004 = vpack.c.b16 %v974, %v973
  %v1005 = vpack.c.b16 %v976, %v975
  %v1006 = vpack.c.b16 %v978, %v977
  %v1007 = vpack.c.b16 %v980, %v979
  %v1008 = vpack.c.b16 %v982, %v981
  %v1009 = vpack.c.b16 %v984, %v983
  %v1010 = vpack.c.b16 %v986, %v985
  %1035 = vmatprep.subr.bf16.mxu0 0
  %1036 = vmatpush1.bf16.msra.mxu0 %v994
  %1037 = vmatprep.subr.bf16.mxu0 0
  %1038 = vmatpush1.bf16.msra.mxu0 %v993
  %1039 = vmatprep.subr.bf16.mxu0 0
  %1040 = vmatpush1.bf16.msra.mxu0 %v992
  %1041 = vmatprep.subr.bf16.mxu0 0
  %1042 = vmatpush1.bf16.msra.mxu0 %v991
  %1043 = vmatprep.subr.bf16.mxu0 0
  %1044 = vmatpush1.bf16.msra.mxu0 %v990
  %1045 = vmatprep.subr.bf16.mxu0 0
  %1046 = vmatpush1.bf16.msra.mxu0 %v989
  %1047 = vmatprep.subr.bf16.mxu0 0
  %1048 = vmatpush1.bf16.msra.mxu0 %v988
  %1049 = vmatprep.subr.bf16.mxu0 0
  %1050 = vmatpush1.bf16.msra.mxu0 %v987
  %1051 = vmatprep.subr.bf16.mxu0 0
  %1052 = vmatpush2.bf16.msra.mxu0 %v1002
  %1053 = vmatprep.subr.bf16.mxu0 0
  %1054 = vmatpush2.bf16.msra.mxu0 %v1001
  %1055 = vmatprep.subr.bf16.mxu0 0
  %1056 = vmatpush2.bf16.msra.mxu0 %v1000
  %1057 = vmatprep.subr.bf16.mxu0 0
  %1058 = vmatpush2.bf16.msra.mxu0 %v999
  %1059 = vmatprep.subr.bf16.mxu0 0
  %1060 = vmatpush2.bf16.msra.mxu0 %v998
  %1061 = vmatprep.subr.bf16.mxu0 0
  %1062 = vmatpush2.bf16.msra.mxu0 %v997
  %1063 = vmatprep.subr.bf16.mxu0 0
  %1064 = vmatpush2.bf16.msra.mxu0 %v996
  %1065 = vmatprep.subr.bf16.mxu0 0
  %1066 = vmatpush2.bf16.msra.mxu0 %v995
  %1067 = vmatprep.mubr.bf16.mxu0 %v868
  %1068 = vmatmul.mubr.bf16.gmra.mxu0 %v867
  %v1069 = vpop.f32.mrf.mxu0
  %v1070 = vadd.f32 0.0, %v1069
  %v1071 = vpop.f32.mrf.mxu0
  %v1072 = vpop.f32.mrf.mxu0
  %v1073 = vadd.f32 0.0, %v1072
  %v1074 = vpop.f32.mrf.mxu0
  %1075 = vmatprep.mubr.bf16.mxu0 %v871
  %1076 = vmatmul.mubr.bf16.gmra.mxu0 %v870
  %v1077 = vpop.f32.mrf.mxu0
  %v1078 = vadd.f32 0.0, %v1077
  %v1079 = vpop.f32.mrf.mxu0
  %v1080 = vpop.f32.mrf.mxu0
  %v1081 = vadd.f32 0.0, %v1080
  %v1082 = vpop.f32.mrf.mxu0
  %1083 = vmatprep.mubr.bf16.mxu0 %v874
  %1084 = vmatmul.mubr.bf16.gmra.mxu0 %v873
  %v1085 = vpop.f32.mrf.mxu0
  %v1086 = vadd.f32 0.0, %v1085
  %v1087 = vpop.f32.mrf.mxu0
  %v1088 = vpop.f32.mrf.mxu0
  %v1089 = vadd.f32 0.0, %v1088
  %v1090 = vpop.f32.mrf.mxu0
  %1091 = vmatprep.mubr.bf16.mxu0 %v877
  %1092 = vmatmul.mubr.bf16.gmra.mxu0 %v876
  %v1093 = vpop.f32.mrf.mxu0
  %v1094 = vadd.f32 0.0, %v1093
  %v1095 = vpop.f32.mrf.mxu0
  %v1096 = vpop.f32.mrf.mxu0
  %v1097 = vadd.f32 0.0, %v1096
  %v1098 = vpop.f32.mrf.mxu0
  %1099 = vdwg.mxu0
  %1100 = vmatprep.subr.bf16.mxu0 0
  %1101 = vmatpush1.bf16.msra.mxu0 %v1010
  %1102 = vmatprep.subr.bf16.mxu0 0
  %1103 = vmatpush1.bf16.msra.mxu0 %v1009
  %1104 = vmatprep.subr.bf16.mxu0 0
  %1105 = vmatpush1.bf16.msra.mxu0 %v1008
  %1106 = vmatprep.subr.bf16.mxu0 0
  %1107 = vmatpush1.bf16.msra.mxu0 %v1007
  %1108 = vmatprep.subr.bf16.mxu0 0
  %1109 = vmatpush1.bf16.msra.mxu0 %v1006
  %1110 = vmatprep.subr.bf16.mxu0 0
  %1111 = vmatpush1.bf16.msra.mxu0 %v1005
  %1112 = vmatprep.subr.bf16.mxu0 0
  %1113 = vmatpush1.bf16.msra.mxu0 %v1004
  %1114 = vmatprep.subr.bf16.mxu0 0
  %1115 = vmatpush1.bf16.msra.mxu0 %v1003
  %1116 = vmatprep.subr.bf16.mxu0 0
  %1117 = vmatpush2.bf16.msra.mxu0 0
  %1118 = vmatprep.subr.bf16.mxu0 0
  %1119 = vmatpush2.bf16.msra.mxu0 0
  %1120 = vmatprep.subr.bf16.mxu0 0
  %1121 = vmatpush2.bf16.msra.mxu0 0
  %1122 = vmatprep.subr.bf16.mxu0 0
  %1123 = vmatpush2.bf16.msra.mxu0 0
  %1124 = vmatprep.subr.bf16.mxu0 0
  %1125 = vmatpush2.bf16.msra.mxu0 0
  %1126 = vmatprep.subr.bf16.mxu0 0
  %1127 = vmatpush2.bf16.msra.mxu0 0
  %1128 = vmatprep.subr.bf16.mxu0 0
  %1129 = vmatpush2.bf16.msra.mxu0 0
  %1130 = vmatprep.subr.bf16.mxu0 0
  %1131 = vmatpush2.bf16.msra.mxu0 0
  %1132 = vmatprep.mubr.bf16.mxu0 0
  %1133 = vmatmul.mubr.bf16.gmra.mxu0 %v869
  %v1134 = vpop.f32.mrf.mxu0
  %v1135 = vadd.f32 %v1070, %v1134
  %v1136 = vpop.f32.mrf.mxu0
  %v1137 = vpop.f32.mrf.mxu0
  %v1138 = vadd.f32 %v1073, %v1137
  %v1139 = vpop.f32.mrf.mxu0
  %1140 = vmatprep.mubr.bf16.mxu0 0
  %1141 = vmatmul.mubr.bf16.gmra.mxu0 %v872
  %v1142 = vpop.f32.mrf.mxu0
  %v1143 = vadd.f32 %v1078, %v1142
  %v1144 = vpop.f32.mrf.mxu0
  %v1145 = vpop.f32.mrf.mxu0
  %v1146 = vadd.f32 %v1081, %v1145
  %v1147 = vpop.f32.mrf.mxu0
  %1148 = vmatprep.mubr.bf16.mxu0 0
  %1149 = vmatmul.mubr.bf16.gmra.mxu0 %v875
  %v1150 = vpop.f32.mrf.mxu0
  %v1151 = vadd.f32 %v1086, %v1150
  %v1152 = vpop.f32.mrf.mxu0
  %v1153 = vpop.f32.mrf.mxu0
  %v1154 = vadd.f32 %v1089, %v1153
  %v1155 = vpop.f32.mrf.mxu0
  %1156 = vmatprep.mubr.bf16.mxu0 0
  %1157 = vmatmul.mubr.bf16.gmra.mxu0 %v878
  %v1158 = vpop.f32.mrf.mxu0
  %v1159 = vadd.f32 %v1094, %v1158
  %v1160 = vpop.f32.mrf.mxu0
  %v1161 = vpop.f32.mrf.mxu0
  %v1162 = vadd.f32 %v1097, %v1161
  %v1163 = vpop.f32.mrf.mxu0
  %1164 = vdwg.mxu0
  %v1165 = vadd.f32 %v732, %v1135
  %v1166 = vadd.f32 %v735, %v1138
  %v1167 = vadd.f32 %v740, %v1143
  %v1168 = vadd.f32 %v743, %v1146
  %v1169 = vadd.f32 %v748, %v1151
  %v1170 = vadd.f32 %v751, %v1154
  %v1171 = vadd.f32 %v756, %v1159
  %v1172 = vadd.f32 %v759, %v1162
  %v1173 = vld [vmem:[%s2] sm:$0x1]
  %v1175 = vlaneseq
  %v1176 = vshrl.u32 %v1175, 7
  %v1177 = vsub.s32 0, %v1176
  %v1178 = vrot.slane %v1173, %v1177
  %v1180 = vadd.f32 %v1165, %v1178
  %v1181 = vadd.f32 %v1166, %v1178
  %v1182 = vadd.f32 %v1167, %v1178
  %v1183 = vadd.f32 %v1168, %v1178
  %v1184 = vadd.f32 %v1169, %v1178
  %v1185 = vadd.f32 %v1170, %v1178
  %v1186 = vadd.f32 %v1171, %v1178
  %v1187 = vadd.f32 %v1172, %v1178
  %1188 = vst [vmem:[%s3] sm:$0xff] %v1180
  %1189 = vst [vmem:[%s3 + $0x8] sm:$0xff] %v1181
  %1190 = vst [vmem:[%s3 + $0x10] sm:$0xff] %v1182
  %1191 = vst [vmem:[%s3 + $0x18] sm:$0xff] %v1183
  %1192 = vst [vmem:[%s3 + $0x20] sm:$0xff] %v1184
  %1193 = vst [vmem:[%s3 + $0x28] sm:$0xff] %v1185
  %1194 = vst [vmem:[%s3 + $0x30] sm:$0xff] %v1186
  %1195 = vst [vmem:[%s3 + $0x38] sm:$0xff] %v1187
  %v1196 = vmax.f32 %v1180, 0.0
  %v1197 = vmax.f32 %v1181, 0.0
  %v1198 = vmax.f32 %v1182, 0.0
  %v1199 = vmax.f32 %v1183, 0.0
  %v1200 = vmax.f32 %v1184, 0.0
  %v1201 = vmax.f32 %v1185, 0.0
  %v1202 = vmax.f32 %v1186, 0.0
  %v1203 = vmax.f32 %v1187, 0.0
  %v1204 = vpack.c.bf16 %v1197, %v1196
  %v1205 = vpack.c.bf16 %v1199, %v1198
  %v1206 = vpack.c.bf16 %v1201, %v1200
  %v1207 = vpack.c.bf16 %v1203, %v1202
  %v1212 = vunpack.c.l.b16 %v1204
  %v1213 = vunpack.c.h.b16 %v1204
  %v1214 = vunpack.c.l.b16 %v1205
  %v1215 = vunpack.c.h.b16 %v1205
  %v1216 = vunpack.c.l.b16 %v1206
  %v1217 = vunpack.c.h.b16 %v1206
  %v1218 = vunpack.c.l.b16 %v1207
  %v1219 = vunpack.c.h.b16 %v1207
  %v1220 = vpack.c.b16 %v1212, %v1212
  %v1221 = vpack.c.b16 %v1213, %v1213
  %v1222 = vpack.c.b16 %v1214, %v1214
  %v1223 = vpack.c.b16 %v1215, %v1215
  %v1224 = vpack.c.b16 %v1216, %v1216
  %v1225 = vpack.c.b16 %v1217, %v1217
  %v1226 = vpack.c.b16 %v1218, %v1218
  %v1227 = vpack.c.b16 %v1219, %v1219
  %1236 = vst [vmem:[%s4] sm:$0xf] %v1220
  %1237 = vst [vmem:[%s4 + $0x4] sm:$0xf] %v1221
  %1238 = vst [vmem:[%s4 + $0x8] sm:$0xf] %v1222
  %1239 = vst [vmem:[%s4 + $0xc] sm:$0xf] %v1223
  %1240 = vst [vmem:[%s4 + $0x10] sm:$0xf] %v1224
  %1241 = vst [vmem:[%s4 + $0x14] sm:$0xf] %v1225
  %1242 = vst [vmem:[%s4 + $0x18] sm:$0xf] %v1226
  %1243 = vst [vmem:[%s4 + $0x1c] sm:$0xf] %v1227
  // Predicated region
  $region14: #{engine_forward.14} parent=0 // pred_check
    _
  $region15: #{engine_forward.14} parent=0 // pred_check_branch
    %1245 = sbr.rel (0) target = $region17
  $region16: #{engine_forward.14} parent=0 // pred_region
    _
  $region17: #{engine_forward.14} parent=0 // pred_fallthru
    _
  // Predicated region
  $region18: #{engine_forward.14} parent=0 // pred_check
    _
  $region19: #{engine_forward.14} parent=0 // pred_check_branch
    %1247 = sbr.rel (0) target = $region21
  $region20: #{engine_forward.14} parent=0 // pred_region
    _
  $region21: #{engine_forward.14} parent=0 // pred_fallthru
    _
  // Predicated region
  $region22: #{engine_forward.14} parent=0 // pred_check
    _
  $region23: #{engine_forward.14} parent=0 // pred_check_branch
    %1249 = sbr.rel (0) target = $region25
  $region24: #{engine_forward.14} parent=0 // pred_region
    _
  $region25: #{engine_forward.14} parent=0 // pred_fallthru
    _
  // Predicated region
  $region26: #{engine_forward.14} parent=0 // pred_check
    _
  $region27: #{engine_forward.14} parent=0 // pred_check_branch
    %1251 = sbr.rel (0) target = $region29
  $region28: #{engine_forward.14} parent=0 // pred_region
    _
  $region29: #{engine_forward.14} parent=0 // pred_fallthru
    _

// kernel: engine_forward.16
$region0: #{engine_forward.16}
  #allocation0 [shape = 'u32[]', space=smem, size = 0x4, offset = 0x4, fixed_abs, tag = 'smem constant byte address 0x4 - core index']
  #allocation1 [shape = 'u32[144,128]{1,0:T(1,128)}', space=vmem, size = 0x12000, scoped, tag = 'internal scratch']
  %s0 = inlined_call_operand.vmem [shape: bf16[1,96,384], index: 0, kind: input, shape index: {}]
  %s1 = inlined_call_operand.vmem [shape: bf16[3,384,32], index: 1, kind: input, shape index: {}]
  %s2 = inlined_call_operand.vmem [shape: f32[1,32], index: 2, kind: input, shape index: {}]
  %s3 = inlined_call_operand.vmem [shape: bf16[32,128], index: 3, kind: input, shape index: {}]
  %s4 = inlined_call_operand.vmem [shape: f32[1,128], index: 4, kind: input, shape index: {}]
  %s5 = inlined_call_operand.vmem [shape: f32[1,64,128], index: 5, kind: input, shape index: {}]
  %s6 = inlined_call_operand.hbm [shape: f32[1,64,128], index: 6, kind: output, shape index: {0}]
  %s7 = inlined_call_operand.vmem [shape: bf16[1,64,128], index: 7, kind: output, shape index: {1}]
  %8 = xla_tuple %s6, %s7
  %s9 = sld [smem:[#allocation0]]
  $region42: #{engine_forward.16} parent=0
    _
  %s11 = ssub.s32 1, %s9
  %s12 = scalar_select 0, %s11, %s9
  $region1: #{engine_forward.16} parent=0
    #allocation2 [shape = 'u8[32768]{0}', space=vmem, size = 0x8000, scoped, tag = 'output window, operand 0, single buffered']
    #allocation3 [shape = 's32[1]{0}', space=sflag, size = 0x4, scoped, tag = 'scoped memory for engine_forward.16']
    %13 = vsyncpa [#allocation3], 0
    // Predicated region
    $region2: #{engine_forward.16} parent=1 // pred_check
      _
    $region3: #{engine_forward.16} parent=1 // pred_check_branch
      %15 = sbr.rel (0) target = $region5
    $region4: #{engine_forward.16} parent=1 // pred_region
      _
    $region5: #{engine_forward.16} parent=1 // pred_fallthru
      _
    // Predicated region
    $region6: #{engine_forward.16} parent=1 // pred_check
      _
    $region7: #{engine_forward.16} parent=1 // pred_check_branch
      %17 = sbr.rel (0) target = $region9
    $region8: #{engine_forward.16} parent=1 // pred_region
      _
    $region9: #{engine_forward.16} parent=1 // pred_fallthru
      _
    // Predicated region
    $region10: #{engine_forward.16} parent=1 // pred_check
      _
    $region11: #{engine_forward.16} parent=1 // pred_check_branch
      %19 = sbr.rel (0) target = $region13
    $region12: #{engine_forward.16} parent=1 // pred_region
      _
    $region13: #{engine_forward.16} parent=1 // pred_fallthru
      _
    // Predicated region
    $region14: #{engine_forward.16} parent=1 // pred_check
      _
    $region15: #{engine_forward.16} parent=1 // pred_check_branch
      %21 = sbr.rel (0) target = $region17
    $region16: #{engine_forward.16} parent=1 // pred_region
      _
    $region17: #{engine_forward.16} parent=1 // pred_fallthru
      _
    // Predicated region
    $region18: #{engine_forward.16} parent=1 // pred_check
      _
    $region19: #{engine_forward.16} parent=1 // pred_check_branch
      %23 = sbr.rel (0) target = $region21
    $region20: #{engine_forward.16} parent=1 // pred_region
      _
    $region21: #{engine_forward.16} parent=1 // pred_fallthru
      _
    // Predicated region
    $region22: #{engine_forward.16} parent=1 // pred_check
      _
    $region23: #{engine_forward.16} parent=1 // pred_check_branch
      %25 = sbr.rel (0) target = $region25
    $region24: #{engine_forward.16} parent=1 // pred_region
      _
    $region25: #{engine_forward.16} parent=1 // pred_fallthru
      _
    %v27 = vld [vmem:[%s0] sm:$0xff]
    %v28 = vld [vmem:[%s0 + $0x8] sm:$0xf]
    %v29 = vld [vmem:[%s0 + $0xc] sm:$0xff]
    %v30 = vld [vmem:[%s0 + $0x14] sm:$0xf]
    %v31 = vld [vmem:[%s0 + $0x18] sm:$0xff]
    %v32 = vld [vmem:[%s0 + $0x20] sm:$0xf]
    %v33 = vld [vmem:[%s0 + $0x24] sm:$0xff]
    %v34 = vld [vmem:[%s0 + $0x2c] sm:$0xf]
    %v35 = vld [vmem:[%s0 + $0x30] sm:$0xff]
    %v36 = vld [vmem:[%s0 + $0x38] sm:$0xf]
    %v37 = vld [vmem:[%s0 + $0x3c] sm:$0xff]
    %v38 = vld [vmem:[%s0 + $0x44] sm:$0xf]
    %v39 = vld [vmem:[%s0 + $0x48] sm:$0xff]
    %v40 = vld [vmem:[%s0 + $0x50] sm:$0xf]
    %v41 = vld [vmem:[%s0 + $0x54] sm:$0xff]
    %v42 = vld [vmem:[%s0 + $0x5c] sm:$0xf]
    %v43 = vld [vmem:[%s1] sm:$0xf]
    %v44 = vld [vmem:[%s1 + $0x4] sm:$0xf]
    %v45 = vld [vmem:[%s1 + $0x8] sm:$0xf]
    %v46 = vld [vmem:[%s1 + $0xc] sm:$0xf]
    %v47 = vld [vmem:[%s1 + $0x10] sm:$0xf]
    %v48 = vld [vmem:[%s1 + $0x14] sm:$0xf]
    %v49 = vld [vmem:[%s1 + $0x18] sm:$0xf]
    %v50 = vld [vmem:[%s1 + $0x1c] sm:$0xf]
    %v51 = vld [vmem:[%s1 + $0x20] sm:$0xf]
    %v52 = vld [vmem:[%s1 + $0x24] sm:$0xf]
    %v53 = vld [vmem:[%s1 + $0x28] sm:$0xf]
    %v54 = vld [vmem:[%s1 + $0x2c] sm:$0xf]
    %v55 = vld [vmem:[%s1 + $0x30] sm:$0xf]
    %v56 = vld [vmem:[%s1 + $0x34] sm:$0xf]
    %v57 = vld [vmem:[%s1 + $0x38] sm:$0xf]
    %v58 = vld [vmem:[%s1 + $0x3c] sm:$0xf]
    %v59 = vld [vmem:[%s1 + $0x40] sm:$0xf]
    %v60 = vld [vmem:[%s1 + $0x44] sm:$0xf]
    %v61 = vld [vmem:[%s1 + $0x48] sm:$0xf]
    %v62 = vld [vmem:[%s1 + $0x4c] sm:$0xf]
    %v63 = vld [vmem:[%s1 + $0x50] sm:$0xf]
    %v64 = vld [vmem:[%s1 + $0x54] sm:$0xf]
    %v65 = vld [vmem:[%s1 + $0x58] sm:$0xf]
    %v66 = vld [vmem:[%s1 + $0x5c] sm:$0xf]
    %v67 = vld [vmem:[%s1 + $0x60] sm:$0xf]
    %v68 = vld [vmem:[%s1 + $0x64] sm:$0xf]
    %v69 = vld [vmem:[%s1 + $0x68] sm:$0xf]
    %v70 = vld [vmem:[%s1 + $0x6c] sm:$0xf]
    %v71 = vld [vmem:[%s1 + $0x70] sm:$0xf]
    %v72 = vld [vmem:[%s1 + $0x74] sm:$0xf]
    %v73 = vld [vmem:[%s1 + $0x78] sm:$0xf]
    %v74 = vld [vmem:[%s1 + $0x7c] sm:$0xf]
    %v75 = vld [vmem:[%s1 + $0x80] sm:$0xf]
    %v76 = vld [vmem:[%s1 + $0x84] sm:$0xf]
    %v77 = vld [vmem:[%s1 + $0x88] sm:$0xf]
    %v78 = vld [vmem:[%s1 + $0x8c] sm:$0xf]
    %v79 = vld [vmem:[%s1 + $0x90] sm:$0xf]
    %v80 = vld [vmem:[%s1 + $0x94] sm:$0xf]
    %v81 = vld [vmem:[%s1 + $0x98] sm:$0xf]
    %v82 = vld [vmem:[%s1 + $0x9c] sm:$0xf]
    %v83 = vld [vmem:[%s1 + $0xa0] sm:$0xf]
    %v84 = vld [vmem:[%s1 + $0xa4] sm:$0xf]
    %v85 = vld [vmem:[%s1 + $0xa8] sm:$0xf]
    %v86 = vld [vmem:[%s1 + $0xac] sm:$0xf]
    %v87 = vld [vmem:[%s1 + $0xb0] sm:$0xf]
    %v88 = vld [vmem:[%s1 + $0xb4] sm:$0xf]
    %v89 = vld [vmem:[%s1 + $0xb8] sm:$0xf]
    %v90 = vld [vmem:[%s1 + $0xbc] sm:$0xf]
    %v91 = vld [vmem:[%s0 + $0x60] sm:$0xff]
    %v92 = vld [vmem:[%s0 + $0x68] sm:$0xf]
    %v93 = vld [vmem:[%s0 + $0x6c] sm:$0xff]
    %v94 = vld [vmem:[%s0 + $0x74] sm:$0xf]
    %s95 = scalar_lea.vmem %s1, 192
    %v96 = vld [vmem:[%s95] sm:$0xf]
    %v97 = vld [vmem:[%s95 + $0x4] sm:$0xf]
    %v98 = vld [vmem:[%s95 + $0x8] sm:$0xf]
    %v99 = vld [vmem:[%s95 + $0xc] sm:$0xf]
    %v100 = vld [vmem:[%s95 + $0x10] sm:$0xf]
    %v101 = vld [vmem:[%s95 + $0x14] sm:$0xf]
    %v102 = vld [vmem:[%s95 + $0x18] sm:$0xf]
    %v103 = vld [vmem:[%s95 + $0x1c] sm:$0xf]
    %v104 = vld [vmem:[%s95 + $0x20] sm:$0xf]
    %v105 = vld [vmem:[%s95 + $0x24] sm:$0xf]
    %v106 = vld [vmem:[%s95 + $0x28] sm:$0xf]
    %v107 = vld [vmem:[%s95 + $0x2c] sm:$0xf]
    %v108 = vld [vmem:[%s95 + $0x30] sm:$0xf]
    %v109 = vld [vmem:[%s95 + $0x34] sm:$0xf]
    %v110 = vld [vmem:[%s95 + $0x38] sm:$0xf]
    %v111 = vld [vmem:[%s95 + $0x3c] sm:$0xf]
    %v112 = vld [vmem:[%s95 + $0x40] sm:$0xf]
    %v113 = vld [vmem:[%s95 + $0x44] sm:$0xf]
    %v114 = vld [vmem:[%s95 + $0x48] sm:$0xf]
    %v115 = vld [vmem:[%s95 + $0x4c] sm:$0xf]
    %v116 = vld [vmem:[%s95 + $0x50] sm:$0xf]
    %v117 = vld [vmem:[%s95 + $0x54] sm:$0xf]
    %v118 = vld [vmem:[%s95 + $0x58] sm:$0xf]
    %v119 = vld [vmem:[%s95 + $0x5c] sm:$0xf]
    %v120 = vld [vmem:[%s95 + $0x60] sm:$0xf]
    %v121 = vld [vmem:[%s95 + $0x64] sm:$0xf]
    %v122 = vld [vmem:[%s95 + $0x68] sm:$0xf]
    %v123 = vld [vmem:[%s95 + $0x6c] sm:$0xf]
    %v124 = vld [vmem:[%s95 + $0x70] sm:$0xf]
    %v125 = vld [vmem:[%s95 + $0x74] sm:$0xf]
    %v126 = vld [vmem:[%s95 + $0x78] sm:$0xf]
    %v127 = vld [vmem:[%s95 + $0x7c] sm:$0xf]
    %v128 = vld [vmem:[%s95 + $0x80] sm:$0xf]
    %v129 = vld [vmem:[%s95 + $0x84] sm:$0xf]
    %v130 = vld [vmem:[%s95 + $0x88] sm:$0xf]
    %v131 = vld [vmem:[%s95 + $0x8c] sm:$0xf]
    %v132 = vld [vmem:[%s95 + $0x90] sm:$0xf]
    %v133 = vld [vmem:[%s95 + $0x94] sm:$0xf]
    %v134 = vld [vmem:[%s95 + $0x98] sm:$0xf]
    %v135 = vld [vmem:[%s95 + $0x9c] sm:$0xf]
    %v136 = vld [vmem:[%s95 + $0xa0] sm:$0xf]
    %v137 = vld [vmem:[%s95 + $0xa4] sm:$0xf]
    %v138 = vld [vmem:[%s95 + $0xa8] sm:$0xf]
    %v139 = vld [vmem:[%s95 + $0xac] sm:$0xf]
    %v140 = vld [vmem:[%s95 + $0xb0] sm:$0xf]
    %v141 = vld [vmem:[%s95 + $0xb4] sm:$0xf]
    %v142 = vld [vmem:[%s95 + $0xb8] sm:$0xf]
    %v143 = vld [vmem:[%s95 + $0xbc] sm:$0xf]
    %v160 = vunpack.c.l.b16 %v31
    %v161 = vunpack.c.h.b16 %v31
    %v162 = vunpack.c.l.b16 %v32
    %v163 = vunpack.c.l.b16 %v33
    %v164 = vunpack.c.h.b16 %v33
    %v165 = vunpack.c.l.b16 %v34
    %v166 = vunpack.c.l.b16 %v35
    %v167 = vunpack.c.h.b16 %v35
    %v168 = vunpack.c.l.b16 %v36
    %v169 = vunpack.c.l.b16 %v37
    %v170 = vunpack.c.h.b16 %v37
    %v171 = vunpack.c.l.b16 %v38
    %v172 = vunpack.c.l.b16 %v39
    %v173 = vunpack.c.h.b16 %v39
    %v174 = vunpack.c.l.b16 %v40
    %v175 = vunpack.c.l.b16 %v41
    %v176 = vunpack.c.h.b16 %v41
    %v177 = vunpack.c.l.b16 %v42
    %v178 = vunpack.c.l.b16 %v91
    %v179 = vunpack.c.h.b16 %v91
    %v180 = vunpack.c.l.b16 %v92
    %v181 = vunpack.c.l.b16 %v93
    %v182 = vunpack.c.h.b16 %v93
    %v183 = vunpack.c.l.b16 %v94
    %v184 = vpack.c.b16 %v163, %v160
    %v185 = vpack.c.b16 %v164, %v161
    %v186 = vpack.c.b16 %v165, %v162
    %v187 = vpack.c.b16 %v169, %v166
    %v188 = vpack.c.b16 %v170, %v167
    %v189 = vpack.c.b16 %v171, %v168
    %v190 = vpack.c.b16 %v175, %v172
    %v191 = vpack.c.b16 %v176, %v173
    %v192 = vpack.c.b16 %v177, %v174
    %v193 = vpack.c.b16 %v181, %v178
    %v194 = vpack.c.b16 %v182, %v179
    %v195 = vpack.c.b16 %v183, %v180
    %v256 = vunpack.c.l.b16 %v96
    %v257 = vunpack.c.l.b16 %v97
    %v258 = vunpack.c.l.b16 %v98
    %v259 = vunpack.c.l.b16 %v99
    %v260 = vunpack.c.l.b16 %v100
    %v261 = vunpack.c.l.b16 %v101
    %v262 = vunpack.c.l.b16 %v102
    %v263 = vunpack.c.l.b16 %v103
    %v264 = vunpack.c.l.b16 %v104
    %v265 = vunpack.c.l.b16 %v105
    %v266 = vunpack.c.l.b16 %v106
    %v267 = vunpack.c.l.b16 %v107
    %v268 = vunpack.c.l.b16 %v108
    %v269 = vunpack.c.l.b16 %v109
    %v270 = vunpack.c.l.b16 %v110
    %v271 = vunpack.c.l.b16 %v111
    %v272 = vunpack.c.l.b16 %v112
    %v273 = vunpack.c.l.b16 %v113
    %v274 = vunpack.c.l.b16 %v114
    %v275 = vunpack.c.l.b16 %v115
    %v276 = vunpack.c.l.b16 %v116
    %v277 = vunpack.c.l.b16 %v117
    %v278 = vunpack.c.l.b16 %v118
    %v279 = vunpack.c.l.b16 %v119
    %v280 = vunpack.c.l.b16 %v120
    %v281 = vunpack.c.l.b16 %v121
    %v282 = vunpack.c.l.b16 %v122
    %v283 = vunpack.c.l.b16 %v123
    %v284 = vunpack.c.l.b16 %v124
    %v285 = vunpack.c.l.b16 %v125
    %v286 = vunpack.c.l.b16 %v126
    %v287 = vunpack.c.l.b16 %v127
    %v288 = vunpack.c.l.b16 %v128
    %v289 = vunpack.c.l.b16 %v129
    %v290 = vunpack.c.l.b16 %v130
    %v291 = vunpack.c.l.b16 %v131
    %v292 = vunpack.c.l.b16 %v132
    %v293 = vunpack.c.l.b16 %v133
    %v294 = vunpack.c.l.b16 %v134
    %v295 = vunpack.c.l.b16 %v135
    %v296 = vunpack.c.l.b16 %v136
    %v297 = vunpack.c.l.b16 %v137
    %v298 = vunpack.c.l.b16 %v138
    %v299 = vunpack.c.l.b16 %v139
    %v300 = vunpack.c.l.b16 %v140
    %v301 = vunpack.c.l.b16 %v141
    %v302 = vunpack.c.l.b16 %v142
    %v303 = vunpack.c.l.b16 %v143
    %v304 = vpack.c.b16 %v257, %v256
    %v305 = vpack.c.b16 %v259, %v258
    %v306 = vpack.c.b16 %v261, %v260
    %v307 = vpack.c.b16 %v263, %v262
    %v308 = vpack.c.b16 %v265, %v264
    %v309 = vpack.c.b16 %v267, %v266
    %v310 = vpack.c.b16 %v269, %v268
    %v311 = vpack.c.b16 %v271, %v270
    %v312 = vpack.c.b16 %v273, %v272
    %v313 = vpack.c.b16 %v275, %v274
    %v314 = vpack.c.b16 %v277, %v276
    %v315 = vpack.c.b16 %v279, %v278
    %v316 = vpack.c.b16 %v281, %v280
    %v317 = vpack.c.b16 %v283, %v282
    %v318 = vpack.c.b16 %v285, %v284
    %v319 = vpack.c.b16 %v287, %v286
    %v320 = vpack.c.b16 %v289, %v288
    %v321 = vpack.c.b16 %v291, %v290
    %v322 = vpack.c.b16 %v293, %v292
    %v323 = vpack.c.b16 %v295, %v294
    %v324 = vpack.c.b16 %v297, %v296
    %v325 = vpack.c.b16 %v299, %v298
    %v326 = vpack.c.b16 %v301, %v300
    %v327 = vpack.c.b16 %v303, %v302
    %352 = vmatprep.subr.bf16.mxu0 0
    %353 = vmatpush1.bf16.msra.mxu0 %v311
    %354 = vmatprep.subr.bf16.mxu0 0
    %355 = vmatpush1.bf16.msra.mxu0 %v310
    %356 = vmatprep.subr.bf16.mxu0 0
    %357 = vmatpush1.bf16.msra.mxu0 %v309
    %358 = vmatprep.subr.bf16.mxu0 0
    %359 = vmatpush1.bf16.msra.mxu0 %v308
    %360 = vmatprep.subr.bf16.mxu0 0
    %361 = vmatpush1.bf16.msra.mxu0 %v307
    %362 = vmatprep.subr.bf16.mxu0 0
    %363 = vmatpush1.bf16.msra.mxu0 %v306
    %364 = vmatprep.subr.bf16.mxu0 0
    %365 = vmatpush1.bf16.msra.mxu0 %v305
    %366 = vmatprep.subr.bf16.mxu0 0
    %367 = vmatpush1.bf16.msra.mxu0 %v304
    %368 = vmatprep.subr.bf16.mxu0 0
    %369 = vmatpush2.bf16.msra.mxu0 %v319
    %370 = vmatprep.subr.bf16.mxu0 0
    %371 = vmatpush2.bf16.msra.mxu0 %v318
    %372 = vmatprep.subr.bf16.mxu0 0
    %373 = vmatpush2.bf16.msra.mxu0 %v317
    %374 = vmatprep.subr.bf16.mxu0 0
    %375 = vmatpush2.bf16.msra.mxu0 %v316
    %376 = vmatprep.subr.bf16.mxu0 0
    %377 = vmatpush2.bf16.msra.mxu0 %v315
    %378 = vmatprep.subr.bf16.mxu0 0
    %379 = vmatpush2.bf16.msra.mxu0 %v314
    %380 = vmatprep.subr.bf16.mxu0 0
    %381 = vmatpush2.bf16.msra.mxu0 %v313
    %382 = vmatprep.subr.bf16.mxu0 0
    %383 = vmatpush2.bf16.msra.mxu0 %v312
    %384 = vmatprep.mubr.bf16.mxu0 %v185
    %385 = vmatmul.mubr.bf16.gmra.mxu0 %v184
    %v386 = vpop.f32.mrf.mxu0
    %v387 = vadd.f32 0.0, %v386
    %v388 = vpop.f32.mrf.mxu0
    %v389 = vpop.f32.mrf.mxu0
    %v390 = vadd.f32 0.0, %v389
    %v391 = vpop.f32.mrf.mxu0
    %392 = vmatprep.mubr.bf16.mxu0 %v188
    %393 = vmatmul.mubr.bf16.gmra.mxu0 %v187
    %v394 = vpop.f32.mrf.mxu0
    %v395 = vadd.f32 0.0, %v394
    %v396 = vpop.f32.mrf.mxu0
    %v397 = vpop.f32.mrf.mxu0
    %v398 = vadd.f32 0.0, %v397
    %v399 = vpop.f32.mrf.mxu0
    %400 = vmatprep.mubr.bf16.mxu0 %v191
    %401 = vmatmul.mubr.bf16.gmra.mxu0 %v190
    %v402 = vpop.f32.mrf.mxu0
    %v403 = vadd.f32 0.0, %v402
    %v404 = vpop.f32.mrf.mxu0
    %v405 = vpop.f32.mrf.mxu0
    %v406 = vadd.f32 0.0, %v405
    %v407 = vpop.f32.mrf.mxu0
    %408 = vmatprep.mubr.bf16.mxu0 %v194
    %409 = vmatmul.mubr.bf16.gmra.mxu0 %v193
    %v410 = vpop.f32.mrf.mxu0
    %v411 = vadd.f32 0.0, %v410
    %v412 = vpop.f32.mrf.mxu0
    %v413 = vpop.f32.mrf.mxu0
    %v414 = vadd.f32 0.0, %v413
    %v415 = vpop.f32.mrf.mxu0
    %416 = vdwg.mxu0
    %417 = vmatprep.subr.bf16.mxu0 0
    %418 = vmatpush1.bf16.msra.mxu0 %v327
    %419 = vmatprep.subr.bf16.mxu0 0
    %420 = vmatpush1.bf16.msra.mxu0 %v326
    %421 = vmatprep.subr.bf16.mxu0 0
    %422 = vmatpush1.bf16.msra.mxu0 %v325
    %423 = vmatprep.subr.bf16.mxu0 0
    %424 = vmatpush1.bf16.msra.mxu0 %v324
    %425 = vmatprep.subr.bf16.mxu0 0
    %426 = vmatpush1.bf16.msra.mxu0 %v323
    %427 = vmatprep.subr.bf16.mxu0 0
    %428 = vmatpush1.bf16.msra.mxu0 %v322
    %429 = vmatprep.subr.bf16.mxu0 0
    %430 = vmatpush1.bf16.msra.mxu0 %v321
    %431 = vmatprep.subr.bf16.mxu0 0
    %432 = vmatpush1.bf16.msra.mxu0 %v320
    %433 = vmatprep.subr.bf16.mxu0 0
    %434 = vmatpush2.bf16.msra.mxu0 0
    %435 = vmatprep.subr.bf16.mxu0 0
    %436 = vmatpush2.bf16.msra.mxu0 0
    %437 = vmatprep.subr.bf16.mxu0 0
    %438 = vmatpush2.bf16.msra.mxu0 0
    %439 = vmatprep.subr.bf16.mxu0 0
    %440 = vmatpush2.bf16.msra.mxu0 0
    %441 = vmatprep.subr.bf16.mxu0 0
    %442 = vmatpush2.bf16.msra.mxu0 0
    %443 = vmatprep.subr.bf16.mxu0 0
    %444 = vmatpush2.bf16.msra.mxu0 0
    %445 = vmatprep.subr.bf16.mxu0 0
    %446 = vmatpush2.bf16.msra.mxu0 0
    %447 = vmatprep.subr.bf16.mxu0 0
    %448 = vmatpush2.bf16.msra.mxu0 0
    %449 = vmatprep.mubr.bf16.mxu0 0
    %450 = vmatmul.mubr.bf16.gmra.mxu0 %v186
    %v451 = vpop.f32.mrf.mxu0
    %v452 = vadd.f32 %v387, %v451
    %v453 = vpop.f32.mrf.mxu0
    %v454 = vpop.f32.mrf.mxu0
    %v455 = vadd.f32 %v390, %v454
    %v456 = vpop.f32.mrf.mxu0
    %457 = vmatprep.mubr.bf16.mxu0 0
    %458 = vmatmul.mubr.bf16.gmra.mxu0 %v189
    %v459 = vpop.f32.mrf.mxu0
    %v460 = vadd.f32 %v395, %v459
    %v461 = vpop.f32.mrf.mxu0
    %v462 = vpop.f32.mrf.mxu0
    %v463 = vadd.f32 %v398, %v462
    %v464 = vpop.f32.mrf.mxu0
    %465 = vmatprep.mubr.bf16.mxu0 0
    %466 = vmatmul.mubr.bf16.gmra.mxu0 %v192
    %v467 = vpop.f32.mrf.mxu0
    %v468 = vadd.f32 %v403, %v467
    %v469 = vpop.f32.mrf.mxu0
    %v470 = vpop.f32.mrf.mxu0
    %v471 = vadd.f32 %v406, %v470
    %v472 = vpop.f32.mrf.mxu0
    %473 = vmatprep.mubr.bf16.mxu0 0
    %474 = vmatmul.mubr.bf16.gmra.mxu0 %v195
    %v475 = vpop.f32.mrf.mxu0
    %v476 = vadd.f32 %v411, %v475
    %v477 = vpop.f32.mrf.mxu0
    %v478 = vpop.f32.mrf.mxu0
    %v479 = vadd.f32 %v414, %v478
    %v480 = vpop.f32.mrf.mxu0
    %481 = vdwg.mxu0
    %v486 = vunpack.c.l.b16 %v27
    %v487 = vunpack.c.h.b16 %v27
    %v488 = vunpack.c.l.b16 %v28
    %v489 = vunpack.c.l.b16 %v29
    %v490 = vunpack.c.h.b16 %v29
    %v491 = vunpack.c.l.b16 %v30
    %v492 = vpack.c.b16 %v489, %v486
    %v493 = vpack.c.b16 %v490, %v487
    %v494 = vpack.c.b16 %v491, %v488
    %v546 = vunpack.c.l.b16 %v43
    %v547 = vunpack.c.l.b16 %v44
    %v548 = vunpack.c.l.b16 %v45
    %v549 = vunpack.c.l.b16 %v46
    %v550 = vunpack.c.l.b16 %v47
    %v551 = vunpack.c.l.b16 %v48
    %v552 = vunpack.c.l.b16 %v49
    %v553 = vunpack.c.l.b16 %v50
    %v554 = vunpack.c.l.b16 %v51
    %v555 = vunpack.c.l.b16 %v52
    %v556 = vunpack.c.l.b16 %v53
    %v557 = vunpack.c.l.b16 %v54
    %v558 = vunpack.c.l.b16 %v55
    %v559 = vunpack.c.l.b16 %v56
    %v560 = vunpack.c.l.b16 %v57
    %v561 = vunpack.c.l.b16 %v58
    %v562 = vunpack.c.l.b16 %v59
    %v563 = vunpack.c.l.b16 %v60
    %v564 = vunpack.c.l.b16 %v61
    %v565 = vunpack.c.l.b16 %v62
    %v566 = vunpack.c.l.b16 %v63
    %v567 = vunpack.c.l.b16 %v64
    %v568 = vunpack.c.l.b16 %v65
    %v569 = vunpack.c.l.b16 %v66
    %v570 = vunpack.c.l.b16 %v67
    %v571 = vunpack.c.l.b16 %v68
    %v572 = vunpack.c.l.b16 %v69
    %v573 = vunpack.c.l.b16 %v70
    %v574 = vunpack.c.l.b16 %v71
    %v575 = vunpack.c.l.b16 %v72
    %v576 = vunpack.c.l.b16 %v73
    %v577 = vunpack.c.l.b16 %v74
    %v578 = vunpack.c.l.b16 %v75
    %v579 = vunpack.c.l.b16 %v76
    %v580 = vunpack.c.l.b16 %v77
    %v581 = vunpack.c.l.b16 %v78
    %v582 = vunpack.c.l.b16 %v79
    %v583 = vunpack.c.l.b16 %v80
    %v584 = vunpack.c.l.b16 %v81
    %v585 = vunpack.c.l.b16 %v82
    %v586 = vunpack.c.l.b16 %v83
    %v587 = vunpack.c.l.b16 %v84
    %v588 = vunpack.c.l.b16 %v85
    %v589 = vunpack.c.l.b16 %v86
    %v590 = vunpack.c.l.b16 %v87
    %v591 = vunpack.c.l.b16 %v88
    %v592 = vunpack.c.l.b16 %v89
    %v593 = vunpack.c.l.b16 %v90
    %v594 = vpack.c.b16 %v547, %v546
    %v595 = vpack.c.b16 %v549, %v548
    %v596 = vpack.c.b16 %v551, %v550
    %v597 = vpack.c.b16 %v553, %v552
    %v598 = vpack.c.b16 %v555, %v554
    %v599 = vpack.c.b16 %v557, %v556
    %v600 = vpack.c.b16 %v559, %v558
    %v601 = vpack.c.b16 %v561, %v560
    %v602 = vpack.c.b16 %v563, %v562
    %v603 = vpack.c.b16 %v565, %v564
    %v604 = vpack.c.b16 %v567, %v566
    %v605 = vpack.c.b16 %v569, %v568
    %v606 = vpack.c.b16 %v571, %v570
    %v607 = vpack.c.b16 %v573, %v572
    %v608 = vpack.c.b16 %v575, %v574
    %v609 = vpack.c.b16 %v577, %v576
    %v610 = vpack.c.b16 %v579, %v578
    %v611 = vpack.c.b16 %v581, %v580
    %v612 = vpack.c.b16 %v583, %v582
    %v613 = vpack.c.b16 %v585, %v584
    %v614 = vpack.c.b16 %v587, %v586
    %v615 = vpack.c.b16 %v589, %v588
    %v616 = vpack.c.b16 %v591, %v590
    %v617 = vpack.c.b16 %v593, %v592
    %642 = vmatprep.subr.bf16.mxu0 0
    %643 = vmatpush1.bf16.msra.mxu0 %v601
    %644 = vmatprep.subr.bf16.mxu0 0
    %645 = vmatpush1.bf16.msra.mxu0 %v600
    %646 = vmatprep.subr.bf16.mxu0 0
    %647 = vmatpush1.bf16.msra.mxu0 %v599
    %648 = vmatprep.subr.bf16.mxu0 0
    %649 = vmatpush1.bf16.msra.mxu0 %v598
    %650 = vmatprep.subr.bf16.mxu0 0
    %651 = vmatpush1.bf16.msra.mxu0 %v597
    %652 = vmatprep.subr.bf16.mxu0 0
    %653 = vmatpush1.bf16.msra.mxu0 %v596
    %654 = vmatprep.subr.bf16.mxu0 0
    %655 = vmatpush1.bf16.msra.mxu0 %v595
    %656 = vmatprep.subr.bf16.mxu0 0
    %657 = vmatpush1.bf16.msra.mxu0 %v594
    %658 = vmatprep.subr.bf16.mxu0 0
    %659 = vmatpush2.bf16.msra.mxu0 %v609
    %660 = vmatprep.subr.bf16.mxu0 0
    %661 = vmatpush2.bf16.msra.mxu0 %v608
    %662 = vmatprep.subr.bf16.mxu0 0
    %663 = vmatpush2.bf16.msra.mxu0 %v607
    %664 = vmatprep.subr.bf16.mxu0 0
    %665 = vmatpush2.bf16.msra.mxu0 %v606
    %666 = vmatprep.subr.bf16.mxu0 0
    %667 = vmatpush2.bf16.msra.mxu0 %v605
    %668 = vmatprep.subr.bf16.mxu0 0
    %669 = vmatpush2.bf16.msra.mxu0 %v604
    %670 = vmatprep.subr.bf16.mxu0 0
    %671 = vmatpush2.bf16.msra.mxu0 %v603
    %672 = vmatprep.subr.bf16.mxu0 0
    %673 = vmatpush2.bf16.msra.mxu0 %v602
    %674 = vmatprep.mubr.bf16.mxu0 %v493
    %675 = vmatmul.mubr.bf16.gmra.mxu0 %v492
    %v676 = vpop.f32.mrf.mxu0
    %v677 = vadd.f32 %v452, %v676
    %v678 = vpop.f32.mrf.mxu0
    %v679 = vpop.f32.mrf.mxu0
    %v680 = vadd.f32 %v455, %v679
    %v681 = vpop.f32.mrf.mxu0
    %682 = vmatprep.mubr.bf16.mxu0 %v185
    %683 = vmatmul.mubr.bf16.gmra.mxu0 %v184
    %v684 = vpop.f32.mrf.mxu0
    %v685 = vadd.f32 %v460, %v684
    %v686 = vpop.f32.mrf.mxu0
    %v687 = vpop.f32.mrf.mxu0
    %v688 = vadd.f32 %v463, %v687
    %v689 = vpop.f32.mrf.mxu0
    %690 = vmatprep.mubr.bf16.mxu0 %v188
    %691 = vmatmul.mubr.bf16.gmra.mxu0 %v187
    %v692 = vpop.f32.mrf.mxu0
    %v693 = vadd.f32 %v468, %v692
    %v694 = vpop.f32.mrf.mxu0
    %v695 = vpop.f32.mrf.mxu0
    %v696 = vadd.f32 %v471, %v695
    %v697 = vpop.f32.mrf.mxu0
    %698 = vmatprep.mubr.bf16.mxu0 %v191
    %699 = vmatmul.mubr.bf16.gmra.mxu0 %v190
    %v700 = vpop.f32.mrf.mxu0
    %v701 = vadd.f32 %v476, %v700
    %v702 = vpop.f32.mrf.mxu0
    %v703 = vpop.f32.mrf.mxu0
    %v704 = vadd.f32 %v479, %v703
    %v705 = vpop.f32.mrf.mxu0
    %706 = vdwg.mxu0
    %707 = vmatprep.subr.bf16.mxu0 0
    %708 = vmatpush1.bf16.msra.mxu0 %v617
    %709 = vmatprep.subr.bf16.mxu0 0
    %710 = vmatpush1.bf16.msra.mxu0 %v616
    %711 = vmatprep.subr.bf16.mxu0 0
    %712 = vmatpush1.bf16.msra.mxu0 %v615
    %713 = vmatprep.subr.bf16.mxu0 0
    %714 = vmatpush1.bf16.msra.mxu0 %v614
    %715 = vmatprep.subr.bf16.mxu0 0
    %716 = vmatpush1.bf16.msra.mxu0 %v613
    %717 = vmatprep.subr.bf16.mxu0 0
    %718 = vmatpush1.bf16.msra.mxu0 %v612
    %719 = vmatprep.subr.bf16.mxu0 0
    %720 = vmatpush1.bf16.msra.mxu0 %v611
    %721 = vmatprep.subr.bf16.mxu0 0
    %722 = vmatpush1.bf16.msra.mxu0 %v610
    %723 = vmatprep.subr.bf16.mxu0 0
    %724 = vmatpush2.bf16.msra.mxu0 0
    %725 = vmatprep.subr.bf16.mxu0 0
    %726 = vmatpush2.bf16.msra.mxu0 0
    %727 = vmatprep.subr.bf16.mxu0 0
    %728 = vmatpush2.bf16.msra.mxu0 0
    %729 = vmatprep.subr.bf16.mxu0 0
    %730 = vmatpush2.bf16.msra.mxu0 0
    %731 = vmatprep.subr.bf16.mxu0 0
    %732 = vmatpush2.bf16.msra.mxu0 0
    %733 = vmatprep.subr.bf16.mxu0 0
    %734 = vmatpush2.bf16.msra.mxu0 0
    %735 = vmatprep.subr.bf16.mxu0 0
    %736 = vmatpush2.bf16.msra.mxu0 0
    %737 = vmatprep.subr.bf16.mxu0 0
    %738 = vmatpush2.bf16.msra.mxu0 0
    %739 = vmatprep.mubr.bf16.mxu0 0
    %740 = vmatmul.mubr.bf16.gmra.mxu0 %v494
    %v741 = vpop.f32.mrf.mxu0
    %v742 = vadd.f32 %v677, %v741
    %v743 = vpop.f32.mrf.mxu0
    %v744 = vpop.f32.mrf.mxu0
    %v745 = vadd.f32 %v680, %v744
    %v746 = vpop.f32.mrf.mxu0
    %747 = vmatprep.mubr.bf16.mxu0 0
    %748 = vmatmul.mubr.bf16.gmra.mxu0 %v186
    %v749 = vpop.f32.mrf.mxu0
    %v750 = vadd.f32 %v685, %v749
    %v751 = vpop.f32.mrf.mxu0
    %v752 = vpop.f32.mrf.mxu0
    %v753 = vadd.f32 %v688, %v752
    %v754 = vpop.f32.mrf.mxu0
    %755 = vmatprep.mubr.bf16.mxu0 0
    %756 = vmatmul.mubr.bf16.gmra.mxu0 %v189
    %v757 = vpop.f32.mrf.mxu0
    %v758 = vadd.f32 %v693, %v757
    %v759 = vpop.f32.mrf.mxu0
    %v760 = vpop.f32.mrf.mxu0
    %v761 = vadd.f32 %v696, %v760
    %v762 = vpop.f32.mrf.mxu0
    %763 = vmatprep.mubr.bf16.mxu0 0
    %764 = vmatmul.mubr.bf16.gmra.mxu0 %v192
    %v765 = vpop.f32.mrf.mxu0
    %v766 = vadd.f32 %v701, %v765
    %v767 = vpop.f32.mrf.mxu0
    %v768 = vpop.f32.mrf.mxu0
    %v769 = vadd.f32 %v704, %v768
    %v770 = vpop.f32.mrf.mxu0
    %771 = vdwg.mxu0
    %v772 = vld [vmem:[%s0 + $0x30] sm:$0xff]
    %v773 = vld [vmem:[%s0 + $0x38] sm:$0xf]
    %v774 = vld [vmem:[%s0 + $0x3c] sm:$0xff]
    %v775 = vld [vmem:[%s0 + $0x44] sm:$0xf]
    %v776 = vld [vmem:[%s0 + $0x48] sm:$0xff]
    %v777 = vld [vmem:[%s0 + $0x50] sm:$0xf]
    %v778 = vld [vmem:[%s0 + $0x54] sm:$0xff]
    %v779 = vld [vmem:[%s0 + $0x5c] sm:$0xf]
    %v780 = vld [vmem:[%s0 + $0x60] sm:$0xff]
    %v781 = vld [vmem:[%s0 + $0x68] sm:$0xf]
    %v782 = vld [vmem:[%s0 + $0x6c] sm:$0xff]
    %v783 = vld [vmem:[%s0 + $0x74] sm:$0xf]
    %v784 = vld [vmem:[%s0 + $0x78] sm:$0xff]
    %v785 = vld [vmem:[%s0 + $0x80] sm:$0xf]
    %v786 = vld [vmem:[%s0 + $0x84] sm:$0xff]
    %v787 = vld [vmem:[%s0 + $0x8c] sm:$0xf]
    %s788 = scalar_lea.vmem %s1, 384
    %v789 = vld [vmem:[%s788] sm:$0xf]
    %v790 = vld [vmem:[%s788 + $0x4] sm:$0xf]
    %v791 = vld [vmem:[%s788 + $0x8] sm:$0xf]
    %v792 = vld [vmem:[%s788 + $0xc] sm:$0xf]
    %v793 = vld [vmem:[%s788 + $0x10] sm:$0xf]
    %v794 = vld [vmem:[%s788 + $0x14] sm:$0xf]
    %v795 = vld [vmem:[%s788 + $0x18] sm:$0xf]
    %v796 = vld [vmem:[%s788 + $0x1c] sm:$0xf]
    %v797 = vld [vmem:[%s788 + $0x20] sm:$0xf]
    %v798 = vld [vmem:[%s788 + $0x24] sm:$0xf]
    %v799 = vld [vmem:[%s788 + $0x28] sm:$0xf]
    %v800 = vld [vmem:[%s788 + $0x2c] sm:$0xf]
    %v801 = vld [vmem:[%s788 + $0x30] sm:$0xf]
    %v802 = vld [vmem:[%s788 + $0x34] sm:$0xf]
    %v803 = vld [vmem:[%s788 + $0x38] sm:$0xf]
    %v804 = vld [vmem:[%s788 + $0x3c] sm:$0xf]
    %v805 = vld [vmem:[%s788 + $0x40] sm:$0xf]
    %v806 = vld [vmem:[%s788 + $0x44] sm:$0xf]
    %v807 = vld [vmem:[%s788 + $0x48] sm:$0xf]
    %v808 = vld [vmem:[%s788 + $0x4c] sm:$0xf]
    %v809 = vld [vmem:[%s788 + $0x50] sm:$0xf]
    %v810 = vld [vmem:[%s788 + $0x54] sm:$0xf]
    %v811 = vld [vmem:[%s788 + $0x58] sm:$0xf]
    %v812 = vld [vmem:[%s788 + $0x5c] sm:$0xf]
    %v813 = vld [vmem:[%s788 + $0x60] sm:$0xf]
    %v814 = vld [vmem:[%s788 + $0x64] sm:$0xf]
    %v815 = vld [vmem:[%s788 + $0x68] sm:$0xf]
    %v816 = vld [vmem:[%s788 + $0x6c] sm:$0xf]
    %v817 = vld [vmem:[%s788 + $0x70] sm:$0xf]
    %v818 = vld [vmem:[%s788 + $0x74] sm:$0xf]
    %v819 = vld [vmem:[%s788 + $0x78] sm:$0xf]
    %v820 = vld [vmem:[%s788 + $0x7c] sm:$0xf]
    %v821 = vld [vmem:[%s788 + $0x80] sm:$0xf]
    %v822 = vld [vmem:[%s788 + $0x84] sm:$0xf]
    %v823 = vld [vmem:[%s788 + $0x88] sm:$0xf]
    %v824 = vld [vmem:[%s788 + $0x8c] sm:$0xf]
    %v825 = vld [vmem:[%s788 + $0x90] sm:$0xf]
    %v826 = vld [vmem:[%s788 + $0x94] sm:$0xf]
    %v827 = vld [vmem:[%s788 + $0x98] sm:$0xf]
    %v828 = vld [vmem:[%s788 + $0x9c] sm:$0xf]
    %v829 = vld [vmem:[%s788 + $0xa0] sm:$0xf]
    %v830 = vld [vmem:[%s788 + $0xa4] sm:$0xf]
    %v831 = vld [vmem:[%s788 + $0xa8] sm:$0xf]
    %v832 = vld [vmem:[%s788 + $0xac] sm:$0xf]
    %v833 = vld [vmem:[%s788 + $0xb0] sm:$0xf]
    %v834 = vld [vmem:[%s788 + $0xb4] sm:$0xf]
    %v835 = vld [vmem:[%s788 + $0xb8] sm:$0xf]
    %v836 = vld [vmem:[%s788 + $0xbc] sm:$0xf]
    %v853 = vunpack.c.l.b16 %v772
    %v854 = vunpack.c.h.b16 %v772
    %v855 = vunpack.c.l.b16 %v773
    %v856 = vunpack.c.l.b16 %v774
    %v857 = vunpack.c.h.b16 %v774
    %v858 = vunpack.c.l.b16 %v775
    %v859 = vunpack.c.l.b16 %v776
    %v860 = vunpack.c.h.b16 %v776
    %v861 = vunpack.c.l.b16 %v777
    %v862 = vunpack.c.l.b16 %v778
    %v863 = vunpack.c.h.b16 %v778
    %v864 = vunpack.c.l.b16 %v779
    %v865 = vunpack.c.l.b16 %v780
    %v866 = vunpack.c.h.b16 %v780
    %v867 = vunpack.c.l.b16 %v781
    %v868 = vunpack.c.l.b16 %v782
    %v869 = vunpack.c.h.b16 %v782
    %v870 = vunpack.c.l.b16 %v783
    %v871 = vunpack.c.l.b16 %v784
    %v872 = vunpack.c.h.b16 %v784
    %v873 = vunpack.c.l.b16 %v785
    %v874 = vunpack.c.l.b16 %v786
    %v875 = vunpack.c.h.b16 %v786
    %v876 = vunpack.c.l.b16 %v787
    %v877 = vpack.c.b16 %v856, %v853
    %v878 = vpack.c.b16 %v857, %v854
    %v879 = vpack.c.b16 %v858, %v855
    %v880 = vpack.c.b16 %v862, %v859
    %v881 = vpack.c.b16 %v863, %v860
    %v882 = vpack.c.b16 %v864, %v861
    %v883 = vpack.c.b16 %v868, %v865
    %v884 = vpack.c.b16 %v869, %v866
    %v885 = vpack.c.b16 %v870, %v867
    %v886 = vpack.c.b16 %v874, %v871
    %v887 = vpack.c.b16 %v875, %v872
    %v888 = vpack.c.b16 %v876, %v873
    %v949 = vunpack.c.l.b16 %v789
    %v950 = vunpack.c.l.b16 %v790
    %v951 = vunpack.c.l.b16 %v791
    %v952 = vunpack.c.l.b16 %v792
    %v953 = vunpack.c.l.b16 %v793
    %v954 = vunpack.c.l.b16 %v794
    %v955 = vunpack.c.l.b16 %v795
    %v956 = vunpack.c.l.b16 %v796
    %v957 = vunpack.c.l.b16 %v797
    %v958 = vunpack.c.l.b16 %v798
    %v959 = vunpack.c.l.b16 %v799
    %v960 = vunpack.c.l.b16 %v800
    %v961 = vunpack.c.l.b16 %v801
    %v962 = vunpack.c.l.b16 %v802
    %v963 = vunpack.c.l.b16 %v803
    %v964 = vunpack.c.l.b16 %v804
    %v965 = vunpack.c.l.b16 %v805
    %v966 = vunpack.c.l.b16 %v806
    %v967 = vunpack.c.l.b16 %v807
    %v968 = vunpack.c.l.b16 %v808
    %v969 = vunpack.c.l.b16 %v809
    %v970 = vunpack.c.l.b16 %v810
    %v971 = vunpack.c.l.b16 %v811
    %v972 = vunpack.c.l.b16 %v812
    %v973 = vunpack.c.l.b16 %v813
    %v974 = vunpack.c.l.b16 %v814
    %v975 = vunpack.c.l.b16 %v815
    %v976 = vunpack.c.l.b16 %v816
    %v977 = vunpack.c.l.b16 %v817
    %v978 = vunpack.c.l.b16 %v818
    %v979 = vunpack.c.l.b16 %v819
    %v980 = vunpack.c.l.b16 %v820
    %v981 = vunpack.c.l.b16 %v821
    %v982 = vunpack.c.l.b16 %v822
    %v983 = vunpack.c.l.b16 %v823
    %v984 = vunpack.c.l.b16 %v824
    %v985 = vunpack.c.l.b16 %v825
    %v986 = vunpack.c.l.b16 %v826
    %v987 = vunpack.c.l.b16 %v827
    %v988 = vunpack.c.l.b16 %v828
    %v989 = vunpack.c.l.b16 %v829
    %v990 = vunpack.c.l.b16 %v830
    %v991 = vunpack.c.l.b16 %v831
    %v992 = vunpack.c.l.b16 %v832
    %v993 = vunpack.c.l.b16 %v833
    %v994 = vunpack.c.l.b16 %v834
    %v995 = vunpack.c.l.b16 %v835
    %v996 = vunpack.c.l.b16 %v836
    %v997 = vpack.c.b16 %v950, %v949
    %v998 = vpack.c.b16 %v952, %v951
    %v999 = vpack.c.b16 %v954, %v953
    %v1000 = vpack.c.b16 %v956, %v955
    %v1001 = vpack.c.b16 %v958, %v957
    %v1002 = vpack.c.b16 %v960, %v959
    %v1003 = vpack.c.b16 %v962, %v961
    %v1004 = vpack.c.b16 %v964, %v963
    %v1005 = vpack.c.b16 %v966, %v965
    %v1006 = vpack.c.b16 %v968, %v967
    %v1007 = vpack.c.b16 %v970, %v969
    %v1008 = vpack.c.b16 %v972, %v971
    %v1009 = vpack.c.b16 %v974, %v973
    %v1010 = vpack.c.b16 %v976, %v975
    %v1011 = vpack.c.b16 %v978, %v977
    %v1012 = vpack.c.b16 %v980, %v979
    %v1013 = vpack.c.b16 %v982, %v981
    %v1014 = vpack.c.b16 %v984, %v983
    %v1015 = vpack.c.b16 %v986, %v985
    %v1016 = vpack.c.b16 %v988, %v987
    %v1017 = vpack.c.b16 %v990, %v989
    %v1018 = vpack.c.b16 %v992, %v991
    %v1019 = vpack.c.b16 %v994, %v993
    %v1020 = vpack.c.b16 %v996, %v995
    %1045 = vmatprep.subr.bf16.mxu0 0
    %1046 = vmatpush1.bf16.msra.mxu0 %v1004
    %1047 = vmatprep.subr.bf16.mxu0 0
    %1048 = vmatpush1.bf16.msra.mxu0 %v1003
    %1049 = vmatprep.subr.bf16.mxu0 0
    %1050 = vmatpush1.bf16.msra.mxu0 %v1002
    %1051 = vmatprep.subr.bf16.mxu0 0
    %1052 = vmatpush1.bf16.msra.mxu0 %v1001
    %1053 = vmatprep.subr.bf16.mxu0 0
    %1054 = vmatpush1.bf16.msra.mxu0 %v1000
    %1055 = vmatprep.subr.bf16.mxu0 0
    %1056 = vmatpush1.bf16.msra.mxu0 %v999
    %1057 = vmatprep.subr.bf16.mxu0 0
    %1058 = vmatpush1.bf16.msra.mxu0 %v998
    %1059 = vmatprep.subr.bf16.mxu0 0
    %1060 = vmatpush1.bf16.msra.mxu0 %v997
    %1061 = vmatprep.subr.bf16.mxu0 0
    %1062 = vmatpush2.bf16.msra.mxu0 %v1012
    %1063 = vmatprep.subr.bf16.mxu0 0
    %1064 = vmatpush2.bf16.msra.mxu0 %v1011
    %1065 = vmatprep.subr.bf16.mxu0 0
    %1066 = vmatpush2.bf16.msra.mxu0 %v1010
    %1067 = vmatprep.subr.bf16.mxu0 0
    %1068 = vmatpush2.bf16.msra.mxu0 %v1009
    %1069 = vmatprep.subr.bf16.mxu0 0
    %1070 = vmatpush2.bf16.msra.mxu0 %v1008
    %1071 = vmatprep.subr.bf16.mxu0 0
    %1072 = vmatpush2.bf16.msra.mxu0 %v1007
    %1073 = vmatprep.subr.bf16.mxu0 0
    %1074 = vmatpush2.bf16.msra.mxu0 %v1006
    %1075 = vmatprep.subr.bf16.mxu0 0
    %1076 = vmatpush2.bf16.msra.mxu0 %v1005
    %1077 = vmatprep.mubr.bf16.mxu0 %v878
    %1078 = vmatmul.mubr.bf16.gmra.mxu0 %v877
    %v1079 = vpop.f32.mrf.mxu0
    %v1080 = vadd.f32 0.0, %v1079
    %v1081 = vpop.f32.mrf.mxu0
    %v1082 = vpop.f32.mrf.mxu0
    %v1083 = vadd.f32 0.0, %v1082
    %v1084 = vpop.f32.mrf.mxu0
    %1085 = vmatprep.mubr.bf16.mxu0 %v881
    %1086 = vmatmul.mubr.bf16.gmra.mxu0 %v880
    %v1087 = vpop.f32.mrf.mxu0
    %v1088 = vadd.f32 0.0, %v1087
    %v1089 = vpop.f32.mrf.mxu0
    %v1090 = vpop.f32.mrf.mxu0
    %v1091 = vadd.f32 0.0, %v1090
    %v1092 = vpop.f32.mrf.mxu0
    %1093 = vmatprep.mubr.bf16.mxu0 %v884
    %1094 = vmatmul.mubr.bf16.gmra.mxu0 %v883
    %v1095 = vpop.f32.mrf.mxu0
    %v1096 = vadd.f32 0.0, %v1095
    %v1097 = vpop.f32.mrf.mxu0
    %v1098 = vpop.f32.mrf.mxu0
    %v1099 = vadd.f32 0.0, %v1098
    %v1100 = vpop.f32.mrf.mxu0
    %1101 = vmatprep.mubr.bf16.mxu0 %v887
    %1102 = vmatmul.mubr.bf16.gmra.mxu0 %v886
    %v1103 = vpop.f32.mrf.mxu0
    %v1104 = vadd.f32 0.0, %v1103
    %v1105 = vpop.f32.mrf.mxu0
    %v1106 = vpop.f32.mrf.mxu0
    %v1107 = vadd.f32 0.0, %v1106
    %v1108 = vpop.f32.mrf.mxu0
    %1109 = vdwg.mxu0
    %1110 = vmatprep.subr.bf16.mxu0 0
    %1111 = vmatpush1.bf16.msra.mxu0 %v1020
    %1112 = vmatprep.subr.bf16.mxu0 0
    %1113 = vmatpush1.bf16.msra.mxu0 %v1019
    %1114 = vmatprep.subr.bf16.mxu0 0
    %1115 = vmatpush1.bf16.msra.mxu0 %v1018
    %1116 = vmatprep.subr.bf16.mxu0 0
    %1117 = vmatpush1.bf16.msra.mxu0 %v1017
    %1118 = vmatprep.subr.bf16.mxu0 0
    %1119 = vmatpush1.bf16.msra.mxu0 %v1016
    %1120 = vmatprep.subr.bf16.mxu0 0
    %1121 = vmatpush1.bf16.msra.mxu0 %v1015
    %1122 = vmatprep.subr.bf16.mxu0 0
    %1123 = vmatpush1.bf16.msra.mxu0 %v1014
    %1124 = vmatprep.subr.bf16.mxu0 0
    %1125 = vmatpush1.bf16.msra.mxu0 %v1013
    %1126 = vmatprep.subr.bf16.mxu0 0
    %1127 = vmatpush2.bf16.msra.mxu0 0
    %1128 = vmatprep.subr.bf16.mxu0 0
    %1129 = vmatpush2.bf16.msra.mxu0 0
    %1130 = vmatprep.subr.bf16.mxu0 0
    %1131 = vmatpush2.bf16.msra.mxu0 0
    %1132 = vmatprep.subr.bf16.mxu0 0
    %1133 = vmatpush2.bf16.msra.mxu0 0
    %1134 = vmatprep.subr.bf16.mxu0 0
    %1135 = vmatpush2.bf16.msra.mxu0 0
    %1136 = vmatprep.subr.bf16.mxu0 0
    %1137 = vmatpush2.bf16.msra.mxu0 0
    %1138 = vmatprep.subr.bf16.mxu0 0
    %1139 = vmatpush2.bf16.msra.mxu0 0
    %1140 = vmatprep.subr.bf16.mxu0 0
    %1141 = vmatpush2.bf16.msra.mxu0 0
    %1142 = vmatprep.mubr.bf16.mxu0 0
    %1143 = vmatmul.mubr.bf16.gmra.mxu0 %v879
    %v1144 = vpop.f32.mrf.mxu0
    %v1145 = vadd.f32 %v1080, %v1144
    %v1146 = vpop.f32.mrf.mxu0
    %v1147 = vpop.f32.mrf.mxu0
    %v1148 = vadd.f32 %v1083, %v1147
    %v1149 = vpop.f32.mrf.mxu0
    %1150 = vmatprep.mubr.bf16.mxu0 0
    %1151 = vmatmul.mubr.bf16.gmra.mxu0 %v882
    %v1152 = vpop.f32.mrf.mxu0
    %v1153 = vadd.f32 %v1088, %v1152
    %v1154 = vpop.f32.mrf.mxu0
    %v1155 = vpop.f32.mrf.mxu0
    %v1156 = vadd.f32 %v1091, %v1155
    %v1157 = vpop.f32.mrf.mxu0
    %1158 = vmatprep.mubr.bf16.mxu0 0
    %1159 = vmatmul.mubr.bf16.gmra.mxu0 %v885
    %v1160 = vpop.f32.mrf.mxu0
    %v1161 = vadd.f32 %v1096, %v1160
    %v1162 = vpop.f32.mrf.mxu0
    %v1163 = vpop.f32.mrf.mxu0
    %v1164 = vadd.f32 %v1099, %v1163
    %v1165 = vpop.f32.mrf.mxu0
    %1166 = vmatprep.mubr.bf16.mxu0 0
    %1167 = vmatmul.mubr.bf16.gmra.mxu0 %v888
    %v1168 = vpop.f32.mrf.mxu0
    %v1169 = vadd.f32 %v1104, %v1168
    %v1170 = vpop.f32.mrf.mxu0
    %v1171 = vpop.f32.mrf.mxu0
    %v1172 = vadd.f32 %v1107, %v1171
    %v1173 = vpop.f32.mrf.mxu0
    %1174 = vdwg.mxu0
    %v1175 = vadd.f32 %v742, %v1145
    %v1176 = vadd.f32 %v745, %v1148
    %v1177 = vadd.f32 %v750, %v1153
    %v1178 = vadd.f32 %v753, %v1156
    %v1179 = vadd.f32 %v758, %v1161
    %v1180 = vadd.f32 %v761, %v1164
    %v1181 = vadd.f32 %v766, %v1169
    %v1182 = vadd.f32 %v769, %v1172
    %v1183 = vld [vmem:[%s2] sm:$0x1]
    %v1185 = vlaneseq
    %v1186 = vshrl.u32 %v1185, 7
    %v1187 = vsub.s32 0, %v1186
    %v1188 = vrot.slane %v1183, %v1187
    %v1190 = vadd.f32 %v1175, %v1188
    %v1191 = vadd.f32 %v1176, %v1188
    %v1192 = vadd.f32 %v1177, %v1188
    %v1193 = vadd.f32 %v1178, %v1188
    %v1194 = vadd.f32 %v1179, %v1188
    %v1195 = vadd.f32 %v1180, %v1188
    %v1196 = vadd.f32 %v1181, %v1188
    %v1197 = vadd.f32 %v1182, %v1188
    %v1198 = vmax.f32 %v1190, 0.0
    %v1199 = vmax.f32 %v1191, 0.0
    %v1200 = vmax.f32 %v1192, 0.0
    %v1201 = vmax.f32 %v1193, 0.0
    %v1202 = vmax.f32 %v1194, 0.0
    %v1203 = vmax.f32 %v1195, 0.0
    %v1204 = vmax.f32 %v1196, 0.0
    %v1205 = vmax.f32 %v1197, 0.0
    %v1206 = vld [vmem:[%s5] sm:$0xff]
    %v1207 = vld [vmem:[%s5 + $0x8] sm:$0xff]
    %v1208 = vld [vmem:[%s5 + $0x10] sm:$0xff]
    %v1209 = vld [vmem:[%s5 + $0x18] sm:$0xff]
    %v1210 = vld [vmem:[%s5 + $0x20] sm:$0xff]
    %v1211 = vld [vmem:[%s5 + $0x28] sm:$0xff]
    %v1212 = vld [vmem:[%s5 + $0x30] sm:$0xff]
    %v1213 = vld [vmem:[%s5 + $0x38] sm:$0xff]
    %v1214 = vpack.c.bf16 %v1199, %v1198
    %v1215 = vpack.c.bf16 %v1201, %v1200
    %v1216 = vpack.c.bf16 %v1203, %v1202
    %v1217 = vpack.c.bf16 %v1205, %v1204
    %v1218 = vld [vmem:[%s3] sm:$0xf]
    %v1219 = vld [vmem:[%s3 + $0x4] sm:$0xf]
    %v1220 = vld [vmem:[%s3 + $0x8] sm:$0xf]
    %v1221 = vld [vmem:[%s3 + $0xc] sm:$0xf]
    %v1226 = vunpack.c.l.b16 %v1218
    %v1227 = vunpack.c.l.b16 %v1219
    %v1228 = vunpack.c.l.b16 %v1220
    %v1229 = vunpack.c.l.b16 %v1221
    %v1230 = vpack.c.b16 %v1227, %v1226
    %v1231 = vpack.c.b16 %v1229, %v1228
    %vm1234 = vcmask 261120
    %v1236 = vsel %vm1234, %v1214, 0
    %v1239 = vsel %vm1234, %v1215, 0
    %v1242 = vsel %vm1234, %v1216, 0
    %v1245 = vsel %vm1234, %v1217, 0
    %1247 = vmatprep.subr.bf16.mxu0 0
    %1248 = vmatpush1.bf16.msra.mxu0 0
    %1249 = vmatprep.subr.bf16.mxu0 0
    %1250 = vmatpush1.bf16.msra.mxu0 0
    %1251 = vmatprep.subr.bf16.mxu0 0
    %1252 = vmatpush1.bf16.msra.mxu0 0
    %1253 = vmatprep.subr.bf16.mxu0 0
    %1254 = vmatpush1.bf16.msra.mxu0 0
    %1255 = vmatprep.subr.bf16.mxu0 0
    %1256 = vmatpush1.bf16.msra.mxu0 0
    %1257 = vmatprep.subr.bf16.mxu0 0
    %1258 = vmatpush1.bf16.msra.mxu0 0
    %1259 = vmatprep.subr.bf16.mxu0 0
    %1260 = vmatpush1.bf16.msra.mxu0 %v1231
    %1261 = vmatprep.subr.bf16.mxu0 0
    %1262 = vmatpush1.bf16.msra.mxu0 %v1230
    %1263 = vmatprep.subr.bf16.mxu0 0
    %1264 = vmatpush2.bf16.msra.mxu0 0
    %1265 = vmatprep.subr.bf16.mxu0 0
    %1266 = vmatpush2.bf16.msra.mxu0 0
    %1267 = vmatprep.subr.bf16.mxu0 0
    %1268 = vmatpush2.bf16.msra.mxu0 0
    %1269 = vmatprep.subr.bf16.mxu0 0
    %1270 = vmatpush2.bf16.msra.mxu0 0
    %1271 = vmatprep.subr.bf16.mxu0 0
    %1272 = vmatpush2.bf16.msra.mxu0 0
    %1273 = vmatprep.subr.bf16.mxu0 0
    %1274 = vmatpush2.bf16.msra.mxu0 0
    %1275 = vmatprep.subr.bf16.mxu0 0
    %1276 = vmatpush2.bf16.msra.mxu0 0
    %1277 = vmatprep.subr.bf16.mxu0 0
    %1278 = vmatpush2.bf16.msra.mxu0 0
    %1279 = vmatprep.mubr.bf16.mxu0 0
    %1280 = vmatmul.mubr.bf16.gmra.mxu0 %v1236
    %v1281 = vpop.f32.mrf.mxu0
    %v1282 = vadd.f32 0.0, %v1281
    %v1283 = vpop.f32.mrf.mxu0
    %v1284 = vpop.f32.mrf.mxu0
    %v1285 = vadd.f32 0.0, %v1284
    %v1286 = vpop.f32.mrf.mxu0
    %1287 = vmatprep.mubr.bf16.mxu0 0
    %1288 = vmatmul.mubr.bf16.gmra.mxu0 %v1239
    %v1289 = vpop.f32.mrf.mxu0
    %v1290 = vadd.f32 0.0, %v1289
    %v1291 = vpop.f32.mrf.mxu0
    %v1292 = vpop.f32.mrf.mxu0
    %v1293 = vadd.f32 0.0, %v1292
    %v1294 = vpop.f32.mrf.mxu0
    %1295 = vmatprep.mubr.bf16.mxu0 0
    %1296 = vmatmul.mubr.bf16.gmra.mxu0 %v1242
    %v1297 = vpop.f32.mrf.mxu0
    %v1298 = vadd.f32 0.0, %v1297
    %v1299 = vpop.f32.mrf.mxu0
    %v1300 = vpop.f32.mrf.mxu0
    %v1301 = vadd.f32 0.0, %v1300
    %v1302 = vpop.f32.mrf.mxu0
    %1303 = vmatprep.mubr.bf16.mxu0 0
    %1304 = vmatmul.mubr.bf16.gmra.mxu0 %v1245
    %v1305 = vpop.f32.mrf.mxu0
    %v1306 = vadd.f32 0.0, %v1305
    %v1307 = vpop.f32.mrf.mxu0
    %v1308 = vpop.f32.mrf.mxu0
    %v1309 = vadd.f32 0.0, %v1308
    %v1310 = vpop.f32.mrf.mxu0
    %1311 = vdwg.mxu0
    %v1312 = vadd.f32 %v1206, %v1282
    %v1313 = vadd.f32 %v1207, %v1285
    %v1314 = vadd.f32 %v1208, %v1290
    %v1315 = vadd.f32 %v1209, %v1293
    %v1316 = vadd.f32 %v1210, %v1298
    %v1317 = vadd.f32 %v1211, %v1301
    %v1318 = vadd.f32 %v1212, %v1306
    %v1319 = vadd.f32 %v1213, %v1309
    %v1320 = vld [vmem:[%s4] sm:$0x1]
    %v1322 = vlaneseq
    %v1323 = vshrl.u32 %v1322, 7
    %v1324 = vsub.s32 0, %v1323
    %v1325 = vrot.slane %v1320, %v1324
    %v1327 = vadd.f32 %v1312, %v1325
    %v1328 = vadd.f32 %v1313, %v1325
    %v1329 = vadd.f32 %v1314, %v1325
    %v1330 = vadd.f32 %v1315, %v1325
    %v1331 = vadd.f32 %v1316, %v1325
    %v1332 = vadd.f32 %v1317, %v1325
    %v1333 = vadd.f32 %v1318, %v1325
    %v1334 = vadd.f32 %v1319, %v1325
    %1335 = vst [vmem:[#allocation2] sm:$0xff] %v1327
    %1336 = vst [vmem:[#allocation2 + $0x8] sm:$0xff] %v1328
    %1337 = vst [vmem:[#allocation2 + $0x10] sm:$0xff] %v1329
    %1338 = vst [vmem:[#allocation2 + $0x18] sm:$0xff] %v1330
    %1339 = vst [vmem:[#allocation2 + $0x20] sm:$0xff] %v1331
    %1340 = vst [vmem:[#allocation2 + $0x28] sm:$0xff] %v1332
    %1341 = vst [vmem:[#allocation2 + $0x30] sm:$0xff] %v1333
    %1342 = vst [vmem:[#allocation2 + $0x38] sm:$0xff] %v1334
    %v1343 = vmax.f32 %v1327, 0.0
    %v1344 = vmax.f32 %v1328, 0.0
    %v1345 = vmax.f32 %v1329, 0.0
    %v1346 = vmax.f32 %v1330, 0.0
    %v1347 = vmax.f32 %v1331, 0.0
    %v1348 = vmax.f32 %v1332, 0.0
    %v1349 = vmax.f32 %v1333, 0.0
    %v1350 = vmax.f32 %v1334, 0.0
    %v1351 = vpack.c.bf16 %v1344, %v1343
    %v1352 = vpack.c.bf16 %v1346, %v1345
    %v1353 = vpack.c.bf16 %v1348, %v1347
    %v1354 = vpack.c.bf16 %v1350, %v1349
    %v1359 = vunpack.c.l.b16 %v1351
    %v1360 = vunpack.c.h.b16 %v1351
    %v1361 = vunpack.c.l.b16 %v1352
    %v1362 = vunpack.c.h.b16 %v1352
    %v1363 = vunpack.c.l.b16 %v1353
    %v1364 = vunpack.c.h.b16 %v1353
    %v1365 = vunpack.c.l.b16 %v1354
    %v1366 = vunpack.c.h.b16 %v1354
    %v1367 = vpack.c.b16 %v1359, %v1359
    %v1368 = vpack.c.b16 %v1360, %v1360
    %v1369 = vpack.c.b16 %v1361, %v1361
    %v1370 = vpack.c.b16 %v1362, %v1362
    %v1371 = vpack.c.b16 %v1363, %v1363
    %v1372 = vpack.c.b16 %v1364, %v1364
    %v1373 = vpack.c.b16 %v1365, %v1365
    %v1374 = vpack.c.b16 %v1366, %v1366
    %1383 = vst [vmem:[%s7] sm:$0xf] %v1367
    %1384 = vst [vmem:[%s7 + $0x4] sm:$0xf] %v1368
    %1385 = vst [vmem:[%s7 + $0x8] sm:$0xf] %v1369
    %1386 = vst [vmem:[%s7 + $0xc] sm:$0xf] %v1370
    %1387 = vst [vmem:[%s7 + $0x10] sm:$0xf] %v1371
    %1388 = vst [vmem:[%s7 + $0x14] sm:$0xf] %v1372
    %1389 = vst [vmem:[%s7 + $0x18] sm:$0xf] %v1373
    %1390 = vst [vmem:[%s7 + $0x1c] sm:$0xf] %v1374
    // Predicated region
    $region26: #{engine_forward.16} parent=1 // pred_check
      _
    $region27: #{engine_forward.16} parent=1 // pred_check_branch
      %1392 = sbr.rel (0) target = $region29
    $region28: #{engine_forward.16} parent=1 // pred_region
      %s1394 = ssub.s32 1024, 1024
      %1395 = vsyncadd [#allocation3], %s1394
      %s1396 = sshll.u32 [#allocation2], 4
      %s1397 = int_to_ptr.vmem [resolvable:$true] %s1396
      %1402 = dma.vmem_to_hbm [thread:$0]  %s1397, 1024, %s6, [#allocation3], 128, 128, 8
    $region29: #{engine_forward.16} parent=1 // pred_fallthru
      _
    // Predicated region
    $region30: #{engine_forward.16} parent=1 // pred_check
      _
    $region31: #{engine_forward.16} parent=1 // pred_check_branch
      %1404 = sbr.rel (0) target = $region33
    $region32: #{engine_forward.16} parent=1 // pred_region
      _
    $region33: #{engine_forward.16} parent=1 // pred_fallthru
      _
    // Predicated region
    $region34: #{engine_forward.16} parent=1 // pred_check
      _
    $region35: #{engine_forward.16} parent=1 // pred_check_branch
      %1406 = sbr.rel (0) target = $region37
    $region36: #{engine_forward.16} parent=1 // pred_region
      %1407 = dma.done [#allocation3], 1024
    $region37: #{engine_forward.16} parent=1 // pred_fallthru
      _
    // Predicated region
    $region38: #{engine_forward.16} parent=1 // pred_check
      _
    $region39: #{engine_forward.16} parent=1 // pred_check_branch
      %1409 = sbr.rel (0) target = $region41
    $region40: #{engine_forward.16} parent=1 // pred_region
      _
    $region41: #{engine_forward.16} parent=1 // pred_fallthru
      _
    %1410 = vsyncpa [#allocation3], 1

// kernel: engine_forward.15
$region0: #{engine_forward.15}
  #allocation0 [shape = 'u32[]', space=smem, size = 0x4, offset = 0x4, fixed_abs, tag = 'smem constant byte address 0x4 - core index']
  #allocation1 [shape = 'u32[144,128]{1,0:T(1,128)}', space=vmem, size = 0x12000, scoped, tag = 'internal scratch']
  %s0 = inlined_call_operand.vmem [shape: bf16[1,96,384], index: 0, kind: input, shape index: {}]
  %s1 = inlined_call_operand.vmem [shape: bf16[3,384,32], index: 1, kind: input, shape index: {}]
  %s2 = inlined_call_operand.vmem [shape: f32[1,32], index: 2, kind: input, shape index: {}]
  %s3 = inlined_call_operand.vmem [shape: bf16[32,128], index: 3, kind: input, shape index: {}]
  %s4 = inlined_call_operand.vmem [shape: f32[1,128], index: 4, kind: input, shape index: {}]
  %s5 = inlined_call_operand.vmem [shape: f32[1,64,128], index: 5, kind: input, shape index: {}]
  %s6 = inlined_call_operand.vmem [shape: f32[1,64,128], index: 6, kind: output, shape index: {0}]
  %s7 = inlined_call_operand.vmem [shape: bf16[1,64,128], index: 7, kind: output, shape index: {1}]
  %8 = xla_tuple %s6, %s7
  %s9 = sld [smem:[#allocation0]]
  $region42: #{engine_forward.15} parent=0
    _
  %s11 = ssub.s32 1, %s9
  %s12 = scalar_select 0, %s11, %s9
  // Predicated region
  $region2: #{engine_forward.15} parent=0 // pred_check
    _
  $region3: #{engine_forward.15} parent=0 // pred_check_branch
    %14 = sbr.rel (0) target = $region5
  $region4: #{engine_forward.15} parent=0 // pred_region
    _
  $region5: #{engine_forward.15} parent=0 // pred_fallthru
    _
  // Predicated region
  $region6: #{engine_forward.15} parent=0 // pred_check
    _
  $region7: #{engine_forward.15} parent=0 // pred_check_branch
    %16 = sbr.rel (0) target = $region9
  $region8: #{engine_forward.15} parent=0 // pred_region
    _
  $region9: #{engine_forward.15} parent=0 // pred_fallthru
    _
  // Predicated region
  $region10: #{engine_forward.15} parent=0 // pred_check
    _
  $region11: #{engine_forward.15} parent=0 // pred_check_branch
    %18 = sbr.rel (0) target = $region13
  $region12: #{engine_forward.15} parent=0 // pred_region
    _
  $region13: #{engine_forward.15} parent=0 // pred_fallthru
    _
  // Predicated region
  $region14: #{engine_forward.15} parent=0 // pred_check
    _
  $region15: #{engine_forward.15} parent=0 // pred_check_branch
    %20 = sbr.rel (0) target = $region17
  $region16: #{engine_forward.15} parent=0 // pred_region
    _
  $region17: #{engine_forward.15} parent=0 // pred_fallthru
    _
  // Predicated region
  $region18: #{engine_forward.15} parent=0 // pred_check
    _
  $region19: #{engine_forward.15} parent=0 // pred_check_branch
    %22 = sbr.rel (0) target = $region21
  $region20: #{engine_forward.15} parent=0 // pred_region
    _
  $region21: #{engine_forward.15} parent=0 // pred_fallthru
    _
  // Predicated region
  $region22: #{engine_forward.15} parent=0 // pred_check
    _
  $region23: #{engine_forward.15} parent=0 // pred_check_branch
    %24 = sbr.rel (0) target = $region25
  $region24: #{engine_forward.15} parent=0 // pred_region
    _
  $region25: #{engine_forward.15} parent=0 // pred_fallthru
    _
  %v26 = vld [vmem:[%s0] sm:$0xff]
  %v27 = vld [vmem:[%s0 + $0x8] sm:$0xf]
  %v28 = vld [vmem:[%s0 + $0xc] sm:$0xff]
  %v29 = vld [vmem:[%s0 + $0x14] sm:$0xf]
  %v30 = vld [vmem:[%s0 + $0x18] sm:$0xff]
  %v31 = vld [vmem:[%s0 + $0x20] sm:$0xf]
  %v32 = vld [vmem:[%s0 + $0x24] sm:$0xff]
  %v33 = vld [vmem:[%s0 + $0x2c] sm:$0xf]
  %v34 = vld [vmem:[%s0 + $0x30] sm:$0xff]
  %v35 = vld [vmem:[%s0 + $0x38] sm:$0xf]
  %v36 = vld [vmem:[%s0 + $0x3c] sm:$0xff]
  %v37 = vld [vmem:[%s0 + $0x44] sm:$0xf]
  %v38 = vld [vmem:[%s0 + $0x48] sm:$0xff]
  %v39 = vld [vmem:[%s0 + $0x50] sm:$0xf]
  %v40 = vld [vmem:[%s0 + $0x54] sm:$0xff]
  %v41 = vld [vmem:[%s0 + $0x5c] sm:$0xf]
  %v42 = vld [vmem:[%s1] sm:$0xf]
  %v43 = vld [vmem:[%s1 + $0x4] sm:$0xf]
  %v44 = vld [vmem:[%s1 + $0x8] sm:$0xf]
  %v45 = vld [vmem:[%s1 + $0xc] sm:$0xf]
  %v46 = vld [vmem:[%s1 + $0x10] sm:$0xf]
  %v47 = vld [vmem:[%s1 + $0x14] sm:$0xf]
  %v48 = vld [vmem:[%s1 + $0x18] sm:$0xf]
  %v49 = vld [vmem:[%s1 + $0x1c] sm:$0xf]
  %v50 = vld [vmem:[%s1 + $0x20] sm:$0xf]
  %v51 = vld [vmem:[%s1 + $0x24] sm:$0xf]
  %v52 = vld [vmem:[%s1 + $0x28] sm:$0xf]
  %v53 = vld [vmem:[%s1 + $0x2c] sm:$0xf]
  %v54 = vld [vmem:[%s1 + $0x30] sm:$0xf]
  %v55 = vld [vmem:[%s1 + $0x34] sm:$0xf]
  %v56 = vld [vmem:[%s1 + $0x38] sm:$0xf]
  %v57 = vld [vmem:[%s1 + $0x3c] sm:$0xf]
  %v58 = vld [vmem:[%s1 + $0x40] sm:$0xf]
  %v59 = vld [vmem:[%s1 + $0x44] sm:$0xf]
  %v60 = vld [vmem:[%s1 + $0x48] sm:$0xf]
  %v61 = vld [vmem:[%s1 + $0x4c] sm:$0xf]
  %v62 = vld [vmem:[%s1 + $0x50] sm:$0xf]
  %v63 = vld [vmem:[%s1 + $0x54] sm:$0xf]
  %v64 = vld [vmem:[%s1 + $0x58] sm:$0xf]
  %v65 = vld [vmem:[%s1 + $0x5c] sm:$0xf]
  %v66 = vld [vmem:[%s1 + $0x60] sm:$0xf]
  %v67 = vld [vmem:[%s1 + $0x64] sm:$0xf]
  %v68 = vld [vmem:[%s1 + $0x68] sm:$0xf]
  %v69 = vld [vmem:[%s1 + $0x6c] sm:$0xf]
  %v70 = vld [vmem:[%s1 + $0x70] sm:$0xf]
  %v71 = vld [vmem:[%s1 + $0x74] sm:$0xf]
  %v72 = vld [vmem:[%s1 + $0x78] sm:$0xf]
  %v73 = vld [vmem:[%s1 + $0x7c] sm:$0xf]
  %v74 = vld [vmem:[%s1 + $0x80] sm:$0xf]
  %v75 = vld [vmem:[%s1 + $0x84] sm:$0xf]
  %v76 = vld [vmem:[%s1 + $0x88] sm:$0xf]
  %v77 = vld [vmem:[%s1 + $0x8c] sm:$0xf]
  %v78 = vld [vmem:[%s1 + $0x90] sm:$0xf]
  %v79 = vld [vmem:[%s1 + $0x94] sm:$0xf]
  %v80 = vld [vmem:[%s1 + $0x98] sm:$0xf]
  %v81 = vld [vmem:[%s1 + $0x9c] sm:$0xf]
  %v82 = vld [vmem:[%s1 + $0xa0] sm:$0xf]
  %v83 = vld [vmem:[%s1 + $0xa4] sm:$0xf]
  %v84 = vld [vmem:[%s1 + $0xa8] sm:$0xf]
  %v85 = vld [vmem:[%s1 + $0xac] sm:$0xf]
  %v86 = vld [vmem:[%s1 + $0xb0] sm:$0xf]
  %v87 = vld [vmem:[%s1 + $0xb4] sm:$0xf]
  %v88 = vld [vmem:[%s1 + $0xb8] sm:$0xf]
  %v89 = vld [vmem:[%s1 + $0xbc] sm:$0xf]
  %v90 = vld [vmem:[%s0 + $0x60] sm:$0xff]
  %v91 = vld [vmem:[%s0 + $0x68] sm:$0xf]
  %v92 = vld [vmem:[%s0 + $0x6c] sm:$0xff]
  %v93 = vld [vmem:[%s0 + $0x74] sm:$0xf]
  %s94 = scalar_lea.vmem %s1, 192
  %v95 = vld [vmem:[%s94] sm:$0xf]
  %v96 = vld [vmem:[%s94 + $0x4] sm:$0xf]
  %v97 = vld [vmem:[%s94 + $0x8] sm:$0xf]
  %v98 = vld [vmem:[%s94 + $0xc] sm:$0xf]
  %v99 = vld [vmem:[%s94 + $0x10] sm:$0xf]
  %v100 = vld [vmem:[%s94 + $0x14] sm:$0xf]
  %v101 = vld [vmem:[%s94 + $0x18] sm:$0xf]
  %v102 = vld [vmem:[%s94 + $0x1c] sm:$0xf]
  %v103 = vld [vmem:[%s94 + $0x20] sm:$0xf]
  %v104 = vld [vmem:[%s94 + $0x24] sm:$0xf]
  %v105 = vld [vmem:[%s94 + $0x28] sm:$0xf]
  %v106 = vld [vmem:[%s94 + $0x2c] sm:$0xf]
  %v107 = vld [vmem:[%s94 + $0x30] sm:$0xf]
  %v108 = vld [vmem:[%s94 + $0x34] sm:$0xf]
  %v109 = vld [vmem:[%s94 + $0x38] sm:$0xf]
  %v110 = vld [vmem:[%s94 + $0x3c] sm:$0xf]
  %v111 = vld [vmem:[%s94 + $0x40] sm:$0xf]
  %v112 = vld [vmem:[%s94 + $0x44] sm:$0xf]
  %v113 = vld [vmem:[%s94 + $0x48] sm:$0xf]
  %v114 = vld [vmem:[%s94 + $0x4c] sm:$0xf]
  %v115 = vld [vmem:[%s94 + $0x50] sm:$0xf]
  %v116 = vld [vmem:[%s94 + $0x54] sm:$0xf]
  %v117 = vld [vmem:[%s94 + $0x58] sm:$0xf]
  %v118 = vld [vmem:[%s94 + $0x5c] sm:$0xf]
  %v119 = vld [vmem:[%s94 + $0x60] sm:$0xf]
  %v120 = vld [vmem:[%s94 + $0x64] sm:$0xf]
  %v121 = vld [vmem:[%s94 + $0x68] sm:$0xf]
  %v122 = vld [vmem:[%s94 + $0x6c] sm:$0xf]
  %v123 = vld [vmem:[%s94 + $0x70] sm:$0xf]
  %v124 = vld [vmem:[%s94 + $0x74] sm:$0xf]
  %v125 = vld [vmem:[%s94 + $0x78] sm:$0xf]
  %v126 = vld [vmem:[%s94 + $0x7c] sm:$0xf]
  %v127 = vld [vmem:[%s94 + $0x80] sm:$0xf]
  %v128 = vld [vmem:[%s94 + $0x84] sm:$0xf]
  %v129 = vld [vmem:[%s94 + $0x88] sm:$0xf]
  %v130 = vld [vmem:[%s94 + $0x8c] sm:$0xf]
  %v131 = vld [vmem:[%s94 + $0x90] sm:$0xf]
  %v132 = vld [vmem:[%s94 + $0x94] sm:$0xf]
  %v133 = vld [vmem:[%s94 + $0x98] sm:$0xf]
  %v134 = vld [vmem:[%s94 + $0x9c] sm:$0xf]
  %v135 = vld [vmem:[%s94 + $0xa0] sm:$0xf]
  %v136 = vld [vmem:[%s94 + $0xa4] sm:$0xf]
  %v137 = vld [vmem:[%s94 + $0xa8] sm:$0xf]
  %v138 = vld [vmem:[%s94 + $0xac] sm:$0xf]
  %v139 = vld [vmem:[%s94 + $0xb0] sm:$0xf]
  %v140 = vld [vmem:[%s94 + $0xb4] sm:$0xf]
  %v141 = vld [vmem:[%s94 + $0xb8] sm:$0xf]
  %v142 = vld [vmem:[%s94 + $0xbc] sm:$0xf]
  %v159 = vunpack.c.l.b16 %v30
  %v160 = vunpack.c.h.b16 %v30
  %v161 = vunpack.c.l.b16 %v31
  %v162 = vunpack.c.l.b16 %v32
  %v163 = vunpack.c.h.b16 %v32
  %v164 = vunpack.c.l.b16 %v33
  %v165 = vunpack.c.l.b16 %v34
  %v166 = vunpack.c.h.b16 %v34
  %v167 = vunpack.c.l.b16 %v35
  %v168 = vunpack.c.l.b16 %v36
  %v169 = vunpack.c.h.b16 %v36
  %v170 = vunpack.c.l.b16 %v37
  %v171 = vunpack.c.l.b16 %v38
  %v172 = vunpack.c.h.b16 %v38
  %v173 = vunpack.c.l.b16 %v39
  %v174 = vunpack.c.l.b16 %v40
  %v175 = vunpack.c.h.b16 %v40
  %v176 = vunpack.c.l.b16 %v41
  %v177 = vunpack.c.l.b16 %v90
  %v178 = vunpack.c.h.b16 %v90
  %v179 = vunpack.c.l.b16 %v91
  %v180 = vunpack.c.l.b16 %v92
  %v181 = vunpack.c.h.b16 %v92
  %v182 = vunpack.c.l.b16 %v93
  %v183 = vpack.c.b16 %v162, %v159
  %v184 = vpack.c.b16 %v163, %v160
  %v185 = vpack.c.b16 %v164, %v161
  %v186 = vpack.c.b16 %v168, %v165
  %v187 = vpack.c.b16 %v169, %v166
  %v188 = vpack.c.b16 %v170, %v167
  %v189 = vpack.c.b16 %v174, %v171
  %v190 = vpack.c.b16 %v175, %v172
  %v191 = vpack.c.b16 %v176, %v173
  %v192 = vpack.c.b16 %v180, %v177
  %v193 = vpack.c.b16 %v181, %v178
  %v194 = vpack.c.b16 %v182, %v179
  %v255 = vunpack.c.l.b16 %v95
  %v256 = vunpack.c.l.b16 %v96
  %v257 = vunpack.c.l.b16 %v97
  %v258 = vunpack.c.l.b16 %v98
  %v259 = vunpack.c.l.b16 %v99
  %v260 = vunpack.c.l.b16 %v100
  %v261 = vunpack.c.l.b16 %v101
  %v262 = vunpack.c.l.b16 %v102
  %v263 = vunpack.c.l.b16 %v103
  %v264 = vunpack.c.l.b16 %v104
  %v265 = vunpack.c.l.b16 %v105
  %v266 = vunpack.c.l.b16 %v106
  %v267 = vunpack.c.l.b16 %v107
  %v268 = vunpack.c.l.b16 %v108
  %v269 = vunpack.c.l.b16 %v109
  %v270 = vunpack.c.l.b16 %v110
  %v271 = vunpack.c.l.b16 %v111
  %v272 = vunpack.c.l.b16 %v112
  %v273 = vunpack.c.l.b16 %v113
  %v274 = vunpack.c.l.b16 %v114
  %v275 = vunpack.c.l.b16 %v115
  %v276 = vunpack.c.l.b16 %v116
  %v277 = vunpack.c.l.b16 %v117
  %v278 = vunpack.c.l.b16 %v118
  %v279 = vunpack.c.l.b16 %v119
  %v280 = vunpack.c.l.b16 %v120
  %v281 = vunpack.c.l.b16 %v121
  %v282 = vunpack.c.l.b16 %v122
  %v283 = vunpack.c.l.b16 %v123
  %v284 = vunpack.c.l.b16 %v124
  %v285 = vunpack.c.l.b16 %v125
  %v286 = vunpack.c.l.b16 %v126
  %v287 = vunpack.c.l.b16 %v127
  %v288 = vunpack.c.l.b16 %v128
  %v289 = vunpack.c.l.b16 %v129
  %v290 = vunpack.c.l.b16 %v130
  %v291 = vunpack.c.l.b16 %v131
  %v292 = vunpack.c.l.b16 %v132
  %v293 = vunpack.c.l.b16 %v133
  %v294 = vunpack.c.l.b16 %v134
  %v295 = vunpack.c.l.b16 %v135
  %v296 = vunpack.c.l.b16 %v136
  %v297 = vunpack.c.l.b16 %v137
  %v298 = vunpack.c.l.b16 %v138
  %v299 = vunpack.c.l.b16 %v139
  %v300 = vunpack.c.l.b16 %v140
  %v301 = vunpack.c.l.b16 %v141
  %v302 = vunpack.c.l.b16 %v142
  %v303 = vpack.c.b16 %v256, %v255
  %v304 = vpack.c.b16 %v258, %v257
  %v305 = vpack.c.b16 %v260, %v259
  %v306 = vpack.c.b16 %v262, %v261
  %v307 = vpack.c.b16 %v264, %v263
  %v308 = vpack.c.b16 %v266, %v265
  %v309 = vpack.c.b16 %v268, %v267
  %v310 = vpack.c.b16 %v270, %v269
  %v311 = vpack.c.b16 %v272, %v271
  %v312 = vpack.c.b16 %v274, %v273
  %v313 = vpack.c.b16 %v276, %v275
  %v314 = vpack.c.b16 %v278, %v277
  %v315 = vpack.c.b16 %v280, %v279
  %v316 = vpack.c.b16 %v282, %v281
  %v317 = vpack.c.b16 %v284, %v283
  %v318 = vpack.c.b16 %v286, %v285
  %v319 = vpack.c.b16 %v288, %v287
  %v320 = vpack.c.b16 %v290, %v289
  %v321 = vpack.c.b16 %v292, %v291
  %v322 = vpack.c.b16 %v294, %v293
  %v323 = vpack.c.b16 %v296, %v295
  %v324 = vpack.c.b16 %v298, %v297
  %v325 = vpack.c.b16 %v300, %v299
  %v326 = vpack.c.b16 %v302, %v301
  %351 = vmatprep.subr.bf16.mxu0 0
  %352 = vmatpush1.bf16.msra.mxu0 %v310
  %353 = vmatprep.subr.bf16.mxu0 0
  %354 = vmatpush1.bf16.msra.mxu0 %v309
  %355 = vmatprep.subr.bf16.mxu0 0
  %356 = vmatpush1.bf16.msra.mxu0 %v308
  %357 = vmatprep.subr.bf16.mxu0 0
  %358 = vmatpush1.bf16.msra.mxu0 %v307
  %359 = vmatprep.subr.bf16.mxu0 0
  %360 = vmatpush1.bf16.msra.mxu0 %v306
  %361 = vmatprep.subr.bf16.mxu0 0
  %362 = vmatpush1.bf16.msra.mxu0 %v305
  %363 = vmatprep.subr.bf16.mxu0 0
  %364 = vmatpush1.bf16.msra.mxu0 %v304
  %365 = vmatprep.subr.bf16.mxu0 0
  %366 = vmatpush1.bf16.msra.mxu0 %v303
  %367 = vmatprep.subr.bf16.mxu0 0
  %368 = vmatpush2.bf16.msra.mxu0 %v318
  %369 = vmatprep.subr.bf16.mxu0 0
  %370 = vmatpush2.bf16.msra.mxu0 %v317
  %371 = vmatprep.subr.bf16.mxu0 0
  %372 = vmatpush2.bf16.msra.mxu0 %v316
  %373 = vmatprep.subr.bf16.mxu0 0
  %374 = vmatpush2.bf16.msra.mxu0 %v315
  %375 = vmatprep.subr.bf16.mxu0 0
  %376 = vmatpush2.bf16.msra.mxu0 %v314
  %377 = vmatprep.subr.bf16.mxu0 0
  %378 = vmatpush2.bf16.msra.mxu0 %v313
  %379 = vmatprep.subr.bf16.mxu0 0
  %380 = vmatpush2.bf16.msra.mxu0 %v312
  %381 = vmatprep.subr.bf16.mxu0 0
  %382 = vmatpush2.bf16.msra.mxu0 %v311
  %383 = vmatprep.mubr.bf16.mxu0 %v184
  %384 = vmatmul.mubr.bf16.gmra.mxu0 %v183
  %v385 = vpop.f32.mrf.mxu0
  %v386 = vadd.f32 0.0, %v385
  %v387 = vpop.f32.mrf.mxu0
  %v388 = vpop.f32.mrf.mxu0
  %v389 = vadd.f32 0.0, %v388
  %v390 = vpop.f32.mrf.mxu0
  %391 = vmatprep.mubr.bf16.mxu0 %v187
  %392 = vmatmul.mubr.bf16.gmra.mxu0 %v186
  %v393 = vpop.f32.mrf.mxu0
  %v394 = vadd.f32 0.0, %v393
  %v395 = vpop.f32.mrf.mxu0
  %v396 = vpop.f32.mrf.mxu0
  %v397 = vadd.f32 0.0, %v396
  %v398 = vpop.f32.mrf.mxu0
  %399 = vmatprep.mubr.bf16.mxu0 %v190
  %400 = vmatmul.mubr.bf16.gmra.mxu0 %v189
  %v401 = vpop.f32.mrf.mxu0
  %v402 = vadd.f32 0.0, %v401
  %v403 = vpop.f32.mrf.mxu0
  %v404 = vpop.f32.mrf.mxu0
  %v405 = vadd.f32 0.0, %v404
  %v406 = vpop.f32.mrf.mxu0
  %407 = vmatprep.mubr.bf16.mxu0 %v193
  %408 = vmatmul.mubr.bf16.gmra.mxu0 %v192
  %v409 = vpop.f32.mrf.mxu0
  %v410 = vadd.f32 0.0, %v409
  %v411 = vpop.f32.mrf.mxu0
  %v412 = vpop.f32.mrf.mxu0
  %v413 = vadd.f32 0.0, %v412
  %v414 = vpop.f32.mrf.mxu0
  %415 = vdwg.mxu0
  %416 = vmatprep.subr.bf16.mxu0 0
  %417 = vmatpush1.bf16.msra.mxu0 %v326
  %418 = vmatprep.subr.bf16.mxu0 0
  %419 = vmatpush1.bf16.msra.mxu0 %v325
  %420 = vmatprep.subr.bf16.mxu0 0
  %421 = vmatpush1.bf16.msra.mxu0 %v324
  %422 = vmatprep.subr.bf16.mxu0 0
  %423 = vmatpush1.bf16.msra.mxu0 %v323
  %424 = vmatprep.subr.bf16.mxu0 0
  %425 = vmatpush1.bf16.msra.mxu0 %v322
  %426 = vmatprep.subr.bf16.mxu0 0
  %427 = vmatpush1.bf16.msra.mxu0 %v321
  %428 = vmatprep.subr.bf16.mxu0 0
  %429 = vmatpush1.bf16.msra.mxu0 %v320
  %430 = vmatprep.subr.bf16.mxu0 0
  %431 = vmatpush1.bf16.msra.mxu0 %v319
  %432 = vmatprep.subr.bf16.mxu0 0
  %433 = vmatpush2.bf16.msra.mxu0 0
  %434 = vmatprep.subr.bf16.mxu0 0
  %435 = vmatpush2.bf16.msra.mxu0 0
  %436 = vmatprep.subr.bf16.mxu0 0
  %437 = vmatpush2.bf16.msra.mxu0 0
  %438 = vmatprep.subr.bf16.mxu0 0
  %439 = vmatpush2.bf16.msra.mxu0 0
  %440 = vmatprep.subr.bf16.mxu0 0
  %441 = vmatpush2.bf16.msra.mxu0 0
  %442 = vmatprep.subr.bf16.mxu0 0
  %443 = vmatpush2.bf16.msra.mxu0 0
  %444 = vmatprep.subr.bf16.mxu0 0
  %445 = vmatpush2.bf16.msra.mxu0 0
  %446 = vmatprep.subr.bf16.mxu0 0
  %447 = vmatpush2.bf16.msra.mxu0 0
  %448 = vmatprep.mubr.bf16.mxu0 0
  %449 = vmatmul.mubr.bf16.gmra.mxu0 %v185
  %v450 = vpop.f32.mrf.mxu0
  %v451 = vadd.f32 %v386, %v450
  %v452 = vpop.f32.mrf.mxu0
  %v453 = vpop.f32.mrf.mxu0
  %v454 = vadd.f32 %v389, %v453
  %v455 = vpop.f32.mrf.mxu0
  %456 = vmatprep.mubr.bf16.mxu0 0
  %457 = vmatmul.mubr.bf16.gmra.mxu0 %v188
  %v458 = vpop.f32.mrf.mxu0
  %v459 = vadd.f32 %v394, %v458
  %v460 = vpop.f32.mrf.mxu0
  %v461 = vpop.f32.mrf.mxu0
  %v462 = vadd.f32 %v397, %v461
  %v463 = vpop.f32.mrf.mxu0
  %464 = vmatprep.mubr.bf16.mxu0 0
  %465 = vmatmul.mubr.bf16.gmra.mxu0 %v191
  %v466 = vpop.f32.mrf.mxu0
  %v467 = vadd.f32 %v402, %v466
  %v468 = vpop.f32.mrf.mxu0
  %v469 = vpop.f32.mrf.mxu0
  %v470 = vadd.f32 %v405, %v469
  %v471 = vpop.f32.mrf.mxu0
  %472 = vmatprep.mubr.bf16.mxu0 0
  %473 = vmatmul.mubr.bf16.gmra.mxu0 %v194
  %v474 = vpop.f32.mrf.mxu0
  %v475 = vadd.f32 %v410, %v474
  %v476 = vpop.f32.mrf.mxu0
  %v477 = vpop.f32.mrf.mxu0
  %v478 = vadd.f32 %v413, %v477
  %v479 = vpop.f32.mrf.mxu0
  %480 = vdwg.mxu0
  %v485 = vunpack.c.l.b16 %v26
  %v486 = vunpack.c.h.b16 %v26
  %v487 = vunpack.c.l.b16 %v27
  %v488 = vunpack.c.l.b16 %v28
  %v489 = vunpack.c.h.b16 %v28
  %v490 = vunpack.c.l.b16 %v29
  %v491 = vpack.c.b16 %v488, %v485
  %v492 = vpack.c.b16 %v489, %v486
  %v493 = vpack.c.b16 %v490, %v487
  %v545 = vunpack.c.l.b16 %v42
  %v546 = vunpack.c.l.b16 %v43
  %v547 = vunpack.c.l.b16 %v44
  %v548 = vunpack.c.l.b16 %v45
  %v549 = vunpack.c.l.b16 %v46
  %v550 = vunpack.c.l.b16 %v47
  %v551 = vunpack.c.l.b16 %v48
  %v552 = vunpack.c.l.b16 %v49
  %v553 = vunpack.c.l.b16 %v50
  %v554 = vunpack.c.l.b16 %v51
  %v555 = vunpack.c.l.b16 %v52
  %v556 = vunpack.c.l.b16 %v53
  %v557 = vunpack.c.l.b16 %v54
  %v558 = vunpack.c.l.b16 %v55
  %v559 = vunpack.c.l.b16 %v56
  %v560 = vunpack.c.l.b16 %v57
  %v561 = vunpack.c.l.b16 %v58
  %v562 = vunpack.c.l.b16 %v59
  %v563 = vunpack.c.l.b16 %v60
  %v564 = vunpack.c.l.b16 %v61
  %v565 = vunpack.c.l.b16 %v62
  %v566 = vunpack.c.l.b16 %v63
  %v567 = vunpack.c.l.b16 %v64
  %v568 = vunpack.c.l.b16 %v65
  %v569 = vunpack.c.l.b16 %v66
  %v570 = vunpack.c.l.b16 %v67
  %v571 = vunpack.c.l.b16 %v68
  %v572 = vunpack.c.l.b16 %v69
  %v573 = vunpack.c.l.b16 %v70
  %v574 = vunpack.c.l.b16 %v71
  %v575 = vunpack.c.l.b16 %v72
  %v576 = vunpack.c.l.b16 %v73
  %v577 = vunpack.c.l.b16 %v74
  %v578 = vunpack.c.l.b16 %v75
  %v579 = vunpack.c.l.b16 %v76
  %v580 = vunpack.c.l.b16 %v77
  %v581 = vunpack.c.l.b16 %v78
  %v582 = vunpack.c.l.b16 %v79
  %v583 = vunpack.c.l.b16 %v80
  %v584 = vunpack.c.l.b16 %v81
  %v585 = vunpack.c.l.b16 %v82
  %v586 = vunpack.c.l.b16 %v83
  %v587 = vunpack.c.l.b16 %v84
  %v588 = vunpack.c.l.b16 %v85
  %v589 = vunpack.c.l.b16 %v86
  %v590 = vunpack.c.l.b16 %v87
  %v591 = vunpack.c.l.b16 %v88
  %v592 = vunpack.c.l.b16 %v89
  %v593 = vpack.c.b16 %v546, %v545
  %v594 = vpack.c.b16 %v548, %v547
  %v595 = vpack.c.b16 %v550, %v549
  %v596 = vpack.c.b16 %v552, %v551
  %v597 = vpack.c.b16 %v554, %v553
  %v598 = vpack.c.b16 %v556, %v555
  %v599 = vpack.c.b16 %v558, %v557
  %v600 = vpack.c.b16 %v560, %v559
  %v601 = vpack.c.b16 %v562, %v561
  %v602 = vpack.c.b16 %v564, %v563
  %v603 = vpack.c.b16 %v566, %v565
  %v604 = vpack.c.b16 %v568, %v567
  %v605 = vpack.c.b16 %v570, %v569
  %v606 = vpack.c.b16 %v572, %v571
  %v607 = vpack.c.b16 %v574, %v573
  %v608 = vpack.c.b16 %v576, %v575
  %v609 = vpack.c.b16 %v578, %v577
  %v610 = vpack.c.b16 %v580, %v579
  %v611 = vpack.c.b16 %v582, %v581
  %v612 = vpack.c.b16 %v584, %v583
  %v613 = vpack.c.b16 %v586, %v585
  %v614 = vpack.c.b16 %v588, %v587
  %v615 = vpack.c.b16 %v590, %v589
  %v616 = vpack.c.b16 %v592, %v591
  %641 = vmatprep.subr.bf16.mxu0 0
  %642 = vmatpush1.bf16.msra.mxu0 %v600
  %643 = vmatprep.subr.bf16.mxu0 0
  %644 = vmatpush1.bf16.msra.mxu0 %v599
  %645 = vmatprep.subr.bf16.mxu0 0
  %646 = vmatpush1.bf16.msra.mxu0 %v598
  %647 = vmatprep.subr.bf16.mxu0 0
  %648 = vmatpush1.bf16.msra.mxu0 %v597
  %649 = vmatprep.subr.bf16.mxu0 0
  %650 = vmatpush1.bf16.msra.mxu0 %v596
  %651 = vmatprep.subr.bf16.mxu0 0
  %652 = vmatpush1.bf16.msra.mxu0 %v595
  %653 = vmatprep.subr.bf16.mxu0 0
  %654 = vmatpush1.bf16.msra.mxu0 %v594
  %655 = vmatprep.subr.bf16.mxu0 0
  %656 = vmatpush1.bf16.msra.mxu0 %v593
  %657 = vmatprep.subr.bf16.mxu0 0
  %658 = vmatpush2.bf16.msra.mxu0 %v608
  %659 = vmatprep.subr.bf16.mxu0 0
  %660 = vmatpush2.bf16.msra.mxu0 %v607
  %661 = vmatprep.subr.bf16.mxu0 0
  %662 = vmatpush2.bf16.msra.mxu0 %v606
  %663 = vmatprep.subr.bf16.mxu0 0
  %664 = vmatpush2.bf16.msra.mxu0 %v605
  %665 = vmatprep.subr.bf16.mxu0 0
  %666 = vmatpush2.bf16.msra.mxu0 %v604
  %667 = vmatprep.subr.bf16.mxu0 0
  %668 = vmatpush2.bf16.msra.mxu0 %v603
  %669 = vmatprep.subr.bf16.mxu0 0
  %670 = vmatpush2.bf16.msra.mxu0 %v602
  %671 = vmatprep.subr.bf16.mxu0 0
  %672 = vmatpush2.bf16.msra.mxu0 %v601
  %673 = vmatprep.mubr.bf16.mxu0 %v492
  %674 = vmatmul.mubr.bf16.gmra.mxu0 %v491
  %v675 = vpop.f32.mrf.mxu0
  %v676 = vadd.f32 %v451, %v675
  %v677 = vpop.f32.mrf.mxu0
  %v678 = vpop.f32.mrf.mxu0
  %v679 = vadd.f32 %v454, %v678
  %v680 = vpop.f32.mrf.mxu0
  %681 = vmatprep.mubr.bf16.mxu0 %v184
  %682 = vmatmul.mubr.bf16.gmra.mxu0 %v183
  %v683 = vpop.f32.mrf.mxu0
  %v684 = vadd.f32 %v459, %v683
  %v685 = vpop.f32.mrf.mxu0
  %v686 = vpop.f32.mrf.mxu0
  %v687 = vadd.f32 %v462, %v686
  %v688 = vpop.f32.mrf.mxu0
  %689 = vmatprep.mubr.bf16.mxu0 %v187
  %690 = vmatmul.mubr.bf16.gmra.mxu0 %v186
  %v691 = vpop.f32.mrf.mxu0
  %v692 = vadd.f32 %v467, %v691
  %v693 = vpop.f32.mrf.mxu0
  %v694 = vpop.f32.mrf.mxu0
  %v695 = vadd.f32 %v470, %v694
  %v696 = vpop.f32.mrf.mxu0
  %697 = vmatprep.mubr.bf16.mxu0 %v190
  %698 = vmatmul.mubr.bf16.gmra.mxu0 %v189
  %v699 = vpop.f32.mrf.mxu0
  %v700 = vadd.f32 %v475, %v699
  %v701 = vpop.f32.mrf.mxu0
  %v702 = vpop.f32.mrf.mxu0
  %v703 = vadd.f32 %v478, %v702
  %v704 = vpop.f32.mrf.mxu0
  %705 = vdwg.mxu0
  %706 = vmatprep.subr.bf16.mxu0 0
  %707 = vmatpush1.bf16.msra.mxu0 %v616
  %708 = vmatprep.subr.bf16.mxu0 0
  %709 = vmatpush1.bf16.msra.mxu0 %v615
  %710 = vmatprep.subr.bf16.mxu0 0
  %711 = vmatpush1.bf16.msra.mxu0 %v614
  %712 = vmatprep.subr.bf16.mxu0 0
  %713 = vmatpush1.bf16.msra.mxu0 %v613
  %714 = vmatprep.subr.bf16.mxu0 0
  %715 = vmatpush1.bf16.msra.mxu0 %v612
  %716 = vmatprep.subr.bf16.mxu0 0
  %717 = vmatpush1.bf16.msra.mxu0 %v611
  %718 = vmatprep.subr.bf16.mxu0 0
  %719 = vmatpush1.bf16.msra.mxu0 %v610
  %720 = vmatprep.subr.bf16.mxu0 0
  %721 = vmatpush1.bf16.msra.mxu0 %v609
  %722 = vmatprep.subr.bf16.mxu0 0
  %723 = vmatpush2.bf16.msra.mxu0 0
  %724 = vmatprep.subr.bf16.mxu0 0
  %725 = vmatpush2.bf16.msra.mxu0 0
  %726 = vmatprep.subr.bf16.mxu0 0
  %727 = vmatpush2.bf16.msra.mxu0 0
  %728 = vmatprep.subr.bf16.mxu0 0
  %729 = vmatpush2.bf16.msra.mxu0 0
  %730 = vmatprep.subr.bf16.mxu0 0
  %731 = vmatpush2.bf16.msra.mxu0 0
  %732 = vmatprep.subr.bf16.mxu0 0
  %733 = vmatpush2.bf16.msra.mxu0 0
  %734 = vmatprep.subr.bf16.mxu0 0
  %735 = vmatpush2.bf16.msra.mxu0 0
  %736 = vmatprep.subr.bf16.mxu0 0
  %737 = vmatpush2.bf16.msra.mxu0 0
  %738 = vmatprep.mubr.bf16.mxu0 0
  %739 = vmatmul.mubr.bf16.gmra.mxu0 %v493
  %v740 = vpop.f32.mrf.mxu0
  %v741 = vadd.f32 %v676, %v740
  %v742 = vpop.f32.mrf.mxu0
  %v743 = vpop.f32.mrf.mxu0
  %v744 = vadd.f32 %v679, %v743
  %v745 = vpop.f32.mrf.mxu0
  %746 = vmatprep.mubr.bf16.mxu0 0
  %747 = vmatmul.mubr.bf16.gmra.mxu0 %v185
  %v748 = vpop.f32.mrf.mxu0
  %v749 = vadd.f32 %v684, %v748
  %v750 = vpop.f32.mrf.mxu0
  %v751 = vpop.f32.mrf.mxu0
  %v752 = vadd.f32 %v687, %v751
  %v753 = vpop.f32.mrf.mxu0
  %754 = vmatprep.mubr.bf16.mxu0 0
  %755 = vmatmul.mubr.bf16.gmra.mxu0 %v188
  %v756 = vpop.f32.mrf.mxu0
  %v757 = vadd.f32 %v692, %v756
  %v758 = vpop.f32.mrf.mxu0
  %v759 = vpop.f32.mrf.mxu0
  %v760 = vadd.f32 %v695, %v759
  %v761 = vpop.f32.mrf.mxu0
  %762 = vmatprep.mubr.bf16.mxu0 0
  %763 = vmatmul.mubr.bf16.gmra.mxu0 %v191
  %v764 = vpop.f32.mrf.mxu0
  %v765 = vadd.f32 %v700, %v764
  %v766 = vpop.f32.mrf.mxu0
  %v767 = vpop.f32.mrf.mxu0
  %v768 = vadd.f32 %v703, %v767
  %v769 = vpop.f32.mrf.mxu0
  %770 = vdwg.mxu0
  %v771 = vld [vmem:[%s0 + $0x30] sm:$0xff]
  %v772 = vld [vmem:[%s0 + $0x38] sm:$0xf]
  %v773 = vld [vmem:[%s0 + $0x3c] sm:$0xff]
  %v774 = vld [vmem:[%s0 + $0x44] sm:$0xf]
  %v775 = vld [vmem:[%s0 + $0x48] sm:$0xff]
  %v776 = vld [vmem:[%s0 + $0x50] sm:$0xf]
  %v777 = vld [vmem:[%s0 + $0x54] sm:$0xff]
  %v778 = vld [vmem:[%s0 + $0x5c] sm:$0xf]
  %v779 = vld [vmem:[%s0 + $0x60] sm:$0xff]
  %v780 = vld [vmem:[%s0 + $0x68] sm:$0xf]
  %v781 = vld [vmem:[%s0 + $0x6c] sm:$0xff]
  %v782 = vld [vmem:[%s0 + $0x74] sm:$0xf]
  %v783 = vld [vmem:[%s0 + $0x78] sm:$0xff]
  %v784 = vld [vmem:[%s0 + $0x80] sm:$0xf]
  %v785 = vld [vmem:[%s0 + $0x84] sm:$0xff]
  %v786 = vld [vmem:[%s0 + $0x8c] sm:$0xf]
  %s787 = scalar_lea.vmem %s1, 384
  %v788 = vld [vmem:[%s787] sm:$0xf]
  %v789 = vld [vmem:[%s787 + $0x4] sm:$0xf]
  %v790 = vld [vmem:[%s787 + $0x8] sm:$0xf]
  %v791 = vld [vmem:[%s787 + $0xc] sm:$0xf]
  %v792 = vld [vmem:[%s787 + $0x10] sm:$0xf]
  %v793 = vld [vmem:[%s787 + $0x14] sm:$0xf]
  %v794 = vld [vmem:[%s787 + $0x18] sm:$0xf]
  %v795 = vld [vmem:[%s787 + $0x1c] sm:$0xf]
  %v796 = vld [vmem:[%s787 + $0x20] sm:$0xf]
  %v797 = vld [vmem:[%s787 + $0x24] sm:$0xf]
  %v798 = vld [vmem:[%s787 + $0x28] sm:$0xf]
  %v799 = vld [vmem:[%s787 + $0x2c] sm:$0xf]
  %v800 = vld [vmem:[%s787 + $0x30] sm:$0xf]
  %v801 = vld [vmem:[%s787 + $0x34] sm:$0xf]
  %v802 = vld [vmem:[%s787 + $0x38] sm:$0xf]
  %v803 = vld [vmem:[%s787 + $0x3c] sm:$0xf]
  %v804 = vld [vmem:[%s787 + $0x40] sm:$0xf]
  %v805 = vld [vmem:[%s787 + $0x44] sm:$0xf]
  %v806 = vld [vmem:[%s787 + $0x48] sm:$0xf]
  %v807 = vld [vmem:[%s787 + $0x4c] sm:$0xf]
  %v808 = vld [vmem:[%s787 + $0x50] sm:$0xf]
  %v809 = vld [vmem:[%s787 + $0x54] sm:$0xf]
  %v810 = vld [vmem:[%s787 + $0x58] sm:$0xf]
  %v811 = vld [vmem:[%s787 + $0x5c] sm:$0xf]
  %v812 = vld [vmem:[%s787 + $0x60] sm:$0xf]
  %v813 = vld [vmem:[%s787 + $0x64] sm:$0xf]
  %v814 = vld [vmem:[%s787 + $0x68] sm:$0xf]
  %v815 = vld [vmem:[%s787 + $0x6c] sm:$0xf]
  %v816 = vld [vmem:[%s787 + $0x70] sm:$0xf]
  %v817 = vld [vmem:[%s787 + $0x74] sm:$0xf]
  %v818 = vld [vmem:[%s787 + $0x78] sm:$0xf]
  %v819 = vld [vmem:[%s787 + $0x7c] sm:$0xf]
  %v820 = vld [vmem:[%s787 + $0x80] sm:$0xf]
  %v821 = vld [vmem:[%s787 + $0x84] sm:$0xf]
  %v822 = vld [vmem:[%s787 + $0x88] sm:$0xf]
  %v823 = vld [vmem:[%s787 + $0x8c] sm:$0xf]
  %v824 = vld [vmem:[%s787 + $0x90] sm:$0xf]
  %v825 = vld [vmem:[%s787 + $0x94] sm:$0xf]
  %v826 = vld [vmem:[%s787 + $0x98] sm:$0xf]
  %v827 = vld [vmem:[%s787 + $0x9c] sm:$0xf]
  %v828 = vld [vmem:[%s787 + $0xa0] sm:$0xf]
  %v829 = vld [vmem:[%s787 + $0xa4] sm:$0xf]
  %v830 = vld [vmem:[%s787 + $0xa8] sm:$0xf]
  %v831 = vld [vmem:[%s787 + $0xac] sm:$0xf]
  %v832 = vld [vmem:[%s787 + $0xb0] sm:$0xf]
  %v833 = vld [vmem:[%s787 + $0xb4] sm:$0xf]
  %v834 = vld [vmem:[%s787 + $0xb8] sm:$0xf]
  %v835 = vld [vmem:[%s787 + $0xbc] sm:$0xf]
  %v852 = vunpack.c.l.b16 %v771
  %v853 = vunpack.c.h.b16 %v771
  %v854 = vunpack.c.l.b16 %v772
  %v855 = vunpack.c.l.b16 %v773
  %v856 = vunpack.c.h.b16 %v773
  %v857 = vunpack.c.l.b16 %v774
  %v858 = vunpack.c.l.b16 %v775
  %v859 = vunpack.c.h.b16 %v775
  %v860 = vunpack.c.l.b16 %v776
  %v861 = vunpack.c.l.b16 %v777
  %v862 = vunpack.c.h.b16 %v777
  %v863 = vunpack.c.l.b16 %v778
  %v864 = vunpack.c.l.b16 %v779
  %v865 = vunpack.c.h.b16 %v779
  %v866 = vunpack.c.l.b16 %v780
  %v867 = vunpack.c.l.b16 %v781
  %v868 = vunpack.c.h.b16 %v781
  %v869 = vunpack.c.l.b16 %v782
  %v870 = vunpack.c.l.b16 %v783
  %v871 = vunpack.c.h.b16 %v783
  %v872 = vunpack.c.l.b16 %v784
  %v873 = vunpack.c.l.b16 %v785
  %v874 = vunpack.c.h.b16 %v785
  %v875 = vunpack.c.l.b16 %v786
  %v876 = vpack.c.b16 %v855, %v852
  %v877 = vpack.c.b16 %v856, %v853
  %v878 = vpack.c.b16 %v857, %v854
  %v879 = vpack.c.b16 %v861, %v858
  %v880 = vpack.c.b16 %v862, %v859
  %v881 = vpack.c.b16 %v863, %v860
  %v882 = vpack.c.b16 %v867, %v864
  %v883 = vpack.c.b16 %v868, %v865
  %v884 = vpack.c.b16 %v869, %v866
  %v885 = vpack.c.b16 %v873, %v870
  %v886 = vpack.c.b16 %v874, %v871
  %v887 = vpack.c.b16 %v875, %v872
  %v948 = vunpack.c.l.b16 %v788
  %v949 = vunpack.c.l.b16 %v789
  %v950 = vunpack.c.l.b16 %v790
  %v951 = vunpack.c.l.b16 %v791
  %v952 = vunpack.c.l.b16 %v792
  %v953 = vunpack.c.l.b16 %v793
  %v954 = vunpack.c.l.b16 %v794
  %v955 = vunpack.c.l.b16 %v795
  %v956 = vunpack.c.l.b16 %v796
  %v957 = vunpack.c.l.b16 %v797
  %v958 = vunpack.c.l.b16 %v798
  %v959 = vunpack.c.l.b16 %v799
  %v960 = vunpack.c.l.b16 %v800
  %v961 = vunpack.c.l.b16 %v801
  %v962 = vunpack.c.l.b16 %v802
  %v963 = vunpack.c.l.b16 %v803
  %v964 = vunpack.c.l.b16 %v804
  %v965 = vunpack.c.l.b16 %v805
  %v966 = vunpack.c.l.b16 %v806
  %v967 = vunpack.c.l.b16 %v807
  %v968 = vunpack.c.l.b16 %v808
  %v969 = vunpack.c.l.b16 %v809
  %v970 = vunpack.c.l.b16 %v810
  %v971 = vunpack.c.l.b16 %v811
  %v972 = vunpack.c.l.b16 %v812
  %v973 = vunpack.c.l.b16 %v813
  %v974 = vunpack.c.l.b16 %v814
  %v975 = vunpack.c.l.b16 %v815
  %v976 = vunpack.c.l.b16 %v816
  %v977 = vunpack.c.l.b16 %v817
  %v978 = vunpack.c.l.b16 %v818
  %v979 = vunpack.c.l.b16 %v819
  %v980 = vunpack.c.l.b16 %v820
  %v981 = vunpack.c.l.b16 %v821
  %v982 = vunpack.c.l.b16 %v822
  %v983 = vunpack.c.l.b16 %v823
  %v984 = vunpack.c.l.b16 %v824
  %v985 = vunpack.c.l.b16 %v825
  %v986 = vunpack.c.l.b16 %v826
  %v987 = vunpack.c.l.b16 %v827
  %v988 = vunpack.c.l.b16 %v828
  %v989 = vunpack.c.l.b16 %v829
  %v990 = vunpack.c.l.b16 %v830
  %v991 = vunpack.c.l.b16 %v831
  %v992 = vunpack.c.l.b16 %v832
  %v993 = vunpack.c.l.b16 %v833
  %v994 = vunpack.c.l.b16 %v834
  %v995 = vunpack.c.l.b16 %v835
  %v996 = vpack.c.b16 %v949, %v948
  %v997 = vpack.c.b16 %v951, %v950
  %v998 = vpack.c.b16 %v953, %v952
  %v999 = vpack.c.b16 %v955, %v954
  %v1000 = vpack.c.b16 %v957, %v956
  %v1001 = vpack.c.b16 %v959, %v958
  %v1002 = vpack.c.b16 %v961, %v960
  %v1003 = vpack.c.b16 %v963, %v962
  %v1004 = vpack.c.b16 %v965, %v964
  %v1005 = vpack.c.b16 %v967, %v966
  %v1006 = vpack.c.b16 %v969, %v968
  %v1007 = vpack.c.b16 %v971, %v970
  %v1008 = vpack.c.b16 %v973, %v972
  %v1009 = vpack.c.b16 %v975, %v974
  %v1010 = vpack.c.b16 %v977, %v976
  %v1011 = vpack.c.b16 %v979, %v978
  %v1012 = vpack.c.b16 %v981, %v980
  %v1013 = vpack.c.b16 %v983, %v982
  %v1014 = vpack.c.b16 %v985, %v984
  %v1015 = vpack.c.b16 %v987, %v986
  %v1016 = vpack.c.b16 %v989, %v988
  %v1017 = vpack.c.b16 %v991, %v990
  %v1018 = vpack.c.b16 %v993, %v992
  %v1019 = vpack.c.b16 %v995, %v994
  %1044 = vmatprep.subr.bf16.mxu0 0
  %1045 = vmatpush1.bf16.msra.mxu0 %v1003
  %1046 = vmatprep.subr.bf16.mxu0 0
  %1047 = vmatpush1.bf16.msra.mxu0 %v1002
  %1048 = vmatprep.subr.bf16.mxu0 0
  %1049 = vmatpush1.bf16.msra.mxu0 %v1001
  %1050 = vmatprep.subr.bf16.mxu0 0
  %1051 = vmatpush1.bf16.msra.mxu0 %v1000
  %1052 = vmatprep.subr.bf16.mxu0 0
  %1053 = vmatpush1.bf16.msra.mxu0 %v999
  %1054 = vmatprep.subr.bf16.mxu0 0
  %1055 = vmatpush1.bf16.msra.mxu0 %v998
  %1056 = vmatprep.subr.bf16.mxu0 0
  %1057 = vmatpush1.bf16.msra.mxu0 %v997
  %1058 = vmatprep.subr.bf16.mxu0 0
  %1059 = vmatpush1.bf16.msra.mxu0 %v996
  %1060 = vmatprep.subr.bf16.mxu0 0
  %1061 = vmatpush2.bf16.msra.mxu0 %v1011
  %1062 = vmatprep.subr.bf16.mxu0 0
  %1063 = vmatpush2.bf16.msra.mxu0 %v1010
  %1064 = vmatprep.subr.bf16.mxu0 0
  %1065 = vmatpush2.bf16.msra.mxu0 %v1009
  %1066 = vmatprep.subr.bf16.mxu0 0
  %1067 = vmatpush2.bf16.msra.mxu0 %v1008
  %1068 = vmatprep.subr.bf16.mxu0 0
  %1069 = vmatpush2.bf16.msra.mxu0 %v1007
  %1070 = vmatprep.subr.bf16.mxu0 0
  %1071 = vmatpush2.bf16.msra.mxu0 %v1006
  %1072 = vmatprep.subr.bf16.mxu0 0
  %1073 = vmatpush2.bf16.msra.mxu0 %v1005
  %1074 = vmatprep.subr.bf16.mxu0 0
  %1075 = vmatpush2.bf16.msra.mxu0 %v1004
  %1076 = vmatprep.mubr.bf16.mxu0 %v877
  %1077 = vmatmul.mubr.bf16.gmra.mxu0 %v876
  %v1078 = vpop.f32.mrf.mxu0
  %v1079 = vadd.f32 0.0, %v1078
  %v1080 = vpop.f32.mrf.mxu0
  %v1081 = vpop.f32.mrf.mxu0
  %v1082 = vadd.f32 0.0, %v1081
  %v1083 = vpop.f32.mrf.mxu0
  %1084 = vmatprep.mubr.bf16.mxu0 %v880
  %1085 = vmatmul.mubr.bf16.gmra.mxu0 %v879
  %v1086 = vpop.f32.mrf.mxu0
  %v1087 = vadd.f32 0.0, %v1086
  %v1088 = vpop.f32.mrf.mxu0
  %v1089 = vpop.f32.mrf.mxu0
  %v1090 = vadd.f32 0.0, %v1089
  %v1091 = vpop.f32.mrf.mxu0
  %1092 = vmatprep.mubr.bf16.mxu0 %v883
  %1093 = vmatmul.mubr.bf16.gmra.mxu0 %v882
  %v1094 = vpop.f32.mrf.mxu0
  %v1095 = vadd.f32 0.0, %v1094
  %v1096 = vpop.f32.mrf.mxu0
  %v1097 = vpop.f32.mrf.mxu0
  %v1098 = vadd.f32 0.0, %v1097
  %v1099 = vpop.f32.mrf.mxu0
  %1100 = vmatprep.mubr.bf16.mxu0 %v886
  %1101 = vmatmul.mubr.bf16.gmra.mxu0 %v885
  %v1102 = vpop.f32.mrf.mxu0
  %v1103 = vadd.f32 0.0, %v1102
  %v1104 = vpop.f32.mrf.mxu0
  %v1105 = vpop.f32.mrf.mxu0
  %v1106 = vadd.f32 0.0, %v1105
  %v1107 = vpop.f32.mrf.mxu0
  %1108 = vdwg.mxu0
  %1109 = vmatprep.subr.bf16.mxu0 0
  %1110 = vmatpush1.bf16.msra.mxu0 %v1019
  %1111 = vmatprep.subr.bf16.mxu0 0
  %1112 = vmatpush1.bf16.msra.mxu0 %v1018
  %1113 = vmatprep.subr.bf16.mxu0 0
  %1114 = vmatpush1.bf16.msra.mxu0 %v1017
  %1115 = vmatprep.subr.bf16.mxu0 0
  %1116 = vmatpush1.bf16.msra.mxu0 %v1016
  %1117 = vmatprep.subr.bf16.mxu0 0
  %1118 = vmatpush1.bf16.msra.mxu0 %v1015
  %1119 = vmatprep.subr.bf16.mxu0 0
  %1120 = vmatpush1.bf16.msra.mxu0 %v1014
  %1121 = vmatprep.subr.bf16.mxu0 0
  %1122 = vmatpush1.bf16.msra.mxu0 %v1013
  %1123 = vmatprep.subr.bf16.mxu0 0
  %1124 = vmatpush1.bf16.msra.mxu0 %v1012
  %1125 = vmatprep.subr.bf16.mxu0 0
  %1126 = vmatpush2.bf16.msra.mxu0 0
  %1127 = vmatprep.subr.bf16.mxu0 0
  %1128 = vmatpush2.bf16.msra.mxu0 0
  %1129 = vmatprep.subr.bf16.mxu0 0
  %1130 = vmatpush2.bf16.msra.mxu0 0
  %1131 = vmatprep.subr.bf16.mxu0 0
  %1132 = vmatpush2.bf16.msra.mxu0 0
  %1133 = vmatprep.subr.bf16.mxu0 0
  %1134 = vmatpush2.bf16.msra.mxu0 0
  %1135 = vmatprep.subr.bf16.mxu0 0
  %1136 = vmatpush2.bf16.msra.mxu0 0
  %1137 = vmatprep.subr.bf16.mxu0 0
  %1138 = vmatpush2.bf16.msra.mxu0 0
  %1139 = vmatprep.subr.bf16.mxu0 0
  %1140 = vmatpush2.bf16.msra.mxu0 0
  %1141 = vmatprep.mubr.bf16.mxu0 0
  %1142 = vmatmul.mubr.bf16.gmra.mxu0 %v878
  %v1143 = vpop.f32.mrf.mxu0
  %v1144 = vadd.f32 %v1079, %v1143
  %v1145 = vpop.f32.mrf.mxu0
  %v1146 = vpop.f32.mrf.mxu0
  %v1147 = vadd.f32 %v1082, %v1146
  %v1148 = vpop.f32.mrf.mxu0
  %1149 = vmatprep.mubr.bf16.mxu0 0
  %1150 = vmatmul.mubr.bf16.gmra.mxu0 %v881
  %v1151 = vpop.f32.mrf.mxu0
  %v1152 = vadd.f32 %v1087, %v1151
  %v1153 = vpop.f32.mrf.mxu0
  %v1154 = vpop.f32.mrf.mxu0
  %v1155 = vadd.f32 %v1090, %v1154
  %v1156 = vpop.f32.mrf.mxu0
  %1157 = vmatprep.mubr.bf16.mxu0 0
  %1158 = vmatmul.mubr.bf16.gmra.mxu0 %v884
  %v1159 = vpop.f32.mrf.mxu0
  %v1160 = vadd.f32 %v1095, %v1159
  %v1161 = vpop.f32.mrf.mxu0
  %v1162 = vpop.f32.mrf.mxu0
  %v1163 = vadd.f32 %v1098, %v1162
  %v1164 = vpop.f32.mrf.mxu0
  %1165 = vmatprep.mubr.bf16.mxu0 0
  %1166 = vmatmul.mubr.bf16.gmra.mxu0 %v887
  %v1167 = vpop.f32.mrf.mxu0
  %v1168 = vadd.f32 %v1103, %v1167
  %v1169 = vpop.f32.mrf.mxu0
  %v1170 = vpop.f32.mrf.mxu0
  %v1171 = vadd.f32 %v1106, %v1170
  %v1172 = vpop.f32.mrf.mxu0
  %1173 = vdwg.mxu0
  %v1174 = vadd.f32 %v741, %v1144
  %v1175 = vadd.f32 %v744, %v1147
  %v1176 = vadd.f32 %v749, %v1152
  %v1177 = vadd.f32 %v752, %v1155
  %v1178 = vadd.f32 %v757, %v1160
  %v1179 = vadd.f32 %v760, %v1163
  %v1180 = vadd.f32 %v765, %v1168
  %v1181 = vadd.f32 %v768, %v1171
  %v1182 = vld [vmem:[%s2] sm:$0x1]
  %v1184 = vlaneseq
  %v1185 = vshrl.u32 %v1184, 7
  %v1186 = vsub.s32 0, %v1185
  %v1187 = vrot.slane %v1182, %v1186
  %v1189 = vadd.f32 %v1174, %v1187
  %v1190 = vadd.f32 %v1175, %v1187
  %v1191 = vadd.f32 %v1176, %v1187
  %v1192 = vadd.f32 %v1177, %v1187
  %v1193 = vadd.f32 %v1178, %v1187
  %v1194 = vadd.f32 %v1179, %v1187
  %v1195 = vadd.f32 %v1180, %v1187
  %v1196 = vadd.f32 %v1181, %v1187
  %v1197 = vmax.f32 %v1189, 0.0
  %v1198 = vmax.f32 %v1190, 0.0
  %v1199 = vmax.f32 %v1191, 0.0
  %v1200 = vmax.f32 %v1192, 0.0
  %v1201 = vmax.f32 %v1193, 0.0
  %v1202 = vmax.f32 %v1194, 0.0
  %v1203 = vmax.f32 %v1195, 0.0
  %v1204 = vmax.f32 %v1196, 0.0
  %v1205 = vld [vmem:[%s5] sm:$0xff]
  %v1206 = vld [vmem:[%s5 + $0x8] sm:$0xff]
  %v1207 = vld [vmem:[%s5 + $0x10] sm:$0xff]
  %v1208 = vld [vmem:[%s5 + $0x18] sm:$0xff]
  %v1209 = vld [vmem:[%s5 + $0x20] sm:$0xff]
  %v1210 = vld [vmem:[%s5 + $0x28] sm:$0xff]
  %v1211 = vld [vmem:[%s5 + $0x30] sm:$0xff]
  %v1212 = vld [vmem:[%s5 + $0x38] sm:$0xff]
  %v1213 = vpack.c.bf16 %v1198, %v1197
  %v1214 = vpack.c.bf16 %v1200, %v1199
  %v1215 = vpack.c.bf16 %v1202, %v1201
  %v1216 = vpack.c.bf16 %v1204, %v1203
  %v1217 = vld [vmem:[%s3] sm:$0xf]
  %v1218 = vld [vmem:[%s3 + $0x4] sm:$0xf]
  %v1219 = vld [vmem:[%s3 + $0x8] sm:$0xf]
  %v1220 = vld [vmem:[%s3 + $0xc] sm:$0xf]
  %v1225 = vunpack.c.l.b16 %v1217
  %v1226 = vunpack.c.l.b16 %v1218
  %v1227 = vunpack.c.l.b16 %v1219
  %v1228 = vunpack.c.l.b16 %v1220
  %v1229 = vpack.c.b16 %v1226, %v1225
  %v1230 = vpack.c.b16 %v1228, %v1227
  %vm1233 = vcmask 261120
  %v1235 = vsel %vm1233, %v1213, 0
  %v1238 = vsel %vm1233, %v1214, 0
  %v1241 = vsel %vm1233, %v1215, 0
  %v1244 = vsel %vm1233, %v1216, 0
  %1246 = vmatprep.subr.bf16.mxu0 0
  %1247 = vmatpush1.bf16.msra.mxu0 0
  %1248 = vmatprep.subr.bf16.mxu0 0
  %1249 = vmatpush1.bf16.msra.mxu0 0
  %1250 = vmatprep.subr.bf16.mxu0 0
  %1251 = vmatpush1.bf16.msra.mxu0 0
  %1252 = vmatprep.subr.bf16.mxu0 0
  %1253 = vmatpush1.bf16.msra.mxu0 0
  %1254 = vmatprep.subr.bf16.mxu0 0
  %1255 = vmatpush1.bf16.msra.mxu0 0
  %1256 = vmatprep.subr.bf16.mxu0 0
  %1257 = vmatpush1.bf16.msra.mxu0 0
  %1258 = vmatprep.subr.bf16.mxu0 0
  %1259 = vmatpush1.bf16.msra.mxu0 %v1230
  %1260 = vmatprep.subr.bf16.mxu0 0
  %1261 = vmatpush1.bf16.msra.mxu0 %v1229
  %1262 = vmatprep.subr.bf16.mxu0 0
  %1263 = vmatpush2.bf16.msra.mxu0 0
  %1264 = vmatprep.subr.bf16.mxu0 0
  %1265 = vmatpush2.bf16.msra.mxu0 0
  %1266 = vmatprep.subr.bf16.mxu0 0
  %1267 = vmatpush2.bf16.msra.mxu0 0
  %1268 = vmatprep.subr.bf16.mxu0 0
  %1269 = vmatpush2.bf16.msra.mxu0 0
  %1270 = vmatprep.subr.bf16.mxu0 0
  %1271 = vmatpush2.bf16.msra.mxu0 0
  %1272 = vmatprep.subr.bf16.mxu0 0
  %1273 = vmatpush2.bf16.msra.mxu0 0
  %1274 = vmatprep.subr.bf16.mxu0 0
  %1275 = vmatpush2.bf16.msra.mxu0 0
  %1276 = vmatprep.subr.bf16.mxu0 0
  %1277 = vmatpush2.bf16.msra.mxu0 0
  %1278 = vmatprep.mubr.bf16.mxu0 0
  %1279 = vmatmul.mubr.bf16.gmra.mxu0 %v1235
  %v1280 = vpop.f32.mrf.mxu0
  %v1281 = vadd.f32 0.0, %v1280
  %v1282 = vpop.f32.mrf.mxu0
  %v1283 = vpop.f32.mrf.mxu0
  %v1284 = vadd.f32 0.0, %v1283
  %v1285 = vpop.f32.mrf.mxu0
  %1286 = vmatprep.mubr.bf16.mxu0 0
  %1287 = vmatmul.mubr.bf16.gmra.mxu0 %v1238
  %v1288 = vpop.f32.mrf.mxu0
  %v1289 = vadd.f32 0.0, %v1288
  %v1290 = vpop.f32.mrf.mxu0
  %v1291 = vpop.f32.mrf.mxu0
  %v1292 = vadd.f32 0.0, %v1291
  %v1293 = vpop.f32.mrf.mxu0
  %1294 = vmatprep.mubr.bf16.mxu0 0
  %1295 = vmatmul.mubr.bf16.gmra.mxu0 %v1241
  %v1296 = vpop.f32.mrf.mxu0
  %v1297 = vadd.f32 0.0, %v1296
  %v1298 = vpop.f32.mrf.mxu0
  %v1299 = vpop.f32.mrf.mxu0
  %v1300 = vadd.f32 0.0, %v1299
  %v1301 = vpop.f32.mrf.mxu0
  %1302 = vmatprep.mubr.bf16.mxu0 0
  %1303 = vmatmul.mubr.bf16.gmra.mxu0 %v1244
  %v1304 = vpop.f32.mrf.mxu0
  %v1305 = vadd.f32 0.0, %v1304
  %v1306 = vpop.f32.mrf.mxu0
  %v1307 = vpop.f32.mrf.mxu0
  %v1308 = vadd.f32 0.0, %v1307
  %v1309 = vpop.f32.mrf.mxu0
  %1310 = vdwg.mxu0
  %v1311 = vadd.f32 %v1205, %v1281
  %v1312 = vadd.f32 %v1206, %v1284
  %v1313 = vadd.f32 %v1207, %v1289
  %v1314 = vadd.f32 %v1208, %v1292
  %v1315 = vadd.f32 %v1209, %v1297
  %v1316 = vadd.f32 %v1210, %v1300
  %v1317 = vadd.f32 %v1211, %v1305
  %v1318 = vadd.f32 %v1212, %v1308
  %v1319 = vld [vmem:[%s4] sm:$0x1]
  %v1321 = vlaneseq
  %v1322 = vshrl.u32 %v1321, 7
  %v1323 = vsub.s32 0, %v1322
  %v1324 = vrot.slane %v1319, %v1323
  %v1326 = vadd.f32 %v1311, %v1324
  %v1327 = vadd.f32 %v1312, %v1324
  %v1328 = vadd.f32 %v1313, %v1324
  %v1329 = vadd.f32 %v1314, %v1324
  %v1330 = vadd.f32 %v1315, %v1324
  %v1331 = vadd.f32 %v1316, %v1324
  %v1332 = vadd.f32 %v1317, %v1324
  %v1333 = vadd.f32 %v1318, %v1324
  %1334 = vst [vmem:[%s6] sm:$0xff] %v1326
  %1335 = vst [vmem:[%s6 + $0x8] sm:$0xff] %v1327
  %1336 = vst [vmem:[%s6 + $0x10] sm:$0xff] %v1328
  %1337 = vst [vmem:[%s6 + $0x18] sm:$0xff] %v1329
  %1338 = vst [vmem:[%s6 + $0x20] sm:$0xff] %v1330
  %1339 = vst [vmem:[%s6 + $0x28] sm:$0xff] %v1331
  %1340 = vst [vmem:[%s6 + $0x30] sm:$0xff] %v1332
  %1341 = vst [vmem:[%s6 + $0x38] sm:$0xff] %v1333
  %v1342 = vmax.f32 %v1326, 0.0
  %v1343 = vmax.f32 %v1327, 0.0
  %v1344 = vmax.f32 %v1328, 0.0
  %v1345 = vmax.f32 %v1329, 0.0
  %v1346 = vmax.f32 %v1330, 0.0
  %v1347 = vmax.f32 %v1331, 0.0
  %v1348 = vmax.f32 %v1332, 0.0
  %v1349 = vmax.f32 %v1333, 0.0
  %v1350 = vpack.c.bf16 %v1343, %v1342
  %v1351 = vpack.c.bf16 %v1345, %v1344
  %v1352 = vpack.c.bf16 %v1347, %v1346
  %v1353 = vpack.c.bf16 %v1349, %v1348
  %v1358 = vunpack.c.l.b16 %v1350
  %v1359 = vunpack.c.h.b16 %v1350
  %v1360 = vunpack.c.l.b16 %v1351
  %v1361 = vunpack.c.h.b16 %v1351
  %v1362 = vunpack.c.l.b16 %v1352
  %v1363 = vunpack.c.h.b16 %v1352
  %v1364 = vunpack.c.l.b16 %v1353
  %v1365 = vunpack.c.h.b16 %v1353
  %v1366 = vpack.c.b16 %v1358, %v1358
  %v1367 = vpack.c.b16 %v1359, %v1359
  %v1368 = vpack.c.b16 %v1360, %v1360
  %v1369 = vpack.c.b16 %v1361, %v1361
  %v1370 = vpack.c.b16 %v1362, %v1362
  %v1371 = vpack.c.b16 %v1363, %v1363
  %v1372 = vpack.c.b16 %v1364, %v1364
  %v1373 = vpack.c.b16 %v1365, %v1365
  %1382 = vst [vmem:[%s7] sm:$0xf] %v1366
  %1383 = vst [vmem:[%s7 + $0x4] sm:$0xf] %v1367
  %1384 = vst [vmem:[%s7 + $0x8] sm:$0xf] %v1368
  %1385 = vst [vmem:[%s7 + $0xc] sm:$0xf] %v1369
  %1386 = vst [vmem:[%s7 + $0x10] sm:$0xf] %v1370
  %1387 = vst [vmem:[%s7 + $0x14] sm:$0xf] %v1371
  %1388 = vst [vmem:[%s7 + $0x18] sm:$0xf] %v1372
  %1389 = vst [vmem:[%s7 + $0x1c] sm:$0xf] %v1373
  // Predicated region
  $region26: #{engine_forward.15} parent=0 // pred_check
    _
  $region27: #{engine_forward.15} parent=0 // pred_check_branch
    %1391 = sbr.rel (0) target = $region29
  $region28: #{engine_forward.15} parent=0 // pred_region
    _
  $region29: #{engine_forward.15} parent=0 // pred_fallthru
    _
  // Predicated region
  $region30: #{engine_forward.15} parent=0 // pred_check
    _
  $region31: #{engine_forward.15} parent=0 // pred_check_branch
    %1393 = sbr.rel (0) target = $region33
  $region32: #{engine_forward.15} parent=0 // pred_region
    _
  $region33: #{engine_forward.15} parent=0 // pred_fallthru
    _
  // Predicated region
  $region34: #{engine_forward.15} parent=0 // pred_check
    _
  $region35: #{engine_forward.15} parent=0 // pred_check_branch
    %1395 = sbr.rel (0) target = $region37
  $region36: #{engine_forward.15} parent=0 // pred_region
    _
  $region37: #{engine_forward.15} parent=0 // pred_fallthru
    _
  // Predicated region
  $region38: #{engine_forward.15} parent=0 // pred_check
    _
  $region39: #{engine_forward.15} parent=0 // pred_check_branch
    %1397 = sbr.rel (0) target = $region41
  $region40: #{engine_forward.15} parent=0 // pred_region
    _
  $region41: #{engine_forward.15} parent=0 // pred_fallthru
    _

// kernel: engine_forward.17
$region0: #{engine_forward.17}
  #allocation0 [shape = 'u32[]', space=smem, size = 0x4, offset = 0x4, fixed_abs, tag = 'smem constant byte address 0x4 - core index']
  #allocation1 [shape = 'u32[144,128]{1,0:T(1,128)}', space=vmem, size = 0x12000, scoped, tag = 'internal scratch']
  %s0 = inlined_call_operand.vmem [shape: bf16[1,96,384], index: 0, kind: input, shape index: {}]
  %s1 = inlined_call_operand.vmem [shape: bf16[3,384,256], index: 1, kind: input, shape index: {}]
  %s2 = inlined_call_operand.vmem [shape: f32[1,256], index: 2, kind: input, shape index: {}]
  %s3 = inlined_call_operand.vmem [shape: bf16[1,64,256], index: 3, kind: output, shape index: {}]
  %s4 = sld [smem:[#allocation0]]
  $region22: #{engine_forward.17} parent=0
    _
  %s6 = ssub.s32 1, %s4
  %s7 = scalar_select 0, %s6, %s4
  // Predicated region
  $region2: #{engine_forward.17} parent=0 // pred_check
    _
  $region3: #{engine_forward.17} parent=0 // pred_check_branch
    %9 = sbr.rel (0) target = $region5
  $region4: #{engine_forward.17} parent=0 // pred_region
    _
  $region5: #{engine_forward.17} parent=0 // pred_fallthru
    _
  // Predicated region
  $region6: #{engine_forward.17} parent=0 // pred_check
    _
  $region7: #{engine_forward.17} parent=0 // pred_check_branch
    %11 = sbr.rel (0) target = $region9
  $region8: #{engine_forward.17} parent=0 // pred_region
    _
  $region9: #{engine_forward.17} parent=0 // pred_fallthru
    _
  // Predicated region
  $region10: #{engine_forward.17} parent=0 // pred_check
    _
  $region11: #{engine_forward.17} parent=0 // pred_check_branch
    %13 = sbr.rel (0) target = $region13
  $region12: #{engine_forward.17} parent=0 // pred_region
    _
  $region13: #{engine_forward.17} parent=0 // pred_fallthru
    _
  %v15 = vld [vmem:[%s0] sm:$0xff]
  %v16 = vld [vmem:[%s0 + $0x8] sm:$0xf]
  %v17 = vld [vmem:[%s0 + $0xc] sm:$0xff]
  %v18 = vld [vmem:[%s0 + $0x14] sm:$0xf]
  %v19 = vld [vmem:[%s0 + $0x18] sm:$0xff]
  %v20 = vld [vmem:[%s0 + $0x20] sm:$0xf]
  %v21 = vld [vmem:[%s0 + $0x24] sm:$0xff]
  %v22 = vld [vmem:[%s0 + $0x2c] sm:$0xf]
  %v23 = vld [vmem:[%s0 + $0x30] sm:$0xff]
  %v24 = vld [vmem:[%s0 + $0x38] sm:$0xf]
  %v25 = vld [vmem:[%s0 + $0x3c] sm:$0xff]
  %v26 = vld [vmem:[%s0 + $0x44] sm:$0xf]
  %v27 = vld [vmem:[%s0 + $0x48] sm:$0xff]
  %v28 = vld [vmem:[%s0 + $0x50] sm:$0xf]
  %v29 = vld [vmem:[%s0 + $0x54] sm:$0xff]
  %v30 = vld [vmem:[%s0 + $0x5c] sm:$0xf]
  %v31 = vld [vmem:[%s1] sm:$0xff]
  %v32 = vld [vmem:[%s1 + $0x8] sm:$0xff]
  %v33 = vld [vmem:[%s1 + $0x10] sm:$0xff]
  %v34 = vld [vmem:[%s1 + $0x18] sm:$0xff]
  %v35 = vld [vmem:[%s1 + $0x20] sm:$0xff]
  %v36 = vld [vmem:[%s1 + $0x28] sm:$0xff]
  %v37 = vld [vmem:[%s1 + $0x30] sm:$0xff]
  %v38 = vld [vmem:[%s1 + $0x38] sm:$0xff]
  %v39 = vld [vmem:[%s1 + $0x40] sm:$0xff]
  %v40 = vld [vmem:[%s1 + $0x48] sm:$0xff]
  %v41 = vld [vmem:[%s1 + $0x50] sm:$0xff]
  %v42 = vld [vmem:[%s1 + $0x58] sm:$0xff]
  %v43 = vld [vmem:[%s1 + $0x60] sm:$0xff]
  %v44 = vld [vmem:[%s1 + $0x68] sm:$0xff]
  %v45 = vld [vmem:[%s1 + $0x70] sm:$0xff]
  %v46 = vld [vmem:[%s1 + $0x78] sm:$0xff]
  %v47 = vld [vmem:[%s1 + $0x80] sm:$0xff]
  %v48 = vld [vmem:[%s1 + $0x88] sm:$0xff]
  %v49 = vld [vmem:[%s1 + $0x90] sm:$0xff]
  %v50 = vld [vmem:[%s1 + $0x98] sm:$0xff]
  %v51 = vld [vmem:[%s1 + $0xa0] sm:$0xff]
  %v52 = vld [vmem:[%s1 + $0xa8] sm:$0xff]
  %v53 = vld [vmem:[%s1 + $0xb0] sm:$0xff]
  %v54 = vld [vmem:[%s1 + $0xb8] sm:$0xff]
  %v55 = vld [vmem:[%s1 + $0xc0] sm:$0xff]
  %v56 = vld [vmem:[%s1 + $0xc8] sm:$0xff]
  %v57 = vld [vmem:[%s1 + $0xd0] sm:$0xff]
  %v58 = vld [vmem:[%s1 + $0xd8] sm:$0xff]
  %v59 = vld [vmem:[%s1 + $0xe0] sm:$0xff]
  %v60 = vld [vmem:[%s1 + $0xe8] sm:$0xff]
  %v61 = vld [vmem:[%s1 + $0xf0] sm:$0xff]
  %v62 = vld [vmem:[%s1 + $0xf8] sm:$0xff]
  %v63 = vld [vmem:[%s1 + $0x100] sm:$0xff]
  %v64 = vld [vmem:[%s1 + $0x108] sm:$0xff]
  %v65 = vld [vmem:[%s1 + $0x110] sm:$0xff]
  %v66 = vld [vmem:[%s1 + $0x118] sm:$0xff]
  %v67 = vld [vmem:[%s1 + $0x120] sm:$0xff]
  %v68 = vld [vmem:[%s1 + $0x128] sm:$0xff]
  %v69 = vld [vmem:[%s1 + $0x130] sm:$0xff]
  %v70 = vld [vmem:[%s1 + $0x138] sm:$0xff]
  %v71 = vld [vmem:[%s1 + $0x140] sm:$0xff]
  %v72 = vld [vmem:[%s1 + $0x148] sm:$0xff]
  %v73 = vld [vmem:[%s1 + $0x150] sm:$0xff]
  %v74 = vld [vmem:[%s1 + $0x158] sm:$0xff]
  %v75 = vld [vmem:[%s1 + $0x160] sm:$0xff]
  %v76 = vld [vmem:[%s1 + $0x168] sm:$0xff]
  %v77 = vld [vmem:[%s1 + $0x170] sm:$0xff]
  %v78 = vld [vmem:[%s1 + $0x178] sm:$0xff]
  %v79 = vld [vmem:[%s0 + $0x60] sm:$0xff]
  %v80 = vld [vmem:[%s0 + $0x68] sm:$0xf]
  %v81 = vld [vmem:[%s0 + $0x6c] sm:$0xff]
  %v82 = vld [vmem:[%s0 + $0x74] sm:$0xf]
  %s83 = scalar_lea.vmem %s1, 384
  %v84 = vld [vmem:[%s83] sm:$0xff]
  %v85 = vld [vmem:[%s83 + $0x8] sm:$0xff]
  %v86 = vld [vmem:[%s83 + $0x10] sm:$0xff]
  %v87 = vld [vmem:[%s83 + $0x18] sm:$0xff]
  %v88 = vld [vmem:[%s83 + $0x20] sm:$0xff]
  %v89 = vld [vmem:[%s83 + $0x28] sm:$0xff]
  %v90 = vld [vmem:[%s83 + $0x30] sm:$0xff]
  %v91 = vld [vmem:[%s83 + $0x38] sm:$0xff]
  %v92 = vld [vmem:[%s83 + $0x40] sm:$0xff]
  %v93 = vld [vmem:[%s83 + $0x48] sm:$0xff]
  %v94 = vld [vmem:[%s83 + $0x50] sm:$0xff]
  %v95 = vld [vmem:[%s83 + $0x58] sm:$0xff]
  %v96 = vld [vmem:[%s83 + $0x60] sm:$0xff]
  %v97 = vld [vmem:[%s83 + $0x68] sm:$0xff]
  %v98 = vld [vmem:[%s83 + $0x70] sm:$0xff]
  %v99 = vld [vmem:[%s83 + $0x78] sm:$0xff]
  %v100 = vld [vmem:[%s83 + $0x80] sm:$0xff]
  %v101 = vld [vmem:[%s83 + $0x88] sm:$0xff]
  %v102 = vld [vmem:[%s83 + $0x90] sm:$0xff]
  %v103 = vld [vmem:[%s83 + $0x98] sm:$0xff]
  %v104 = vld [vmem:[%s83 + $0xa0] sm:$0xff]
  %v105 = vld [vmem:[%s83 + $0xa8] sm:$0xff]
  %v106 = vld [vmem:[%s83 + $0xb0] sm:$0xff]
  %v107 = vld [vmem:[%s83 + $0xb8] sm:$0xff]
  %v108 = vld [vmem:[%s83 + $0xc0] sm:$0xff]
  %v109 = vld [vmem:[%s83 + $0xc8] sm:$0xff]
  %v110 = vld [vmem:[%s83 + $0xd0] sm:$0xff]
  %v111 = vld [vmem:[%s83 + $0xd8] sm:$0xff]
  %v112 = vld [vmem:[%s83 + $0xe0] sm:$0xff]
  %v113 = vld [vmem:[%s83 + $0xe8] sm:$0xff]
  %v114 = vld [vmem:[%s83 + $0xf0] sm:$0xff]
  %v115 = vld [vmem:[%s83 + $0xf8] sm:$0xff]
  %v116 = vld [vmem:[%s83 + $0x100] sm:$0xff]
  %v117 = vld [vmem:[%s83 + $0x108] sm:$0xff]
  %v118 = vld [vmem:[%s83 + $0x110] sm:$0xff]
  %v119 = vld [vmem:[%s83 + $0x118] sm:$0xff]
  %v120 = vld [vmem:[%s83 + $0x120] sm:$0xff]
  %v121 = vld [vmem:[%s83 + $0x128] sm:$0xff]
  %v122 = vld [vmem:[%s83 + $0x130] sm:$0xff]
  %v123 = vld [vmem:[%s83 + $0x138] sm:$0xff]
  %v124 = vld [vmem:[%s83 + $0x140] sm:$0xff]
  %v125 = vld [vmem:[%s83 + $0x148] sm:$0xff]
  %v126 = vld [vmem:[%s83 + $0x150] sm:$0xff]
  %v127 = vld [vmem:[%s83 + $0x158] sm:$0xff]
  %v128 = vld [vmem:[%s83 + $0x160] sm:$0xff]
  %v129 = vld [vmem:[%s83 + $0x168] sm:$0xff]
  %v130 = vld [vmem:[%s83 + $0x170] sm:$0xff]
  %v131 = vld [vmem:[%s83 + $0x178] sm:$0xff]
  %v148 = vunpack.c.l.b16 %v19
  %v149 = vunpack.c.h.b16 %v19
  %v150 = vunpack.c.l.b16 %v20
  %v151 = vunpack.c.l.b16 %v21
  %v152 = vunpack.c.h.b16 %v21
  %v153 = vunpack.c.l.b16 %v22
  %v154 = vunpack.c.l.b16 %v23
  %v155 = vunpack.c.h.b16 %v23
  %v156 = vunpack.c.l.b16 %v24
  %v157 = vunpack.c.l.b16 %v25
  %v158 = vunpack.c.h.b16 %v25
  %v159 = vunpack.c.l.b16 %v26
  %v160 = vunpack.c.l.b16 %v27
  %v161 = vunpack.c.h.b16 %v27
  %v162 = vunpack.c.l.b16 %v28
  %v163 = vunpack.c.l.b16 %v29
  %v164 = vunpack.c.h.b16 %v29
  %v165 = vunpack.c.l.b16 %v30
  %v166 = vunpack.c.l.b16 %v79
  %v167 = vunpack.c.h.b16 %v79
  %v168 = vunpack.c.l.b16 %v80
  %v169 = vunpack.c.l.b16 %v81
  %v170 = vunpack.c.h.b16 %v81
  %v171 = vunpack.c.l.b16 %v82
  %v172 = vpack.c.b16 %v151, %v148
  %v173 = vpack.c.b16 %v152, %v149
  %v174 = vpack.c.b16 %v153, %v150
  %v175 = vpack.c.b16 %v157, %v154
  %v176 = vpack.c.b16 %v158, %v155
  %v177 = vpack.c.b16 %v159, %v156
  %v178 = vpack.c.b16 %v163, %v160
  %v179 = vpack.c.b16 %v164, %v161
  %v180 = vpack.c.b16 %v165, %v162
  %v181 = vpack.c.b16 %v169, %v166
  %v182 = vpack.c.b16 %v170, %v167
  %v183 = vpack.c.b16 %v171, %v168
  %v244 = vunpack.c.l.b16 %v84
  %v245 = vunpack.c.h.b16 %v84
  %v246 = vunpack.c.l.b16 %v85
  %v247 = vunpack.c.h.b16 %v85
  %v248 = vunpack.c.l.b16 %v86
  %v249 = vunpack.c.h.b16 %v86
  %v250 = vunpack.c.l.b16 %v87
  %v251 = vunpack.c.h.b16 %v87
  %v252 = vunpack.c.l.b16 %v88
  %v253 = vunpack.c.h.b16 %v88
  %v254 = vunpack.c.l.b16 %v89
  %v255 = vunpack.c.h.b16 %v89
  %v256 = vunpack.c.l.b16 %v90
  %v257 = vunpack.c.h.b16 %v90
  %v258 = vunpack.c.l.b16 %v91
  %v259 = vunpack.c.h.b16 %v91
  %v260 = vunpack.c.l.b16 %v92
  %v261 = vunpack.c.h.b16 %v92
  %v262 = vunpack.c.l.b16 %v93
  %v263 = vunpack.c.h.b16 %v93
  %v264 = vunpack.c.l.b16 %v94
  %v265 = vunpack.c.h.b16 %v94
  %v266 = vunpack.c.l.b16 %v95
  %v267 = vunpack.c.h.b16 %v95
  %v268 = vunpack.c.l.b16 %v96
  %v269 = vunpack.c.h.b16 %v96
  %v270 = vunpack.c.l.b16 %v97
  %v271 = vunpack.c.h.b16 %v97
  %v272 = vunpack.c.l.b16 %v98
  %v273 = vunpack.c.h.b16 %v98
  %v274 = vunpack.c.l.b16 %v99
  %v275 = vunpack.c.h.b16 %v99
  %v276 = vunpack.c.l.b16 %v100
  %v277 = vunpack.c.h.b16 %v100
  %v278 = vunpack.c.l.b16 %v101
  %v279 = vunpack.c.h.b16 %v101
  %v280 = vunpack.c.l.b16 %v102
  %v281 = vunpack.c.h.b16 %v102
  %v282 = vunpack.c.l.b16 %v103
  %v283 = vunpack.c.h.b16 %v103
  %v284 = vunpack.c.l.b16 %v104
  %v285 = vunpack.c.h.b16 %v104
  %v286 = vunpack.c.l.b16 %v105
  %v287 = vunpack.c.h.b16 %v105
  %v288 = vunpack.c.l.b16 %v106
  %v289 = vunpack.c.h.b16 %v106
  %v290 = vunpack.c.l.b16 %v107
  %v291 = vunpack.c.h.b16 %v107
  %v292 = vunpack.c.l.b16 %v108
  %v293 = vunpack.c.h.b16 %v108
  %v294 = vunpack.c.l.b16 %v109
  %v295 = vunpack.c.h.b16 %v109
  %v296 = vunpack.c.l.b16 %v110
  %v297 = vunpack.c.h.b16 %v110
  %v298 = vunpack.c.l.b16 %v111
  %v299 = vunpack.c.h.b16 %v111
  %v300 = vunpack.c.l.b16 %v112
  %v301 = vunpack.c.h.b16 %v112
  %v302 = vunpack.c.l.b16 %v113
  %v303 = vunpack.c.h.b16 %v113
  %v304 = vunpack.c.l.b16 %v114
  %v305 = vunpack.c.h.b16 %v114
  %v306 = vunpack.c.l.b16 %v115
  %v307 = vunpack.c.h.b16 %v115
  %v308 = vunpack.c.l.b16 %v116
  %v309 = vunpack.c.h.b16 %v116
  %v310 = vunpack.c.l.b16 %v117
  %v311 = vunpack.c.h.b16 %v117
  %v312 = vunpack.c.l.b16 %v118
  %v313 = vunpack.c.h.b16 %v118
  %v314 = vunpack.c.l.b16 %v119
  %v315 = vunpack.c.h.b16 %v119
  %v316 = vunpack.c.l.b16 %v120
  %v317 = vunpack.c.h.b16 %v120
  %v318 = vunpack.c.l.b16 %v121
  %v319 = vunpack.c.h.b16 %v121
  %v320 = vunpack.c.l.b16 %v122
  %v321 = vunpack.c.h.b16 %v122
  %v322 = vunpack.c.l.b16 %v123
  %v323 = vunpack.c.h.b16 %v123
  %v324 = vunpack.c.l.b16 %v124
  %v325 = vunpack.c.h.b16 %v124
  %v326 = vunpack.c.l.b16 %v125
  %v327 = vunpack.c.h.b16 %v125
  %v328 = vunpack.c.l.b16 %v126
  %v329 = vunpack.c.h.b16 %v126
  %v330 = vunpack.c.l.b16 %v127
  %v331 = vunpack.c.h.b16 %v127
  %v332 = vunpack.c.l.b16 %v128
  %v333 = vunpack.c.h.b16 %v128
  %v334 = vunpack.c.l.b16 %v129
  %v335 = vunpack.c.h.b16 %v129
  %v336 = vunpack.c.l.b16 %v130
  %v337 = vunpack.c.h.b16 %v130
  %v338 = vunpack.c.l.b16 %v131
  %v339 = vunpack.c.h.b16 %v131
  %v340 = vpack.c.b16 %v246, %v244
  %v341 = vpack.c.b16 %v247, %v245
  %v342 = vpack.c.b16 %v250, %v248
  %v343 = vpack.c.b16 %v251, %v249
  %v344 = vpack.c.b16 %v254, %v252
  %v345 = vpack.c.b16 %v255, %v253
  %v346 = vpack.c.b16 %v258, %v256
  %v347 = vpack.c.b16 %v259, %v257
  %v348 = vpack.c.b16 %v262, %v260
  %v349 = vpack.c.b16 %v263, %v261
  %v350 = vpack.c.b16 %v266, %v264
  %v351 = vpack.c.b16 %v267, %v265
  %v352 = vpack.c.b16 %v270, %v268
  %v353 = vpack.c.b16 %v271, %v269
  %v354 = vpack.c.b16 %v274, %v272
  %v355 = vpack.c.b16 %v275, %v273
  %v356 = vpack.c.b16 %v278, %v276
  %v357 = vpack.c.b16 %v279, %v277
  %v358 = vpack.c.b16 %v282, %v280
  %v359 = vpack.c.b16 %v283, %v281
  %v360 = vpack.c.b16 %v286, %v284
  %v361 = vpack.c.b16 %v287, %v285
  %v362 = vpack.c.b16 %v290, %v288
  %v363 = vpack.c.b16 %v291, %v289
  %v364 = vpack.c.b16 %v294, %v292
  %v365 = vpack.c.b16 %v295, %v293
  %v366 = vpack.c.b16 %v298, %v296
  %v367 = vpack.c.b16 %v299, %v297
  %v368 = vpack.c.b16 %v302, %v300
  %v369 = vpack.c.b16 %v303, %v301
  %v370 = vpack.c.b16 %v306, %v304
  %v371 = vpack.c.b16 %v307, %v305
  %v372 = vpack.c.b16 %v310, %v308
  %v373 = vpack.c.b16 %v311, %v309
  %v374 = vpack.c.b16 %v314, %v312
  %v375 = vpack.c.b16 %v315, %v313
  %v376 = vpack.c.b16 %v318, %v316
  %v377 = vpack.c.b16 %v319, %v317
  %v378 = vpack.c.b16 %v322, %v320
  %v379 = vpack.c.b16 %v323, %v321
  %v380 = vpack.c.b16 %v326, %v324
  %v381 = vpack.c.b16 %v327, %v325
  %v382 = vpack.c.b16 %v330, %v328
  %v383 = vpack.c.b16 %v331, %v329
  %v384 = vpack.c.b16 %v334, %v332
  %v385 = vpack.c.b16 %v335, %v333
  %v386 = vpack.c.b16 %v338, %v336
  %v387 = vpack.c.b16 %v339, %v337
  %436 = vmatprep.subr.bf16.mxu0 %v355
  %437 = vmatpush1.bf16.msra.mxu0 %v354
  %438 = vmatprep.subr.bf16.mxu0 %v353
  %439 = vmatpush1.bf16.msra.mxu0 %v352
  %440 = vmatprep.subr.bf16.mxu0 %v351
  %441 = vmatpush1.bf16.msra.mxu0 %v350
  %442 = vmatprep.subr.bf16.mxu0 %v349
  %443 = vmatpush1.bf16.msra.mxu0 %v348
  %444 = vmatprep.subr.bf16.mxu0 %v347
  %445 = vmatpush1.bf16.msra.mxu0 %v346
  %446 = vmatprep.subr.bf16.mxu0 %v345
  %447 = vmatpush1.bf16.msra.mxu0 %v344
  %448 = vmatprep.subr.bf16.mxu0 %v343
  %449 = vmatpush1.bf16.msra.mxu0 %v342
  %450 = vmatprep.subr.bf16.mxu0 %v341
  %451 = vmatpush1.bf16.msra.mxu0 %v340
  %452 = vmatprep.subr.bf16.mxu0 %v371
  %453 = vmatpush2.bf16.msra.mxu0 %v370
  %454 = vmatprep.subr.bf16.mxu0 %v369
  %455 = vmatpush2.bf16.msra.mxu0 %v368
  %456 = vmatprep.subr.bf16.mxu0 %v367
  %457 = vmatpush2.bf16.msra.mxu0 %v366
  %458 = vmatprep.subr.bf16.mxu0 %v365
  %459 = vmatpush2.bf16.msra.mxu0 %v364
  %460 = vmatprep.subr.bf16.mxu0 %v363
  %461 = vmatpush2.bf16.msra.mxu0 %v362
  %462 = vmatprep.subr.bf16.mxu0 %v361
  %463 = vmatpush2.bf16.msra.mxu0 %v360
  %464 = vmatprep.subr.bf16.mxu0 %v359
  %465 = vmatpush2.bf16.msra.mxu0 %v358
  %466 = vmatprep.subr.bf16.mxu0 %v357
  %467 = vmatpush2.bf16.msra.mxu0 %v356
  %468 = vmatprep.mubr.bf16.mxu0 %v173
  %469 = vmatmul.mubr.bf16.gmra.mxu0 %v172
  %v470 = vpop.f32.mrf.mxu0
  %v471 = vadd.f32 0.0, %v470
  %v472 = vpop.f32.mrf.mxu0
  %v473 = vadd.f32 0.0, %v472
  %v474 = vpop.f32.mrf.mxu0
  %v475 = vadd.f32 0.0, %v474
  %v476 = vpop.f32.mrf.mxu0
  %v477 = vadd.f32 0.0, %v476
  %478 = vmatprep.mubr.bf16.mxu0 %v176
  %479 = vmatmul.mubr.bf16.gmra.mxu0 %v175
  %v480 = vpop.f32.mrf.mxu0
  %v481 = vadd.f32 0.0, %v480
  %v482 = vpop.f32.mrf.mxu0
  %v483 = vadd.f32 0.0, %v482
  %v484 = vpop.f32.mrf.mxu0
  %v485 = vadd.f32 0.0, %v484
  %v486 = vpop.f32.mrf.mxu0
  %v487 = vadd.f32 0.0, %v486
  %488 = vmatprep.mubr.bf16.mxu0 %v179
  %489 = vmatmul.mubr.bf16.gmra.mxu0 %v178
  %v490 = vpop.f32.mrf.mxu0
  %v491 = vadd.f32 0.0, %v490
  %v492 = vpop.f32.mrf.mxu0
  %v493 = vadd.f32 0.0, %v492
  %v494 = vpop.f32.mrf.mxu0
  %v495 = vadd.f32 0.0, %v494
  %v496 = vpop.f32.mrf.mxu0
  %v497 = vadd.f32 0.0, %v496
  %498 = vmatprep.mubr.bf16.mxu0 %v182
  %499 = vmatmul.mubr.bf16.gmra.mxu0 %v181
  %v500 = vpop.f32.mrf.mxu0
  %v501 = vadd.f32 0.0, %v500
  %v502 = vpop.f32.mrf.mxu0
  %v503 = vadd.f32 0.0, %v502
  %v504 = vpop.f32.mrf.mxu0
  %v505 = vadd.f32 0.0, %v504
  %v506 = vpop.f32.mrf.mxu0
  %v507 = vadd.f32 0.0, %v506
  %508 = vdwg.mxu0
  %509 = vmatprep.subr.bf16.mxu0 %v387
  %510 = vmatpush1.bf16.msra.mxu0 %v386
  %511 = vmatprep.subr.bf16.mxu0 %v385
  %512 = vmatpush1.bf16.msra.mxu0 %v384
  %513 = vmatprep.subr.bf16.mxu0 %v383
  %514 = vmatpush1.bf16.msra.mxu0 %v382
  %515 = vmatprep.subr.bf16.mxu0 %v381
  %516 = vmatpush1.bf16.msra.mxu0 %v380
  %517 = vmatprep.subr.bf16.mxu0 %v379
  %518 = vmatpush1.bf16.msra.mxu0 %v378
  %519 = vmatprep.subr.bf16.mxu0 %v377
  %520 = vmatpush1.bf16.msra.mxu0 %v376
  %521 = vmatprep.subr.bf16.mxu0 %v375
  %522 = vmatpush1.bf16.msra.mxu0 %v374
  %523 = vmatprep.subr.bf16.mxu0 %v373
  %524 = vmatpush1.bf16.msra.mxu0 %v372
  %525 = vmatprep.subr.bf16.mxu0 0
  %526 = vmatpush2.bf16.msra.mxu0 0
  %527 = vmatprep.subr.bf16.mxu0 0
  %528 = vmatpush2.bf16.msra.mxu0 0
  %529 = vmatprep.subr.bf16.mxu0 0
  %530 = vmatpush2.bf16.msra.mxu0 0
  %531 = vmatprep.subr.bf16.mxu0 0
  %532 = vmatpush2.bf16.msra.mxu0 0
  %533 = vmatprep.subr.bf16.mxu0 0
  %534 = vmatpush2.bf16.msra.mxu0 0
  %535 = vmatprep.subr.bf16.mxu0 0
  %536 = vmatpush2.bf16.msra.mxu0 0
  %537 = vmatprep.subr.bf16.mxu0 0
  %538 = vmatpush2.bf16.msra.mxu0 0
  %539 = vmatprep.subr.bf16.mxu0 0
  %540 = vmatpush2.bf16.msra.mxu0 0
  %541 = vmatprep.mubr.bf16.mxu0 0
  %542 = vmatmul.mubr.bf16.gmra.mxu0 %v174
  %v543 = vpop.f32.mrf.mxu0
  %v544 = vadd.f32 %v471, %v543
  %v545 = vpop.f32.mrf.mxu0
  %v546 = vadd.f32 %v473, %v545
  %v547 = vpop.f32.mrf.mxu0
  %v548 = vadd.f32 %v475, %v547
  %v549 = vpop.f32.mrf.mxu0
  %v550 = vadd.f32 %v477, %v549
  %551 = vmatprep.mubr.bf16.mxu0 0
  %552 = vmatmul.mubr.bf16.gmra.mxu0 %v177
  %v553 = vpop.f32.mrf.mxu0
  %v554 = vadd.f32 %v481, %v553
  %v555 = vpop.f32.mrf.mxu0
  %v556 = vadd.f32 %v483, %v555
  %v557 = vpop.f32.mrf.mxu0
  %v558 = vadd.f32 %v485, %v557
  %v559 = vpop.f32.mrf.mxu0
  %v560 = vadd.f32 %v487, %v559
  %561 = vmatprep.mubr.bf16.mxu0 0
  %562 = vmatmul.mubr.bf16.gmra.mxu0 %v180
  %v563 = vpop.f32.mrf.mxu0
  %v564 = vadd.f32 %v491, %v563
  %v565 = vpop.f32.mrf.mxu0
  %v566 = vadd.f32 %v493, %v565
  %v567 = vpop.f32.mrf.mxu0
  %v568 = vadd.f32 %v495, %v567
  %v569 = vpop.f32.mrf.mxu0
  %v570 = vadd.f32 %v497, %v569
  %571 = vmatprep.mubr.bf16.mxu0 0
  %572 = vmatmul.mubr.bf16.gmra.mxu0 %v183
  %v573 = vpop.f32.mrf.mxu0
  %v574 = vadd.f32 %v501, %v573
  %v575 = vpop.f32.mrf.mxu0
  %v576 = vadd.f32 %v503, %v575
  %v577 = vpop.f32.mrf.mxu0
  %v578 = vadd.f32 %v505, %v577
  %v579 = vpop.f32.mrf.mxu0
  %v580 = vadd.f32 %v507, %v579
  %581 = vdwg.mxu0
  %v586 = vunpack.c.l.b16 %v15
  %v587 = vunpack.c.h.b16 %v15
  %v588 = vunpack.c.l.b16 %v16
  %v589 = vunpack.c.l.b16 %v17
  %v590 = vunpack.c.h.b16 %v17
  %v591 = vunpack.c.l.b16 %v18
  %v592 = vpack.c.b16 %v589, %v586
  %v593 = vpack.c.b16 %v590, %v587
  %v594 = vpack.c.b16 %v591, %v588
  %v646 = vunpack.c.l.b16 %v31
  %v647 = vunpack.c.h.b16 %v31
  %v648 = vunpack.c.l.b16 %v32
  %v649 = vunpack.c.h.b16 %v32
  %v650 = vunpack.c.l.b16 %v33
  %v651 = vunpack.c.h.b16 %v33
  %v652 = vunpack.c.l.b16 %v34
  %v653 = vunpack.c.h.b16 %v34
  %v654 = vunpack.c.l.b16 %v35
  %v655 = vunpack.c.h.b16 %v35
  %v656 = vunpack.c.l.b16 %v36
  %v657 = vunpack.c.h.b16 %v36
  %v658 = vunpack.c.l.b16 %v37
  %v659 = vunpack.c.h.b16 %v37
  %v660 = vunpack.c.l.b16 %v38
  %v661 = vunpack.c.h.b16 %v38
  %v662 = vunpack.c.l.b16 %v39
  %v663 = vunpack.c.h.b16 %v39
  %v664 = vunpack.c.l.b16 %v40
  %v665 = vunpack.c.h.b16 %v40
  %v666 = vunpack.c.l.b16 %v41
  %v667 = vunpack.c.h.b16 %v41
  %v668 = vunpack.c.l.b16 %v42
  %v669 = vunpack.c.h.b16 %v42
  %v670 = vunpack.c.l.b16 %v43
  %v671 = vunpack.c.h.b16 %v43
  %v672 = vunpack.c.l.b16 %v44
  %v673 = vunpack.c.h.b16 %v44
  %v674 = vunpack.c.l.b16 %v45
  %v675 = vunpack.c.h.b16 %v45
  %v676 = vunpack.c.l.b16 %v46
  %v677 = vunpack.c.h.b16 %v46
  %v678 = vunpack.c.l.b16 %v47
  %v679 = vunpack.c.h.b16 %v47
  %v680 = vunpack.c.l.b16 %v48
  %v681 = vunpack.c.h.b16 %v48
  %v682 = vunpack.c.l.b16 %v49
  %v683 = vunpack.c.h.b16 %v49
  %v684 = vunpack.c.l.b16 %v50
  %v685 = vunpack.c.h.b16 %v50
  %v686 = vunpack.c.l.b16 %v51
  %v687 = vunpack.c.h.b16 %v51
  %v688 = vunpack.c.l.b16 %v52
  %v689 = vunpack.c.h.b16 %v52
  %v690 = vunpack.c.l.b16 %v53
  %v691 = vunpack.c.h.b16 %v53
  %v692 = vunpack.c.l.b16 %v54
  %v693 = vunpack.c.h.b16 %v54
  %v694 = vunpack.c.l.b16 %v55
  %v695 = vunpack.c.h.b16 %v55
  %v696 = vunpack.c.l.b16 %v56
  %v697 = vunpack.c.h.b16 %v56
  %v698 = vunpack.c.l.b16 %v57
  %v699 = vunpack.c.h.b16 %v57
  %v700 = vunpack.c.l.b16 %v58
  %v701 = vunpack.c.h.b16 %v58
  %v702 = vunpack.c.l.b16 %v59
  %v703 = vunpack.c.h.b16 %v59
  %v704 = vunpack.c.l.b16 %v60
  %v705 = vunpack.c.h.b16 %v60
  %v706 = vunpack.c.l.b16 %v61
  %v707 = vunpack.c.h.b16 %v61
  %v708 = vunpack.c.l.b16 %v62
  %v709 = vunpack.c.h.b16 %v62
  %v710 = vunpack.c.l.b16 %v63
  %v711 = vunpack.c.h.b16 %v63
  %v712 = vunpack.c.l.b16 %v64
  %v713 = vunpack.c.h.b16 %v64
  %v714 = vunpack.c.l.b16 %v65
  %v715 = vunpack.c.h.b16 %v65
  %v716 = vunpack.c.l.b16 %v66
  %v717 = vunpack.c.h.b16 %v66
  %v718 = vunpack.c.l.b16 %v67
  %v719 = vunpack.c.h.b16 %v67
  %v720 = vunpack.c.l.b16 %v68
  %v721 = vunpack.c.h.b16 %v68
  %v722 = vunpack.c.l.b16 %v69
  %v723 = vunpack.c.h.b16 %v69
  %v724 = vunpack.c.l.b16 %v70
  %v725 = vunpack.c.h.b16 %v70
  %v726 = vunpack.c.l.b16 %v71
  %v727 = vunpack.c.h.b16 %v71
  %v728 = vunpack.c.l.b16 %v72
  %v729 = vunpack.c.h.b16 %v72
  %v730 = vunpack.c.l.b16 %v73
  %v731 = vunpack.c.h.b16 %v73
  %v732 = vunpack.c.l.b16 %v74
  %v733 = vunpack.c.h.b16 %v74
  %v734 = vunpack.c.l.b16 %v75
  %v735 = vunpack.c.h.b16 %v75
  %v736 = vunpack.c.l.b16 %v76
  %v737 = vunpack.c.h.b16 %v76
  %v738 = vunpack.c.l.b16 %v77
  %v739 = vunpack.c.h.b16 %v77
  %v740 = vunpack.c.l.b16 %v78
  %v741 = vunpack.c.h.b16 %v78
  %v742 = vpack.c.b16 %v648, %v646
  %v743 = vpack.c.b16 %v649, %v647
  %v744 = vpack.c.b16 %v652, %v650
  %v745 = vpack.c.b16 %v653, %v651
  %v746 = vpack.c.b16 %v656, %v654
  %v747 = vpack.c.b16 %v657, %v655
  %v748 = vpack.c.b16 %v660, %v658
  %v749 = vpack.c.b16 %v661, %v659
  %v750 = vpack.c.b16 %v664, %v662
  %v751 = vpack.c.b16 %v665, %v663
  %v752 = vpack.c.b16 %v668, %v666
  %v753 = vpack.c.b16 %v669, %v667
  %v754 = vpack.c.b16 %v672, %v670
  %v755 = vpack.c.b16 %v673, %v671
  %v756 = vpack.c.b16 %v676, %v674
  %v757 = vpack.c.b16 %v677, %v675
  %v758 = vpack.c.b16 %v680, %v678
  %v759 = vpack.c.b16 %v681, %v679
  %v760 = vpack.c.b16 %v684, %v682
  %v761 = vpack.c.b16 %v685, %v683
  %v762 = vpack.c.b16 %v688, %v686
  %v763 = vpack.c.b16 %v689, %v687
  %v764 = vpack.c.b16 %v692, %v690
  %v765 = vpack.c.b16 %v693, %v691
  %v766 = vpack.c.b16 %v696, %v694
  %v767 = vpack.c.b16 %v697, %v695
  %v768 = vpack.c.b16 %v700, %v698
  %v769 = vpack.c.b16 %v701, %v699
  %v770 = vpack.c.b16 %v704, %v702
  %v771 = vpack.c.b16 %v705, %v703
  %v772 = vpack.c.b16 %v708, %v706
  %v773 = vpack.c.b16 %v709, %v707
  %v774 = vpack.c.b16 %v712, %v710
  %v775 = vpack.c.b16 %v713, %v711
  %v776 = vpack.c.b16 %v716, %v714
  %v777 = vpack.c.b16 %v717, %v715
  %v778 = vpack.c.b16 %v720, %v718
  %v779 = vpack.c.b16 %v721, %v719
  %v780 = vpack.c.b16 %v724, %v722
  %v781 = vpack.c.b16 %v725, %v723
  %v782 = vpack.c.b16 %v728, %v726
  %v783 = vpack.c.b16 %v729, %v727
  %v784 = vpack.c.b16 %v732, %v730
  %v785 = vpack.c.b16 %v733, %v731
  %v786 = vpack.c.b16 %v736, %v734
  %v787 = vpack.c.b16 %v737, %v735
  %v788 = vpack.c.b16 %v740, %v738
  %v789 = vpack.c.b16 %v741, %v739
  %838 = vmatprep.subr.bf16.mxu0 %v757
  %839 = vmatpush1.bf16.msra.mxu0 %v756
  %840 = vmatprep.subr.bf16.mxu0 %v755
  %841 = vmatpush1.bf16.msra.mxu0 %v754
  %842 = vmatprep.subr.bf16.mxu0 %v753
  %843 = vmatpush1.bf16.msra.mxu0 %v752
  %844 = vmatprep.subr.bf16.mxu0 %v751
  %845 = vmatpush1.bf16.msra.mxu0 %v750
  %846 = vmatprep.subr.bf16.mxu0 %v749
  %847 = vmatpush1.bf16.msra.mxu0 %v748
  %848 = vmatprep.subr.bf16.mxu0 %v747
  %849 = vmatpush1.bf16.msra.mxu0 %v746
  %850 = vmatprep.subr.bf16.mxu0 %v745
  %851 = vmatpush1.bf16.msra.mxu0 %v744
  %852 = vmatprep.subr.bf16.mxu0 %v743
  %853 = vmatpush1.bf16.msra.mxu0 %v742
  %854 = vmatprep.subr.bf16.mxu0 %v773
  %855 = vmatpush2.bf16.msra.mxu0 %v772
  %856 = vmatprep.subr.bf16.mxu0 %v771
  %857 = vmatpush2.bf16.msra.mxu0 %v770
  %858 = vmatprep.subr.bf16.mxu0 %v769
  %859 = vmatpush2.bf16.msra.mxu0 %v768
  %860 = vmatprep.subr.bf16.mxu0 %v767
  %861 = vmatpush2.bf16.msra.mxu0 %v766
  %862 = vmatprep.subr.bf16.mxu0 %v765
  %863 = vmatpush2.bf16.msra.mxu0 %v764
  %864 = vmatprep.subr.bf16.mxu0 %v763
  %865 = vmatpush2.bf16.msra.mxu0 %v762
  %866 = vmatprep.subr.bf16.mxu0 %v761
  %867 = vmatpush2.bf16.msra.mxu0 %v760
  %868 = vmatprep.subr.bf16.mxu0 %v759
  %869 = vmatpush2.bf16.msra.mxu0 %v758
  %870 = vmatprep.mubr.bf16.mxu0 %v593
  %871 = vmatmul.mubr.bf16.gmra.mxu0 %v592
  %v872 = vpop.f32.mrf.mxu0
  %v873 = vadd.f32 %v544, %v872
  %v874 = vpop.f32.mrf.mxu0
  %v875 = vadd.f32 %v546, %v874
  %v876 = vpop.f32.mrf.mxu0
  %v877 = vadd.f32 %v548, %v876
  %v878 = vpop.f32.mrf.mxu0
  %v879 = vadd.f32 %v550, %v878
  %880 = vmatprep.mubr.bf16.mxu0 %v173
  %881 = vmatmul.mubr.bf16.gmra.mxu0 %v172
  %v882 = vpop.f32.mrf.mxu0
  %v883 = vadd.f32 %v554, %v882
  %v884 = vpop.f32.mrf.mxu0
  %v885 = vadd.f32 %v556, %v884
  %v886 = vpop.f32.mrf.mxu0
  %v887 = vadd.f32 %v558, %v886
  %v888 = vpop.f32.mrf.mxu0
  %v889 = vadd.f32 %v560, %v888
  %890 = vmatprep.mubr.bf16.mxu0 %v176
  %891 = vmatmul.mubr.bf16.gmra.mxu0 %v175
  %v892 = vpop.f32.mrf.mxu0
  %v893 = vadd.f32 %v564, %v892
  %v894 = vpop.f32.mrf.mxu0
  %v895 = vadd.f32 %v566, %v894
  %v896 = vpop.f32.mrf.mxu0
  %v897 = vadd.f32 %v568, %v896
  %v898 = vpop.f32.mrf.mxu0
  %v899 = vadd.f32 %v570, %v898
  %900 = vmatprep.mubr.bf16.mxu0 %v179
  %901 = vmatmul.mubr.bf16.gmra.mxu0 %v178
  %v902 = vpop.f32.mrf.mxu0
  %v903 = vadd.f32 %v574, %v902
  %v904 = vpop.f32.mrf.mxu0
  %v905 = vadd.f32 %v576, %v904
  %v906 = vpop.f32.mrf.mxu0
  %v907 = vadd.f32 %v578, %v906
  %v908 = vpop.f32.mrf.mxu0
  %v909 = vadd.f32 %v580, %v908
  %910 = vdwg.mxu0
  %911 = vmatprep.subr.bf16.mxu0 %v789
  %912 = vmatpush1.bf16.msra.mxu0 %v788
  %913 = vmatprep.subr.bf16.mxu0 %v787
  %914 = vmatpush1.bf16.msra.mxu0 %v786
  %915 = vmatprep.subr.bf16.mxu0 %v785
  %916 = vmatpush1.bf16.msra.mxu0 %v784
  %917 = vmatprep.subr.bf16.mxu0 %v783
  %918 = vmatpush1.bf16.msra.mxu0 %v782
  %919 = vmatprep.subr.bf16.mxu0 %v781
  %920 = vmatpush1.bf16.msra.mxu0 %v780
  %921 = vmatprep.subr.bf16.mxu0 %v779
  %922 = vmatpush1.bf16.msra.mxu0 %v778
  %923 = vmatprep.subr.bf16.mxu0 %v777
  %924 = vmatpush1.bf16.msra.mxu0 %v776
  %925 = vmatprep.subr.bf16.mxu0 %v775
  %926 = vmatpush1.bf16.msra.mxu0 %v774
  %927 = vmatprep.subr.bf16.mxu0 0
  %928 = vmatpush2.bf16.msra.mxu0 0
  %929 = vmatprep.subr.bf16.mxu0 0
  %930 = vmatpush2.bf16.msra.mxu0 0
  %931 = vmatprep.subr.bf16.mxu0 0
  %932 = vmatpush2.bf16.msra.mxu0 0
  %933 = vmatprep.subr.bf16.mxu0 0
  %934 = vmatpush2.bf16.msra.mxu0 0
  %935 = vmatprep.subr.bf16.mxu0 0
  %936 = vmatpush2.bf16.msra.mxu0 0
  %937 = vmatprep.subr.bf16.mxu0 0
  %938 = vmatpush2.bf16.msra.mxu0 0
  %939 = vmatprep.subr.bf16.mxu0 0
  %940 = vmatpush2.bf16.msra.mxu0 0
  %941 = vmatprep.subr.bf16.mxu0 0
  %942 = vmatpush2.bf16.msra.mxu0 0
  %943 = vmatprep.mubr.bf16.mxu0 0
  %944 = vmatmul.mubr.bf16.gmra.mxu0 %v594
  %v945 = vpop.f32.mrf.mxu0
  %v946 = vadd.f32 %v873, %v945
  %v947 = vpop.f32.mrf.mxu0
  %v948 = vadd.f32 %v875, %v947
  %v949 = vpop.f32.mrf.mxu0
  %v950 = vadd.f32 %v877, %v949
  %v951 = vpop.f32.mrf.mxu0
  %v952 = vadd.f32 %v879, %v951
  %953 = vmatprep.mubr.bf16.mxu0 0
  %954 = vmatmul.mubr.bf16.gmra.mxu0 %v174
  %v955 = vpop.f32.mrf.mxu0
  %v956 = vadd.f32 %v883, %v955
  %v957 = vpop.f32.mrf.mxu0
  %v958 = vadd.f32 %v885, %v957
  %v959 = vpop.f32.mrf.mxu0
  %v960 = vadd.f32 %v887, %v959
  %v961 = vpop.f32.mrf.mxu0
  %v962 = vadd.f32 %v889, %v961
  %963 = vmatprep.mubr.bf16.mxu0 0
  %964 = vmatmul.mubr.bf16.gmra.mxu0 %v177
  %v965 = vpop.f32.mrf.mxu0
  %v966 = vadd.f32 %v893, %v965
  %v967 = vpop.f32.mrf.mxu0
  %v968 = vadd.f32 %v895, %v967
  %v969 = vpop.f32.mrf.mxu0
  %v970 = vadd.f32 %v897, %v969
  %v971 = vpop.f32.mrf.mxu0
  %v972 = vadd.f32 %v899, %v971
  %973 = vmatprep.mubr.bf16.mxu0 0
  %974 = vmatmul.mubr.bf16.gmra.mxu0 %v180
  %v975 = vpop.f32.mrf.mxu0
  %v976 = vadd.f32 %v903, %v975
  %v977 = vpop.f32.mrf.mxu0
  %v978 = vadd.f32 %v905, %v977
  %v979 = vpop.f32.mrf.mxu0
  %v980 = vadd.f32 %v907, %v979
  %v981 = vpop.f32.mrf.mxu0
  %v982 = vadd.f32 %v909, %v981
  %983 = vdwg.mxu0
  %v984 = vld [vmem:[%s0 + $0x30] sm:$0xff]
  %v985 = vld [vmem:[%s0 + $0x38] sm:$0xf]
  %v986 = vld [vmem:[%s0 + $0x3c] sm:$0xff]
  %v987 = vld [vmem:[%s0 + $0x44] sm:$0xf]
  %v988 = vld [vmem:[%s0 + $0x48] sm:$0xff]
  %v989 = vld [vmem:[%s0 + $0x50] sm:$0xf]
  %v990 = vld [vmem:[%s0 + $0x54] sm:$0xff]
  %v991 = vld [vmem:[%s0 + $0x5c] sm:$0xf]
  %v992 = vld [vmem:[%s0 + $0x60] sm:$0xff]
  %v993 = vld [vmem:[%s0 + $0x68] sm:$0xf]
  %v994 = vld [vmem:[%s0 + $0x6c] sm:$0xff]
  %v995 = vld [vmem:[%s0 + $0x74] sm:$0xf]
  %v996 = vld [vmem:[%s0 + $0x78] sm:$0xff]
  %v997 = vld [vmem:[%s0 + $0x80] sm:$0xf]
  %v998 = vld [vmem:[%s0 + $0x84] sm:$0xff]
  %v999 = vld [vmem:[%s0 + $0x8c] sm:$0xf]
  %s1000 = scalar_lea.vmem %s1, 768
  %v1001 = vld [vmem:[%s1000] sm:$0xff]
  %v1002 = vld [vmem:[%s1000 + $0x8] sm:$0xff]
  %v1003 = vld [vmem:[%s1000 + $0x10] sm:$0xff]
  %v1004 = vld [vmem:[%s1000 + $0x18] sm:$0xff]
  %v1005 = vld [vmem:[%s1000 + $0x20] sm:$0xff]
  %v1006 = vld [vmem:[%s1000 + $0x28] sm:$0xff]
  %v1007 = vld [vmem:[%s1000 + $0x30] sm:$0xff]
  %v1008 = vld [vmem:[%s1000 + $0x38] sm:$0xff]
  %v1009 = vld [vmem:[%s1000 + $0x40] sm:$0xff]
  %v1010 = vld [vmem:[%s1000 + $0x48] sm:$0xff]
  %v1011 = vld [vmem:[%s1000 + $0x50] sm:$0xff]
  %v1012 = vld [vmem:[%s1000 + $0x58] sm:$0xff]
  %v1013 = vld [vmem:[%s1000 + $0x60] sm:$0xff]
  %v1014 = vld [vmem:[%s1000 + $0x68] sm:$0xff]
  %v1015 = vld [vmem:[%s1000 + $0x70] sm:$0xff]
  %v1016 = vld [vmem:[%s1000 + $0x78] sm:$0xff]
  %v1017 = vld [vmem:[%s1000 + $0x80] sm:$0xff]
  %v1018 = vld [vmem:[%s1000 + $0x88] sm:$0xff]
  %v1019 = vld [vmem:[%s1000 + $0x90] sm:$0xff]
  %v1020 = vld [vmem:[%s1000 + $0x98] sm:$0xff]
  %v1021 = vld [vmem:[%s1000 + $0xa0] sm:$0xff]
  %v1022 = vld [vmem:[%s1000 + $0xa8] sm:$0xff]
  %v1023 = vld [vmem:[%s1000 + $0xb0] sm:$0xff]
  %v1024 = vld [vmem:[%s1000 + $0xb8] sm:$0xff]
  %v1025 = vld [vmem:[%s1000 + $0xc0] sm:$0xff]
  %v1026 = vld [vmem:[%s1000 + $0xc8] sm:$0xff]
  %v1027 = vld [vmem:[%s1000 + $0xd0] sm:$0xff]
  %v1028 = vld [vmem:[%s1000 + $0xd8] sm:$0xff]
  %v1029 = vld [vmem:[%s1000 + $0xe0] sm:$0xff]
  %v1030 = vld [vmem:[%s1000 + $0xe8] sm:$0xff]
  %v1031 = vld [vmem:[%s1000 + $0xf0] sm:$0xff]
  %v1032 = vld [vmem:[%s1000 + $0xf8] sm:$0xff]
  %v1033 = vld [vmem:[%s1000 + $0x100] sm:$0xff]
  %v1034 = vld [vmem:[%s1000 + $0x108] sm:$0xff]
  %v1035 = vld [vmem:[%s1000 + $0x110] sm:$0xff]
  %v1036 = vld [vmem:[%s1000 + $0x118] sm:$0xff]
  %v1037 = vld [vmem:[%s1000 + $0x120] sm:$0xff]
  %v1038 = vld [vmem:[%s1000 + $0x128] sm:$0xff]
  %v1039 = vld [vmem:[%s1000 + $0x130] sm:$0xff]
  %v1040 = vld [vmem:[%s1000 + $0x138] sm:$0xff]
  %v1041 = vld [vmem:[%s1000 + $0x140] sm:$0xff]
  %v1042 = vld [vmem:[%s1000 + $0x148] sm:$0xff]
  %v1043 = vld [vmem:[%s1000 + $0x150] sm:$0xff]
  %v1044 = vld [vmem:[%s1000 + $0x158] sm:$0xff]
  %v1045 = vld [vmem:[%s1000 + $0x160] sm:$0xff]
  %v1046 = vld [vmem:[%s1000 + $0x168] sm:$0xff]
  %v1047 = vld [vmem:[%s1000 + $0x170] sm:$0xff]
  %v1048 = vld [vmem:[%s1000 + $0x178] sm:$0xff]
  %v1065 = vunpack.c.l.b16 %v984
  %v1066 = vunpack.c.h.b16 %v984
  %v1067 = vunpack.c.l.b16 %v985
  %v1068 = vunpack.c.l.b16 %v986
  %v1069 = vunpack.c.h.b16 %v986
  %v1070 = vunpack.c.l.b16 %v987
  %v1071 = vunpack.c.l.b16 %v988
  %v1072 = vunpack.c.h.b16 %v988
  %v1073 = vunpack.c.l.b16 %v989
  %v1074 = vunpack.c.l.b16 %v990
  %v1075 = vunpack.c.h.b16 %v990
  %v1076 = vunpack.c.l.b16 %v991
  %v1077 = vunpack.c.l.b16 %v992
  %v1078 = vunpack.c.h.b16 %v992
  %v1079 = vunpack.c.l.b16 %v993
  %v1080 = vunpack.c.l.b16 %v994
  %v1081 = vunpack.c.h.b16 %v994
  %v1082 = vunpack.c.l.b16 %v995
  %v1083 = vunpack.c.l.b16 %v996
  %v1084 = vunpack.c.h.b16 %v996
  %v1085 = vunpack.c.l.b16 %v997
  %v1086 = vunpack.c.l.b16 %v998
  %v1087 = vunpack.c.h.b16 %v998
  %v1088 = vunpack.c.l.b16 %v999
  %v1089 = vpack.c.b16 %v1068, %v1065
  %v1090 = vpack.c.b16 %v1069, %v1066
  %v1091 = vpack.c.b16 %v1070, %v1067
  %v1092 = vpack.c.b16 %v1074, %v1071
  %v1093 = vpack.c.b16 %v1075, %v1072
  %v1094 = vpack.c.b16 %v1076, %v1073
  %v1095 = vpack.c.b16 %v1080, %v1077
  %v1096 = vpack.c.b16 %v1081, %v1078
  %v1097 = vpack.c.b16 %v1082, %v1079
  %v1098 = vpack.c.b16 %v1086, %v1083
  %v1099 = vpack.c.b16 %v1087, %v1084
  %v1100 = vpack.c.b16 %v1088, %v1085
  %v1161 = vunpack.c.l.b16 %v1001
  %v1162 = vunpack.c.h.b16 %v1001
  %v1163 = vunpack.c.l.b16 %v1002
  %v1164 = vunpack.c.h.b16 %v1002
  %v1165 = vunpack.c.l.b16 %v1003
  %v1166 = vunpack.c.h.b16 %v1003
  %v1167 = vunpack.c.l.b16 %v1004
  %v1168 = vunpack.c.h.b16 %v1004
  %v1169 = vunpack.c.l.b16 %v1005
  %v1170 = vunpack.c.h.b16 %v1005
  %v1171 = vunpack.c.l.b16 %v1006
  %v1172 = vunpack.c.h.b16 %v1006
  %v1173 = vunpack.c.l.b16 %v1007
  %v1174 = vunpack.c.h.b16 %v1007
  %v1175 = vunpack.c.l.b16 %v1008
  %v1176 = vunpack.c.h.b16 %v1008
  %v1177 = vunpack.c.l.b16 %v1009
  %v1178 = vunpack.c.h.b16 %v1009
  %v1179 = vunpack.c.l.b16 %v1010
  %v1180 = vunpack.c.h.b16 %v1010
  %v1181 = vunpack.c.l.b16 %v1011
  %v1182 = vunpack.c.h.b16 %v1011
  %v1183 = vunpack.c.l.b16 %v1012
  %v1184 = vunpack.c.h.b16 %v1012
  %v1185 = vunpack.c.l.b16 %v1013
  %v1186 = vunpack.c.h.b16 %v1013
  %v1187 = vunpack.c.l.b16 %v1014
  %v1188 = vunpack.c.h.b16 %v1014
  %v1189 = vunpack.c.l.b16 %v1015
  %v1190 = vunpack.c.h.b16 %v1015
  %v1191 = vunpack.c.l.b16 %v1016
  %v1192 = vunpack.c.h.b16 %v1016
  %v1193 = vunpack.c.l.b16 %v1017
  %v1194 = vunpack.c.h.b16 %v1017
  %v1195 = vunpack.c.l.b16 %v1018
  %v1196 = vunpack.c.h.b16 %v1018
  %v1197 = vunpack.c.l.b16 %v1019
  %v1198 = vunpack.c.h.b16 %v1019
  %v1199 = vunpack.c.l.b16 %v1020
  %v1200 = vunpack.c.h.b16 %v1020
  %v1201 = vunpack.c.l.b16 %v1021
  %v1202 = vunpack.c.h.b16 %v1021
  %v1203 = vunpack.c.l.b16 %v1022
  %v1204 = vunpack.c.h.b16 %v1022
  %v1205 = vunpack.c.l.b16 %v1023
  %v1206 = vunpack.c.h.b16 %v1023
  %v1207 = vunpack.c.l.b16 %v1024
  %v1208 = vunpack.c.h.b16 %v1024
  %v1209 = vunpack.c.l.b16 %v1025
  %v1210 = vunpack.c.h.b16 %v1025
  %v1211 = vunpack.c.l.b16 %v1026
  %v1212 = vunpack.c.h.b16 %v1026
  %v1213 = vunpack.c.l.b16 %v1027
  %v1214 = vunpack.c.h.b16 %v1027
  %v1215 = vunpack.c.l.b16 %v1028
  %v1216 = vunpack.c.h.b16 %v1028
  %v1217 = vunpack.c.l.b16 %v1029
  %v1218 = vunpack.c.h.b16 %v1029
  %v1219 = vunpack.c.l.b16 %v1030
  %v1220 = vunpack.c.h.b16 %v1030
  %v1221 = vunpack.c.l.b16 %v1031
  %v1222 = vunpack.c.h.b16 %v1031
  %v1223 = vunpack.c.l.b16 %v1032
  %v1224 = vunpack.c.h.b16 %v1032
  %v1225 = vunpack.c.l.b16 %v1033
  %v1226 = vunpack.c.h.b16 %v1033
  %v1227 = vunpack.c.l.b16 %v1034
  %v1228 = vunpack.c.h.b16 %v1034
  %v1229 = vunpack.c.l.b16 %v1035
  %v1230 = vunpack.c.h.b16 %v1035
  %v1231 = vunpack.c.l.b16 %v1036
  %v1232 = vunpack.c.h.b16 %v1036
  %v1233 = vunpack.c.l.b16 %v1037
  %v1234 = vunpack.c.h.b16 %v1037
  %v1235 = vunpack.c.l.b16 %v1038
  %v1236 = vunpack.c.h.b16 %v1038
  %v1237 = vunpack.c.l.b16 %v1039
  %v1238 = vunpack.c.h.b16 %v1039
  %v1239 = vunpack.c.l.b16 %v1040
  %v1240 = vunpack.c.h.b16 %v1040
  %v1241 = vunpack.c.l.b16 %v1041
  %v1242 = vunpack.c.h.b16 %v1041
  %v1243 = vunpack.c.l.b16 %v1042
  %v1244 = vunpack.c.h.b16 %v1042
  %v1245 = vunpack.c.l.b16 %v1043
  %v1246 = vunpack.c.h.b16 %v1043
  %v1247 = vunpack.c.l.b16 %v1044
  %v1248 = vunpack.c.h.b16 %v1044
  %v1249 = vunpack.c.l.b16 %v1045
  %v1250 = vunpack.c.h.b16 %v1045
  %v1251 = vunpack.c.l.b16 %v1046
  %v1252 = vunpack.c.h.b16 %v1046
  %v1253 = vunpack.c.l.b16 %v1047
  %v1254 = vunpack.c.h.b16 %v1047
  %v1255 = vunpack.c.l.b16 %v1048
  %v1256 = vunpack.c.h.b16 %v1048
  %v1257 = vpack.c.b16 %v1163, %v1161
  %v1258 = vpack.c.b16 %v1164, %v1162
  %v1259 = vpack.c.b16 %v1167, %v1165
  %v1260 = vpack.c.b16 %v1168, %v1166
  %v1261 = vpack.c.b16 %v1171, %v1169
  %v1262 = vpack.c.b16 %v1172, %v1170
  %v1263 = vpack.c.b16 %v1175, %v1173
  %v1264 = vpack.c.b16 %v1176, %v1174
  %v1265 = vpack.c.b16 %v1179, %v1177
  %v1266 = vpack.c.b16 %v1180, %v1178
  %v1267 = vpack.c.b16 %v1183, %v1181
  %v1268 = vpack.c.b16 %v1184, %v1182
  %v1269 = vpack.c.b16 %v1187, %v1185
  %v1270 = vpack.c.b16 %v1188, %v1186
  %v1271 = vpack.c.b16 %v1191, %v1189
  %v1272 = vpack.c.b16 %v1192, %v1190
  %v1273 = vpack.c.b16 %v1195, %v1193
  %v1274 = vpack.c.b16 %v1196, %v1194
  %v1275 = vpack.c.b16 %v1199, %v1197
  %v1276 = vpack.c.b16 %v1200, %v1198
  %v1277 = vpack.c.b16 %v1203, %v1201
  %v1278 = vpack.c.b16 %v1204, %v1202
  %v1279 = vpack.c.b16 %v1207, %v1205
  %v1280 = vpack.c.b16 %v1208, %v1206
  %v1281 = vpack.c.b16 %v1211, %v1209
  %v1282 = vpack.c.b16 %v1212, %v1210
  %v1283 = vpack.c.b16 %v1215, %v1213
  %v1284 = vpack.c.b16 %v1216, %v1214
  %v1285 = vpack.c.b16 %v1219, %v1217
  %v1286 = vpack.c.b16 %v1220, %v1218
  %v1287 = vpack.c.b16 %v1223, %v1221
  %v1288 = vpack.c.b16 %v1224, %v1222
  %v1289 = vpack.c.b16 %v1227, %v1225
  %v1290 = vpack.c.b16 %v1228, %v1226
  %v1291 = vpack.c.b16 %v1231, %v1229
  %v1292 = vpack.c.b16 %v1232, %v1230
  %v1293 = vpack.c.b16 %v1235, %v1233
  %v1294 = vpack.c.b16 %v1236, %v1234
  %v1295 = vpack.c.b16 %v1239, %v1237
  %v1296 = vpack.c.b16 %v1240, %v1238
  %v1297 = vpack.c.b16 %v1243, %v1241
  %v1298 = vpack.c.b16 %v1244, %v1242
  %v1299 = vpack.c.b16 %v1247, %v1245
  %v1300 = vpack.c.b16 %v1248, %v1246
  %v1301 = vpack.c.b16 %v1251, %v1249
  %v1302 = vpack.c.b16 %v1252, %v1250
  %v1303 = vpack.c.b16 %v1255, %v1253
  %v1304 = vpack.c.b16 %v1256, %v1254
  %1353 = vmatprep.subr.bf16.mxu0 %v1272
  %1354 = vmatpush1.bf16.msra.mxu0 %v1271
  %1355 = vmatprep.subr.bf16.mxu0 %v1270
  %1356 = vmatpush1.bf16.msra.mxu0 %v1269
  %1357 = vmatprep.subr.bf16.mxu0 %v1268
  %1358 = vmatpush1.bf16.msra.mxu0 %v1267
  %1359 = vmatprep.subr.bf16.mxu0 %v1266
  %1360 = vmatpush1.bf16.msra.mxu0 %v1265
  %1361 = vmatprep.subr.bf16.mxu0 %v1264
  %1362 = vmatpush1.bf16.msra.mxu0 %v1263
  %1363 = vmatprep.subr.bf16.mxu0 %v1262
  %1364 = vmatpush1.bf16.msra.mxu0 %v1261
  %1365 = vmatprep.subr.bf16.mxu0 %v1260
  %1366 = vmatpush1.bf16.msra.mxu0 %v1259
  %1367 = vmatprep.subr.bf16.mxu0 %v1258
  %1368 = vmatpush1.bf16.msra.mxu0 %v1257
  %1369 = vmatprep.subr.bf16.mxu0 %v1288
  %1370 = vmatpush2.bf16.msra.mxu0 %v1287
  %1371 = vmatprep.subr.bf16.mxu0 %v1286
  %1372 = vmatpush2.bf16.msra.mxu0 %v1285
  %1373 = vmatprep.subr.bf16.mxu0 %v1284
  %1374 = vmatpush2.bf16.msra.mxu0 %v1283
  %1375 = vmatprep.subr.bf16.mxu0 %v1282
  %1376 = vmatpush2.bf16.msra.mxu0 %v1281
  %1377 = vmatprep.subr.bf16.mxu0 %v1280
  %1378 = vmatpush2.bf16.msra.mxu0 %v1279
  %1379 = vmatprep.subr.bf16.mxu0 %v1278
  %1380 = vmatpush2.bf16.msra.mxu0 %v1277
  %1381 = vmatprep.subr.bf16.mxu0 %v1276
  %1382 = vmatpush2.bf16.msra.mxu0 %v1275
  %1383 = vmatprep.subr.bf16.mxu0 %v1274
  %1384 = vmatpush2.bf16.msra.mxu0 %v1273
  %1385 = vmatprep.mubr.bf16.mxu0 %v1090
  %1386 = vmatmul.mubr.bf16.gmra.mxu0 %v1089
  %v1387 = vpop.f32.mrf.mxu0
  %v1388 = vadd.f32 0.0, %v1387
  %v1389 = vpop.f32.mrf.mxu0
  %v1390 = vadd.f32 0.0, %v1389
  %v1391 = vpop.f32.mrf.mxu0
  %v1392 = vadd.f32 0.0, %v1391
  %v1393 = vpop.f32.mrf.mxu0
  %v1394 = vadd.f32 0.0, %v1393
  %1395 = vmatprep.mubr.bf16.mxu0 %v1093
  %1396 = vmatmul.mubr.bf16.gmra.mxu0 %v1092
  %v1397 = vpop.f32.mrf.mxu0
  %v1398 = vadd.f32 0.0, %v1397
  %v1399 = vpop.f32.mrf.mxu0
  %v1400 = vadd.f32 0.0, %v1399
  %v1401 = vpop.f32.mrf.mxu0
  %v1402 = vadd.f32 0.0, %v1401
  %v1403 = vpop.f32.mrf.mxu0
  %v1404 = vadd.f32 0.0, %v1403
  %1405 = vmatprep.mubr.bf16.mxu0 %v1096
  %1406 = vmatmul.mubr.bf16.gmra.mxu0 %v1095
  %v1407 = vpop.f32.mrf.mxu0
  %v1408 = vadd.f32 0.0, %v1407
  %v1409 = vpop.f32.mrf.mxu0
  %v1410 = vadd.f32 0.0, %v1409
  %v1411 = vpop.f32.mrf.mxu0
  %v1412 = vadd.f32 0.0, %v1411
  %v1413 = vpop.f32.mrf.mxu0
  %v1414 = vadd.f32 0.0, %v1413
  %1415 = vmatprep.mubr.bf16.mxu0 %v1099
  %1416 = vmatmul.mubr.bf16.gmra.mxu0 %v1098
  %v1417 = vpop.f32.mrf.mxu0
  %v1418 = vadd.f32 0.0, %v1417
  %v1419 = vpop.f32.mrf.mxu0
  %v1420 = vadd.f32 0.0, %v1419
  %v1421 = vpop.f32.mrf.mxu0
  %v1422 = vadd.f32 0.0, %v1421
  %v1423 = vpop.f32.mrf.mxu0
  %v1424 = vadd.f32 0.0, %v1423
  %1425 = vdwg.mxu0
  %1426 = vmatprep.subr.bf16.mxu0 %v1304
  %1427 = vmatpush1.bf16.msra.mxu0 %v1303
  %1428 = vmatprep.subr.bf16.mxu0 %v1302
  %1429 = vmatpush1.bf16.msra.mxu0 %v1301
  %1430 = vmatprep.subr.bf16.mxu0 %v1300
  %1431 = vmatpush1.bf16.msra.mxu0 %v1299
  %1432 = vmatprep.subr.bf16.mxu0 %v1298
  %1433 = vmatpush1.bf16.msra.mxu0 %v1297
  %1434 = vmatprep.subr.bf16.mxu0 %v1296
  %1435 = vmatpush1.bf16.msra.mxu0 %v1295
  %1436 = vmatprep.subr.bf16.mxu0 %v1294
  %1437 = vmatpush1.bf16.msra.mxu0 %v1293
  %1438 = vmatprep.subr.bf16.mxu0 %v1292
  %1439 = vmatpush1.bf16.msra.mxu0 %v1291
  %1440 = vmatprep.subr.bf16.mxu0 %v1290
  %1441 = vmatpush1.bf16.msra.mxu0 %v1289
  %1442 = vmatprep.subr.bf16.mxu0 0
  %1443 = vmatpush2.bf16.msra.mxu0 0
  %1444 = vmatprep.subr.bf16.mxu0 0
  %1445 = vmatpush2.bf16.msra.mxu0 0
  %1446 = vmatprep.subr.bf16.mxu0 0
  %1447 = vmatpush2.bf16.msra.mxu0 0
  %1448 = vmatprep.subr.bf16.mxu0 0
  %1449 = vmatpush2.bf16.msra.mxu0 0
  %1450 = vmatprep.subr.bf16.mxu0 0
  %1451 = vmatpush2.bf16.msra.mxu0 0
  %1452 = vmatprep.subr.bf16.mxu0 0
  %1453 = vmatpush2.bf16.msra.mxu0 0
  %1454 = vmatprep.subr.bf16.mxu0 0
  %1455 = vmatpush2.bf16.msra.mxu0 0
  %1456 = vmatprep.subr.bf16.mxu0 0
  %1457 = vmatpush2.bf16.msra.mxu0 0
  %1458 = vmatprep.mubr.bf16.mxu0 0
  %1459 = vmatmul.mubr.bf16.gmra.mxu0 %v1091
  %v1460 = vpop.f32.mrf.mxu0
  %v1461 = vadd.f32 %v1388, %v1460
  %v1462 = vpop.f32.mrf.mxu0
  %v1463 = vadd.f32 %v1390, %v1462
  %v1464 = vpop.f32.mrf.mxu0
  %v1465 = vadd.f32 %v1392, %v1464
  %v1466 = vpop.f32.mrf.mxu0
  %v1467 = vadd.f32 %v1394, %v1466
  %1468 = vmatprep.mubr.bf16.mxu0 0
  %1469 = vmatmul.mubr.bf16.gmra.mxu0 %v1094
  %v1470 = vpop.f32.mrf.mxu0
  %v1471 = vadd.f32 %v1398, %v1470
  %v1472 = vpop.f32.mrf.mxu0
  %v1473 = vadd.f32 %v1400, %v1472
  %v1474 = vpop.f32.mrf.mxu0
  %v1475 = vadd.f32 %v1402, %v1474
  %v1476 = vpop.f32.mrf.mxu0
  %v1477 = vadd.f32 %v1404, %v1476
  %1478 = vmatprep.mubr.bf16.mxu0 0
  %1479 = vmatmul.mubr.bf16.gmra.mxu0 %v1097
  %v1480 = vpop.f32.mrf.mxu0
  %v1481 = vadd.f32 %v1408, %v1480
  %v1482 = vpop.f32.mrf.mxu0
  %v1483 = vadd.f32 %v1410, %v1482
  %v1484 = vpop.f32.mrf.mxu0
  %v1485 = vadd.f32 %v1412, %v1484
  %v1486 = vpop.f32.mrf.mxu0
  %v1487 = vadd.f32 %v1414, %v1486
  %1488 = vmatprep.mubr.bf16.mxu0 0
  %1489 = vmatmul.mubr.bf16.gmra.mxu0 %v1100
  %v1490 = vpop.f32.mrf.mxu0
  %v1491 = vadd.f32 %v1418, %v1490
  %v1492 = vpop.f32.mrf.mxu0
  %v1493 = vadd.f32 %v1420, %v1492
  %v1494 = vpop.f32.mrf.mxu0
  %v1495 = vadd.f32 %v1422, %v1494
  %v1496 = vpop.f32.mrf.mxu0
  %v1497 = vadd.f32 %v1424, %v1496
  %1498 = vdwg.mxu0
  %v1499 = vadd.f32 %v946, %v1461
  %v1500 = vadd.f32 %v948, %v1463
  %v1501 = vadd.f32 %v950, %v1465
  %v1502 = vadd.f32 %v952, %v1467
  %v1503 = vadd.f32 %v956, %v1471
  %v1504 = vadd.f32 %v958, %v1473
  %v1505 = vadd.f32 %v960, %v1475
  %v1506 = vadd.f32 %v962, %v1477
  %v1507 = vadd.f32 %v966, %v1481
  %v1508 = vadd.f32 %v968, %v1483
  %v1509 = vadd.f32 %v970, %v1485
  %v1510 = vadd.f32 %v972, %v1487
  %v1511 = vadd.f32 %v976, %v1491
  %v1512 = vadd.f32 %v978, %v1493
  %v1513 = vadd.f32 %v980, %v1495
  %v1514 = vadd.f32 %v982, %v1497
  %v1515 = vld [vmem:[%s2] sm:$0x3]
  %v1517 = vlaneseq
  %v1518 = vshrl.u32 %v1517, 7
  %v1519 = vsub.s32 0, %v1518
  %v1520 = vrot.slane %v1515, %v1519
  %v1521 = vlaneseq
  %v1522 = vshrl.u32 %v1521, 7
  %v1523 = vsub.s32 1, %v1522
  %v1524 = vrot.slane %v1515, %v1523
  %v1527 = vadd.f32 %v1499, %v1520
  %v1528 = vadd.f32 %v1500, %v1524
  %v1529 = vadd.f32 %v1501, %v1520
  %v1530 = vadd.f32 %v1502, %v1524
  %v1531 = vadd.f32 %v1503, %v1520
  %v1532 = vadd.f32 %v1504, %v1524
  %v1533 = vadd.f32 %v1505, %v1520
  %v1534 = vadd.f32 %v1506, %v1524
  %v1535 = vadd.f32 %v1507, %v1520
  %v1536 = vadd.f32 %v1508, %v1524
  %v1537 = vadd.f32 %v1509, %v1520
  %v1538 = vadd.f32 %v1510, %v1524
  %v1539 = vadd.f32 %v1511, %v1520
  %v1540 = vadd.f32 %v1512, %v1524
  %v1541 = vadd.f32 %v1513, %v1520
  %v1542 = vadd.f32 %v1514, %v1524
  %v1543 = vmax.f32 %v1527, 0.0
  %v1544 = vmax.f32 %v1528, 0.0
  %v1545 = vmax.f32 %v1529, 0.0
  %v1546 = vmax.f32 %v1530, 0.0
  %v1547 = vmax.f32 %v1531, 0.0
  %v1548 = vmax.f32 %v1532, 0.0
  %v1549 = vmax.f32 %v1533, 0.0
  %v1550 = vmax.f32 %v1534, 0.0
  %v1551 = vmax.f32 %v1535, 0.0
  %v1552 = vmax.f32 %v1536, 0.0
  %v1553 = vmax.f32 %v1537, 0.0
  %v1554 = vmax.f32 %v1538, 0.0
  %v1555 = vmax.f32 %v1539, 0.0
  %v1556 = vmax.f32 %v1540, 0.0
  %v1557 = vmax.f32 %v1541, 0.0
  %v1558 = vmax.f32 %v1542, 0.0
  %v1559 = vpack.c.bf16 %v1545, %v1543
  %v1560 = vpack.c.bf16 %v1546, %v1544
  %v1561 = vpack.c.bf16 %v1549, %v1547
  %v1562 = vpack.c.bf16 %v1550, %v1548
  %v1563 = vpack.c.bf16 %v1553, %v1551
  %v1564 = vpack.c.bf16 %v1554, %v1552
  %v1565 = vpack.c.bf16 %v1557, %v1555
  %v1566 = vpack.c.bf16 %v1558, %v1556
  %v1575 = vunpack.c.l.b16 %v1559
  %v1576 = vunpack.c.l.b16 %v1560
  %v1577 = vunpack.c.h.b16 %v1559
  %v1578 = vunpack.c.h.b16 %v1560
  %v1579 = vunpack.c.l.b16 %v1561
  %v1580 = vunpack.c.l.b16 %v1562
  %v1581 = vunpack.c.h.b16 %v1561
  %v1582 = vunpack.c.h.b16 %v1562
  %v1583 = vunpack.c.l.b16 %v1563
  %v1584 = vunpack.c.l.b16 %v1564
  %v1585 = vunpack.c.h.b16 %v1563
  %v1586 = vunpack.c.h.b16 %v1564
  %v1587 = vunpack.c.l.b16 %v1565
  %v1588 = vunpack.c.l.b16 %v1566
  %v1589 = vunpack.c.h.b16 %v1565
  %v1590 = vunpack.c.h.b16 %v1566
  %v1591 = vpack.c.b16 %v1576, %v1575
  %v1592 = vpack.c.b16 %v1578, %v1577
  %v1593 = vpack.c.b16 %v1580, %v1579
  %v1594 = vpack.c.b16 %v1582, %v1581
  %v1595 = vpack.c.b16 %v1584, %v1583
  %v1596 = vpack.c.b16 %v1586, %v1585
  %v1597 = vpack.c.b16 %v1588, %v1587
  %v1598 = vpack.c.b16 %v1590, %v1589
  %1607 = vst [vmem:[%s3] sm:$0xff] %v1591
  %1608 = vst [vmem:[%s3 + $0x8] sm:$0xff] %v1592
  %1609 = vst [vmem:[%s3 + $0x10] sm:$0xff] %v1593
  %1610 = vst [vmem:[%s3 + $0x18] sm:$0xff] %v1594
  %1611 = vst [vmem:[%s3 + $0x20] sm:$0xff] %v1595
  %1612 = vst [vmem:[%s3 + $0x28] sm:$0xff] %v1596
  %1613 = vst [vmem:[%s3 + $0x30] sm:$0xff] %v1597
  %1614 = vst [vmem:[%s3 + $0x38] sm:$0xff] %v1598
  // Predicated region
  $region14: #{engine_forward.17} parent=0 // pred_check
    _
  $region15: #{engine_forward.17} parent=0 // pred_check_branch
    %1616 = sbr.rel (0) target = $region17
  $region16: #{engine_forward.17} parent=0 // pred_region
    _
  $region17: #{engine_forward.17} parent=0 // pred_fallthru
    _
  // Predicated region
  $region18: #{engine_forward.17} parent=0 // pred_check
    _
  $region19: #{engine_forward.17} parent=0 // pred_check_branch
    %1618 = sbr.rel (0) target = $region21
  $region20: #{engine_forward.17} parent=0 // pred_region
    _
  $region21: #{engine_forward.17} parent=0 // pred_fallthru
    _

// kernel: engine_forward.18
$region0: #{engine_forward.18}
  #allocation0 [shape = 'u32[]', space=smem, size = 0x4, offset = 0x4, fixed_abs, tag = 'smem constant byte address 0x4 - core index']
  #allocation1 [shape = 'u32[144,128]{1,0:T(1,128)}', space=vmem, size = 0x12000, scoped, tag = 'internal scratch']
  %s0 = inlined_call_operand.vmem [shape: bf16[1,160,192], index: 0, kind: input, shape index: {}]
  %s1 = inlined_call_operand.vmem [shape: bf16[3,192,4], index: 1, kind: input, shape index: {}]
  %s2 = inlined_call_operand.vmem [shape: f32[1,4], index: 2, kind: input, shape index: {}]
  %s3 = inlined_call_operand.vmem [shape: f32[1,128,4], index: 3, kind: output, shape index: {}]
  %s4 = sld [smem:[#allocation0]]
  $region22: #{engine_forward.18} parent=0
    _
  %s6 = ssub.s32 1, %s4
  %s7 = scalar_select 0, %s6, %s4
  // Predicated region
  $region2: #{engine_forward.18} parent=0 // pred_check
    _
  $region3: #{engine_forward.18} parent=0 // pred_check_branch
    %9 = sbr.rel (0) target = $region5
  $region4: #{engine_forward.18} parent=0 // pred_region
    _
  $region5: #{engine_forward.18} parent=0 // pred_fallthru
    _
  // Predicated region
  $region6: #{engine_forward.18} parent=0 // pred_check
    _
  $region7: #{engine_forward.18} parent=0 // pred_check_branch
    %11 = sbr.rel (0) target = $region9
  $region8: #{engine_forward.18} parent=0 // pred_region
    _
  $region9: #{engine_forward.18} parent=0 // pred_fallthru
    _
  // Predicated region
  $region10: #{engine_forward.18} parent=0 // pred_check
    _
  $region11: #{engine_forward.18} parent=0 // pred_check_branch
    %13 = sbr.rel (0) target = $region13
  $region12: #{engine_forward.18} parent=0 // pred_region
    _
  $region13: #{engine_forward.18} parent=0 // pred_fallthru
    _
  %v15 = vld [vmem:[%s0] sm:$0xff]
  %v16 = vld [vmem:[%s0 + $0x8] sm:$0xff]
  %v17 = vld [vmem:[%s0 + $0x10] sm:$0xff]
  %v18 = vld [vmem:[%s0 + $0x18] sm:$0xff]
  %v19 = vld [vmem:[%s0 + $0x20] sm:$0xff]
  %v20 = vld [vmem:[%s0 + $0x28] sm:$0xff]
  %v21 = vld [vmem:[%s0 + $0x30] sm:$0xff]
  %v22 = vld [vmem:[%s0 + $0x38] sm:$0xff]
  %v23 = vld [vmem:[%s0 + $0x40] sm:$0xff]
  %v24 = vld [vmem:[%s0 + $0x48] sm:$0xff]
  %v25 = vld [vmem:[%s0 + $0x50] sm:$0xff]
  %v26 = vld [vmem:[%s0 + $0x58] sm:$0xff]
  %v27 = vld [vmem:[%s0 + $0x60] sm:$0xff]
  %v28 = vld [vmem:[%s0 + $0x68] sm:$0xff]
  %v29 = vld [vmem:[%s0 + $0x70] sm:$0xff]
  %v30 = vld [vmem:[%s0 + $0x78] sm:$0xff]
  %v31 = vld [vmem:[%s1] sm:$0xf]
  %v32 = vld [vmem:[%s1 + $0x4] sm:$0xf]
  %v33 = vld [vmem:[%s1 + $0x8] sm:$0xf]
  %v34 = vld [vmem:[%s1 + $0xc] sm:$0xf]
  %v35 = vld [vmem:[%s1 + $0x10] sm:$0xf]
  %v36 = vld [vmem:[%s1 + $0x14] sm:$0xf]
  %v37 = vld [vmem:[%s1 + $0x18] sm:$0xf]
  %v38 = vld [vmem:[%s1 + $0x1c] sm:$0xf]
  %v39 = vld [vmem:[%s1 + $0x20] sm:$0xf]
  %v40 = vld [vmem:[%s1 + $0x24] sm:$0xf]
  %v41 = vld [vmem:[%s1 + $0x28] sm:$0xf]
  %v42 = vld [vmem:[%s1 + $0x2c] sm:$0xf]
  %v43 = vld [vmem:[%s1 + $0x30] sm:$0xf]
  %v44 = vld [vmem:[%s1 + $0x34] sm:$0xf]
  %v45 = vld [vmem:[%s1 + $0x38] sm:$0xf]
  %v46 = vld [vmem:[%s1 + $0x3c] sm:$0xf]
  %v47 = vld [vmem:[%s1 + $0x40] sm:$0xf]
  %v48 = vld [vmem:[%s1 + $0x44] sm:$0xf]
  %v49 = vld [vmem:[%s1 + $0x48] sm:$0xf]
  %v50 = vld [vmem:[%s1 + $0x4c] sm:$0xf]
  %v51 = vld [vmem:[%s1 + $0x50] sm:$0xf]
  %v52 = vld [vmem:[%s1 + $0x54] sm:$0xf]
  %v53 = vld [vmem:[%s1 + $0x58] sm:$0xf]
  %v54 = vld [vmem:[%s1 + $0x5c] sm:$0xf]
  %v55 = vld [vmem:[%s0 + $0x80] sm:$0xff]
  %v56 = vld [vmem:[%s0 + $0x88] sm:$0xff]
  %s57 = scalar_lea.vmem %s1, 96
  %v58 = vld [vmem:[%s57] sm:$0xf]
  %v59 = vld [vmem:[%s57 + $0x4] sm:$0xf]
  %v60 = vld [vmem:[%s57 + $0x8] sm:$0xf]
  %v61 = vld [vmem:[%s57 + $0xc] sm:$0xf]
  %v62 = vld [vmem:[%s57 + $0x10] sm:$0xf]
  %v63 = vld [vmem:[%s57 + $0x14] sm:$0xf]
  %v64 = vld [vmem:[%s57 + $0x18] sm:$0xf]
  %v65 = vld [vmem:[%s57 + $0x1c] sm:$0xf]
  %v66 = vld [vmem:[%s57 + $0x20] sm:$0xf]
  %v67 = vld [vmem:[%s57 + $0x24] sm:$0xf]
  %v68 = vld [vmem:[%s57 + $0x28] sm:$0xf]
  %v69 = vld [vmem:[%s57 + $0x2c] sm:$0xf]
  %v70 = vld [vmem:[%s57 + $0x30] sm:$0xf]
  %v71 = vld [vmem:[%s57 + $0x34] sm:$0xf]
  %v72 = vld [vmem:[%s57 + $0x38] sm:$0xf]
  %v73 = vld [vmem:[%s57 + $0x3c] sm:$0xf]
  %v74 = vld [vmem:[%s57 + $0x40] sm:$0xf]
  %v75 = vld [vmem:[%s57 + $0x44] sm:$0xf]
  %v76 = vld [vmem:[%s57 + $0x48] sm:$0xf]
  %v77 = vld [vmem:[%s57 + $0x4c] sm:$0xf]
  %v78 = vld [vmem:[%s57 + $0x50] sm:$0xf]
  %v79 = vld [vmem:[%s57 + $0x54] sm:$0xf]
  %v80 = vld [vmem:[%s57 + $0x58] sm:$0xf]
  %v81 = vld [vmem:[%s57 + $0x5c] sm:$0xf]
  %v98 = vunpack.c.l.b16 %v17
  %v99 = vunpack.c.h.b16 %v17
  %v100 = vunpack.c.l.b16 %v18
  %v101 = vunpack.c.h.b16 %v18
  %v102 = vunpack.c.l.b16 %v19
  %v103 = vunpack.c.h.b16 %v19
  %v104 = vunpack.c.l.b16 %v20
  %v105 = vunpack.c.h.b16 %v20
  %v106 = vunpack.c.l.b16 %v21
  %v107 = vunpack.c.h.b16 %v21
  %v108 = vunpack.c.l.b16 %v22
  %v109 = vunpack.c.h.b16 %v22
  %v110 = vunpack.c.l.b16 %v23
  %v111 = vunpack.c.h.b16 %v23
  %v112 = vunpack.c.l.b16 %v24
  %v113 = vunpack.c.h.b16 %v24
  %v114 = vunpack.c.l.b16 %v25
  %v115 = vunpack.c.h.b16 %v25
  %v116 = vunpack.c.l.b16 %v26
  %v117 = vunpack.c.h.b16 %v26
  %v118 = vunpack.c.l.b16 %v27
  %v119 = vunpack.c.h.b16 %v27
  %v120 = vunpack.c.l.b16 %v28
  %v121 = vunpack.c.h.b16 %v28
  %v122 = vunpack.c.l.b16 %v29
  %v123 = vunpack.c.h.b16 %v29
  %v124 = vunpack.c.l.b16 %v30
  %v125 = vunpack.c.h.b16 %v30
  %v126 = vunpack.c.l.b16 %v55
  %v127 = vunpack.c.h.b16 %v55
  %v128 = vunpack.c.l.b16 %v56
  %v129 = vunpack.c.h.b16 %v56
  %v130 = vpack.c.b16 %v100, %v98
  %v131 = vpack.c.b16 %v101, %v99
  %v132 = vpack.c.b16 %v104, %v102
  %v133 = vpack.c.b16 %v105, %v103
  %v134 = vpack.c.b16 %v108, %v106
  %v135 = vpack.c.b16 %v109, %v107
  %v136 = vpack.c.b16 %v112, %v110
  %v137 = vpack.c.b16 %v113, %v111
  %v138 = vpack.c.b16 %v116, %v114
  %v139 = vpack.c.b16 %v117, %v115
  %v140 = vpack.c.b16 %v120, %v118
  %v141 = vpack.c.b16 %v121, %v119
  %v142 = vpack.c.b16 %v124, %v122
  %v143 = vpack.c.b16 %v125, %v123
  %v144 = vpack.c.b16 %v128, %v126
  %v145 = vpack.c.b16 %v129, %v127
  %v178 = vunpack.c.l.b16 %v58
  %v179 = vunpack.c.l.b16 %v59
  %v180 = vunpack.c.l.b16 %v60
  %v181 = vunpack.c.l.b16 %v61
  %v182 = vunpack.c.l.b16 %v62
  %v183 = vunpack.c.l.b16 %v63
  %v184 = vunpack.c.l.b16 %v64
  %v185 = vunpack.c.l.b16 %v65
  %v186 = vunpack.c.l.b16 %v66
  %v187 = vunpack.c.l.b16 %v67
  %v188 = vunpack.c.l.b16 %v68
  %v189 = vunpack.c.l.b16 %v69
  %v190 = vunpack.c.l.b16 %v70
  %v191 = vunpack.c.l.b16 %v71
  %v192 = vunpack.c.l.b16 %v72
  %v193 = vunpack.c.l.b16 %v73
  %v194 = vunpack.c.l.b16 %v74
  %v195 = vunpack.c.l.b16 %v75
  %v196 = vunpack.c.l.b16 %v76
  %v197 = vunpack.c.l.b16 %v77
  %v198 = vunpack.c.l.b16 %v78
  %v199 = vunpack.c.l.b16 %v79
  %v200 = vunpack.c.l.b16 %v80
  %v201 = vunpack.c.l.b16 %v81
  %v202 = vpack.c.b16 %v179, %v178
  %v203 = vpack.c.b16 %v181, %v180
  %v204 = vpack.c.b16 %v183, %v182
  %v205 = vpack.c.b16 %v185, %v184
  %v206 = vpack.c.b16 %v187, %v186
  %v207 = vpack.c.b16 %v189, %v188
  %v208 = vpack.c.b16 %v191, %v190
  %v209 = vpack.c.b16 %v193, %v192
  %v210 = vpack.c.b16 %v195, %v194
  %v211 = vpack.c.b16 %v197, %v196
  %v212 = vpack.c.b16 %v199, %v198
  %v213 = vpack.c.b16 %v201, %v200
  %vm226 = vcmask 523264
  %v228 = vsel %vm226, %v131, 0
  %v231 = vsel %vm226, %v133, 0
  %v234 = vsel %vm226, %v135, 0
  %v237 = vsel %vm226, %v137, 0
  %v240 = vsel %vm226, %v139, 0
  %v243 = vsel %vm226, %v141, 0
  %v246 = vsel %vm226, %v143, 0
  %v249 = vsel %vm226, %v145, 0
  %251 = vmatprep.subr.bf16.mxu0 0
  %252 = vmatpush1.bf16.msra.mxu0 %v209
  %253 = vmatprep.subr.bf16.mxu0 0
  %254 = vmatpush1.bf16.msra.mxu0 %v208
  %255 = vmatprep.subr.bf16.mxu0 0
  %256 = vmatpush1.bf16.msra.mxu0 %v207
  %257 = vmatprep.subr.bf16.mxu0 0
  %258 = vmatpush1.bf16.msra.mxu0 %v206
  %259 = vmatprep.subr.bf16.mxu0 0
  %260 = vmatpush1.bf16.msra.mxu0 %v205
  %261 = vmatprep.subr.bf16.mxu0 0
  %262 = vmatpush1.bf16.msra.mxu0 %v204
  %263 = vmatprep.subr.bf16.mxu0 0
  %264 = vmatpush1.bf16.msra.mxu0 %v203
  %265 = vmatprep.subr.bf16.mxu0 0
  %266 = vmatpush1.bf16.msra.mxu0 %v202
  %267 = vmatprep.subr.bf16.mxu0 0
  %268 = vmatpush2.bf16.msra.mxu0 0
  %269 = vmatprep.subr.bf16.mxu0 0
  %270 = vmatpush2.bf16.msra.mxu0 0
  %271 = vmatprep.subr.bf16.mxu0 0
  %272 = vmatpush2.bf16.msra.mxu0 0
  %273 = vmatprep.subr.bf16.mxu0 0
  %274 = vmatpush2.bf16.msra.mxu0 0
  %275 = vmatprep.subr.bf16.mxu0 0
  %276 = vmatpush2.bf16.msra.mxu0 %v213
  %277 = vmatprep.subr.bf16.mxu0 0
  %278 = vmatpush2.bf16.msra.mxu0 %v212
  %279 = vmatprep.subr.bf16.mxu0 0
  %280 = vmatpush2.bf16.msra.mxu0 %v211
  %281 = vmatprep.subr.bf16.mxu0 0
  %282 = vmatpush2.bf16.msra.mxu0 %v210
  %283 = vmatprep.mubr.bf16.mxu0 %v228
  %284 = vmatmul.mubr.bf16.gmra.mxu0 %v130
  %v285 = vpop.f32.mrf.mxu0
  %v286 = vadd.f32 0.0, %v285
  %v287 = vpop.f32.mrf.mxu0
  %v288 = vpop.f32.mrf.mxu0
  %v289 = vadd.f32 0.0, %v288
  %v290 = vpop.f32.mrf.mxu0
  %291 = vmatprep.mubr.bf16.mxu0 %v231
  %292 = vmatmul.mubr.bf16.gmra.mxu0 %v132
  %v293 = vpop.f32.mrf.mxu0
  %v294 = vadd.f32 0.0, %v293
  %v295 = vpop.f32.mrf.mxu0
  %v296 = vpop.f32.mrf.mxu0
  %v297 = vadd.f32 0.0, %v296
  %v298 = vpop.f32.mrf.mxu0
  %299 = vmatprep.mubr.bf16.mxu0 %v234
  %300 = vmatmul.mubr.bf16.gmra.mxu0 %v134
  %v301 = vpop.f32.mrf.mxu0
  %v302 = vadd.f32 0.0, %v301
  %v303 = vpop.f32.mrf.mxu0
  %v304 = vpop.f32.mrf.mxu0
  %v305 = vadd.f32 0.0, %v304
  %v306 = vpop.f32.mrf.mxu0
  %307 = vmatprep.mubr.bf16.mxu0 %v237
  %308 = vmatmul.mubr.bf16.gmra.mxu0 %v136
  %v309 = vpop.f32.mrf.mxu0
  %v310 = vadd.f32 0.0, %v309
  %v311 = vpop.f32.mrf.mxu0
  %v312 = vpop.f32.mrf.mxu0
  %v313 = vadd.f32 0.0, %v312
  %v314 = vpop.f32.mrf.mxu0
  %315 = vmatprep.mubr.bf16.mxu0 %v240
  %316 = vmatmul.mubr.bf16.gmra.mxu0 %v138
  %v317 = vpop.f32.mrf.mxu0
  %v318 = vadd.f32 0.0, %v317
  %v319 = vpop.f32.mrf.mxu0
  %v320 = vpop.f32.mrf.mxu0
  %v321 = vadd.f32 0.0, %v320
  %v322 = vpop.f32.mrf.mxu0
  %323 = vmatprep.mubr.bf16.mxu0 %v243
  %324 = vmatmul.mubr.bf16.gmra.mxu0 %v140
  %v325 = vpop.f32.mrf.mxu0
  %v326 = vadd.f32 0.0, %v325
  %v327 = vpop.f32.mrf.mxu0
  %v328 = vpop.f32.mrf.mxu0
  %v329 = vadd.f32 0.0, %v328
  %v330 = vpop.f32.mrf.mxu0
  %331 = vmatprep.mubr.bf16.mxu0 %v246
  %332 = vmatmul.mubr.bf16.gmra.mxu0 %v142
  %v333 = vpop.f32.mrf.mxu0
  %v334 = vadd.f32 0.0, %v333
  %v335 = vpop.f32.mrf.mxu0
  %v336 = vpop.f32.mrf.mxu0
  %v337 = vadd.f32 0.0, %v336
  %v338 = vpop.f32.mrf.mxu0
  %339 = vmatprep.mubr.bf16.mxu0 %v249
  %340 = vmatmul.mubr.bf16.gmra.mxu0 %v144
  %v341 = vpop.f32.mrf.mxu0
  %v342 = vadd.f32 0.0, %v341
  %v343 = vpop.f32.mrf.mxu0
  %v344 = vpop.f32.mrf.mxu0
  %v345 = vadd.f32 0.0, %v344
  %v346 = vpop.f32.mrf.mxu0
  %347 = vdwg.mxu0
  %v350 = vunpack.c.l.b16 %v15
  %v351 = vunpack.c.h.b16 %v15
  %v352 = vunpack.c.l.b16 %v16
  %v353 = vunpack.c.h.b16 %v16
  %v354 = vpack.c.b16 %v352, %v350
  %v355 = vpack.c.b16 %v353, %v351
  %v381 = vunpack.c.l.b16 %v31
  %v382 = vunpack.c.l.b16 %v32
  %v383 = vunpack.c.l.b16 %v33
  %v384 = vunpack.c.l.b16 %v34
  %v385 = vunpack.c.l.b16 %v35
  %v386 = vunpack.c.l.b16 %v36
  %v387 = vunpack.c.l.b16 %v37
  %v388 = vunpack.c.l.b16 %v38
  %v389 = vunpack.c.l.b16 %v39
  %v390 = vunpack.c.l.b16 %v40
  %v391 = vunpack.c.l.b16 %v41
  %v392 = vunpack.c.l.b16 %v42
  %v393 = vunpack.c.l.b16 %v43
  %v394 = vunpack.c.l.b16 %v44
  %v395 = vunpack.c.l.b16 %v45
  %v396 = vunpack.c.l.b16 %v46
  %v397 = vunpack.c.l.b16 %v47
  %v398 = vunpack.c.l.b16 %v48
  %v399 = vunpack.c.l.b16 %v49
  %v400 = vunpack.c.l.b16 %v50
  %v401 = vunpack.c.l.b16 %v51
  %v402 = vunpack.c.l.b16 %v52
  %v403 = vunpack.c.l.b16 %v53
  %v404 = vunpack.c.l.b16 %v54
  %v405 = vpack.c.b16 %v382, %v381
  %v406 = vpack.c.b16 %v384, %v383
  %v407 = vpack.c.b16 %v386, %v385
  %v408 = vpack.c.b16 %v388, %v387
  %v409 = vpack.c.b16 %v390, %v389
  %v410 = vpack.c.b16 %v392, %v391
  %v411 = vpack.c.b16 %v394, %v393
  %v412 = vpack.c.b16 %v396, %v395
  %v413 = vpack.c.b16 %v398, %v397
  %v414 = vpack.c.b16 %v400, %v399
  %v415 = vpack.c.b16 %v402, %v401
  %v416 = vpack.c.b16 %v404, %v403
  %v430 = vsel %vm226, %v355, 0
  %432 = vmatprep.subr.bf16.mxu0 0
  %433 = vmatpush1.bf16.msra.mxu0 %v412
  %434 = vmatprep.subr.bf16.mxu0 0
  %435 = vmatpush1.bf16.msra.mxu0 %v411
  %436 = vmatprep.subr.bf16.mxu0 0
  %437 = vmatpush1.bf16.msra.mxu0 %v410
  %438 = vmatprep.subr.bf16.mxu0 0
  %439 = vmatpush1.bf16.msra.mxu0 %v409
  %440 = vmatprep.subr.bf16.mxu0 0
  %441 = vmatpush1.bf16.msra.mxu0 %v408
  %442 = vmatprep.subr.bf16.mxu0 0
  %443 = vmatpush1.bf16.msra.mxu0 %v407
  %444 = vmatprep.subr.bf16.mxu0 0
  %445 = vmatpush1.bf16.msra.mxu0 %v406
  %446 = vmatprep.subr.bf16.mxu0 0
  %447 = vmatpush1.bf16.msra.mxu0 %v405
  %448 = vmatprep.subr.bf16.mxu0 0
  %449 = vmatpush2.bf16.msra.mxu0 0
  %450 = vmatprep.subr.bf16.mxu0 0
  %451 = vmatpush2.bf16.msra.mxu0 0
  %452 = vmatprep.subr.bf16.mxu0 0
  %453 = vmatpush2.bf16.msra.mxu0 0
  %454 = vmatprep.subr.bf16.mxu0 0
  %455 = vmatpush2.bf16.msra.mxu0 0
  %456 = vmatprep.subr.bf16.mxu0 0
  %457 = vmatpush2.bf16.msra.mxu0 %v416
  %458 = vmatprep.subr.bf16.mxu0 0
  %459 = vmatpush2.bf16.msra.mxu0 %v415
  %460 = vmatprep.subr.bf16.mxu0 0
  %461 = vmatpush2.bf16.msra.mxu0 %v414
  %462 = vmatprep.subr.bf16.mxu0 0
  %463 = vmatpush2.bf16.msra.mxu0 %v413
  %464 = vmatprep.mubr.bf16.mxu0 %v430
  %465 = vmatmul.mubr.bf16.gmra.mxu0 %v354
  %v466 = vpop.f32.mrf.mxu0
  %v467 = vadd.f32 %v286, %v466
  %v468 = vpop.f32.mrf.mxu0
  %v469 = vpop.f32.mrf.mxu0
  %v470 = vadd.f32 %v289, %v469
  %v471 = vpop.f32.mrf.mxu0
  %472 = vmatprep.mubr.bf16.mxu0 %v228
  %473 = vmatmul.mubr.bf16.gmra.mxu0 %v130
  %v474 = vpop.f32.mrf.mxu0
  %v475 = vadd.f32 %v294, %v474
  %v476 = vpop.f32.mrf.mxu0
  %v477 = vpop.f32.mrf.mxu0
  %v478 = vadd.f32 %v297, %v477
  %v479 = vpop.f32.mrf.mxu0
  %480 = vmatprep.mubr.bf16.mxu0 %v231
  %481 = vmatmul.mubr.bf16.gmra.mxu0 %v132
  %v482 = vpop.f32.mrf.mxu0
  %v483 = vadd.f32 %v302, %v482
  %v484 = vpop.f32.mrf.mxu0
  %v485 = vpop.f32.mrf.mxu0
  %v486 = vadd.f32 %v305, %v485
  %v487 = vpop.f32.mrf.mxu0
  %488 = vmatprep.mubr.bf16.mxu0 %v234
  %489 = vmatmul.mubr.bf16.gmra.mxu0 %v134
  %v490 = vpop.f32.mrf.mxu0
  %v491 = vadd.f32 %v310, %v490
  %v492 = vpop.f32.mrf.mxu0
  %v493 = vpop.f32.mrf.mxu0
  %v494 = vadd.f32 %v313, %v493
  %v495 = vpop.f32.mrf.mxu0
  %496 = vmatprep.mubr.bf16.mxu0 %v237
  %497 = vmatmul.mubr.bf16.gmra.mxu0 %v136
  %v498 = vpop.f32.mrf.mxu0
  %v499 = vadd.f32 %v318, %v498
  %v500 = vpop.f32.mrf.mxu0
  %v501 = vpop.f32.mrf.mxu0
  %v502 = vadd.f32 %v321, %v501
  %v503 = vpop.f32.mrf.mxu0
  %504 = vmatprep.mubr.bf16.mxu0 %v240
  %505 = vmatmul.mubr.bf16.gmra.mxu0 %v138
  %v506 = vpop.f32.mrf.mxu0
  %v507 = vadd.f32 %v326, %v506
  %v508 = vpop.f32.mrf.mxu0
  %v509 = vpop.f32.mrf.mxu0
  %v510 = vadd.f32 %v329, %v509
  %v511 = vpop.f32.mrf.mxu0
  %512 = vmatprep.mubr.bf16.mxu0 %v243
  %513 = vmatmul.mubr.bf16.gmra.mxu0 %v140
  %v514 = vpop.f32.mrf.mxu0
  %v515 = vadd.f32 %v334, %v514
  %v516 = vpop.f32.mrf.mxu0
  %v517 = vpop.f32.mrf.mxu0
  %v518 = vadd.f32 %v337, %v517
  %v519 = vpop.f32.mrf.mxu0
  %520 = vmatprep.mubr.bf16.mxu0 %v246
  %521 = vmatmul.mubr.bf16.gmra.mxu0 %v142
  %v522 = vpop.f32.mrf.mxu0
  %v523 = vadd.f32 %v342, %v522
  %v524 = vpop.f32.mrf.mxu0
  %v525 = vpop.f32.mrf.mxu0
  %v526 = vadd.f32 %v345, %v525
  %v527 = vpop.f32.mrf.mxu0
  %528 = vdwg.mxu0
  %v529 = vld [vmem:[%s0 + $0x20] sm:$0xff]
  %v530 = vld [vmem:[%s0 + $0x28] sm:$0xff]
  %v531 = vld [vmem:[%s0 + $0x30] sm:$0xff]
  %v532 = vld [vmem:[%s0 + $0x38] sm:$0xff]
  %v533 = vld [vmem:[%s0 + $0x40] sm:$0xff]
  %v534 = vld [vmem:[%s0 + $0x48] sm:$0xff]
  %v535 = vld [vmem:[%s0 + $0x50] sm:$0xff]
  %v536 = vld [vmem:[%s0 + $0x58] sm:$0xff]
  %v537 = vld [vmem:[%s0 + $0x60] sm:$0xff]
  %v538 = vld [vmem:[%s0 + $0x68] sm:$0xff]
  %v539 = vld [vmem:[%s0 + $0x70] sm:$0xff]
  %v540 = vld [vmem:[%s0 + $0x78] sm:$0xff]
  %v541 = vld [vmem:[%s0 + $0x80] sm:$0xff]
  %v542 = vld [vmem:[%s0 + $0x88] sm:$0xff]
  %v543 = vld [vmem:[%s0 + $0x90] sm:$0xff]
  %v544 = vld [vmem:[%s0 + $0x98] sm:$0xff]
  %s545 = scalar_lea.vmem %s1, 192
  %v546 = vld [vmem:[%s545] sm:$0xf]
  %v547 = vld [vmem:[%s545 + $0x4] sm:$0xf]
  %v548 = vld [vmem:[%s545 + $0x8] sm:$0xf]
  %v549 = vld [vmem:[%s545 + $0xc] sm:$0xf]
  %v550 = vld [vmem:[%s545 + $0x10] sm:$0xf]
  %v551 = vld [vmem:[%s545 + $0x14] sm:$0xf]
  %v552 = vld [vmem:[%s545 + $0x18] sm:$0xf]
  %v553 = vld [vmem:[%s545 + $0x1c] sm:$0xf]
  %v554 = vld [vmem:[%s545 + $0x20] sm:$0xf]
  %v555 = vld [vmem:[%s545 + $0x24] sm:$0xf]
  %v556 = vld [vmem:[%s545 + $0x28] sm:$0xf]
  %v557 = vld [vmem:[%s545 + $0x2c] sm:$0xf]
  %v558 = vld [vmem:[%s545 + $0x30] sm:$0xf]
  %v559 = vld [vmem:[%s545 + $0x34] sm:$0xf]
  %v560 = vld [vmem:[%s545 + $0x38] sm:$0xf]
  %v561 = vld [vmem:[%s545 + $0x3c] sm:$0xf]
  %v562 = vld [vmem:[%s545 + $0x40] sm:$0xf]
  %v563 = vld [vmem:[%s545 + $0x44] sm:$0xf]
  %v564 = vld [vmem:[%s545 + $0x48] sm:$0xf]
  %v565 = vld [vmem:[%s545 + $0x4c] sm:$0xf]
  %v566 = vld [vmem:[%s545 + $0x50] sm:$0xf]
  %v567 = vld [vmem:[%s545 + $0x54] sm:$0xf]
  %v568 = vld [vmem:[%s545 + $0x58] sm:$0xf]
  %v569 = vld [vmem:[%s545 + $0x5c] sm:$0xf]
  %v586 = vunpack.c.l.b16 %v529
  %v587 = vunpack.c.h.b16 %v529
  %v588 = vunpack.c.l.b16 %v530
  %v589 = vunpack.c.h.b16 %v530
  %v590 = vunpack.c.l.b16 %v531
  %v591 = vunpack.c.h.b16 %v531
  %v592 = vunpack.c.l.b16 %v532
  %v593 = vunpack.c.h.b16 %v532
  %v594 = vunpack.c.l.b16 %v533
  %v595 = vunpack.c.h.b16 %v533
  %v596 = vunpack.c.l.b16 %v534
  %v597 = vunpack.c.h.b16 %v534
  %v598 = vunpack.c.l.b16 %v535
  %v599 = vunpack.c.h.b16 %v535
  %v600 = vunpack.c.l.b16 %v536
  %v601 = vunpack.c.h.b16 %v536
  %v602 = vunpack.c.l.b16 %v537
  %v603 = vunpack.c.h.b16 %v537
  %v604 = vunpack.c.l.b16 %v538
  %v605 = vunpack.c.h.b16 %v538
  %v606 = vunpack.c.l.b16 %v539
  %v607 = vunpack.c.h.b16 %v539
  %v608 = vunpack.c.l.b16 %v540
  %v609 = vunpack.c.h.b16 %v540
  %v610 = vunpack.c.l.b16 %v541
  %v611 = vunpack.c.h.b16 %v541
  %v612 = vunpack.c.l.b16 %v542
  %v613 = vunpack.c.h.b16 %v542
  %v614 = vunpack.c.l.b16 %v543
  %v615 = vunpack.c.h.b16 %v543
  %v616 = vunpack.c.l.b16 %v544
  %v617 = vunpack.c.h.b16 %v544
  %v618 = vpack.c.b16 %v588, %v586
  %v619 = vpack.c.b16 %v589, %v587
  %v620 = vpack.c.b16 %v592, %v590
  %v621 = vpack.c.b16 %v593, %v591
  %v622 = vpack.c.b16 %v596, %v594
  %v623 = vpack.c.b16 %v597, %v595
  %v624 = vpack.c.b16 %v600, %v598
  %v625 = vpack.c.b16 %v601, %v599
  %v626 = vpack.c.b16 %v604, %v602
  %v627 = vpack.c.b16 %v605, %v603
  %v628 = vpack.c.b16 %v608, %v606
  %v629 = vpack.c.b16 %v609, %v607
  %v630 = vpack.c.b16 %v612, %v610
  %v631 = vpack.c.b16 %v613, %v611
  %v632 = vpack.c.b16 %v616, %v614
  %v633 = vpack.c.b16 %v617, %v615
  %v666 = vunpack.c.l.b16 %v546
  %v667 = vunpack.c.l.b16 %v547
  %v668 = vunpack.c.l.b16 %v548
  %v669 = vunpack.c.l.b16 %v549
  %v670 = vunpack.c.l.b16 %v550
  %v671 = vunpack.c.l.b16 %v551
  %v672 = vunpack.c.l.b16 %v552
  %v673 = vunpack.c.l.b16 %v553
  %v674 = vunpack.c.l.b16 %v554
  %v675 = vunpack.c.l.b16 %v555
  %v676 = vunpack.c.l.b16 %v556
  %v677 = vunpack.c.l.b16 %v557
  %v678 = vunpack.c.l.b16 %v558
  %v679 = vunpack.c.l.b16 %v559
  %v680 = vunpack.c.l.b16 %v560
  %v681 = vunpack.c.l.b16 %v561
  %v682 = vunpack.c.l.b16 %v562
  %v683 = vunpack.c.l.b16 %v563
  %v684 = vunpack.c.l.b16 %v564
  %v685 = vunpack.c.l.b16 %v565
  %v686 = vunpack.c.l.b16 %v566
  %v687 = vunpack.c.l.b16 %v567
  %v688 = vunpack.c.l.b16 %v568
  %v689 = vunpack.c.l.b16 %v569
  %v690 = vpack.c.b16 %v667, %v666
  %v691 = vpack.c.b16 %v669, %v668
  %v692 = vpack.c.b16 %v671, %v670
  %v693 = vpack.c.b16 %v673, %v672
  %v694 = vpack.c.b16 %v675, %v674
  %v695 = vpack.c.b16 %v677, %v676
  %v696 = vpack.c.b16 %v679, %v678
  %v697 = vpack.c.b16 %v681, %v680
  %v698 = vpack.c.b16 %v683, %v682
  %v699 = vpack.c.b16 %v685, %v684
  %v700 = vpack.c.b16 %v687, %v686
  %v701 = vpack.c.b16 %v689, %v688
  %v715 = vsel %vm226, %v619, 0
  %v718 = vsel %vm226, %v621, 0
  %v721 = vsel %vm226, %v623, 0
  %v724 = vsel %vm226, %v625, 0
  %v727 = vsel %vm226, %v627, 0
  %v730 = vsel %vm226, %v629, 0
  %v733 = vsel %vm226, %v631, 0
  %v736 = vsel %vm226, %v633, 0
  %738 = vmatprep.subr.bf16.mxu0 0
  %739 = vmatpush1.bf16.msra.mxu0 %v697
  %740 = vmatprep.subr.bf16.mxu0 0
  %741 = vmatpush1.bf16.msra.mxu0 %v696
  %742 = vmatprep.subr.bf16.mxu0 0
  %743 = vmatpush1.bf16.msra.mxu0 %v695
  %744 = vmatprep.subr.bf16.mxu0 0
  %745 = vmatpush1.bf16.msra.mxu0 %v694
  %746 = vmatprep.subr.bf16.mxu0 0
  %747 = vmatpush1.bf16.msra.mxu0 %v693
  %748 = vmatprep.subr.bf16.mxu0 0
  %749 = vmatpush1.bf16.msra.mxu0 %v692
  %750 = vmatprep.subr.bf16.mxu0 0
  %751 = vmatpush1.bf16.msra.mxu0 %v691
  %752 = vmatprep.subr.bf16.mxu0 0
  %753 = vmatpush1.bf16.msra.mxu0 %v690
  %754 = vmatprep.subr.bf16.mxu0 0
  %755 = vmatpush2.bf16.msra.mxu0 0
  %756 = vmatprep.subr.bf16.mxu0 0
  %757 = vmatpush2.bf16.msra.mxu0 0
  %758 = vmatprep.subr.bf16.mxu0 0
  %759 = vmatpush2.bf16.msra.mxu0 0
  %760 = vmatprep.subr.bf16.mxu0 0
  %761 = vmatpush2.bf16.msra.mxu0 0
  %762 = vmatprep.subr.bf16.mxu0 0
  %763 = vmatpush2.bf16.msra.mxu0 %v701
  %764 = vmatprep.subr.bf16.mxu0 0
  %765 = vmatpush2.bf16.msra.mxu0 %v700
  %766 = vmatprep.subr.bf16.mxu0 0
  %767 = vmatpush2.bf16.msra.mxu0 %v699
  %768 = vmatprep.subr.bf16.mxu0 0
  %769 = vmatpush2.bf16.msra.mxu0 %v698
  %770 = vmatprep.mubr.bf16.mxu0 %v715
  %771 = vmatmul.mubr.bf16.gmra.mxu0 %v618
  %v772 = vpop.f32.mrf.mxu0
  %v773 = vadd.f32 0.0, %v772
  %v774 = vpop.f32.mrf.mxu0
  %v775 = vpop.f32.mrf.mxu0
  %v776 = vadd.f32 0.0, %v775
  %v777 = vpop.f32.mrf.mxu0
  %778 = vmatprep.mubr.bf16.mxu0 %v718
  %779 = vmatmul.mubr.bf16.gmra.mxu0 %v620
  %v780 = vpop.f32.mrf.mxu0
  %v781 = vadd.f32 0.0, %v780
  %v782 = vpop.f32.mrf.mxu0
  %v783 = vpop.f32.mrf.mxu0
  %v784 = vadd.f32 0.0, %v783
  %v785 = vpop.f32.mrf.mxu0
  %786 = vmatprep.mubr.bf16.mxu0 %v721
  %787 = vmatmul.mubr.bf16.gmra.mxu0 %v622
  %v788 = vpop.f32.mrf.mxu0
  %v789 = vadd.f32 0.0, %v788
  %v790 = vpop.f32.mrf.mxu0
  %v791 = vpop.f32.mrf.mxu0
  %v792 = vadd.f32 0.0, %v791
  %v793 = vpop.f32.mrf.mxu0
  %794 = vmatprep.mubr.bf16.mxu0 %v724
  %795 = vmatmul.mubr.bf16.gmra.mxu0 %v624
  %v796 = vpop.f32.mrf.mxu0
  %v797 = vadd.f32 0.0, %v796
  %v798 = vpop.f32.mrf.mxu0
  %v799 = vpop.f32.mrf.mxu0
  %v800 = vadd.f32 0.0, %v799
  %v801 = vpop.f32.mrf.mxu0
  %802 = vmatprep.mubr.bf16.mxu0 %v727
  %803 = vmatmul.mubr.bf16.gmra.mxu0 %v626
  %v804 = vpop.f32.mrf.mxu0
  %v805 = vadd.f32 0.0, %v804
  %v806 = vpop.f32.mrf.mxu0
  %v807 = vpop.f32.mrf.mxu0
  %v808 = vadd.f32 0.0, %v807
  %v809 = vpop.f32.mrf.mxu0
  %810 = vmatprep.mubr.bf16.mxu0 %v730
  %811 = vmatmul.mubr.bf16.gmra.mxu0 %v628
  %v812 = vpop.f32.mrf.mxu0
  %v813 = vadd.f32 0.0, %v812
  %v814 = vpop.f32.mrf.mxu0
  %v815 = vpop.f32.mrf.mxu0
  %v816 = vadd.f32 0.0, %v815
  %v817 = vpop.f32.mrf.mxu0
  %818 = vmatprep.mubr.bf16.mxu0 %v733
  %819 = vmatmul.mubr.bf16.gmra.mxu0 %v630
  %v820 = vpop.f32.mrf.mxu0
  %v821 = vadd.f32 0.0, %v820
  %v822 = vpop.f32.mrf.mxu0
  %v823 = vpop.f32.mrf.mxu0
  %v824 = vadd.f32 0.0, %v823
  %v825 = vpop.f32.mrf.mxu0
  %826 = vmatprep.mubr.bf16.mxu0 %v736
  %827 = vmatmul.mubr.bf16.gmra.mxu0 %v632
  %v828 = vpop.f32.mrf.mxu0
  %v829 = vadd.f32 0.0, %v828
  %v830 = vpop.f32.mrf.mxu0
  %v831 = vpop.f32.mrf.mxu0
  %v832 = vadd.f32 0.0, %v831
  %v833 = vpop.f32.mrf.mxu0
  %834 = vdwg.mxu0
  %v835 = vadd.f32 %v467, %v773
  %v836 = vadd.f32 %v470, %v776
  %v837 = vadd.f32 %v475, %v781
  %v838 = vadd.f32 %v478, %v784
  %v839 = vadd.f32 %v483, %v789
  %v840 = vadd.f32 %v486, %v792
  %v841 = vadd.f32 %v491, %v797
  %v842 = vadd.f32 %v494, %v800
  %v843 = vadd.f32 %v499, %v805
  %v844 = vadd.f32 %v502, %v808
  %v845 = vadd.f32 %v507, %v813
  %v846 = vadd.f32 %v510, %v816
  %v847 = vadd.f32 %v515, %v821
  %v848 = vadd.f32 %v518, %v824
  %v849 = vadd.f32 %v523, %v829
  %v850 = vadd.f32 %v526, %v832
  %v851 = vld [vmem:[%s2] sm:$0x1]
  %v853 = vlaneseq
  %v854 = vshrl.u32 %v853, 7
  %v855 = vsub.s32 0, %v854
  %v856 = vrot.slane %v851, %v855
  %v858 = vadd.f32 %v835, %v856
  %v859 = vadd.f32 %v836, %v856
  %v860 = vadd.f32 %v837, %v856
  %v861 = vadd.f32 %v838, %v856
  %v862 = vadd.f32 %v839, %v856
  %v863 = vadd.f32 %v840, %v856
  %v864 = vadd.f32 %v841, %v856
  %v865 = vadd.f32 %v842, %v856
  %v866 = vadd.f32 %v843, %v856
  %v867 = vadd.f32 %v844, %v856
  %v868 = vadd.f32 %v845, %v856
  %v869 = vadd.f32 %v846, %v856
  %v870 = vadd.f32 %v847, %v856
  %v871 = vadd.f32 %v848, %v856
  %v872 = vadd.f32 %v849, %v856
  %v873 = vadd.f32 %v850, %v856
  %v874 = vxor.u32 %v858, 2147483648
  %v875 = vxor.u32 %v859, 2147483648
  %v876 = vxor.u32 %v860, 2147483648
  %v877 = vxor.u32 %v861, 2147483648
  %v878 = vxor.u32 %v862, 2147483648
  %v879 = vxor.u32 %v863, 2147483648
  %v880 = vxor.u32 %v864, 2147483648
  %v881 = vxor.u32 %v865, 2147483648
  %v882 = vxor.u32 %v866, 2147483648
  %v883 = vxor.u32 %v867, 2147483648
  %v884 = vxor.u32 %v868, 2147483648
  %v885 = vxor.u32 %v869, 2147483648
  %v886 = vxor.u32 %v870, 2147483648
  %v887 = vxor.u32 %v871, 2147483648
  %v888 = vxor.u32 %v872, 2147483648
  %v889 = vxor.u32 %v873, 2147483648
  %v890 = vmul.f32 %v874, 1.442695
  %v891 = vpow.pop %v890
  %v892 = vmul.f32 %v875, 1.442695
  %v893 = vpow.pop %v892
  %v894 = vmul.f32 %v876, 1.442695
  %v895 = vpow.pop %v894
  %v896 = vmul.f32 %v877, 1.442695
  %v897 = vpow.pop %v896
  %v898 = vmul.f32 %v878, 1.442695
  %v899 = vpow.pop %v898
  %v900 = vmul.f32 %v879, 1.442695
  %v901 = vpow.pop %v900
  %v902 = vmul.f32 %v880, 1.442695
  %v903 = vpow.pop %v902
  %v904 = vmul.f32 %v881, 1.442695
  %v905 = vpow.pop %v904
  %v906 = vmul.f32 %v882, 1.442695
  %v907 = vpow.pop %v906
  %v908 = vmul.f32 %v883, 1.442695
  %v909 = vpow.pop %v908
  %v910 = vmul.f32 %v884, 1.442695
  %v911 = vpow.pop %v910
  %v912 = vmul.f32 %v885, 1.442695
  %v913 = vpow.pop %v912
  %v914 = vmul.f32 %v886, 1.442695
  %v915 = vpow.pop %v914
  %v916 = vmul.f32 %v887, 1.442695
  %v917 = vpow.pop %v916
  %v918 = vmul.f32 %v888, 1.442695
  %v919 = vpow.pop %v918
  %v920 = vmul.f32 %v889, 1.442695
  %v921 = vpow.pop %v920
  %v922 = vadd.f32 %v891, 1.0
  %v923 = vadd.f32 %v893, 1.0
  %v924 = vadd.f32 %v895, 1.0
  %v925 = vadd.f32 %v897, 1.0
  %v926 = vadd.f32 %v899, 1.0
  %v927 = vadd.f32 %v901, 1.0
  %v928 = vadd.f32 %v903, 1.0
  %v929 = vadd.f32 %v905, 1.0
  %v930 = vadd.f32 %v907, 1.0
  %v931 = vadd.f32 %v909, 1.0
  %v932 = vadd.f32 %v911, 1.0
  %v933 = vadd.f32 %v913, 1.0
  %v934 = vadd.f32 %v915, 1.0
  %v935 = vadd.f32 %v917, 1.0
  %v936 = vadd.f32 %v919, 1.0
  %v937 = vadd.f32 %v921, 1.0
  %v938 = vrcp.pop %v922
  %v939 = vmul.f32 1.0, %v938
  %v940 = vrcp.pop %v923
  %v941 = vmul.f32 1.0, %v940
  %v942 = vrcp.pop %v924
  %v943 = vmul.f32 1.0, %v942
  %v944 = vrcp.pop %v925
  %v945 = vmul.f32 1.0, %v944
  %v946 = vrcp.pop %v926
  %v947 = vmul.f32 1.0, %v946
  %v948 = vrcp.pop %v927
  %v949 = vmul.f32 1.0, %v948
  %v950 = vrcp.pop %v928
  %v951 = vmul.f32 1.0, %v950
  %v952 = vrcp.pop %v929
  %v953 = vmul.f32 1.0, %v952
  %v954 = vrcp.pop %v930
  %v955 = vmul.f32 1.0, %v954
  %v956 = vrcp.pop %v931
  %v957 = vmul.f32 1.0, %v956
  %v958 = vrcp.pop %v932
  %v959 = vmul.f32 1.0, %v958
  %v960 = vrcp.pop %v933
  %v961 = vmul.f32 1.0, %v960
  %v962 = vrcp.pop %v934
  %v963 = vmul.f32 1.0, %v962
  %v964 = vrcp.pop %v935
  %v965 = vmul.f32 1.0, %v964
  %v966 = vrcp.pop %v936
  %v967 = vmul.f32 1.0, %v966
  %v968 = vrcp.pop %v937
  %v969 = vmul.f32 1.0, %v968
  %vm970 = vcmask 31744
  %971 = vst.msk [vmem:[%s3] sm:$0xff] %vm970, %v939
  %972 = vst.msk [vmem:[%s3 + $0x8] sm:$0xff] %vm970, %v941
  %973 = vst.msk [vmem:[%s3 + $0x10] sm:$0xff] %vm970, %v943
  %974 = vst.msk [vmem:[%s3 + $0x18] sm:$0xff] %vm970, %v945
  %975 = vst.msk [vmem:[%s3 + $0x20] sm:$0xff] %vm970, %v947
  %976 = vst.msk [vmem:[%s3 + $0x28] sm:$0xff] %vm970, %v949
  %977 = vst.msk [vmem:[%s3 + $0x30] sm:$0xff] %vm970, %v951
  %978 = vst.msk [vmem:[%s3 + $0x38] sm:$0xff] %vm970, %v953
  %979 = vst.msk [vmem:[%s3 + $0x40] sm:$0xff] %vm970, %v955
  %980 = vst.msk [vmem:[%s3 + $0x48] sm:$0xff] %vm970, %v957
  %981 = vst.msk [vmem:[%s3 + $0x50] sm:$0xff] %vm970, %v959
  %982 = vst.msk [vmem:[%s3 + $0x58] sm:$0xff] %vm970, %v961
  %983 = vst.msk [vmem:[%s3 + $0x60] sm:$0xff] %vm970, %v963
  %984 = vst.msk [vmem:[%s3 + $0x68] sm:$0xff] %vm970, %v965
  %985 = vst.msk [vmem:[%s3 + $0x70] sm:$0xff] %vm970, %v967
  %986 = vst.msk [vmem:[%s3 + $0x78] sm:$0xff] %vm970, %v969
  // Predicated region
  $region14: #{engine_forward.18} parent=0 // pred_check
    _
  $region15: #{engine_forward.18} parent=0 // pred_check_branch
    %988 = sbr.rel (0) target = $region17
  $region16: #{engine_forward.18} parent=0 // pred_region
    _
  $region17: #{engine_forward.18} parent=0 // pred_fallthru
    _
  // Predicated region
  $region18: #{engine_forward.18} parent=0 // pred_check
    _
  $region19: #{engine_forward.18} parent=0 // pred_check_branch
    %990 = sbr.rel (0) target = $region21
  $region20: #{engine_forward.18} parent=0 // pred_region
    _
  $region21: #{engine_forward.18} parent=0 // pred_fallthru
    _

// kernel: engine_forward.25
$region0: #{engine_forward.25}
  #allocation0 [shape = 'u32[]', space=smem, size = 0x4, offset = 0x4, fixed_abs, tag = 'smem constant byte address 0x4 - core index']
  #allocation1 [shape = 'u32[144,128]{1,0:T(1,128)}', space=vmem, size = 0x12000, scoped, tag = 'internal scratch']
  #allocation2 [shape = 'f32[1]{0:T(128)S(6)}', space=smem, size = 0x200, scoped, tag = 'scoped memory for engine_forward.25']
  %s0 = inlined_call_operand.vmem [shape: f32[3,256], index: 0, kind: input, shape index: {}]
  %s1 = inlined_call_operand.vmem [shape: f32[1,256], index: 1, kind: input, shape index: {}]
  %s2 = inlined_call_operand.<no memory space> [shape: f32[1], index: 2, kind: input, shape index: {}]
  %s3 = inlined_call_operand.vmem [shape: f32[1,256], index: 3, kind: output, shape index: {0}]
  %s4 = inlined_call_operand.vmem [shape: f32[1,256], index: 4, kind: output, shape index: {1}]
  %s5 = inlined_call_operand.vmem [shape: f32[3,256], index: 5, kind: output, shape index: {2}]
  %s6 = inlined_call_operand.vmem [shape: f32[3,256], index: 6, kind: output, shape index: {3}]
  %7 = xla_tuple %s3, %s4, %s5, %s6
  %s8 = sld [smem:[#allocation0]]
  $region46: #{engine_forward.25} parent=0
    _
  %s10 = ssub.s32 1, %s8
  %s11 = scalar_select 0, %s10, %s8
  %12 = sst [smem:[#allocation2]] %s2
  // Predicated region
  $region2: #{engine_forward.25} parent=0 // pred_check
    _
  $region3: #{engine_forward.25} parent=0 // pred_check_branch
    %14 = sbr.rel (0) target = $region5
  $region4: #{engine_forward.25} parent=0 // pred_region
    _
  $region5: #{engine_forward.25} parent=0 // pred_fallthru
    _
  // Predicated region
  $region6: #{engine_forward.25} parent=0 // pred_check
    _
  $region7: #{engine_forward.25} parent=0 // pred_check_branch
    %16 = sbr.rel (0) target = $region9
  $region8: #{engine_forward.25} parent=0 // pred_region
    _
  $region9: #{engine_forward.25} parent=0 // pred_fallthru
    _
  // Predicated region
  $region10: #{engine_forward.25} parent=0 // pred_check
    _
  $region11: #{engine_forward.25} parent=0 // pred_check_branch
    %18 = sbr.rel (0) target = $region13
  $region12: #{engine_forward.25} parent=0 // pred_region
    _
  $region13: #{engine_forward.25} parent=0 // pred_fallthru
    _
  %v19 = vld [vmem:[%s1] sm:$0x3]
  %v20 = vmax.f32 %v19, 0.0
  %v21 = vld [vmem:[%s0] sm:$0x77]
  %s22 = sld [smem:[#allocation2]]
  %s23 = sxor.u32 %s22, 2147483648
  %v24 = vstv %s23
  %v25 = vmul.f32 %v24, 1.442695
  %v26 = vpow.pop %v25
  %s27 = vtos %v26
  %s28 = sadd.f32 %s27, 1.0
  %v29 = vstv %s28
  %v30 = vrcp.pop %v29
  %s31 = vtos %v30
  %vm32 = vcmp.gt.f32.partialorder %v20, 0.0
  %v33 = vmax.f32 %v20, 1e-38
  %v34 = vlog2.pop %v33
  %v35 = vmul.f32 %v34, 0.6931472
  %v36 = vstv %s31
  %v37 = vmul.f32 %v36, %v35
  %v38 = vmul.f32 %v37, 1.442695
  %v39 = vpow.pop %v38
  %v40 = vsel %vm32, %v39, 0.0
  %v41 = vlaneseq
  %vm42 = vcmp.ge.s32.totalorder %v41, 0
  %vm43 = vcmp.lt.s32.totalorder %v41, 256
  %vm44 = vmand %vm42, %vm43
  %45 = vst.msk [vmem:[%s3] sm:$0x3] %vm44, %v20
  %46 = vst.msk [vmem:[%s4] sm:$0x3] %vm44, %v40
  %v48 = vlaneseq
  %v49 = vshrl.u32 %v48, 7
  %v50 = vsub.s32 0, %v49
  %v51 = vrot.slane %v20, %v50
  %v52 = vlaneseq
  %v53 = vshrl.u32 %v52, 7
  %v54 = vsub.s32 1, %v53
  %v55 = vrot.slane %v20, %v54
  %v56 = vcombine.low %v51, %v55
  %v58 = vmul.f32 %v21, %v56
  %59 = vst [vmem:[%s5] sm:$0x77] %v58
  %v61 = vlaneseq
  %v62 = vshrl.u32 %v61, 7
  %v63 = vsub.s32 0, %v62
  %v64 = vrot.slane %v40, %v63
  %v65 = vlaneseq
  %v66 = vshrl.u32 %v65, 7
  %v67 = vsub.s32 1, %v66
  %v68 = vrot.slane %v40, %v67
  %v69 = vcombine.low %v64, %v68
  %v71 = vmul.f32 %v21, %v69
  %72 = vst [vmem:[%s6] sm:$0x77] %v71
  // Predicated region
  $region14: #{engine_forward.25} parent=0 // pred_check
    _
  $region15: #{engine_forward.25} parent=0 // pred_check_branch
    %74 = sbr.rel (0) target = $region17
  $region16: #{engine_forward.25} parent=0 // pred_region
    _
  $region17: #{engine_forward.25} parent=0 // pred_fallthru
    _
  // Predicated region
  $region18: #{engine_forward.25} parent=0 // pred_check
    _
  $region19: #{engine_forward.25} parent=0 // pred_check_branch
    %76 = sbr.rel (0) target = $region21
  $region20: #{engine_forward.25} parent=0 // pred_region
    _
  $region21: #{engine_forward.25} parent=0 // pred_fallthru
    _
  // Predicated region
  $region22: #{engine_forward.25} parent=0 // pred_check
    _
  $region23: #{engine_forward.25} parent=0 // pred_check_branch
    %78 = sbr.rel (0) target = $region25
  $region24: #{engine_forward.25} parent=0 // pred_region
    _
  $region25: #{engine_forward.25} parent=0 // pred_fallthru
    _
  // Predicated region
  $region26: #{engine_forward.25} parent=0 // pred_check
    _
  $region27: #{engine_forward.25} parent=0 // pred_check_branch
    %80 = sbr.rel (0) target = $region29
  $region28: #{engine_forward.25} parent=0 // pred_region
    _
  $region29: #{engine_forward.25} parent=0 // pred_fallthru
    _
  // Predicated region
  $region30: #{engine_forward.25} parent=0 // pred_check
    _
  $region31: #{engine_forward.25} parent=0 // pred_check_branch
    %82 = sbr.rel (0) target = $region33
  $region32: #{engine_forward.25} parent=0 // pred_region
    _
  $region33: #{engine_forward.25} parent=0 // pred_fallthru
    _
  // Predicated region
  $region34: #{engine_forward.25} parent=0 // pred_check
    _
  $region35: #{engine_forward.25} parent=0 // pred_check_branch
    %84 = sbr.rel (0) target = $region37
  $region36: #{engine_forward.25} parent=0 // pred_region
    _
  $region37: #{engine_forward.25} parent=0 // pred_fallthru
    _
  // Predicated region
  $region38: #{engine_forward.25} parent=0 // pred_check
    _
  $region39: #{engine_forward.25} parent=0 // pred_check_branch
    %86 = sbr.rel (0) target = $region41
  $region40: #{engine_forward.25} parent=0 // pred_region
    _
  $region41: #{engine_forward.25} parent=0 // pred_fallthru
    _
  // Predicated region
  $region42: #{engine_forward.25} parent=0 // pred_check
    _
  $region43: #{engine_forward.25} parent=0 // pred_check_branch
    %88 = sbr.rel (0) target = $region45
  $region44: #{engine_forward.25} parent=0 // pred_region
    _
  $region45: #{engine_forward.25} parent=0 // pred_fallthru
    _

// kernel: engine_forward.24
$region0: #{engine_forward.24}
  #allocation0 [shape = 'u32[]', space=smem, size = 0x4, offset = 0x4, fixed_abs, tag = 'smem constant byte address 0x4 - core index']
  #allocation1 [shape = 'u32[144,128]{1,0:T(1,128)}', space=vmem, size = 0x12000, scoped, tag = 'internal scratch']
  %s0 = inlined_call_operand.vmem [shape: bf16[1,160,192], index: 0, kind: input, shape index: {}]
  %s1 = inlined_call_operand.vmem [shape: bf16[3,192,12], index: 1, kind: input, shape index: {}]
  %s2 = inlined_call_operand.vmem [shape: f32[1,12], index: 2, kind: input, shape index: {}]
  %s3 = inlined_call_operand.vmem [shape: f32[1,128,12], index: 3, kind: output, shape index: {}]
  %s4 = sld [smem:[#allocation0]]
  $region22: #{engine_forward.24} parent=0
    _
  %s6 = ssub.s32 1, %s4
  %s7 = scalar_select 0, %s6, %s4
  // Predicated region
  $region2: #{engine_forward.24} parent=0 // pred_check
    _
  $region3: #{engine_forward.24} parent=0 // pred_check_branch
    %9 = sbr.rel (0) target = $region5
  $region4: #{engine_forward.24} parent=0 // pred_region
    _
  $region5: #{engine_forward.24} parent=0 // pred_fallthru
    _
  // Predicated region
  $region6: #{engine_forward.24} parent=0 // pred_check
    _
  $region7: #{engine_forward.24} parent=0 // pred_check_branch
    %11 = sbr.rel (0) target = $region9
  $region8: #{engine_forward.24} parent=0 // pred_region
    _
  $region9: #{engine_forward.24} parent=0 // pred_fallthru
    _
  // Predicated region
  $region10: #{engine_forward.24} parent=0 // pred_check
    _
  $region11: #{engine_forward.24} parent=0 // pred_check_branch
    %13 = sbr.rel (0) target = $region13
  $region12: #{engine_forward.24} parent=0 // pred_region
    _
  $region13: #{engine_forward.24} parent=0 // pred_fallthru
    _
  %v15 = vld [vmem:[%s0] sm:$0xff]
  %v16 = vld [vmem:[%s0 + $0x8] sm:$0xff]
  %v17 = vld [vmem:[%s0 + $0x10] sm:$0xff]
  %v18 = vld [vmem:[%s0 + $0x18] sm:$0xff]
  %v19 = vld [vmem:[%s0 + $0x20] sm:$0xff]
  %v20 = vld [vmem:[%s0 + $0x28] sm:$0xff]
  %v21 = vld [vmem:[%s0 + $0x30] sm:$0xff]
  %v22 = vld [vmem:[%s0 + $0x38] sm:$0xff]
  %v23 = vld [vmem:[%s0 + $0x40] sm:$0xff]
  %v24 = vld [vmem:[%s0 + $0x48] sm:$0xff]
  %v25 = vld [vmem:[%s0 + $0x50] sm:$0xff]
  %v26 = vld [vmem:[%s0 + $0x58] sm:$0xff]
  %v27 = vld [vmem:[%s0 + $0x60] sm:$0xff]
  %v28 = vld [vmem:[%s0 + $0x68] sm:$0xff]
  %v29 = vld [vmem:[%s0 + $0x70] sm:$0xff]
  %v30 = vld [vmem:[%s0 + $0x78] sm:$0xff]
  %v31 = vld [vmem:[%s1] sm:$0xf]
  %v32 = vld [vmem:[%s1 + $0x4] sm:$0xf]
  %v33 = vld [vmem:[%s1 + $0x8] sm:$0xf]
  %v34 = vld [vmem:[%s1 + $0xc] sm:$0xf]
  %v35 = vld [vmem:[%s1 + $0x10] sm:$0xf]
  %v36 = vld [vmem:[%s1 + $0x14] sm:$0xf]
  %v37 = vld [vmem:[%s1 + $0x18] sm:$0xf]
  %v38 = vld [vmem:[%s1 + $0x1c] sm:$0xf]
  %v39 = vld [vmem:[%s1 + $0x20] sm:$0xf]
  %v40 = vld [vmem:[%s1 + $0x24] sm:$0xf]
  %v41 = vld [vmem:[%s1 + $0x28] sm:$0xf]
  %v42 = vld [vmem:[%s1 + $0x2c] sm:$0xf]
  %v43 = vld [vmem:[%s1 + $0x30] sm:$0xf]
  %v44 = vld [vmem:[%s1 + $0x34] sm:$0xf]
  %v45 = vld [vmem:[%s1 + $0x38] sm:$0xf]
  %v46 = vld [vmem:[%s1 + $0x3c] sm:$0xf]
  %v47 = vld [vmem:[%s1 + $0x40] sm:$0xf]
  %v48 = vld [vmem:[%s1 + $0x44] sm:$0xf]
  %v49 = vld [vmem:[%s1 + $0x48] sm:$0xf]
  %v50 = vld [vmem:[%s1 + $0x4c] sm:$0xf]
  %v51 = vld [vmem:[%s1 + $0x50] sm:$0xf]
  %v52 = vld [vmem:[%s1 + $0x54] sm:$0xf]
  %v53 = vld [vmem:[%s1 + $0x58] sm:$0xf]
  %v54 = vld [vmem:[%s1 + $0x5c] sm:$0xf]
  %v55 = vld [vmem:[%s0 + $0x80] sm:$0xff]
  %v56 = vld [vmem:[%s0 + $0x88] sm:$0xff]
  %s57 = scalar_lea.vmem %s1, 96
  %v58 = vld [vmem:[%s57] sm:$0xf]
  %v59 = vld [vmem:[%s57 + $0x4] sm:$0xf]
  %v60 = vld [vmem:[%s57 + $0x8] sm:$0xf]
  %v61 = vld [vmem:[%s57 + $0xc] sm:$0xf]
  %v62 = vld [vmem:[%s57 + $0x10] sm:$0xf]
  %v63 = vld [vmem:[%s57 + $0x14] sm:$0xf]
  %v64 = vld [vmem:[%s57 + $0x18] sm:$0xf]
  %v65 = vld [vmem:[%s57 + $0x1c] sm:$0xf]
  %v66 = vld [vmem:[%s57 + $0x20] sm:$0xf]
  %v67 = vld [vmem:[%s57 + $0x24] sm:$0xf]
  %v68 = vld [vmem:[%s57 + $0x28] sm:$0xf]
  %v69 = vld [vmem:[%s57 + $0x2c] sm:$0xf]
  %v70 = vld [vmem:[%s57 + $0x30] sm:$0xf]
  %v71 = vld [vmem:[%s57 + $0x34] sm:$0xf]
  %v72 = vld [vmem:[%s57 + $0x38] sm:$0xf]
  %v73 = vld [vmem:[%s57 + $0x3c] sm:$0xf]
  %v74 = vld [vmem:[%s57 + $0x40] sm:$0xf]
  %v75 = vld [vmem:[%s57 + $0x44] sm:$0xf]
  %v76 = vld [vmem:[%s57 + $0x48] sm:$0xf]
  %v77 = vld [vmem:[%s57 + $0x4c] sm:$0xf]
  %v78 = vld [vmem:[%s57 + $0x50] sm:$0xf]
  %v79 = vld [vmem:[%s57 + $0x54] sm:$0xf]
  %v80 = vld [vmem:[%s57 + $0x58] sm:$0xf]
  %v81 = vld [vmem:[%s57 + $0x5c] sm:$0xf]
  %v98 = vunpack.c.l.b16 %v17
  %v99 = vunpack.c.h.b16 %v17
  %v100 = vunpack.c.l.b16 %v18
  %v101 = vunpack.c.h.b16 %v18
  %v102 = vunpack.c.l.b16 %v19
  %v103 = vunpack.c.h.b16 %v19
  %v104 = vunpack.c.l.b16 %v20
  %v105 = vunpack.c.h.b16 %v20
  %v106 = vunpack.c.l.b16 %v21
  %v107 = vunpack.c.h.b16 %v21
  %v108 = vunpack.c.l.b16 %v22
  %v109 = vunpack.c.h.b16 %v22
  %v110 = vunpack.c.l.b16 %v23
  %v111 = vunpack.c.h.b16 %v23
  %v112 = vunpack.c.l.b16 %v24
  %v113 = vunpack.c.h.b16 %v24
  %v114 = vunpack.c.l.b16 %v25
  %v115 = vunpack.c.h.b16 %v25
  %v116 = vunpack.c.l.b16 %v26
  %v117 = vunpack.c.h.b16 %v26
  %v118 = vunpack.c.l.b16 %v27
  %v119 = vunpack.c.h.b16 %v27
  %v120 = vunpack.c.l.b16 %v28
  %v121 = vunpack.c.h.b16 %v28
  %v122 = vunpack.c.l.b16 %v29
  %v123 = vunpack.c.h.b16 %v29
  %v124 = vunpack.c.l.b16 %v30
  %v125 = vunpack.c.h.b16 %v30
  %v126 = vunpack.c.l.b16 %v55
  %v127 = vunpack.c.h.b16 %v55
  %v128 = vunpack.c.l.b16 %v56
  %v129 = vunpack.c.h.b16 %v56
  %v130 = vpack.c.b16 %v100, %v98
  %v131 = vpack.c.b16 %v101, %v99
  %v132 = vpack.c.b16 %v104, %v102
  %v133 = vpack.c.b16 %v105, %v103
  %v134 = vpack.c.b16 %v108, %v106
  %v135 = vpack.c.b16 %v109, %v107
  %v136 = vpack.c.b16 %v112, %v110
  %v137 = vpack.c.b16 %v113, %v111
  %v138 = vpack.c.b16 %v116, %v114
  %v139 = vpack.c.b16 %v117, %v115
  %v140 = vpack.c.b16 %v120, %v118
  %v141 = vpack.c.b16 %v121, %v119
  %v142 = vpack.c.b16 %v124, %v122
  %v143 = vpack.c.b16 %v125, %v123
  %v144 = vpack.c.b16 %v128, %v126
  %v145 = vpack.c.b16 %v129, %v127
  %v178 = vunpack.c.l.b16 %v58
  %v179 = vunpack.c.l.b16 %v59
  %v180 = vunpack.c.l.b16 %v60
  %v181 = vunpack.c.l.b16 %v61
  %v182 = vunpack.c.l.b16 %v62
  %v183 = vunpack.c.l.b16 %v63
  %v184 = vunpack.c.l.b16 %v64
  %v185 = vunpack.c.l.b16 %v65
  %v186 = vunpack.c.l.b16 %v66
  %v187 = vunpack.c.l.b16 %v67
  %v188 = vunpack.c.l.b16 %v68
  %v189 = vunpack.c.l.b16 %v69
  %v190 = vunpack.c.l.b16 %v70
  %v191 = vunpack.c.l.b16 %v71
  %v192 = vunpack.c.l.b16 %v72
  %v193 = vunpack.c.l.b16 %v73
  %v194 = vunpack.c.l.b16 %v74
  %v195 = vunpack.c.l.b16 %v75
  %v196 = vunpack.c.l.b16 %v76
  %v197 = vunpack.c.l.b16 %v77
  %v198 = vunpack.c.l.b16 %v78
  %v199 = vunpack.c.l.b16 %v79
  %v200 = vunpack.c.l.b16 %v80
  %v201 = vunpack.c.l.b16 %v81
  %v202 = vpack.c.b16 %v179, %v178
  %v203 = vpack.c.b16 %v181, %v180
  %v204 = vpack.c.b16 %v183, %v182
  %v205 = vpack.c.b16 %v185, %v184
  %v206 = vpack.c.b16 %v187, %v186
  %v207 = vpack.c.b16 %v189, %v188
  %v208 = vpack.c.b16 %v191, %v190
  %v209 = vpack.c.b16 %v193, %v192
  %v210 = vpack.c.b16 %v195, %v194
  %v211 = vpack.c.b16 %v197, %v196
  %v212 = vpack.c.b16 %v199, %v198
  %v213 = vpack.c.b16 %v201, %v200
  %vm226 = vcmask 523264
  %v228 = vsel %vm226, %v131, 0
  %v231 = vsel %vm226, %v133, 0
  %v234 = vsel %vm226, %v135, 0
  %v237 = vsel %vm226, %v137, 0
  %v240 = vsel %vm226, %v139, 0
  %v243 = vsel %vm226, %v141, 0
  %v246 = vsel %vm226, %v143, 0
  %v249 = vsel %vm226, %v145, 0
  %251 = vmatprep.subr.bf16.mxu0 0
  %252 = vmatpush1.bf16.msra.mxu0 %v209
  %253 = vmatprep.subr.bf16.mxu0 0
  %254 = vmatpush1.bf16.msra.mxu0 %v208
  %255 = vmatprep.subr.bf16.mxu0 0
  %256 = vmatpush1.bf16.msra.mxu0 %v207
  %257 = vmatprep.subr.bf16.mxu0 0
  %258 = vmatpush1.bf16.msra.mxu0 %v206
  %259 = vmatprep.subr.bf16.mxu0 0
  %260 = vmatpush1.bf16.msra.mxu0 %v205
  %261 = vmatprep.subr.bf16.mxu0 0
  %262 = vmatpush1.bf16.msra.mxu0 %v204
  %263 = vmatprep.subr.bf16.mxu0 0
  %264 = vmatpush1.bf16.msra.mxu0 %v203
  %265 = vmatprep.subr.bf16.mxu0 0
  %266 = vmatpush1.bf16.msra.mxu0 %v202
  %267 = vmatprep.subr.bf16.mxu0 0
  %268 = vmatpush2.bf16.msra.mxu0 0
  %269 = vmatprep.subr.bf16.mxu0 0
  %270 = vmatpush2.bf16.msra.mxu0 0
  %271 = vmatprep.subr.bf16.mxu0 0
  %272 = vmatpush2.bf16.msra.mxu0 0
  %273 = vmatprep.subr.bf16.mxu0 0
  %274 = vmatpush2.bf16.msra.mxu0 0
  %275 = vmatprep.subr.bf16.mxu0 0
  %276 = vmatpush2.bf16.msra.mxu0 %v213
  %277 = vmatprep.subr.bf16.mxu0 0
  %278 = vmatpush2.bf16.msra.mxu0 %v212
  %279 = vmatprep.subr.bf16.mxu0 0
  %280 = vmatpush2.bf16.msra.mxu0 %v211
  %281 = vmatprep.subr.bf16.mxu0 0
  %282 = vmatpush2.bf16.msra.mxu0 %v210
  %283 = vmatprep.mubr.bf16.mxu0 %v228
  %284 = vmatmul.mubr.bf16.gmra.mxu0 %v130
  %v285 = vpop.f32.mrf.mxu0
  %v286 = vadd.f32 0.0, %v285
  %v287 = vpop.f32.mrf.mxu0
  %v288 = vpop.f32.mrf.mxu0
  %v289 = vadd.f32 0.0, %v288
  %v290 = vpop.f32.mrf.mxu0
  %291 = vmatprep.mubr.bf16.mxu0 %v231
  %292 = vmatmul.mubr.bf16.gmra.mxu0 %v132
  %v293 = vpop.f32.mrf.mxu0
  %v294 = vadd.f32 0.0, %v293
  %v295 = vpop.f32.mrf.mxu0
  %v296 = vpop.f32.mrf.mxu0
  %v297 = vadd.f32 0.0, %v296
  %v298 = vpop.f32.mrf.mxu0
  %299 = vmatprep.mubr.bf16.mxu0 %v234
  %300 = vmatmul.mubr.bf16.gmra.mxu0 %v134
  %v301 = vpop.f32.mrf.mxu0
  %v302 = vadd.f32 0.0, %v301
  %v303 = vpop.f32.mrf.mxu0
  %v304 = vpop.f32.mrf.mxu0
  %v305 = vadd.f32 0.0, %v304
  %v306 = vpop.f32.mrf.mxu0
  %307 = vmatprep.mubr.bf16.mxu0 %v237
  %308 = vmatmul.mubr.bf16.gmra.mxu0 %v136
  %v309 = vpop.f32.mrf.mxu0
  %v310 = vadd.f32 0.0, %v309
  %v311 = vpop.f32.mrf.mxu0
  %v312 = vpop.f32.mrf.mxu0
  %v313 = vadd.f32 0.0, %v312
  %v314 = vpop.f32.mrf.mxu0
  %315 = vmatprep.mubr.bf16.mxu0 %v240
  %316 = vmatmul.mubr.bf16.gmra.mxu0 %v138
  %v317 = vpop.f32.mrf.mxu0
  %v318 = vadd.f32 0.0, %v317
  %v319 = vpop.f32.mrf.mxu0
  %v320 = vpop.f32.mrf.mxu0
  %v321 = vadd.f32 0.0, %v320
  %v322 = vpop.f32.mrf.mxu0
  %323 = vmatprep.mubr.bf16.mxu0 %v243
  %324 = vmatmul.mubr.bf16.gmra.mxu0 %v140
  %v325 = vpop.f32.mrf.mxu0
  %v326 = vadd.f32 0.0, %v325
  %v327 = vpop.f32.mrf.mxu0
  %v328 = vpop.f32.mrf.mxu0
  %v329 = vadd.f32 0.0, %v328
  %v330 = vpop.f32.mrf.mxu0
  %331 = vmatprep.mubr.bf16.mxu0 %v246
  %332 = vmatmul.mubr.bf16.gmra.mxu0 %v142
  %v333 = vpop.f32.mrf.mxu0
  %v334 = vadd.f32 0.0, %v333
  %v335 = vpop.f32.mrf.mxu0
  %v336 = vpop.f32.mrf.mxu0
  %v337 = vadd.f32 0.0, %v336
  %v338 = vpop.f32.mrf.mxu0
  %339 = vmatprep.mubr.bf16.mxu0 %v249
  %340 = vmatmul.mubr.bf16.gmra.mxu0 %v144
  %v341 = vpop.f32.mrf.mxu0
  %v342 = vadd.f32 0.0, %v341
  %v343 = vpop.f32.mrf.mxu0
  %v344 = vpop.f32.mrf.mxu0
  %v345 = vadd.f32 0.0, %v344
  %v346 = vpop.f32.mrf.mxu0
  %347 = vdwg.mxu0
  %v350 = vunpack.c.l.b16 %v15
  %v351 = vunpack.c.h.b16 %v15
  %v352 = vunpack.c.l.b16 %v16
  %v353 = vunpack.c.h.b16 %v16
  %v354 = vpack.c.b16 %v352, %v350
  %v355 = vpack.c.b16 %v353, %v351
  %v381 = vunpack.c.l.b16 %v31
  %v382 = vunpack.c.l.b16 %v32
  %v383 = vunpack.c.l.b16 %v33
  %v384 = vunpack.c.l.b16 %v34
  %v385 = vunpack.c.l.b16 %v35
  %v386 = vunpack.c.l.b16 %v36
  %v387 = vunpack.c.l.b16 %v37
  %v388 = vunpack.c.l.b16 %v38
  %v389 = vunpack.c.l.b16 %v39
  %v390 = vunpack.c.l.b16 %v40
  %v391 = vunpack.c.l.b16 %v41
  %v392 = vunpack.c.l.b16 %v42
  %v393 = vunpack.c.l.b16 %v43
  %v394 = vunpack.c.l.b16 %v44
  %v395 = vunpack.c.l.b16 %v45
  %v396 = vunpack.c.l.b16 %v46
  %v397 = vunpack.c.l.b16 %v47
  %v398 = vunpack.c.l.b16 %v48
  %v399 = vunpack.c.l.b16 %v49
  %v400 = vunpack.c.l.b16 %v50
  %v401 = vunpack.c.l.b16 %v51
  %v402 = vunpack.c.l.b16 %v52
  %v403 = vunpack.c.l.b16 %v53
  %v404 = vunpack.c.l.b16 %v54
  %v405 = vpack.c.b16 %v382, %v381
  %v406 = vpack.c.b16 %v384, %v383
  %v407 = vpack.c.b16 %v386, %v385
  %v408 = vpack.c.b16 %v388, %v387
  %v409 = vpack.c.b16 %v390, %v389
  %v410 = vpack.c.b16 %v392, %v391
  %v411 = vpack.c.b16 %v394, %v393
  %v412 = vpack.c.b16 %v396, %v395
  %v413 = vpack.c.b16 %v398, %v397
  %v414 = vpack.c.b16 %v400, %v399
  %v415 = vpack.c.b16 %v402, %v401
  %v416 = vpack.c.b16 %v404, %v403
  %v430 = vsel %vm226, %v355, 0
  %432 = vmatprep.subr.bf16.mxu0 0
  %433 = vmatpush1.bf16.msra.mxu0 %v412
  %434 = vmatprep.subr.bf16.mxu0 0
  %435 = vmatpush1.bf16.msra.mxu0 %v411
  %436 = vmatprep.subr.bf16.mxu0 0
  %437 = vmatpush1.bf16.msra.mxu0 %v410
  %438 = vmatprep.subr.bf16.mxu0 0
  %439 = vmatpush1.bf16.msra.mxu0 %v409
  %440 = vmatprep.subr.bf16.mxu0 0
  %441 = vmatpush1.bf16.msra.mxu0 %v408
  %442 = vmatprep.subr.bf16.mxu0 0
  %443 = vmatpush1.bf16.msra.mxu0 %v407
  %444 = vmatprep.subr.bf16.mxu0 0
  %445 = vmatpush1.bf16.msra.mxu0 %v406
  %446 = vmatprep.subr.bf16.mxu0 0
  %447 = vmatpush1.bf16.msra.mxu0 %v405
  %448 = vmatprep.subr.bf16.mxu0 0
  %449 = vmatpush2.bf16.msra.mxu0 0
  %450 = vmatprep.subr.bf16.mxu0 0
  %451 = vmatpush2.bf16.msra.mxu0 0
  %452 = vmatprep.subr.bf16.mxu0 0
  %453 = vmatpush2.bf16.msra.mxu0 0
  %454 = vmatprep.subr.bf16.mxu0 0
  %455 = vmatpush2.bf16.msra.mxu0 0
  %456 = vmatprep.subr.bf16.mxu0 0
  %457 = vmatpush2.bf16.msra.mxu0 %v416
  %458 = vmatprep.subr.bf16.mxu0 0
  %459 = vmatpush2.bf16.msra.mxu0 %v415
  %460 = vmatprep.subr.bf16.mxu0 0
  %461 = vmatpush2.bf16.msra.mxu0 %v414
  %462 = vmatprep.subr.bf16.mxu0 0
  %463 = vmatpush2.bf16.msra.mxu0 %v413
  %464 = vmatprep.mubr.bf16.mxu0 %v430
  %465 = vmatmul.mubr.bf16.gmra.mxu0 %v354
  %v466 = vpop.f32.mrf.mxu0
  %v467 = vadd.f32 %v286, %v466
  %v468 = vpop.f32.mrf.mxu0
  %v469 = vpop.f32.mrf.mxu0
  %v470 = vadd.f32 %v289, %v469
  %v471 = vpop.f32.mrf.mxu0
  %472 = vmatprep.mubr.bf16.mxu0 %v228
  %473 = vmatmul.mubr.bf16.gmra.mxu0 %v130
  %v474 = vpop.f32.mrf.mxu0
  %v475 = vadd.f32 %v294, %v474
  %v476 = vpop.f32.mrf.mxu0
  %v477 = vpop.f32.mrf.mxu0
  %v478 = vadd.f32 %v297, %v477
  %v479 = vpop.f32.mrf.mxu0
  %480 = vmatprep.mubr.bf16.mxu0 %v231
  %481 = vmatmul.mubr.bf16.gmra.mxu0 %v132
  %v482 = vpop.f32.mrf.mxu0
  %v483 = vadd.f32 %v302, %v482
  %v484 = vpop.f32.mrf.mxu0
  %v485 = vpop.f32.mrf.mxu0
  %v486 = vadd.f32 %v305, %v485
  %v487 = vpop.f32.mrf.mxu0
  %488 = vmatprep.mubr.bf16.mxu0 %v234
  %489 = vmatmul.mubr.bf16.gmra.mxu0 %v134
  %v490 = vpop.f32.mrf.mxu0
  %v491 = vadd.f32 %v310, %v490
  %v492 = vpop.f32.mrf.mxu0
  %v493 = vpop.f32.mrf.mxu0
  %v494 = vadd.f32 %v313, %v493
  %v495 = vpop.f32.mrf.mxu0
  %496 = vmatprep.mubr.bf16.mxu0 %v237
  %497 = vmatmul.mubr.bf16.gmra.mxu0 %v136
  %v498 = vpop.f32.mrf.mxu0
  %v499 = vadd.f32 %v318, %v498
  %v500 = vpop.f32.mrf.mxu0
  %v501 = vpop.f32.mrf.mxu0
  %v502 = vadd.f32 %v321, %v501
  %v503 = vpop.f32.mrf.mxu0
  %504 = vmatprep.mubr.bf16.mxu0 %v240
  %505 = vmatmul.mubr.bf16.gmra.mxu0 %v138
  %v506 = vpop.f32.mrf.mxu0
  %v507 = vadd.f32 %v326, %v506
  %v508 = vpop.f32.mrf.mxu0
  %v509 = vpop.f32.mrf.mxu0
  %v510 = vadd.f32 %v329, %v509
  %v511 = vpop.f32.mrf.mxu0
  %512 = vmatprep.mubr.bf16.mxu0 %v243
  %513 = vmatmul.mubr.bf16.gmra.mxu0 %v140
  %v514 = vpop.f32.mrf.mxu0
  %v515 = vadd.f32 %v334, %v514
  %v516 = vpop.f32.mrf.mxu0
  %v517 = vpop.f32.mrf.mxu0
  %v518 = vadd.f32 %v337, %v517
  %v519 = vpop.f32.mrf.mxu0
  %520 = vmatprep.mubr.bf16.mxu0 %v246
  %521 = vmatmul.mubr.bf16.gmra.mxu0 %v142
  %v522 = vpop.f32.mrf.mxu0
  %v523 = vadd.f32 %v342, %v522
  %v524 = vpop.f32.mrf.mxu0
  %v525 = vpop.f32.mrf.mxu0
  %v526 = vadd.f32 %v345, %v525
  %v527 = vpop.f32.mrf.mxu0
  %528 = vdwg.mxu0
  %v529 = vld [vmem:[%s0 + $0x20] sm:$0xff]
  %v530 = vld [vmem:[%s0 + $0x28] sm:$0xff]
  %v531 = vld [vmem:[%s0 + $0x30] sm:$0xff]
  %v532 = vld [vmem:[%s0 + $0x38] sm:$0xff]
  %v533 = vld [vmem:[%s0 + $0x40] sm:$0xff]
  %v534 = vld [vmem:[%s0 + $0x48] sm:$0xff]
  %v535 = vld [vmem:[%s0 + $0x50] sm:$0xff]
  %v536 = vld [vmem:[%s0 + $0x58] sm:$0xff]
  %v537 = vld [vmem:[%s0 + $0x60] sm:$0xff]
  %v538 = vld [vmem:[%s0 + $0x68] sm:$0xff]
  %v539 = vld [vmem:[%s0 + $0x70] sm:$0xff]
  %v540 = vld [vmem:[%s0 + $0x78] sm:$0xff]
  %v541 = vld [vmem:[%s0 + $0x80] sm:$0xff]
  %v542 = vld [vmem:[%s0 + $0x88] sm:$0xff]
  %v543 = vld [vmem:[%s0 + $0x90] sm:$0xff]
  %v544 = vld [vmem:[%s0 + $0x98] sm:$0xff]
  %s545 = scalar_lea.vmem %s1, 192
  %v546 = vld [vmem:[%s545] sm:$0xf]
  %v547 = vld [vmem:[%s545 + $0x4] sm:$0xf]
  %v548 = vld [vmem:[%s545 + $0x8] sm:$0xf]
  %v549 = vld [vmem:[%s545 + $0xc] sm:$0xf]
  %v550 = vld [vmem:[%s545 + $0x10] sm:$0xf]
  %v551 = vld [vmem:[%s545 + $0x14] sm:$0xf]
  %v552 = vld [vmem:[%s545 + $0x18] sm:$0xf]
  %v553 = vld [vmem:[%s545 + $0x1c] sm:$0xf]
  %v554 = vld [vmem:[%s545 + $0x20] sm:$0xf]
  %v555 = vld [vmem:[%s545 + $0x24] sm:$0xf]
  %v556 = vld [vmem:[%s545 + $0x28] sm:$0xf]
  %v557 = vld [vmem:[%s545 + $0x2c] sm:$0xf]
  %v558 = vld [vmem:[%s545 + $0x30] sm:$0xf]
  %v559 = vld [vmem:[%s545 + $0x34] sm:$0xf]
  %v560 = vld [vmem:[%s545 + $0x38] sm:$0xf]
  %v561 = vld [vmem:[%s545 + $0x3c] sm:$0xf]
  %v562 = vld [vmem:[%s545 + $0x40] sm:$0xf]
  %v563 = vld [vmem:[%s545 + $0x44] sm:$0xf]
  %v564 = vld [vmem:[%s545 + $0x48] sm:$0xf]
  %v565 = vld [vmem:[%s545 + $0x4c] sm:$0xf]
  %v566 = vld [vmem:[%s545 + $0x50] sm:$0xf]
  %v567 = vld [vmem:[%s545 + $0x54] sm:$0xf]
  %v568 = vld [vmem:[%s545 + $0x58] sm:$0xf]
  %v569 = vld [vmem:[%s545 + $0x5c] sm:$0xf]
  %v586 = vunpack.c.l.b16 %v529
  %v587 = vunpack.c.h.b16 %v529
  %v588 = vunpack.c.l.b16 %v530
  %v589 = vunpack.c.h.b16 %v530
  %v590 = vunpack.c.l.b16 %v531
  %v591 = vunpack.c.h.b16 %v531
  %v592 = vunpack.c.l.b16 %v532
  %v593 = vunpack.c.h.b16 %v532
  %v594 = vunpack.c.l.b16 %v533
  %v595 = vunpack.c.h.b16 %v533
  %v596 = vunpack.c.l.b16 %v534
  %v597 = vunpack.c.h.b16 %v534
  %v598 = vunpack.c.l.b16 %v535
  %v599 = vunpack.c.h.b16 %v535
  %v600 = vunpack.c.l.b16 %v536
  %v601 = vunpack.c.h.b16 %v536
  %v602 = vunpack.c.l.b16 %v537
  %v603 = vunpack.c.h.b16 %v537
  %v604 = vunpack.c.l.b16 %v538
  %v605 = vunpack.c.h.b16 %v538
  %v606 = vunpack.c.l.b16 %v539
  %v607 = vunpack.c.h.b16 %v539
  %v608 = vunpack.c.l.b16 %v540
  %v609 = vunpack.c.h.b16 %v540
  %v610 = vunpack.c.l.b16 %v541
  %v611 = vunpack.c.h.b16 %v541
  %v612 = vunpack.c.l.b16 %v542
  %v613 = vunpack.c.h.b16 %v542
  %v614 = vunpack.c.l.b16 %v543
  %v615 = vunpack.c.h.b16 %v543
  %v616 = vunpack.c.l.b16 %v544
  %v617 = vunpack.c.h.b16 %v544
  %v618 = vpack.c.b16 %v588, %v586
  %v619 = vpack.c.b16 %v589, %v587
  %v620 = vpack.c.b16 %v592, %v590
  %v621 = vpack.c.b16 %v593, %v591
  %v622 = vpack.c.b16 %v596, %v594
  %v623 = vpack.c.b16 %v597, %v595
  %v624 = vpack.c.b16 %v600, %v598
  %v625 = vpack.c.b16 %v601, %v599
  %v626 = vpack.c.b16 %v604, %v602
  %v627 = vpack.c.b16 %v605, %v603
  %v628 = vpack.c.b16 %v608, %v606
  %v629 = vpack.c.b16 %v609, %v607
  %v630 = vpack.c.b16 %v612, %v610
  %v631 = vpack.c.b16 %v613, %v611
  %v632 = vpack.c.b16 %v616, %v614
  %v633 = vpack.c.b16 %v617, %v615
  %v666 = vunpack.c.l.b16 %v546
  %v667 = vunpack.c.l.b16 %v547
  %v668 = vunpack.c.l.b16 %v548
  %v669 = vunpack.c.l.b16 %v549
  %v670 = vunpack.c.l.b16 %v550
  %v671 = vunpack.c.l.b16 %v551
  %v672 = vunpack.c.l.b16 %v552
  %v673 = vunpack.c.l.b16 %v553
  %v674 = vunpack.c.l.b16 %v554
  %v675 = vunpack.c.l.b16 %v555
  %v676 = vunpack.c.l.b16 %v556
  %v677 = vunpack.c.l.b16 %v557
  %v678 = vunpack.c.l.b16 %v558
  %v679 = vunpack.c.l.b16 %v559
  %v680 = vunpack.c.l.b16 %v560
  %v681 = vunpack.c.l.b16 %v561
  %v682 = vunpack.c.l.b16 %v562
  %v683 = vunpack.c.l.b16 %v563
  %v684 = vunpack.c.l.b16 %v564
  %v685 = vunpack.c.l.b16 %v565
  %v686 = vunpack.c.l.b16 %v566
  %v687 = vunpack.c.l.b16 %v567
  %v688 = vunpack.c.l.b16 %v568
  %v689 = vunpack.c.l.b16 %v569
  %v690 = vpack.c.b16 %v667, %v666
  %v691 = vpack.c.b16 %v669, %v668
  %v692 = vpack.c.b16 %v671, %v670
  %v693 = vpack.c.b16 %v673, %v672
  %v694 = vpack.c.b16 %v675, %v674
  %v695 = vpack.c.b16 %v677, %v676
  %v696 = vpack.c.b16 %v679, %v678
  %v697 = vpack.c.b16 %v681, %v680
  %v698 = vpack.c.b16 %v683, %v682
  %v699 = vpack.c.b16 %v685, %v684
  %v700 = vpack.c.b16 %v687, %v686
  %v701 = vpack.c.b16 %v689, %v688
  %v715 = vsel %vm226, %v619, 0
  %v718 = vsel %vm226, %v621, 0
  %v721 = vsel %vm226, %v623, 0
  %v724 = vsel %vm226, %v625, 0
  %v727 = vsel %vm226, %v627, 0
  %v730 = vsel %vm226, %v629, 0
  %v733 = vsel %vm226, %v631, 0
  %v736 = vsel %vm226, %v633, 0
  %738 = vmatprep.subr.bf16.mxu0 0
  %739 = vmatpush1.bf16.msra.mxu0 %v697
  %740 = vmatprep.subr.bf16.mxu0 0
  %741 = vmatpush1.bf16.msra.mxu0 %v696
  %742 = vmatprep.subr.bf16.mxu0 0
  %743 = vmatpush1.bf16.msra.mxu0 %v695
  %744 = vmatprep.subr.bf16.mxu0 0
  %745 = vmatpush1.bf16.msra.mxu0 %v694
  %746 = vmatprep.subr.bf16.mxu0 0
  %747 = vmatpush1.bf16.msra.mxu0 %v693
  %748 = vmatprep.subr.bf16.mxu0 0
  %749 = vmatpush1.bf16.msra.mxu0 %v692
  %750 = vmatprep.subr.bf16.mxu0 0
  %751 = vmatpush1.bf16.msra.mxu0 %v691
  %752 = vmatprep.subr.bf16.mxu0 0
  %753 = vmatpush1.bf16.msra.mxu0 %v690
  %754 = vmatprep.subr.bf16.mxu0 0
  %755 = vmatpush2.bf16.msra.mxu0 0
  %756 = vmatprep.subr.bf16.mxu0 0
  %757 = vmatpush2.bf16.msra.mxu0 0
  %758 = vmatprep.subr.bf16.mxu0 0
  %759 = vmatpush2.bf16.msra.mxu0 0
  %760 = vmatprep.subr.bf16.mxu0 0
  %761 = vmatpush2.bf16.msra.mxu0 0
  %762 = vmatprep.subr.bf16.mxu0 0
  %763 = vmatpush2.bf16.msra.mxu0 %v701
  %764 = vmatprep.subr.bf16.mxu0 0
  %765 = vmatpush2.bf16.msra.mxu0 %v700
  %766 = vmatprep.subr.bf16.mxu0 0
  %767 = vmatpush2.bf16.msra.mxu0 %v699
  %768 = vmatprep.subr.bf16.mxu0 0
  %769 = vmatpush2.bf16.msra.mxu0 %v698
  %770 = vmatprep.mubr.bf16.mxu0 %v715
  %771 = vmatmul.mubr.bf16.gmra.mxu0 %v618
  %v772 = vpop.f32.mrf.mxu0
  %v773 = vadd.f32 0.0, %v772
  %v774 = vpop.f32.mrf.mxu0
  %v775 = vpop.f32.mrf.mxu0
  %v776 = vadd.f32 0.0, %v775
  %v777 = vpop.f32.mrf.mxu0
  %778 = vmatprep.mubr.bf16.mxu0 %v718
  %779 = vmatmul.mubr.bf16.gmra.mxu0 %v620
  %v780 = vpop.f32.mrf.mxu0
  %v781 = vadd.f32 0.0, %v780
  %v782 = vpop.f32.mrf.mxu0
  %v783 = vpop.f32.mrf.mxu0
  %v784 = vadd.f32 0.0, %v783
  %v785 = vpop.f32.mrf.mxu0
  %786 = vmatprep.mubr.bf16.mxu0 %v721
  %787 = vmatmul.mubr.bf16.gmra.mxu0 %v622
  %v788 = vpop.f32.mrf.mxu0
  %v789 = vadd.f32 0.0, %v788
  %v790 = vpop.f32.mrf.mxu0
  %v791 = vpop.f32.mrf.mxu0
  %v792 = vadd.f32 0.0, %v791
  %v793 = vpop.f32.mrf.mxu0
  %794 = vmatprep.mubr.bf16.mxu0 %v724
  %795 = vmatmul.mubr.bf16.gmra.mxu0 %v624
  %v796 = vpop.f32.mrf.mxu0
  %v797 = vadd.f32 0.0, %v796
  %v798 = vpop.f32.mrf.mxu0
  %v799 = vpop.f32.mrf.mxu0
  %v800 = vadd.f32 0.0, %v799
  %v801 = vpop.f32.mrf.mxu0
  %802 = vmatprep.mubr.bf16.mxu0 %v727
  %803 = vmatmul.mubr.bf16.gmra.mxu0 %v626
  %v804 = vpop.f32.mrf.mxu0
  %v805 = vadd.f32 0.0, %v804
  %v806 = vpop.f32.mrf.mxu0
  %v807 = vpop.f32.mrf.mxu0
  %v808 = vadd.f32 0.0, %v807
  %v809 = vpop.f32.mrf.mxu0
  %810 = vmatprep.mubr.bf16.mxu0 %v730
  %811 = vmatmul.mubr.bf16.gmra.mxu0 %v628
  %v812 = vpop.f32.mrf.mxu0
  %v813 = vadd.f32 0.0, %v812
  %v814 = vpop.f32.mrf.mxu0
  %v815 = vpop.f32.mrf.mxu0
  %v816 = vadd.f32 0.0, %v815
  %v817 = vpop.f32.mrf.mxu0
  %818 = vmatprep.mubr.bf16.mxu0 %v733
  %819 = vmatmul.mubr.bf16.gmra.mxu0 %v630
  %v820 = vpop.f32.mrf.mxu0
  %v821 = vadd.f32 0.0, %v820
  %v822 = vpop.f32.mrf.mxu0
  %v823 = vpop.f32.mrf.mxu0
  %v824 = vadd.f32 0.0, %v823
  %v825 = vpop.f32.mrf.mxu0
  %826 = vmatprep.mubr.bf16.mxu0 %v736
  %827 = vmatmul.mubr.bf16.gmra.mxu0 %v632
  %v828 = vpop.f32.mrf.mxu0
  %v829 = vadd.f32 0.0, %v828
  %v830 = vpop.f32.mrf.mxu0
  %v831 = vpop.f32.mrf.mxu0
  %v832 = vadd.f32 0.0, %v831
  %v833 = vpop.f32.mrf.mxu0
  %834 = vdwg.mxu0
  %v835 = vadd.f32 %v467, %v773
  %v836 = vadd.f32 %v470, %v776
  %v837 = vadd.f32 %v475, %v781
  %v838 = vadd.f32 %v478, %v784
  %v839 = vadd.f32 %v483, %v789
  %v840 = vadd.f32 %v486, %v792
  %v841 = vadd.f32 %v491, %v797
  %v842 = vadd.f32 %v494, %v800
  %v843 = vadd.f32 %v499, %v805
  %v844 = vadd.f32 %v502, %v808
  %v845 = vadd.f32 %v507, %v813
  %v846 = vadd.f32 %v510, %v816
  %v847 = vadd.f32 %v515, %v821
  %v848 = vadd.f32 %v518, %v824
  %v849 = vadd.f32 %v523, %v829
  %v850 = vadd.f32 %v526, %v832
  %v851 = vld [vmem:[%s2] sm:$0x1]
  %v853 = vlaneseq
  %v854 = vshrl.u32 %v853, 7
  %v855 = vsub.s32 0, %v854
  %v856 = vrot.slane %v851, %v855
  %v858 = vadd.f32 %v835, %v856
  %v859 = vadd.f32 %v836, %v856
  %v860 = vadd.f32 %v837, %v856
  %v861 = vadd.f32 %v838, %v856
  %v862 = vadd.f32 %v839, %v856
  %v863 = vadd.f32 %v840, %v856
  %v864 = vadd.f32 %v841, %v856
  %v865 = vadd.f32 %v842, %v856
  %v866 = vadd.f32 %v843, %v856
  %v867 = vadd.f32 %v844, %v856
  %v868 = vadd.f32 %v845, %v856
  %v869 = vadd.f32 %v846, %v856
  %v870 = vadd.f32 %v847, %v856
  %v871 = vadd.f32 %v848, %v856
  %v872 = vadd.f32 %v849, %v856
  %v873 = vadd.f32 %v850, %v856
  %v874 = vxor.u32 %v858, 2147483648
  %v875 = vxor.u32 %v859, 2147483648
  %v876 = vxor.u32 %v860, 2147483648
  %v877 = vxor.u32 %v861, 2147483648
  %v878 = vxor.u32 %v862, 2147483648
  %v879 = vxor.u32 %v863, 2147483648
  %v880 = vxor.u32 %v864, 2147483648
  %v881 = vxor.u32 %v865, 2147483648
  %v882 = vxor.u32 %v866, 2147483648
  %v883 = vxor.u32 %v867, 2147483648
  %v884 = vxor.u32 %v868, 2147483648
  %v885 = vxor.u32 %v869, 2147483648
  %v886 = vxor.u32 %v870, 2147483648
  %v887 = vxor.u32 %v871, 2147483648
  %v888 = vxor.u32 %v872, 2147483648
  %v889 = vxor.u32 %v873, 2147483648
  %v890 = vmul.f32 %v874, 1.442695
  %v891 = vpow.pop %v890
  %v892 = vmul.f32 %v875, 1.442695
  %v893 = vpow.pop %v892
  %v894 = vmul.f32 %v876, 1.442695
  %v895 = vpow.pop %v894
  %v896 = vmul.f32 %v877, 1.442695
  %v897 = vpow.pop %v896
  %v898 = vmul.f32 %v878, 1.442695
  %v899 = vpow.pop %v898
  %v900 = vmul.f32 %v879, 1.442695
  %v901 = vpow.pop %v900
  %v902 = vmul.f32 %v880, 1.442695
  %v903 = vpow.pop %v902
  %v904 = vmul.f32 %v881, 1.442695
  %v905 = vpow.pop %v904
  %v906 = vmul.f32 %v882, 1.442695
  %v907 = vpow.pop %v906
  %v908 = vmul.f32 %v883, 1.442695
  %v909 = vpow.pop %v908
  %v910 = vmul.f32 %v884, 1.442695
  %v911 = vpow.pop %v910
  %v912 = vmul.f32 %v885, 1.442695
  %v913 = vpow.pop %v912
  %v914 = vmul.f32 %v886, 1.442695
  %v915 = vpow.pop %v914
  %v916 = vmul.f32 %v887, 1.442695
  %v917 = vpow.pop %v916
  %v918 = vmul.f32 %v888, 1.442695
  %v919 = vpow.pop %v918
  %v920 = vmul.f32 %v889, 1.442695
  %v921 = vpow.pop %v920
  %v922 = vadd.f32 %v891, 1.0
  %v923 = vadd.f32 %v893, 1.0
  %v924 = vadd.f32 %v895, 1.0
  %v925 = vadd.f32 %v897, 1.0
  %v926 = vadd.f32 %v899, 1.0
  %v927 = vadd.f32 %v901, 1.0
  %v928 = vadd.f32 %v903, 1.0
  %v929 = vadd.f32 %v905, 1.0
  %v930 = vadd.f32 %v907, 1.0
  %v931 = vadd.f32 %v909, 1.0
  %v932 = vadd.f32 %v911, 1.0
  %v933 = vadd.f32 %v913, 1.0
  %v934 = vadd.f32 %v915, 1.0
  %v935 = vadd.f32 %v917, 1.0
  %v936 = vadd.f32 %v919, 1.0
  %v937 = vadd.f32 %v921, 1.0
  %v938 = vrcp.pop %v922
  %v939 = vmul.f32 1.0, %v938
  %v940 = vrcp.pop %v923
  %v941 = vmul.f32 1.0, %v940
  %v942 = vrcp.pop %v924
  %v943 = vmul.f32 1.0, %v942
  %v944 = vrcp.pop %v925
  %v945 = vmul.f32 1.0, %v944
  %v946 = vrcp.pop %v926
  %v947 = vmul.f32 1.0, %v946
  %v948 = vrcp.pop %v927
  %v949 = vmul.f32 1.0, %v948
  %v950 = vrcp.pop %v928
  %v951 = vmul.f32 1.0, %v950
  %v952 = vrcp.pop %v929
  %v953 = vmul.f32 1.0, %v952
  %v954 = vrcp.pop %v930
  %v955 = vmul.f32 1.0, %v954
  %v956 = vrcp.pop %v931
  %v957 = vmul.f32 1.0, %v956
  %v958 = vrcp.pop %v932
  %v959 = vmul.f32 1.0, %v958
  %v960 = vrcp.pop %v933
  %v961 = vmul.f32 1.0, %v960
  %v962 = vrcp.pop %v934
  %v963 = vmul.f32 1.0, %v962
  %v964 = vrcp.pop %v935
  %v965 = vmul.f32 1.0, %v964
  %v966 = vrcp.pop %v936
  %v967 = vmul.f32 1.0, %v966
  %v968 = vrcp.pop %v937
  %v969 = vmul.f32 1.0, %v968
  %vm970 = vcmask 97280
  %971 = vst.msk [vmem:[%s3] sm:$0xff] %vm970, %v939
  %972 = vst.msk [vmem:[%s3 + $0x8] sm:$0xff] %vm970, %v941
  %973 = vst.msk [vmem:[%s3 + $0x10] sm:$0xff] %vm970, %v943
  %974 = vst.msk [vmem:[%s3 + $0x18] sm:$0xff] %vm970, %v945
  %975 = vst.msk [vmem:[%s3 + $0x20] sm:$0xff] %vm970, %v947
  %976 = vst.msk [vmem:[%s3 + $0x28] sm:$0xff] %vm970, %v949
  %977 = vst.msk [vmem:[%s3 + $0x30] sm:$0xff] %vm970, %v951
  %978 = vst.msk [vmem:[%s3 + $0x38] sm:$0xff] %vm970, %v953
  %979 = vst.msk [vmem:[%s3 + $0x40] sm:$0xff] %vm970, %v955
  %980 = vst.msk [vmem:[%s3 + $0x48] sm:$0xff] %vm970, %v957
  %981 = vst.msk [vmem:[%s3 + $0x50] sm:$0xff] %vm970, %v959
  %982 = vst.msk [vmem:[%s3 + $0x58] sm:$0xff] %vm970, %v961
  %983 = vst.msk [vmem:[%s3 + $0x60] sm:$0xff] %vm970, %v963
  %984 = vst.msk [vmem:[%s3 + $0x68] sm:$0xff] %vm970, %v965
  %985 = vst.msk [vmem:[%s3 + $0x70] sm:$0xff] %vm970, %v967
  %986 = vst.msk [vmem:[%s3 + $0x78] sm:$0xff] %vm970, %v969
  // Predicated region
  $region14: #{engine_forward.24} parent=0 // pred_check
    _
  $region15: #{engine_forward.24} parent=0 // pred_check_branch
    %988 = sbr.rel (0) target = $region17
  $region16: #{engine_forward.24} parent=0 // pred_region
    _
  $region17: #{engine_forward.24} parent=0 // pred_fallthru
    _
  // Predicated region
  $region18: #{engine_forward.24} parent=0 // pred_check
    _
  $region19: #{engine_forward.24} parent=0 // pred_check_branch
    %990 = sbr.rel (0) target = $region21
  $region20: #{engine_forward.24} parent=0 // pred_region
    _
  $region21: #{engine_forward.24} parent=0 // pred_fallthru
    _

</llo_original>
